<compile_context>
chip_gen: v5e
topology: v5e:2x2
jax: 0.10.0
libtpu: 0.0.40
codegen_flags: <defaults>
</compile_context>

<pallas_src>
import functools

import jax
import jax.numpy as jnp
from jax.experimental import pallas as pl
from jax.experimental.pallas import tpu as pltpu


def discriminator_kernel(
    x_ref,
    w0_ref, b0_ref,
    w1_ref, b1_ref,
    w2_ref, b2_ref,
    w3_ref, b3_ref,
    o_ref,
    *,
    acts_dtype,
):
    # Whole (block_b, 784) batch tile resident in VMEM; each linear layer on the MXU
    # with bf16 inputs and f32 accumulation; bias/activation on the VPU in `acts_dtype`.
    x = x_ref[...].astype(jnp.bfloat16)                                    # f32 -> bf16 in-kernel

    h = jnp.dot(x, w0_ref[...], preferred_element_type=jnp.float32)
    h = h.astype(acts_dtype) + b0_ref[...]
    h = jnp.maximum(h, 0.2 * h)                                            # LeakyReLU(0.2)
    # Dropout(0.3): identity in eval mode.
    h = h.astype(jnp.bfloat16)                                             # (TB, 1024)

    h = jnp.dot(h, w1_ref[...], preferred_element_type=jnp.float32)
    h = h.astype(acts_dtype) + b1_ref[...]
    h = jnp.maximum(h, 0.2 * h)
    h = h.astype(jnp.bfloat16)                                             # (TB, 512)

    h = jnp.dot(h, w2_ref[...], preferred_element_type=jnp.float32)
    h = h.astype(acts_dtype) + b2_ref[...]
    h = jnp.maximum(h, 0.2 * h)
    h = h.astype(jnp.bfloat16)                                             # (TB, 256)

    logit = jnp.dot(h, w3_ref[...], preferred_element_type=jnp.float32) + b3_ref[...]
    o_ref[...] = jax.nn.sigmoid(logit).astype(o_ref.dtype)                 # f32 (TB, 128)


def _supports_bf16_vpu():
    # v5e has no bf16 VPU/EUP -> keep bias/activation math in f32 there.
    try:
        kind = jax.devices()[0].device_kind.lower()
    except Exception:
        return True
    return "v5" not in kind


def _choose_tiling(batch, max_block_b):
    """Adaptive batch tiling: minimal padding, even grid length for v7x megacore."""
    assert max_block_b % 16 == 0
    n_steps = -(-batch // max_block_b)             # ceil
    if n_steps > 1 and n_steps % 2 == 1:
        n_steps += 1                               # even grid -> balanced across 2 TCs (v7x)
    block_b = -(-batch // n_steps)
    block_b = ((block_b + 15) // 16) * 16          # bf16 sublane packing / (8,128) rule
    return block_b, n_steps * block_b, n_steps


def discriminator_forward(x, params, max_block_b=512, acts_bf16=None):
    """Forward pass.  max_block_b=512 is safe on v7x; v5e/v6e may use 512-1024."""
    if acts_bf16 is None:
        acts_bf16 = _supports_bf16_vpu()
    return _discriminator_forward(x, params, max_block_b, bool(acts_bf16))


@functools.partial(jax.jit, static_argnums=(2, 3))
def _discriminator_forward(x, params, max_block_b, acts_bf16):
    (w0, b0), (w1, b1), (w2, b2), (w3, b3) = params
    B, F = x.shape
    assert F == 784

    OUT_PAD = 128                                  # lane-dense output width
    acts_dtype = jnp.bfloat16 if acts_bf16 else jnp.float32

    block_b, Bp, n_steps = _choose_tiling(B, max_block_b)
    grid = (n_steps,)

    # Batch-only pad (at most 15 rows thanks to adaptive block_b); features stay 784.
    x_in = x if Bp == B else jnp.pad(x, ((0, Bp - B), (0, 0)))

    # Weights/biases at the kernel boundary: bf16 for the MXU, acts_dtype for biases.
    # TODO(synk): pre-cast weights once at load time instead of per call.
    w0_b = w0.astype(jnp.bfloat16)
    w1_b = w1.astype(jnp.bfloat16)
    w2_b = w2.astype(jnp.bfloat16)
    w3_p = jnp.pad(w3, ((0, 0), (0, OUT_PAD - w3.shape[1]))).astype(jnp.bfloat16)
    b0_c = b0.astype(acts_dtype)
    b1_c = b1.astype(acts_dtype)
    b2_c = b2.astype(acts_dtype)
    b3_p = jnp.pad(b3, ((0, 0), (0, OUT_PAD - b3.shape[1])))               # f32

    def x_map(i):
        return (i, 0)

    # Constant-index weight/bias blocks: single-buffer them (no re-DMA across steps,
    # and no duplicate allocation).
    def full(a):
        return pl.BlockSpec(a.shape, lambda i: (0, 0), pipeline_mode=pl.Buffered(1))

    out = pl.pallas_call(
        functools.partial(discriminator_kernel, acts_dtype=acts_dtype),
        out_shape=jax.ShapeDtypeStruct((Bp, OUT_PAD), jnp.float32),
        grid_spec=pltpu.PrefetchScalarGridSpec(
            num_scalar_prefetch=0,
            grid=grid,
            in_specs=[
                pl.BlockSpec((block_b, F), x_map),
                full(w0_b), full(b0_c),
                full(w1_b), full(b1_c),
                full(w2_b), full(b2_c),
                full(w3_p), full(b3_p),
            ],
            out_specs=pl.BlockSpec((block_b, OUT_PAD), x_map),
        ),
        compiler_params=pltpu.CompilerParams(
            dimension_semantics=("parallel",),
            vmem_limit_bytes=40 << 20,
        ),
    )(x_in, w0_b, b0_c, w1_b, b1_c, w2_b, b2_c, w3_p, b3_p)

    return out[:B, :1]


def init_params(key):
    """Deterministic init mimicking nn.Linear's U(-1/sqrt(fan_in), 1/sqrt(fan_in))."""
    dims = [(784, 1024), (1024, 512), (512, 256), (256, 1)]
    params = []
    for i, (fan_in, fan_out) in enumerate(dims):
        kw, kb = jax.random.split(jax.random.fold_in(key, i))
        bound = 1.0 / (fan_in ** 0.5)
        w = jax.random.uniform(kw, (fan_in, fan_out), jnp.float32, -bound, bound)
        b = jax.random.uniform(kb, (1, fan_out), jnp.float32, -bound, bound)
        params.append((w, b))
    return params


def reference_forward(x, params):
    h = x
    for i, (w, b) in enumerate(params):
        h = h @ w + b
        if i < 3:
            h = jnp.where(h > 0, h, 0.2 * h)
    return jax.nn.sigmoid(h)


if __name__ == "__main__":
    key = jax.random.PRNGKey(0)
    params = init_params(key)

    # Small MNIST-like flattened batch; B=37 is not a multiple of 16, exercising the
    # adaptive block_b (-> 48) and the minimal batch-only padding path.
    x = jax.random.normal(jax.random.fold_in(key, 100), (37, 784), jnp.float32)

    out = discriminator_forward(x, params)
    out = jax.block_until_ready(out)

    ref = reference_forward(x, params)
    assert out.shape == (37, 1)
    max_err = float(jnp.max(jnp.abs(out - ref)))
    # bf16 MXU inputs vs f32 reference: ~1e-3 typical error on sigmoid outputs.
    assert max_err < 2e-2, f"max abs err {max_err}"
    print("KERNEL_OK")
</pallas_src>

<mosaic_0001>
module attributes {stable_mosaic.version = 11 : i64} {
  func.func @discriminator_kernel(%arg0: i32, %arg1: memref<48x784xf32, #tpu.memory_space<vmem>>, %arg2: memref<784x1024xbf16, #tpu.memory_space<vmem>>, %arg3: memref<1x1024xbf16, #tpu.memory_space<vmem>>, %arg4: memref<1024x512xbf16, #tpu.memory_space<vmem>>, %arg5: memref<1x512xbf16, #tpu.memory_space<vmem>>, %arg6: memref<512x256xbf16, #tpu.memory_space<vmem>>, %arg7: memref<1x256xbf16, #tpu.memory_space<vmem>>, %arg8: memref<256x128xbf16, #tpu.memory_space<vmem>>, %arg9: memref<1x128xf32, #tpu.memory_space<vmem>>, %arg10: memref<48x128xf32, #tpu.memory_space<vmem>>) attributes {dimension_semantics = [#tpu.dimension_semantics<parallel>], iteration_bounds = array<i64: 1>, scalar_prefetch = 0 : i64, scratch_operands = 0 : i64, tpu.core_type = #tpu.core_type<tc>, window_params = [{transform_indices = @transform_0, window_bounds = array<i64: 48, 784>}, {pipeline_mode = #tpu.pipeline_mode<synchronous>, transform_indices = @transform_1, window_bounds = array<i64: 784, 1024>}, {pipeline_mode = #tpu.pipeline_mode<synchronous>, transform_indices = @transform_2, window_bounds = array<i64: 1, 1024>}, {pipeline_mode = #tpu.pipeline_mode<synchronous>, transform_indices = @transform_3, window_bounds = array<i64: 1024, 512>}, {pipeline_mode = #tpu.pipeline_mode<synchronous>, transform_indices = @transform_4, window_bounds = array<i64: 1, 512>}, {pipeline_mode = #tpu.pipeline_mode<synchronous>, transform_indices = @transform_5, window_bounds = array<i64: 512, 256>}, {pipeline_mode = #tpu.pipeline_mode<synchronous>, transform_indices = @transform_6, window_bounds = array<i64: 1, 256>}, {pipeline_mode = #tpu.pipeline_mode<synchronous>, transform_indices = @transform_7, window_bounds = array<i64: 256, 128>}, {pipeline_mode = #tpu.pipeline_mode<synchronous>, transform_indices = @transform_8, window_bounds = array<i64: 1, 128>}, {transform_indices = @transform_9, window_bounds = array<i64: 48, 128>}]} {
    %c0 = arith.constant 0 : index
    %c0_0 = arith.constant 0 : index
    %0 = vector.load %arg1[%c0, %c0_0] : memref<48x784xf32, #tpu.memory_space<vmem>>, vector<48x784xf32>
    %1 = arith.truncf %0 : vector<48x784xf32> to vector<48x784xbf16>
    %c0_1 = arith.constant 0 : index
    %c0_2 = arith.constant 0 : index
    %2 = vector.load %arg2[%c0_1, %c0_2] : memref<784x1024xbf16, #tpu.memory_space<vmem>>, vector<784x1024xbf16>
    %cst = arith.constant dense<0.000000e+00> : vector<48x1024xf32>
    %3 = tpu.matmul %1, %2, %cst {dimension_numbers = #tpu.dot_dimension_numbers<[1], [0], [0], [1], [0, 0, 1, 1], [], []>} : vector<48x784xbf16>, vector<784x1024xbf16>, vector<48x1024xf32> -> vector<48x1024xf32>
    %4 = arith.truncf %3 : vector<48x1024xf32> to vector<48x1024xbf16>
    %c0_3 = arith.constant 0 : index
    %c0_4 = arith.constant 0 : index
    %5 = vector.load %arg3[%c0_3, %c0_4] : memref<1x1024xbf16, #tpu.memory_space<vmem>>, vector<1x1024xbf16>
    %6 = vector.broadcast %5 : vector<1x1024xbf16> to vector<48x1024xbf16>
    %7 = arith.addf %4, %6 : vector<48x1024xbf16>
    %cst_5 = arith.constant 2.001950e-01 : bf16
    %8 = vector.broadcast %cst_5 : bf16 to vector<48x1024xbf16>
    %9 = arith.mulf %8, %7 : vector<48x1024xbf16>
    %10 = arith.maximumf %7, %9 : vector<48x1024xbf16>
    %c0_6 = arith.constant 0 : index
    %c0_7 = arith.constant 0 : index
    %11 = vector.load %arg4[%c0_6, %c0_7] : memref<1024x512xbf16, #tpu.memory_space<vmem>>, vector<1024x512xbf16>
    %cst_8 = arith.constant dense<0.000000e+00> : vector<48x512xf32>
    %12 = tpu.matmul %10, %11, %cst_8 {dimension_numbers = #tpu.dot_dimension_numbers<[1], [0], [0], [1], [0, 0, 1, 1], [], []>} : vector<48x1024xbf16>, vector<1024x512xbf16>, vector<48x512xf32> -> vector<48x512xf32>
    %13 = arith.truncf %12 : vector<48x512xf32> to vector<48x512xbf16>
    %c0_9 = arith.constant 0 : index
    %c0_10 = arith.constant 0 : index
    %14 = vector.load %arg5[%c0_9, %c0_10] : memref<1x512xbf16, #tpu.memory_space<vmem>>, vector<1x512xbf16>
    %15 = vector.broadcast %14 : vector<1x512xbf16> to vector<48x512xbf16>
    %16 = arith.addf %13, %15 : vector<48x512xbf16>
    %cst_11 = arith.constant 2.001950e-01 : bf16
    %17 = vector.broadcast %cst_11 : bf16 to vector<48x512xbf16>
    %18 = arith.mulf %17, %16 : vector<48x512xbf16>
    %19 = arith.maximumf %16, %18 : vector<48x512xbf16>
    %c0_12 = arith.constant 0 : index
    %c0_13 = arith.constant 0 : index
    %20 = vector.load %arg6[%c0_12, %c0_13] : memref<512x256xbf16, #tpu.memory_space<vmem>>, vector<512x256xbf16>
    %cst_14 = arith.constant dense<0.000000e+00> : vector<48x256xf32>
    %21 = tpu.matmul %19, %20, %cst_14 {dimension_numbers = #tpu.dot_dimension_numbers<[1], [0], [0], [1], [0, 0, 1, 1], [], []>} : vector<48x512xbf16>, vector<512x256xbf16>, vector<48x256xf32> -> vector<48x256xf32>
    %22 = arith.truncf %21 : vector<48x256xf32> to vector<48x256xbf16>
    %c0_15 = arith.constant 0 : index
    %c0_16 = arith.constant 0 : index
    %23 = vector.load %arg7[%c0_15, %c0_16] : memref<1x256xbf16, #tpu.memory_space<vmem>>, vector<1x256xbf16>
    %24 = vector.broadcast %23 : vector<1x256xbf16> to vector<48x256xbf16>
    %25 = arith.addf %22, %24 : vector<48x256xbf16>
    %cst_17 = arith.constant 2.001950e-01 : bf16
    %26 = vector.broadcast %cst_17 : bf16 to vector<48x256xbf16>
    %27 = arith.mulf %26, %25 : vector<48x256xbf16>
    %28 = arith.maximumf %25, %27 : vector<48x256xbf16>
    %c0_18 = arith.constant 0 : index
    %c0_19 = arith.constant 0 : index
    %29 = vector.load %arg8[%c0_18, %c0_19] : memref<256x128xbf16, #tpu.memory_space<vmem>>, vector<256x128xbf16>
    %cst_20 = arith.constant dense<0.000000e+00> : vector<48x128xf32>
    %30 = tpu.matmul %28, %29, %cst_20 {dimension_numbers = #tpu.dot_dimension_numbers<[1], [0], [0], [1], [0, 0, 1, 1], [], []>} : vector<48x256xbf16>, vector<256x128xbf16>, vector<48x128xf32> -> vector<48x128xf32>
    %c0_21 = arith.constant 0 : index
    %c0_22 = arith.constant 0 : index
    %31 = vector.load %arg9[%c0_21, %c0_22] : memref<1x128xf32, #tpu.memory_space<vmem>>, vector<1x128xf32>
    %32 = vector.broadcast %31 : vector<1x128xf32> to vector<48x128xf32>
    %33 = arith.addf %30, %32 : vector<48x128xf32>
    %34 = arith.negf %33 : vector<48x128xf32>
    %35 = math.exp %34 : vector<48x128xf32>
    %cst_23 = arith.constant 1.000000e+00 : f32
    %36 = vector.broadcast %cst_23 : f32 to vector<48x128xf32>
    %37 = arith.addf %36, %35 : vector<48x128xf32>
    %38 = arith.divf %36, %37 : vector<48x128xf32>
    %c0_24 = arith.constant 0 : index
    %c0_25 = arith.constant 0 : index
    %39 = vector.load %arg10[%c0_24, %c0_25] : memref<48x128xf32, #tpu.memory_space<vmem>>, vector<48x128xf32>
    tpu.vector_store %arg10[%c0_24, %c0_25], %38 {strides = array<i32>} : memref<48x128xf32, #tpu.memory_space<vmem>>, vector<48x128xf32>,
    return
  }
  func.func @transform_0(%arg0: i32) -> (i32, i32) {
    %c0_i32 = arith.constant 0 : i32
    %c0_i32_0 = arith.constant 0 : i32
    return %arg0, %c0_i32 : i32, i32
  }
  func.func @transform_1(%arg0: i32) -> (i32, i32) {
    %c0_i32 = arith.constant 0 : i32
    %c0_i32_0 = arith.constant 0 : i32
    %c0_i32_1 = arith.constant 0 : i32
    return %c0_i32, %c0_i32_0 : i32, i32
  }
  func.func @transform_2(%arg0: i32) -> (i32, i32) {
    %c0_i32 = arith.constant 0 : i32
    %c0_i32_0 = arith.constant 0 : i32
    %c0_i32_1 = arith.constant 0 : i32
    return %c0_i32, %c0_i32_0 : i32, i32
  }
  func.func @transform_3(%arg0: i32) -> (i32, i32) {
    %c0_i32 = arith.constant 0 : i32
    %c0_i32_0 = arith.constant 0 : i32
    %c0_i32_1 = arith.constant 0 : i32
    return %c0_i32, %c0_i32_0 : i32, i32
  }
  func.func @transform_4(%arg0: i32) -> (i32, i32) {
    %c0_i32 = arith.constant 0 : i32
    %c0_i32_0 = arith.constant 0 : i32
    %c0_i32_1 = arith.constant 0 : i32
    return %c0_i32, %c0_i32_0 : i32, i32
  }
  func.func @transform_5(%arg0: i32) -> (i32, i32) {
    %c0_i32 = arith.constant 0 : i32
    %c0_i32_0 = arith.constant 0 : i32
    %c0_i32_1 = arith.constant 0 : i32
    return %c0_i32, %c0_i32_0 : i32, i32
  }
  func.func @transform_6(%arg0: i32) -> (i32, i32) {
    %c0_i32 = arith.constant 0 : i32
    %c0_i32_0 = arith.constant 0 : i32
    %c0_i32_1 = arith.constant 0 : i32
    return %c0_i32, %c0_i32_0 : i32, i32
  }
  func.func @transform_7(%arg0: i32) -> (i32, i32) {
    %c0_i32 = arith.constant 0 : i32
    %c0_i32_0 = arith.constant 0 : i32
    %c0_i32_1 = arith.constant 0 : i32
    return %c0_i32, %c0_i32_0 : i32, i32
  }
  func.func @transform_8(%arg0: i32) -> (i32, i32) {
    %c0_i32 = arith.constant 0 : i32
    %c0_i32_0 = arith.constant 0 : i32
    %c0_i32_1 = arith.constant 0 : i32
    return %c0_i32, %c0_i32_0 : i32, i32
  }
  func.func @transform_9(%arg0: i32) -> (i32, i32) {
    %c0_i32 = arith.constant 0 : i32
    %c0_i32_0 = arith.constant 0 : i32
    return %arg0, %c0_i32 : i32, i32
  }
}

</mosaic_0001>

<llo_original>
// kernel: _discriminator_forward.1
$region0: #{_discriminator_forward.1}
  #allocation0 [shape = 'u32[]', space=smem, size = 0x4, offset = 0x4, fixed_abs, tag = 'smem constant byte address 0x4 - core index']
  #allocation1 [shape = 'u32[72,128]{1,0:T(1,128)}', space=vmem, size = 0x9000, scoped, tag = 'internal scratch']
  %s0 = inlined_call_operand.vmem [shape: f32[48,784], index: 0, kind: input, shape index: {}]
  %s1 = inlined_call_operand.vmem [shape: bf16[784,1024], index: 1, kind: input, shape index: {}]
  %s2 = inlined_call_operand.vmem [shape: bf16[1,1024], index: 2, kind: input, shape index: {}]
  %s3 = inlined_call_operand.vmem [shape: bf16[1024,512], index: 3, kind: input, shape index: {}]
  %s4 = inlined_call_operand.vmem [shape: bf16[1,512], index: 4, kind: input, shape index: {}]
  %s5 = inlined_call_operand.vmem [shape: bf16[512,256], index: 5, kind: input, shape index: {}]
  %s6 = inlined_call_operand.vmem [shape: bf16[1,256], index: 6, kind: input, shape index: {}]
  %s7 = inlined_call_operand.vmem [shape: bf16[256,128], index: 7, kind: input, shape index: {}]
  %s8 = inlined_call_operand.vmem [shape: f32[1,128], index: 8, kind: input, shape index: {}]
  %s9 = inlined_call_operand.vmem [shape: f32[48,128], index: 9, kind: output, shape index: {}]
  %s10 = sld [smem:[#allocation0]]
  $region46: #{_discriminator_forward.1} parent=0
    _
  %s12 = ssub.s32 1, %s10
  %s13 = scalar_select 0, %s12, %s10
  // Predicated region
  $region2: #{_discriminator_forward.1} parent=0 // pred_check
    _
  $region3: #{_discriminator_forward.1} parent=0 // pred_check_branch
    %15 = sbr.rel (0) target = $region5
  $region4: #{_discriminator_forward.1} parent=0 // pred_region
    _
  $region5: #{_discriminator_forward.1} parent=0 // pred_fallthru
    _
  // Predicated region
  $region6: #{_discriminator_forward.1} parent=0 // pred_check
    _
  $region7: #{_discriminator_forward.1} parent=0 // pred_check_branch
    %17 = sbr.rel (0) target = $region9
  $region8: #{_discriminator_forward.1} parent=0 // pred_region
    _
  $region9: #{_discriminator_forward.1} parent=0 // pred_fallthru
    _
  // Predicated region
  $region10: #{_discriminator_forward.1} parent=0 // pred_check
    _
  $region11: #{_discriminator_forward.1} parent=0 // pred_check_branch
    %19 = sbr.rel (0) target = $region13
  $region12: #{_discriminator_forward.1} parent=0 // pred_region
    _
  $region13: #{_discriminator_forward.1} parent=0 // pred_fallthru
    _
  // Predicated region
  $region14: #{_discriminator_forward.1} parent=0 // pred_check
    _
  $region15: #{_discriminator_forward.1} parent=0 // pred_check_branch
    %21 = sbr.rel (0) target = $region17
  $region16: #{_discriminator_forward.1} parent=0 // pred_region
    _
  $region17: #{_discriminator_forward.1} parent=0 // pred_fallthru
    _
  // Predicated region
  $region18: #{_discriminator_forward.1} parent=0 // pred_check
    _
  $region19: #{_discriminator_forward.1} parent=0 // pred_check_branch
    %23 = sbr.rel (0) target = $region21
  $region20: #{_discriminator_forward.1} parent=0 // pred_region
    _
  $region21: #{_discriminator_forward.1} parent=0 // pred_fallthru
    _
  // Predicated region
  $region22: #{_discriminator_forward.1} parent=0 // pred_check
    _
  $region23: #{_discriminator_forward.1} parent=0 // pred_check_branch
    %25 = sbr.rel (0) target = $region25
  $region24: #{_discriminator_forward.1} parent=0 // pred_region
    _
  $region25: #{_discriminator_forward.1} parent=0 // pred_fallthru
    _
  // Predicated region
  $region26: #{_discriminator_forward.1} parent=0 // pred_check
    _
  $region27: #{_discriminator_forward.1} parent=0 // pred_check_branch
    %27 = sbr.rel (0) target = $region29
  $region28: #{_discriminator_forward.1} parent=0 // pred_region
    _
  $region29: #{_discriminator_forward.1} parent=0 // pred_fallthru
    _
  // Predicated region
  $region30: #{_discriminator_forward.1} parent=0 // pred_check
    _
  $region31: #{_discriminator_forward.1} parent=0 // pred_check_branch
    %29 = sbr.rel (0) target = $region33
  $region32: #{_discriminator_forward.1} parent=0 // pred_region
    _
  $region33: #{_discriminator_forward.1} parent=0 // pred_fallthru
    _
  // Predicated region
  $region34: #{_discriminator_forward.1} parent=0 // pred_check
    _
  $region35: #{_discriminator_forward.1} parent=0 // pred_check_branch
    %31 = sbr.rel (0) target = $region37
  $region36: #{_discriminator_forward.1} parent=0 // pred_region
    _
  $region37: #{_discriminator_forward.1} parent=0 // pred_fallthru
    _
  %v33 = vld [vmem:[%s0] sm:$0xff]
  %v34 = vld [vmem:[%s0 + $0x8] sm:$0xff]
  %v35 = vld [vmem:[%s0 + $0x10] sm:$0xff]
  %v36 = vld [vmem:[%s0 + $0x18] sm:$0xff]
  %v37 = vld [vmem:[%s0 + $0x20] sm:$0xff]
  %v38 = vld [vmem:[%s0 + $0x28] sm:$0xff]
  %v39 = vld [vmem:[%s0 + $0x30] sm:$0xff]
  %v40 = vld [vmem:[%s0 + $0x38] sm:$0xff]
  %v41 = vld [vmem:[%s0 + $0x40] sm:$0xff]
  %v42 = vld [vmem:[%s0 + $0x48] sm:$0xff]
  %v43 = vld [vmem:[%s0 + $0x50] sm:$0xff]
  %v44 = vld [vmem:[%s0 + $0x58] sm:$0xff]
  %v45 = vld [vmem:[%s0 + $0x60] sm:$0xff]
  %v46 = vld [vmem:[%s0 + $0x68] sm:$0xff]
  %v47 = vld [vmem:[%s0 + $0x70] sm:$0xff]
  %v48 = vld [vmem:[%s0 + $0x78] sm:$0xff]
  %v49 = vld [vmem:[%s0 + $0x80] sm:$0xff]
  %v50 = vld [vmem:[%s0 + $0x88] sm:$0xff]
  %v51 = vld [vmem:[%s0 + $0x90] sm:$0xff]
  %v52 = vld [vmem:[%s0 + $0x98] sm:$0xff]
  %v53 = vld [vmem:[%s0 + $0xa0] sm:$0xff]
  %v54 = vld [vmem:[%s0 + $0xa8] sm:$0xff]
  %v55 = vld [vmem:[%s0 + $0xb0] sm:$0xff]
  %v56 = vld [vmem:[%s0 + $0xb8] sm:$0xff]
  %v57 = vld [vmem:[%s0 + $0xc0] sm:$0xff]
  %v58 = vld [vmem:[%s0 + $0xc8] sm:$0xff]
  %v59 = vld [vmem:[%s0 + $0xd0] sm:$0xff]
  %v60 = vld [vmem:[%s0 + $0xd8] sm:$0xff]
  %v61 = vld [vmem:[%s0 + $0xe0] sm:$0xff]
  %v62 = vld [vmem:[%s0 + $0xe8] sm:$0xff]
  %v63 = vld [vmem:[%s0 + $0xf0] sm:$0xff]
  %v64 = vld [vmem:[%s0 + $0xf8] sm:$0xff]
  %v65 = vld [vmem:[%s0 + $0x100] sm:$0xff]
  %v66 = vld [vmem:[%s0 + $0x108] sm:$0xff]
  %v67 = vld [vmem:[%s0 + $0x110] sm:$0xff]
  %v68 = vld [vmem:[%s0 + $0x118] sm:$0xff]
  %v69 = vld [vmem:[%s0 + $0x120] sm:$0xff]
  %v70 = vld [vmem:[%s0 + $0x128] sm:$0xff]
  %v71 = vld [vmem:[%s0 + $0x130] sm:$0xff]
  %v72 = vld [vmem:[%s0 + $0x138] sm:$0xff]
  %v73 = vld [vmem:[%s0 + $0x140] sm:$0xff]
  %v74 = vld [vmem:[%s0 + $0x148] sm:$0xff]
  %v75 = vpack.c.bf16 %v40, %v33
  %v76 = vpack.c.bf16 %v41, %v34
  %v77 = vpack.c.bf16 %v42, %v35
  %v78 = vpack.c.bf16 %v43, %v36
  %v79 = vpack.c.bf16 %v44, %v37
  %v80 = vpack.c.bf16 %v45, %v38
  %v81 = vpack.c.bf16 %v46, %v39
  %v82 = vpack.c.bf16 %v54, %v47
  %v83 = vpack.c.bf16 %v55, %v48
  %v84 = vpack.c.bf16 %v56, %v49
  %v85 = vpack.c.bf16 %v57, %v50
  %v86 = vpack.c.bf16 %v58, %v51
  %v87 = vpack.c.bf16 %v59, %v52
  %v88 = vpack.c.bf16 %v60, %v53
  %v89 = vpack.c.bf16 %v68, %v61
  %v90 = vpack.c.bf16 %v69, %v62
  %v91 = vpack.c.bf16 %v70, %v63
  %v92 = vpack.c.bf16 %v71, %v64
  %v93 = vpack.c.bf16 %v72, %v65
  %v94 = vpack.c.bf16 %v73, %v66
  %v95 = vpack.c.bf16 %v74, %v67
  %v96 = vld [vmem:[%s1] sm:$0xff]
  %v97 = vld [vmem:[%s1 + $0x8] sm:$0xff]
  %v98 = vld [vmem:[%s1 + $0x10] sm:$0xff]
  %v99 = vld [vmem:[%s1 + $0x18] sm:$0xff]
  %v100 = vld [vmem:[%s1 + $0x20] sm:$0xff]
  %v101 = vld [vmem:[%s1 + $0x28] sm:$0xff]
  %v102 = vld [vmem:[%s1 + $0x30] sm:$0xff]
  %v103 = vld [vmem:[%s1 + $0x38] sm:$0xff]
  %v104 = vld [vmem:[%s1 + $0x40] sm:$0xff]
  %v105 = vld [vmem:[%s1 + $0x48] sm:$0xff]
  %v106 = vld [vmem:[%s1 + $0x50] sm:$0xff]
  %v107 = vld [vmem:[%s1 + $0x58] sm:$0xff]
  %v108 = vld [vmem:[%s1 + $0x60] sm:$0xff]
  %v109 = vld [vmem:[%s1 + $0x68] sm:$0xff]
  %v110 = vld [vmem:[%s1 + $0x70] sm:$0xff]
  %v111 = vld [vmem:[%s1 + $0x78] sm:$0xff]
  %v112 = vld [vmem:[%s1 + $0x80] sm:$0xff]
  %v113 = vld [vmem:[%s1 + $0x88] sm:$0xff]
  %v114 = vld [vmem:[%s1 + $0x90] sm:$0xff]
  %v115 = vld [vmem:[%s1 + $0x98] sm:$0xff]
  %v116 = vld [vmem:[%s1 + $0xa0] sm:$0xff]
  %v117 = vld [vmem:[%s1 + $0xa8] sm:$0xff]
  %v118 = vld [vmem:[%s1 + $0xb0] sm:$0xff]
  %v119 = vld [vmem:[%s1 + $0xb8] sm:$0xff]
  %v120 = vld [vmem:[%s1 + $0xc0] sm:$0xff]
  %v121 = vld [vmem:[%s1 + $0xc8] sm:$0xff]
  %v122 = vld [vmem:[%s1 + $0xd0] sm:$0xff]
  %v123 = vld [vmem:[%s1 + $0xd8] sm:$0xff]
  %v124 = vld [vmem:[%s1 + $0xe0] sm:$0xff]
  %v125 = vld [vmem:[%s1 + $0xe8] sm:$0xff]
  %v126 = vld [vmem:[%s1 + $0xf0] sm:$0xff]
  %v127 = vld [vmem:[%s1 + $0xf8] sm:$0xff]
  %v128 = vld [vmem:[%s1 + $0x100] sm:$0xff]
  %v129 = vld [vmem:[%s1 + $0x108] sm:$0xff]
  %v130 = vld [vmem:[%s1 + $0x110] sm:$0xff]
  %v131 = vld [vmem:[%s1 + $0x118] sm:$0xff]
  %v132 = vld [vmem:[%s1 + $0x120] sm:$0xff]
  %v133 = vld [vmem:[%s1 + $0x128] sm:$0xff]
  %v134 = vld [vmem:[%s1 + $0x130] sm:$0xff]
  %v135 = vld [vmem:[%s1 + $0x138] sm:$0xff]
  %v136 = vld [vmem:[%s1 + $0x140] sm:$0xff]
  %v137 = vld [vmem:[%s1 + $0x148] sm:$0xff]
  %v138 = vld [vmem:[%s1 + $0x150] sm:$0xff]
  %v139 = vld [vmem:[%s1 + $0x158] sm:$0xff]
  %v140 = vld [vmem:[%s1 + $0x160] sm:$0xff]
  %v141 = vld [vmem:[%s1 + $0x168] sm:$0xff]
  %v142 = vld [vmem:[%s1 + $0x170] sm:$0xff]
  %v143 = vld [vmem:[%s1 + $0x178] sm:$0xff]
  %v144 = vld [vmem:[%s1 + $0x180] sm:$0xff]
  %v145 = vld [vmem:[%s1 + $0x188] sm:$0xff]
  %v146 = vld [vmem:[%s1 + $0x190] sm:$0xff]
  %v147 = vld [vmem:[%s1 + $0x198] sm:$0xff]
  %v148 = vld [vmem:[%s1 + $0x1a0] sm:$0xff]
  %v149 = vld [vmem:[%s1 + $0x1a8] sm:$0xff]
  %v150 = vld [vmem:[%s1 + $0x1b0] sm:$0xff]
  %v151 = vld [vmem:[%s1 + $0x1b8] sm:$0xff]
  %v152 = vld [vmem:[%s1 + $0x1c0] sm:$0xff]
  %v153 = vld [vmem:[%s1 + $0x1c8] sm:$0xff]
  %v154 = vld [vmem:[%s1 + $0x1d0] sm:$0xff]
  %v155 = vld [vmem:[%s1 + $0x1d8] sm:$0xff]
  %v156 = vld [vmem:[%s1 + $0x1e0] sm:$0xff]
  %v157 = vld [vmem:[%s1 + $0x1e8] sm:$0xff]
  %v158 = vld [vmem:[%s1 + $0x1f0] sm:$0xff]
  %v159 = vld [vmem:[%s1 + $0x1f8] sm:$0xff]
  %v160 = vld [vmem:[%s1 + $0x200] sm:$0xff]
  %v161 = vld [vmem:[%s1 + $0x208] sm:$0xff]
  %v162 = vld [vmem:[%s1 + $0x210] sm:$0xff]
  %v163 = vld [vmem:[%s1 + $0x218] sm:$0xff]
  %v164 = vld [vmem:[%s1 + $0x220] sm:$0xff]
  %v165 = vld [vmem:[%s1 + $0x228] sm:$0xff]
  %v166 = vld [vmem:[%s1 + $0x230] sm:$0xff]
  %v167 = vld [vmem:[%s1 + $0x238] sm:$0xff]
  %v168 = vld [vmem:[%s1 + $0x240] sm:$0xff]
  %v169 = vld [vmem:[%s1 + $0x248] sm:$0xff]
  %v170 = vld [vmem:[%s1 + $0x250] sm:$0xff]
  %v171 = vld [vmem:[%s1 + $0x258] sm:$0xff]
  %v172 = vld [vmem:[%s1 + $0x260] sm:$0xff]
  %v173 = vld [vmem:[%s1 + $0x268] sm:$0xff]
  %v174 = vld [vmem:[%s1 + $0x270] sm:$0xff]
  %v175 = vld [vmem:[%s1 + $0x278] sm:$0xff]
  %v176 = vld [vmem:[%s1 + $0x280] sm:$0xff]
  %v177 = vld [vmem:[%s1 + $0x288] sm:$0xff]
  %v178 = vld [vmem:[%s1 + $0x290] sm:$0xff]
  %v179 = vld [vmem:[%s1 + $0x298] sm:$0xff]
  %v180 = vld [vmem:[%s1 + $0x2a0] sm:$0xff]
  %v181 = vld [vmem:[%s1 + $0x2a8] sm:$0xff]
  %v182 = vld [vmem:[%s1 + $0x2b0] sm:$0xff]
  %v183 = vld [vmem:[%s1 + $0x2b8] sm:$0xff]
  %v184 = vld [vmem:[%s1 + $0x2c0] sm:$0xff]
  %v185 = vld [vmem:[%s1 + $0x2c8] sm:$0xff]
  %v186 = vld [vmem:[%s1 + $0x2d0] sm:$0xff]
  %v187 = vld [vmem:[%s1 + $0x2d8] sm:$0xff]
  %v188 = vld [vmem:[%s1 + $0x2e0] sm:$0xff]
  %v189 = vld [vmem:[%s1 + $0x2e8] sm:$0xff]
  %v190 = vld [vmem:[%s1 + $0x2f0] sm:$0xff]
  %v191 = vld [vmem:[%s1 + $0x2f8] sm:$0xff]
  %v192 = vld [vmem:[%s1 + $0x300] sm:$0xff]
  %v193 = vld [vmem:[%s1 + $0x308] sm:$0xff]
  %v194 = vld [vmem:[%s1 + $0x310] sm:$0xff]
  %v195 = vld [vmem:[%s1 + $0x318] sm:$0xff]
  %v196 = vld [vmem:[%s1 + $0x320] sm:$0xff]
  %v197 = vld [vmem:[%s1 + $0x328] sm:$0xff]
  %v198 = vld [vmem:[%s1 + $0x330] sm:$0xff]
  %v199 = vld [vmem:[%s1 + $0x338] sm:$0xff]
  %v200 = vld [vmem:[%s1 + $0x340] sm:$0xff]
  %v201 = vld [vmem:[%s1 + $0x348] sm:$0xff]
  %v202 = vld [vmem:[%s1 + $0x350] sm:$0xff]
  %v203 = vld [vmem:[%s1 + $0x358] sm:$0xff]
  %v204 = vld [vmem:[%s1 + $0x360] sm:$0xff]
  %v205 = vld [vmem:[%s1 + $0x368] sm:$0xff]
  %v206 = vld [vmem:[%s1 + $0x370] sm:$0xff]
  %v207 = vld [vmem:[%s1 + $0x378] sm:$0xff]
  %v208 = vld [vmem:[%s1 + $0x380] sm:$0xff]
  %v209 = vld [vmem:[%s1 + $0x388] sm:$0xff]
  %v210 = vld [vmem:[%s1 + $0x390] sm:$0xff]
  %v211 = vld [vmem:[%s1 + $0x398] sm:$0xff]
  %v212 = vld [vmem:[%s1 + $0x3a0] sm:$0xff]
  %v213 = vld [vmem:[%s1 + $0x3a8] sm:$0xff]
  %v214 = vld [vmem:[%s1 + $0x3b0] sm:$0xff]
  %v215 = vld [vmem:[%s1 + $0x3b8] sm:$0xff]
  %v216 = vld [vmem:[%s1 + $0x3c0] sm:$0xff]
  %v217 = vld [vmem:[%s1 + $0x3c8] sm:$0xff]
  %v218 = vld [vmem:[%s1 + $0x3d0] sm:$0xff]
  %v219 = vld [vmem:[%s1 + $0x3d8] sm:$0xff]
  %v220 = vld [vmem:[%s1 + $0x3e0] sm:$0xff]
  %v221 = vld [vmem:[%s1 + $0x3e8] sm:$0xff]
  %v222 = vld [vmem:[%s1 + $0x3f0] sm:$0xff]
  %v223 = vld [vmem:[%s1 + $0x3f8] sm:$0xff]
  %v224 = vld [vmem:[%s1 + $0x400] sm:$0xff]
  %v225 = vld [vmem:[%s1 + $0x408] sm:$0xff]
  %v226 = vld [vmem:[%s1 + $0x410] sm:$0xff]
  %v227 = vld [vmem:[%s1 + $0x418] sm:$0xff]
  %v228 = vld [vmem:[%s1 + $0x420] sm:$0xff]
  %v229 = vld [vmem:[%s1 + $0x428] sm:$0xff]
  %v230 = vld [vmem:[%s1 + $0x430] sm:$0xff]
  %v231 = vld [vmem:[%s1 + $0x438] sm:$0xff]
  %v232 = vld [vmem:[%s1 + $0x440] sm:$0xff]
  %v233 = vld [vmem:[%s1 + $0x448] sm:$0xff]
  %v234 = vld [vmem:[%s1 + $0x450] sm:$0xff]
  %v235 = vld [vmem:[%s1 + $0x458] sm:$0xff]
  %v236 = vld [vmem:[%s1 + $0x460] sm:$0xff]
  %v237 = vld [vmem:[%s1 + $0x468] sm:$0xff]
  %v238 = vld [vmem:[%s1 + $0x470] sm:$0xff]
  %v239 = vld [vmem:[%s1 + $0x478] sm:$0xff]
  %v240 = vld [vmem:[%s1 + $0x480] sm:$0xff]
  %v241 = vld [vmem:[%s1 + $0x488] sm:$0xff]
  %v242 = vld [vmem:[%s1 + $0x490] sm:$0xff]
  %v243 = vld [vmem:[%s1 + $0x498] sm:$0xff]
  %v244 = vld [vmem:[%s1 + $0x4a0] sm:$0xff]
  %v245 = vld [vmem:[%s1 + $0x4a8] sm:$0xff]
  %v246 = vld [vmem:[%s1 + $0x4b0] sm:$0xff]
  %v247 = vld [vmem:[%s1 + $0x4b8] sm:$0xff]
  %v248 = vld [vmem:[%s1 + $0x4c0] sm:$0xff]
  %v249 = vld [vmem:[%s1 + $0x4c8] sm:$0xff]
  %v250 = vld [vmem:[%s1 + $0x4d0] sm:$0xff]
  %v251 = vld [vmem:[%s1 + $0x4d8] sm:$0xff]
  %v252 = vld [vmem:[%s1 + $0x4e0] sm:$0xff]
  %v253 = vld [vmem:[%s1 + $0x4e8] sm:$0xff]
  %v254 = vld [vmem:[%s1 + $0x4f0] sm:$0xff]
  %v255 = vld [vmem:[%s1 + $0x4f8] sm:$0xff]
  %v256 = vld [vmem:[%s1 + $0x500] sm:$0xff]
  %v257 = vld [vmem:[%s1 + $0x508] sm:$0xff]
  %v258 = vld [vmem:[%s1 + $0x510] sm:$0xff]
  %v259 = vld [vmem:[%s1 + $0x518] sm:$0xff]
  %v260 = vld [vmem:[%s1 + $0x520] sm:$0xff]
  %v261 = vld [vmem:[%s1 + $0x528] sm:$0xff]
  %v262 = vld [vmem:[%s1 + $0x530] sm:$0xff]
  %v263 = vld [vmem:[%s1 + $0x538] sm:$0xff]
  %v264 = vld [vmem:[%s1 + $0x540] sm:$0xff]
  %v265 = vld [vmem:[%s1 + $0x548] sm:$0xff]
  %v266 = vld [vmem:[%s1 + $0x550] sm:$0xff]
  %v267 = vld [vmem:[%s1 + $0x558] sm:$0xff]
  %v268 = vld [vmem:[%s1 + $0x560] sm:$0xff]
  %v269 = vld [vmem:[%s1 + $0x568] sm:$0xff]
  %v270 = vld [vmem:[%s1 + $0x570] sm:$0xff]
  %v271 = vld [vmem:[%s1 + $0x578] sm:$0xff]
  %v272 = vld [vmem:[%s1 + $0x580] sm:$0xff]
  %v273 = vld [vmem:[%s1 + $0x588] sm:$0xff]
  %v274 = vld [vmem:[%s1 + $0x590] sm:$0xff]
  %v275 = vld [vmem:[%s1 + $0x598] sm:$0xff]
  %v276 = vld [vmem:[%s1 + $0x5a0] sm:$0xff]
  %v277 = vld [vmem:[%s1 + $0x5a8] sm:$0xff]
  %v278 = vld [vmem:[%s1 + $0x5b0] sm:$0xff]
  %v279 = vld [vmem:[%s1 + $0x5b8] sm:$0xff]
  %v280 = vld [vmem:[%s1 + $0x5c0] sm:$0xff]
  %v281 = vld [vmem:[%s1 + $0x5c8] sm:$0xff]
  %v282 = vld [vmem:[%s1 + $0x5d0] sm:$0xff]
  %v283 = vld [vmem:[%s1 + $0x5d8] sm:$0xff]
  %v284 = vld [vmem:[%s1 + $0x5e0] sm:$0xff]
  %v285 = vld [vmem:[%s1 + $0x5e8] sm:$0xff]
  %v286 = vld [vmem:[%s1 + $0x5f0] sm:$0xff]
  %v287 = vld [vmem:[%s1 + $0x5f8] sm:$0xff]
  %v288 = vld [vmem:[%s1 + $0x600] sm:$0xff]
  %v289 = vld [vmem:[%s1 + $0x608] sm:$0xff]
  %v290 = vld [vmem:[%s1 + $0x610] sm:$0xff]
  %v291 = vld [vmem:[%s1 + $0x618] sm:$0xff]
  %v292 = vld [vmem:[%s1 + $0x620] sm:$0xff]
  %v293 = vld [vmem:[%s1 + $0x628] sm:$0xff]
  %v294 = vld [vmem:[%s1 + $0x630] sm:$0xff]
  %v295 = vld [vmem:[%s1 + $0x638] sm:$0xff]
  %v296 = vld [vmem:[%s1 + $0x640] sm:$0xff]
  %v297 = vld [vmem:[%s1 + $0x648] sm:$0xff]
  %v298 = vld [vmem:[%s1 + $0x650] sm:$0xff]
  %v299 = vld [vmem:[%s1 + $0x658] sm:$0xff]
  %v300 = vld [vmem:[%s1 + $0x660] sm:$0xff]
  %v301 = vld [vmem:[%s1 + $0x668] sm:$0xff]
  %v302 = vld [vmem:[%s1 + $0x670] sm:$0xff]
  %v303 = vld [vmem:[%s1 + $0x678] sm:$0xff]
  %v304 = vld [vmem:[%s1 + $0x680] sm:$0xff]
  %v305 = vld [vmem:[%s1 + $0x688] sm:$0xff]
  %v306 = vld [vmem:[%s1 + $0x690] sm:$0xff]
  %v307 = vld [vmem:[%s1 + $0x698] sm:$0xff]
  %v308 = vld [vmem:[%s1 + $0x6a0] sm:$0xff]
  %v309 = vld [vmem:[%s1 + $0x6a8] sm:$0xff]
  %v310 = vld [vmem:[%s1 + $0x6b0] sm:$0xff]
  %v311 = vld [vmem:[%s1 + $0x6b8] sm:$0xff]
  %v312 = vld [vmem:[%s1 + $0x6c0] sm:$0xff]
  %v313 = vld [vmem:[%s1 + $0x6c8] sm:$0xff]
  %v314 = vld [vmem:[%s1 + $0x6d0] sm:$0xff]
  %v315 = vld [vmem:[%s1 + $0x6d8] sm:$0xff]
  %v316 = vld [vmem:[%s1 + $0x6e0] sm:$0xff]
  %v317 = vld [vmem:[%s1 + $0x6e8] sm:$0xff]
  %v318 = vld [vmem:[%s1 + $0x6f0] sm:$0xff]
  %v319 = vld [vmem:[%s1 + $0x6f8] sm:$0xff]
  %v320 = vld [vmem:[%s1 + $0x700] sm:$0xff]
  %v321 = vld [vmem:[%s1 + $0x708] sm:$0xff]
  %v322 = vld [vmem:[%s1 + $0x710] sm:$0xff]
  %v323 = vld [vmem:[%s1 + $0x718] sm:$0xff]
  %v324 = vld [vmem:[%s1 + $0x720] sm:$0xff]
  %v325 = vld [vmem:[%s1 + $0x728] sm:$0xff]
  %v326 = vld [vmem:[%s1 + $0x730] sm:$0xff]
  %v327 = vld [vmem:[%s1 + $0x738] sm:$0xff]
  %v328 = vld [vmem:[%s1 + $0x740] sm:$0xff]
  %v329 = vld [vmem:[%s1 + $0x748] sm:$0xff]
  %v330 = vld [vmem:[%s1 + $0x750] sm:$0xff]
  %v331 = vld [vmem:[%s1 + $0x758] sm:$0xff]
  %v332 = vld [vmem:[%s1 + $0x760] sm:$0xff]
  %v333 = vld [vmem:[%s1 + $0x768] sm:$0xff]
  %v334 = vld [vmem:[%s1 + $0x770] sm:$0xff]
  %v335 = vld [vmem:[%s1 + $0x778] sm:$0xff]
  %v336 = vld [vmem:[%s1 + $0x780] sm:$0xff]
  %v337 = vld [vmem:[%s1 + $0x788] sm:$0xff]
  %v338 = vld [vmem:[%s1 + $0x790] sm:$0xff]
  %v339 = vld [vmem:[%s1 + $0x798] sm:$0xff]
  %v340 = vld [vmem:[%s1 + $0x7a0] sm:$0xff]
  %v341 = vld [vmem:[%s1 + $0x7a8] sm:$0xff]
  %v342 = vld [vmem:[%s1 + $0x7b0] sm:$0xff]
  %v343 = vld [vmem:[%s1 + $0x7b8] sm:$0xff]
  %v344 = vld [vmem:[%s1 + $0x7c0] sm:$0xff]
  %v345 = vld [vmem:[%s1 + $0x7c8] sm:$0xff]
  %v346 = vld [vmem:[%s1 + $0x7d0] sm:$0xff]
  %v347 = vld [vmem:[%s1 + $0x7d8] sm:$0xff]
  %v348 = vld [vmem:[%s1 + $0x7e0] sm:$0xff]
  %v349 = vld [vmem:[%s1 + $0x7e8] sm:$0xff]
  %v350 = vld [vmem:[%s1 + $0x7f0] sm:$0xff]
  %v351 = vld [vmem:[%s1 + $0x7f8] sm:$0xff]
  %v352 = vld [vmem:[%s1 + $0x800] sm:$0xff]
  %v353 = vld [vmem:[%s1 + $0x808] sm:$0xff]
  %v354 = vld [vmem:[%s1 + $0x810] sm:$0xff]
  %v355 = vld [vmem:[%s1 + $0x818] sm:$0xff]
  %v356 = vld [vmem:[%s1 + $0x820] sm:$0xff]
  %v357 = vld [vmem:[%s1 + $0x828] sm:$0xff]
  %v358 = vld [vmem:[%s1 + $0x830] sm:$0xff]
  %v359 = vld [vmem:[%s1 + $0x838] sm:$0xff]
  %v360 = vld [vmem:[%s1 + $0x840] sm:$0xff]
  %v361 = vld [vmem:[%s1 + $0x848] sm:$0xff]
  %v362 = vld [vmem:[%s1 + $0x850] sm:$0xff]
  %v363 = vld [vmem:[%s1 + $0x858] sm:$0xff]
  %v364 = vld [vmem:[%s1 + $0x860] sm:$0xff]
  %v365 = vld [vmem:[%s1 + $0x868] sm:$0xff]
  %v366 = vld [vmem:[%s1 + $0x870] sm:$0xff]
  %v367 = vld [vmem:[%s1 + $0x878] sm:$0xff]
  %v368 = vld [vmem:[%s1 + $0x880] sm:$0xff]
  %v369 = vld [vmem:[%s1 + $0x888] sm:$0xff]
  %v370 = vld [vmem:[%s1 + $0x890] sm:$0xff]
  %v371 = vld [vmem:[%s1 + $0x898] sm:$0xff]
  %v372 = vld [vmem:[%s1 + $0x8a0] sm:$0xff]
  %v373 = vld [vmem:[%s1 + $0x8a8] sm:$0xff]
  %v374 = vld [vmem:[%s1 + $0x8b0] sm:$0xff]
  %v375 = vld [vmem:[%s1 + $0x8b8] sm:$0xff]
  %v376 = vld [vmem:[%s1 + $0x8c0] sm:$0xff]
  %v377 = vld [vmem:[%s1 + $0x8c8] sm:$0xff]
  %v378 = vld [vmem:[%s1 + $0x8d0] sm:$0xff]
  %v379 = vld [vmem:[%s1 + $0x8d8] sm:$0xff]
  %v380 = vld [vmem:[%s1 + $0x8e0] sm:$0xff]
  %v381 = vld [vmem:[%s1 + $0x8e8] sm:$0xff]
  %v382 = vld [vmem:[%s1 + $0x8f0] sm:$0xff]
  %v383 = vld [vmem:[%s1 + $0x8f8] sm:$0xff]
  %v384 = vld [vmem:[%s1 + $0x900] sm:$0xff]
  %v385 = vld [vmem:[%s1 + $0x908] sm:$0xff]
  %v386 = vld [vmem:[%s1 + $0x910] sm:$0xff]
  %v387 = vld [vmem:[%s1 + $0x918] sm:$0xff]
  %v388 = vld [vmem:[%s1 + $0x920] sm:$0xff]
  %v389 = vld [vmem:[%s1 + $0x928] sm:$0xff]
  %v390 = vld [vmem:[%s1 + $0x930] sm:$0xff]
  %v391 = vld [vmem:[%s1 + $0x938] sm:$0xff]
  %v392 = vld [vmem:[%s1 + $0x940] sm:$0xff]
  %v393 = vld [vmem:[%s1 + $0x948] sm:$0xff]
  %v394 = vld [vmem:[%s1 + $0x950] sm:$0xff]
  %v395 = vld [vmem:[%s1 + $0x958] sm:$0xff]
  %v396 = vld [vmem:[%s1 + $0x960] sm:$0xff]
  %v397 = vld [vmem:[%s1 + $0x968] sm:$0xff]
  %v398 = vld [vmem:[%s1 + $0x970] sm:$0xff]
  %v399 = vld [vmem:[%s1 + $0x978] sm:$0xff]
  %v400 = vld [vmem:[%s1 + $0x980] sm:$0xff]
  %v401 = vld [vmem:[%s1 + $0x988] sm:$0xff]
  %v402 = vld [vmem:[%s1 + $0x990] sm:$0xff]
  %v403 = vld [vmem:[%s1 + $0x998] sm:$0xff]
  %v404 = vld [vmem:[%s1 + $0x9a0] sm:$0xff]
  %v405 = vld [vmem:[%s1 + $0x9a8] sm:$0xff]
  %v406 = vld [vmem:[%s1 + $0x9b0] sm:$0xff]
  %v407 = vld [vmem:[%s1 + $0x9b8] sm:$0xff]
  %v408 = vld [vmem:[%s1 + $0x9c0] sm:$0xff]
  %v409 = vld [vmem:[%s1 + $0x9c8] sm:$0xff]
  %v410 = vld [vmem:[%s1 + $0x9d0] sm:$0xff]
  %v411 = vld [vmem:[%s1 + $0x9d8] sm:$0xff]
  %v412 = vld [vmem:[%s1 + $0x9e0] sm:$0xff]
  %v413 = vld [vmem:[%s1 + $0x9e8] sm:$0xff]
  %v414 = vld [vmem:[%s1 + $0x9f0] sm:$0xff]
  %v415 = vld [vmem:[%s1 + $0x9f8] sm:$0xff]
  %v416 = vld [vmem:[%s1 + $0xa00] sm:$0xff]
  %v417 = vld [vmem:[%s1 + $0xa08] sm:$0xff]
  %v418 = vld [vmem:[%s1 + $0xa10] sm:$0xff]
  %v419 = vld [vmem:[%s1 + $0xa18] sm:$0xff]
  %v420 = vld [vmem:[%s1 + $0xa20] sm:$0xff]
  %v421 = vld [vmem:[%s1 + $0xa28] sm:$0xff]
  %v422 = vld [vmem:[%s1 + $0xa30] sm:$0xff]
  %v423 = vld [vmem:[%s1 + $0xa38] sm:$0xff]
  %v424 = vld [vmem:[%s1 + $0xa40] sm:$0xff]
  %v425 = vld [vmem:[%s1 + $0xa48] sm:$0xff]
  %v426 = vld [vmem:[%s1 + $0xa50] sm:$0xff]
  %v427 = vld [vmem:[%s1 + $0xa58] sm:$0xff]
  %v428 = vld [vmem:[%s1 + $0xa60] sm:$0xff]
  %v429 = vld [vmem:[%s1 + $0xa68] sm:$0xff]
  %v430 = vld [vmem:[%s1 + $0xa70] sm:$0xff]
  %v431 = vld [vmem:[%s1 + $0xa78] sm:$0xff]
  %v432 = vld [vmem:[%s1 + $0xa80] sm:$0xff]
  %v433 = vld [vmem:[%s1 + $0xa88] sm:$0xff]
  %v434 = vld [vmem:[%s1 + $0xa90] sm:$0xff]
  %v435 = vld [vmem:[%s1 + $0xa98] sm:$0xff]
  %v436 = vld [vmem:[%s1 + $0xaa0] sm:$0xff]
  %v437 = vld [vmem:[%s1 + $0xaa8] sm:$0xff]
  %v438 = vld [vmem:[%s1 + $0xab0] sm:$0xff]
  %v439 = vld [vmem:[%s1 + $0xab8] sm:$0xff]
  %v440 = vld [vmem:[%s1 + $0xac0] sm:$0xff]
  %v441 = vld [vmem:[%s1 + $0xac8] sm:$0xff]
  %v442 = vld [vmem:[%s1 + $0xad0] sm:$0xff]
  %v443 = vld [vmem:[%s1 + $0xad8] sm:$0xff]
  %v444 = vld [vmem:[%s1 + $0xae0] sm:$0xff]
  %v445 = vld [vmem:[%s1 + $0xae8] sm:$0xff]
  %v446 = vld [vmem:[%s1 + $0xaf0] sm:$0xff]
  %v447 = vld [vmem:[%s1 + $0xaf8] sm:$0xff]
  %v448 = vld [vmem:[%s1 + $0xb00] sm:$0xff]
  %v449 = vld [vmem:[%s1 + $0xb08] sm:$0xff]
  %v450 = vld [vmem:[%s1 + $0xb10] sm:$0xff]
  %v451 = vld [vmem:[%s1 + $0xb18] sm:$0xff]
  %v452 = vld [vmem:[%s1 + $0xb20] sm:$0xff]
  %v453 = vld [vmem:[%s1 + $0xb28] sm:$0xff]
  %v454 = vld [vmem:[%s1 + $0xb30] sm:$0xff]
  %v455 = vld [vmem:[%s1 + $0xb38] sm:$0xff]
  %v456 = vld [vmem:[%s1 + $0xb40] sm:$0xff]
  %v457 = vld [vmem:[%s1 + $0xb48] sm:$0xff]
  %v458 = vld [vmem:[%s1 + $0xb50] sm:$0xff]
  %v459 = vld [vmem:[%s1 + $0xb58] sm:$0xff]
  %v460 = vld [vmem:[%s1 + $0xb60] sm:$0xff]
  %v461 = vld [vmem:[%s1 + $0xb68] sm:$0xff]
  %v462 = vld [vmem:[%s1 + $0xb70] sm:$0xff]
  %v463 = vld [vmem:[%s1 + $0xb78] sm:$0xff]
  %v464 = vld [vmem:[%s1 + $0xb80] sm:$0xff]
  %v465 = vld [vmem:[%s1 + $0xb88] sm:$0xff]
  %v466 = vld [vmem:[%s1 + $0xb90] sm:$0xff]
  %v467 = vld [vmem:[%s1 + $0xb98] sm:$0xff]
  %v468 = vld [vmem:[%s1 + $0xba0] sm:$0xff]
  %v469 = vld [vmem:[%s1 + $0xba8] sm:$0xff]
  %v470 = vld [vmem:[%s1 + $0xbb0] sm:$0xff]
  %v471 = vld [vmem:[%s1 + $0xbb8] sm:$0xff]
  %v472 = vld [vmem:[%s1 + $0xbc0] sm:$0xff]
  %v473 = vld [vmem:[%s1 + $0xbc8] sm:$0xff]
  %v474 = vld [vmem:[%s1 + $0xbd0] sm:$0xff]
  %v475 = vld [vmem:[%s1 + $0xbd8] sm:$0xff]
  %v476 = vld [vmem:[%s1 + $0xbe0] sm:$0xff]
  %v477 = vld [vmem:[%s1 + $0xbe8] sm:$0xff]
  %v478 = vld [vmem:[%s1 + $0xbf0] sm:$0xff]
  %v479 = vld [vmem:[%s1 + $0xbf8] sm:$0xff]
  %v480 = vld [vmem:[%s1 + $0xc00] sm:$0xff]
  %v481 = vld [vmem:[%s1 + $0xc08] sm:$0xff]
  %v482 = vld [vmem:[%s1 + $0xc10] sm:$0xff]
  %v483 = vld [vmem:[%s1 + $0xc18] sm:$0xff]
  %v484 = vld [vmem:[%s1 + $0xc20] sm:$0xff]
  %v485 = vld [vmem:[%s1 + $0xc28] sm:$0xff]
  %v486 = vld [vmem:[%s1 + $0xc30] sm:$0xff]
  %v487 = vld [vmem:[%s1 + $0xc38] sm:$0xff]
  %v880 = vunpack.c.l.b16 %v96
  %v881 = vunpack.c.h.b16 %v96
  %v882 = vunpack.c.l.b16 %v97
  %v883 = vunpack.c.h.b16 %v97
  %v884 = vunpack.c.l.b16 %v98
  %v885 = vunpack.c.h.b16 %v98
  %v886 = vunpack.c.l.b16 %v99
  %v887 = vunpack.c.h.b16 %v99
  %v888 = vunpack.c.l.b16 %v100
  %v889 = vunpack.c.h.b16 %v100
  %v890 = vunpack.c.l.b16 %v101
  %v891 = vunpack.c.h.b16 %v101
  %v892 = vunpack.c.l.b16 %v102
  %v893 = vunpack.c.h.b16 %v102
  %v894 = vunpack.c.l.b16 %v103
  %v895 = vunpack.c.h.b16 %v103
  %v896 = vunpack.c.l.b16 %v104
  %v897 = vunpack.c.h.b16 %v104
  %v898 = vunpack.c.l.b16 %v105
  %v899 = vunpack.c.h.b16 %v105
  %v900 = vunpack.c.l.b16 %v106
  %v901 = vunpack.c.h.b16 %v106
  %v902 = vunpack.c.l.b16 %v107
  %v903 = vunpack.c.h.b16 %v107
  %v904 = vunpack.c.l.b16 %v108
  %v905 = vunpack.c.h.b16 %v108
  %v906 = vunpack.c.l.b16 %v109
  %v907 = vunpack.c.h.b16 %v109
  %v908 = vunpack.c.l.b16 %v110
  %v909 = vunpack.c.h.b16 %v110
  %v910 = vunpack.c.l.b16 %v111
  %v911 = vunpack.c.h.b16 %v111
  %v912 = vunpack.c.l.b16 %v112
  %v913 = vunpack.c.h.b16 %v112
  %v914 = vunpack.c.l.b16 %v113
  %v915 = vunpack.c.h.b16 %v113
  %v916 = vunpack.c.l.b16 %v114
  %v917 = vunpack.c.h.b16 %v114
  %v918 = vunpack.c.l.b16 %v115
  %v919 = vunpack.c.h.b16 %v115
  %v920 = vunpack.c.l.b16 %v116
  %v921 = vunpack.c.h.b16 %v116
  %v922 = vunpack.c.l.b16 %v117
  %v923 = vunpack.c.h.b16 %v117
  %v924 = vunpack.c.l.b16 %v118
  %v925 = vunpack.c.h.b16 %v118
  %v926 = vunpack.c.l.b16 %v119
  %v927 = vunpack.c.h.b16 %v119
  %v928 = vunpack.c.l.b16 %v120
  %v929 = vunpack.c.h.b16 %v120
  %v930 = vunpack.c.l.b16 %v121
  %v931 = vunpack.c.h.b16 %v121
  %v932 = vunpack.c.l.b16 %v122
  %v933 = vunpack.c.h.b16 %v122
  %v934 = vunpack.c.l.b16 %v123
  %v935 = vunpack.c.h.b16 %v123
  %v936 = vunpack.c.l.b16 %v124
  %v937 = vunpack.c.h.b16 %v124
  %v938 = vunpack.c.l.b16 %v125
  %v939 = vunpack.c.h.b16 %v125
  %v940 = vunpack.c.l.b16 %v126
  %v941 = vunpack.c.h.b16 %v126
  %v942 = vunpack.c.l.b16 %v127
  %v943 = vunpack.c.h.b16 %v127
  %v944 = vunpack.c.l.b16 %v128
  %v945 = vunpack.c.h.b16 %v128
  %v946 = vunpack.c.l.b16 %v129
  %v947 = vunpack.c.h.b16 %v129
  %v948 = vunpack.c.l.b16 %v130
  %v949 = vunpack.c.h.b16 %v130
  %v950 = vunpack.c.l.b16 %v131
  %v951 = vunpack.c.h.b16 %v131
  %v952 = vunpack.c.l.b16 %v132
  %v953 = vunpack.c.h.b16 %v132
  %v954 = vunpack.c.l.b16 %v133
  %v955 = vunpack.c.h.b16 %v133
  %v956 = vunpack.c.l.b16 %v134
  %v957 = vunpack.c.h.b16 %v134
  %v958 = vunpack.c.l.b16 %v135
  %v959 = vunpack.c.h.b16 %v135
  %v960 = vunpack.c.l.b16 %v136
  %v961 = vunpack.c.h.b16 %v136
  %v962 = vunpack.c.l.b16 %v137
  %v963 = vunpack.c.h.b16 %v137
  %v964 = vunpack.c.l.b16 %v138
  %v965 = vunpack.c.h.b16 %v138
  %v966 = vunpack.c.l.b16 %v139
  %v967 = vunpack.c.h.b16 %v139
  %v968 = vunpack.c.l.b16 %v140
  %v969 = vunpack.c.h.b16 %v140
  %v970 = vunpack.c.l.b16 %v141
  %v971 = vunpack.c.h.b16 %v141
  %v972 = vunpack.c.l.b16 %v142
  %v973 = vunpack.c.h.b16 %v142
  %v974 = vunpack.c.l.b16 %v143
  %v975 = vunpack.c.h.b16 %v143
  %v976 = vunpack.c.l.b16 %v144
  %v977 = vunpack.c.h.b16 %v144
  %v978 = vunpack.c.l.b16 %v145
  %v979 = vunpack.c.h.b16 %v145
  %v980 = vunpack.c.l.b16 %v146
  %v981 = vunpack.c.h.b16 %v146
  %v982 = vunpack.c.l.b16 %v147
  %v983 = vunpack.c.h.b16 %v147
  %v984 = vunpack.c.l.b16 %v148
  %v985 = vunpack.c.h.b16 %v148
  %v986 = vunpack.c.l.b16 %v149
  %v987 = vunpack.c.h.b16 %v149
  %v988 = vunpack.c.l.b16 %v150
  %v989 = vunpack.c.h.b16 %v150
  %v990 = vunpack.c.l.b16 %v151
  %v991 = vunpack.c.h.b16 %v151
  %v992 = vunpack.c.l.b16 %v152
  %v993 = vunpack.c.h.b16 %v152
  %v994 = vunpack.c.l.b16 %v153
  %v995 = vunpack.c.h.b16 %v153
  %v996 = vunpack.c.l.b16 %v154
  %v997 = vunpack.c.h.b16 %v154
  %v998 = vunpack.c.l.b16 %v155
  %v999 = vunpack.c.h.b16 %v155
  %v1000 = vunpack.c.l.b16 %v156
  %v1001 = vunpack.c.h.b16 %v156
  %v1002 = vunpack.c.l.b16 %v157
  %v1003 = vunpack.c.h.b16 %v157
  %v1004 = vunpack.c.l.b16 %v158
  %v1005 = vunpack.c.h.b16 %v158
  %v1006 = vunpack.c.l.b16 %v159
  %v1007 = vunpack.c.h.b16 %v159
  %v1008 = vunpack.c.l.b16 %v160
  %v1009 = vunpack.c.h.b16 %v160
  %v1010 = vunpack.c.l.b16 %v161
  %v1011 = vunpack.c.h.b16 %v161
  %v1012 = vunpack.c.l.b16 %v162
  %v1013 = vunpack.c.h.b16 %v162
  %v1014 = vunpack.c.l.b16 %v163
  %v1015 = vunpack.c.h.b16 %v163
  %v1016 = vunpack.c.l.b16 %v164
  %v1017 = vunpack.c.h.b16 %v164
  %v1018 = vunpack.c.l.b16 %v165
  %v1019 = vunpack.c.h.b16 %v165
  %v1020 = vunpack.c.l.b16 %v166
  %v1021 = vunpack.c.h.b16 %v166
  %v1022 = vunpack.c.l.b16 %v167
  %v1023 = vunpack.c.h.b16 %v167
  %v1024 = vunpack.c.l.b16 %v168
  %v1025 = vunpack.c.h.b16 %v168
  %v1026 = vunpack.c.l.b16 %v169
  %v1027 = vunpack.c.h.b16 %v169
  %v1028 = vunpack.c.l.b16 %v170
  %v1029 = vunpack.c.h.b16 %v170
  %v1030 = vunpack.c.l.b16 %v171
  %v1031 = vunpack.c.h.b16 %v171
  %v1032 = vunpack.c.l.b16 %v172
  %v1033 = vunpack.c.h.b16 %v172
  %v1034 = vunpack.c.l.b16 %v173
  %v1035 = vunpack.c.h.b16 %v173
  %v1036 = vunpack.c.l.b16 %v174
  %v1037 = vunpack.c.h.b16 %v174
  %v1038 = vunpack.c.l.b16 %v175
  %v1039 = vunpack.c.h.b16 %v175
  %v1040 = vunpack.c.l.b16 %v176
  %v1041 = vunpack.c.h.b16 %v176
  %v1042 = vunpack.c.l.b16 %v177
  %v1043 = vunpack.c.h.b16 %v177
  %v1044 = vunpack.c.l.b16 %v178
  %v1045 = vunpack.c.h.b16 %v178
  %v1046 = vunpack.c.l.b16 %v179
  %v1047 = vunpack.c.h.b16 %v179
  %v1048 = vunpack.c.l.b16 %v180
  %v1049 = vunpack.c.h.b16 %v180
  %v1050 = vunpack.c.l.b16 %v181
  %v1051 = vunpack.c.h.b16 %v181
  %v1052 = vunpack.c.l.b16 %v182
  %v1053 = vunpack.c.h.b16 %v182
  %v1054 = vunpack.c.l.b16 %v183
  %v1055 = vunpack.c.h.b16 %v183
  %v1056 = vunpack.c.l.b16 %v184
  %v1057 = vunpack.c.h.b16 %v184
  %v1058 = vunpack.c.l.b16 %v185
  %v1059 = vunpack.c.h.b16 %v185
  %v1060 = vunpack.c.l.b16 %v186
  %v1061 = vunpack.c.h.b16 %v186
  %v1062 = vunpack.c.l.b16 %v187
  %v1063 = vunpack.c.h.b16 %v187
  %v1064 = vunpack.c.l.b16 %v188
  %v1065 = vunpack.c.h.b16 %v188
  %v1066 = vunpack.c.l.b16 %v189
  %v1067 = vunpack.c.h.b16 %v189
  %v1068 = vunpack.c.l.b16 %v190
  %v1069 = vunpack.c.h.b16 %v190
  %v1070 = vunpack.c.l.b16 %v191
  %v1071 = vunpack.c.h.b16 %v191
  %v1072 = vunpack.c.l.b16 %v192
  %v1073 = vunpack.c.h.b16 %v192
  %v1074 = vunpack.c.l.b16 %v193
  %v1075 = vunpack.c.h.b16 %v193
  %v1076 = vunpack.c.l.b16 %v194
  %v1077 = vunpack.c.h.b16 %v194
  %v1078 = vunpack.c.l.b16 %v195
  %v1079 = vunpack.c.h.b16 %v195
  %v1080 = vunpack.c.l.b16 %v196
  %v1081 = vunpack.c.h.b16 %v196
  %v1082 = vunpack.c.l.b16 %v197
  %v1083 = vunpack.c.h.b16 %v197
  %v1084 = vunpack.c.l.b16 %v198
  %v1085 = vunpack.c.h.b16 %v198
  %v1086 = vunpack.c.l.b16 %v199
  %v1087 = vunpack.c.h.b16 %v199
  %v1088 = vunpack.c.l.b16 %v200
  %v1089 = vunpack.c.h.b16 %v200
  %v1090 = vunpack.c.l.b16 %v201
  %v1091 = vunpack.c.h.b16 %v201
  %v1092 = vunpack.c.l.b16 %v202
  %v1093 = vunpack.c.h.b16 %v202
  %v1094 = vunpack.c.l.b16 %v203
  %v1095 = vunpack.c.h.b16 %v203
  %v1096 = vunpack.c.l.b16 %v204
  %v1097 = vunpack.c.h.b16 %v204
  %v1098 = vunpack.c.l.b16 %v205
  %v1099 = vunpack.c.h.b16 %v205
  %v1100 = vunpack.c.l.b16 %v206
  %v1101 = vunpack.c.h.b16 %v206
  %v1102 = vunpack.c.l.b16 %v207
  %v1103 = vunpack.c.h.b16 %v207
  %v1104 = vunpack.c.l.b16 %v208
  %v1105 = vunpack.c.h.b16 %v208
  %v1106 = vunpack.c.l.b16 %v209
  %v1107 = vunpack.c.h.b16 %v209
  %v1108 = vunpack.c.l.b16 %v210
  %v1109 = vunpack.c.h.b16 %v210
  %v1110 = vunpack.c.l.b16 %v211
  %v1111 = vunpack.c.h.b16 %v211
  %v1112 = vunpack.c.l.b16 %v212
  %v1113 = vunpack.c.h.b16 %v212
  %v1114 = vunpack.c.l.b16 %v213
  %v1115 = vunpack.c.h.b16 %v213
  %v1116 = vunpack.c.l.b16 %v214
  %v1117 = vunpack.c.h.b16 %v214
  %v1118 = vunpack.c.l.b16 %v215
  %v1119 = vunpack.c.h.b16 %v215
  %v1120 = vunpack.c.l.b16 %v216
  %v1121 = vunpack.c.h.b16 %v216
  %v1122 = vunpack.c.l.b16 %v217
  %v1123 = vunpack.c.h.b16 %v217
  %v1124 = vunpack.c.l.b16 %v218
  %v1125 = vunpack.c.h.b16 %v218
  %v1126 = vunpack.c.l.b16 %v219
  %v1127 = vunpack.c.h.b16 %v219
  %v1128 = vunpack.c.l.b16 %v220
  %v1129 = vunpack.c.h.b16 %v220
  %v1130 = vunpack.c.l.b16 %v221
  %v1131 = vunpack.c.h.b16 %v221
  %v1132 = vunpack.c.l.b16 %v222
  %v1133 = vunpack.c.h.b16 %v222
  %v1134 = vunpack.c.l.b16 %v223
  %v1135 = vunpack.c.h.b16 %v223
  %v1136 = vunpack.c.l.b16 %v224
  %v1137 = vunpack.c.h.b16 %v224
  %v1138 = vunpack.c.l.b16 %v225
  %v1139 = vunpack.c.h.b16 %v225
  %v1140 = vunpack.c.l.b16 %v226
  %v1141 = vunpack.c.h.b16 %v226
  %v1142 = vunpack.c.l.b16 %v227
  %v1143 = vunpack.c.h.b16 %v227
  %v1144 = vunpack.c.l.b16 %v228
  %v1145 = vunpack.c.h.b16 %v228
  %v1146 = vunpack.c.l.b16 %v229
  %v1147 = vunpack.c.h.b16 %v229
  %v1148 = vunpack.c.l.b16 %v230
  %v1149 = vunpack.c.h.b16 %v230
  %v1150 = vunpack.c.l.b16 %v231
  %v1151 = vunpack.c.h.b16 %v231
  %v1152 = vunpack.c.l.b16 %v232
  %v1153 = vunpack.c.h.b16 %v232
  %v1154 = vunpack.c.l.b16 %v233
  %v1155 = vunpack.c.h.b16 %v233
  %v1156 = vunpack.c.l.b16 %v234
  %v1157 = vunpack.c.h.b16 %v234
  %v1158 = vunpack.c.l.b16 %v235
  %v1159 = vunpack.c.h.b16 %v235
  %v1160 = vunpack.c.l.b16 %v236
  %v1161 = vunpack.c.h.b16 %v236
  %v1162 = vunpack.c.l.b16 %v237
  %v1163 = vunpack.c.h.b16 %v237
  %v1164 = vunpack.c.l.b16 %v238
  %v1165 = vunpack.c.h.b16 %v238
  %v1166 = vunpack.c.l.b16 %v239
  %v1167 = vunpack.c.h.b16 %v239
  %v1168 = vunpack.c.l.b16 %v240
  %v1169 = vunpack.c.h.b16 %v240
  %v1170 = vunpack.c.l.b16 %v241
  %v1171 = vunpack.c.h.b16 %v241
  %v1172 = vunpack.c.l.b16 %v242
  %v1173 = vunpack.c.h.b16 %v242
  %v1174 = vunpack.c.l.b16 %v243
  %v1175 = vunpack.c.h.b16 %v243
  %v1176 = vunpack.c.l.b16 %v244
  %v1177 = vunpack.c.h.b16 %v244
  %v1178 = vunpack.c.l.b16 %v245
  %v1179 = vunpack.c.h.b16 %v245
  %v1180 = vunpack.c.l.b16 %v246
  %v1181 = vunpack.c.h.b16 %v246
  %v1182 = vunpack.c.l.b16 %v247
  %v1183 = vunpack.c.h.b16 %v247
  %v1184 = vunpack.c.l.b16 %v248
  %v1185 = vunpack.c.h.b16 %v248
  %v1186 = vunpack.c.l.b16 %v249
  %v1187 = vunpack.c.h.b16 %v249
  %v1188 = vunpack.c.l.b16 %v250
  %v1189 = vunpack.c.h.b16 %v250
  %v1190 = vunpack.c.l.b16 %v251
  %v1191 = vunpack.c.h.b16 %v251
  %v1192 = vunpack.c.l.b16 %v252
  %v1193 = vunpack.c.h.b16 %v252
  %v1194 = vunpack.c.l.b16 %v253
  %v1195 = vunpack.c.h.b16 %v253
  %v1196 = vunpack.c.l.b16 %v254
  %v1197 = vunpack.c.h.b16 %v254
  %v1198 = vunpack.c.l.b16 %v255
  %v1199 = vunpack.c.h.b16 %v255
  %v1200 = vunpack.c.l.b16 %v256
  %v1201 = vunpack.c.h.b16 %v256
  %v1202 = vunpack.c.l.b16 %v257
  %v1203 = vunpack.c.h.b16 %v257
  %v1204 = vunpack.c.l.b16 %v258
  %v1205 = vunpack.c.h.b16 %v258
  %v1206 = vunpack.c.l.b16 %v259
  %v1207 = vunpack.c.h.b16 %v259
  %v1208 = vunpack.c.l.b16 %v260
  %v1209 = vunpack.c.h.b16 %v260
  %v1210 = vunpack.c.l.b16 %v261
  %v1211 = vunpack.c.h.b16 %v261
  %v1212 = vunpack.c.l.b16 %v262
  %v1213 = vunpack.c.h.b16 %v262
  %v1214 = vunpack.c.l.b16 %v263
  %v1215 = vunpack.c.h.b16 %v263
  %v1216 = vunpack.c.l.b16 %v264
  %v1217 = vunpack.c.h.b16 %v264
  %v1218 = vunpack.c.l.b16 %v265
  %v1219 = vunpack.c.h.b16 %v265
  %v1220 = vunpack.c.l.b16 %v266
  %v1221 = vunpack.c.h.b16 %v266
  %v1222 = vunpack.c.l.b16 %v267
  %v1223 = vunpack.c.h.b16 %v267
  %v1224 = vunpack.c.l.b16 %v268
  %v1225 = vunpack.c.h.b16 %v268
  %v1226 = vunpack.c.l.b16 %v269
  %v1227 = vunpack.c.h.b16 %v269
  %v1228 = vunpack.c.l.b16 %v270
  %v1229 = vunpack.c.h.b16 %v270
  %v1230 = vunpack.c.l.b16 %v271
  %v1231 = vunpack.c.h.b16 %v271
  %v1232 = vunpack.c.l.b16 %v272
  %v1233 = vunpack.c.h.b16 %v272
  %v1234 = vunpack.c.l.b16 %v273
  %v1235 = vunpack.c.h.b16 %v273
  %v1236 = vunpack.c.l.b16 %v274
  %v1237 = vunpack.c.h.b16 %v274
  %v1238 = vunpack.c.l.b16 %v275
  %v1239 = vunpack.c.h.b16 %v275
  %v1240 = vunpack.c.l.b16 %v276
  %v1241 = vunpack.c.h.b16 %v276
  %v1242 = vunpack.c.l.b16 %v277
  %v1243 = vunpack.c.h.b16 %v277
  %v1244 = vunpack.c.l.b16 %v278
  %v1245 = vunpack.c.h.b16 %v278
  %v1246 = vunpack.c.l.b16 %v279
  %v1247 = vunpack.c.h.b16 %v279
  %v1248 = vunpack.c.l.b16 %v280
  %v1249 = vunpack.c.h.b16 %v280
  %v1250 = vunpack.c.l.b16 %v281
  %v1251 = vunpack.c.h.b16 %v281
  %v1252 = vunpack.c.l.b16 %v282
  %v1253 = vunpack.c.h.b16 %v282
  %v1254 = vunpack.c.l.b16 %v283
  %v1255 = vunpack.c.h.b16 %v283
  %v1256 = vunpack.c.l.b16 %v284
  %v1257 = vunpack.c.h.b16 %v284
  %v1258 = vunpack.c.l.b16 %v285
  %v1259 = vunpack.c.h.b16 %v285
  %v1260 = vunpack.c.l.b16 %v286
  %v1261 = vunpack.c.h.b16 %v286
  %v1262 = vunpack.c.l.b16 %v287
  %v1263 = vunpack.c.h.b16 %v287
  %v1264 = vunpack.c.l.b16 %v288
  %v1265 = vunpack.c.h.b16 %v288
  %v1266 = vunpack.c.l.b16 %v289
  %v1267 = vunpack.c.h.b16 %v289
  %v1268 = vunpack.c.l.b16 %v290
  %v1269 = vunpack.c.h.b16 %v290
  %v1270 = vunpack.c.l.b16 %v291
  %v1271 = vunpack.c.h.b16 %v291
  %v1272 = vunpack.c.l.b16 %v292
  %v1273 = vunpack.c.h.b16 %v292
  %v1274 = vunpack.c.l.b16 %v293
  %v1275 = vunpack.c.h.b16 %v293
  %v1276 = vunpack.c.l.b16 %v294
  %v1277 = vunpack.c.h.b16 %v294
  %v1278 = vunpack.c.l.b16 %v295
  %v1279 = vunpack.c.h.b16 %v295
  %v1280 = vunpack.c.l.b16 %v296
  %v1281 = vunpack.c.h.b16 %v296
  %v1282 = vunpack.c.l.b16 %v297
  %v1283 = vunpack.c.h.b16 %v297
  %v1284 = vunpack.c.l.b16 %v298
  %v1285 = vunpack.c.h.b16 %v298
  %v1286 = vunpack.c.l.b16 %v299
  %v1287 = vunpack.c.h.b16 %v299
  %v1288 = vunpack.c.l.b16 %v300
  %v1289 = vunpack.c.h.b16 %v300
  %v1290 = vunpack.c.l.b16 %v301
  %v1291 = vunpack.c.h.b16 %v301
  %v1292 = vunpack.c.l.b16 %v302
  %v1293 = vunpack.c.h.b16 %v302
  %v1294 = vunpack.c.l.b16 %v303
  %v1295 = vunpack.c.h.b16 %v303
  %v1296 = vunpack.c.l.b16 %v304
  %v1297 = vunpack.c.h.b16 %v304
  %v1298 = vunpack.c.l.b16 %v305
  %v1299 = vunpack.c.h.b16 %v305
  %v1300 = vunpack.c.l.b16 %v306
  %v1301 = vunpack.c.h.b16 %v306
  %v1302 = vunpack.c.l.b16 %v307
  %v1303 = vunpack.c.h.b16 %v307
  %v1304 = vunpack.c.l.b16 %v308
  %v1305 = vunpack.c.h.b16 %v308
  %v1306 = vunpack.c.l.b16 %v309
  %v1307 = vunpack.c.h.b16 %v309
  %v1308 = vunpack.c.l.b16 %v310
  %v1309 = vunpack.c.h.b16 %v310
  %v1310 = vunpack.c.l.b16 %v311
  %v1311 = vunpack.c.h.b16 %v311
  %v1312 = vunpack.c.l.b16 %v312
  %v1313 = vunpack.c.h.b16 %v312
  %v1314 = vunpack.c.l.b16 %v313
  %v1315 = vunpack.c.h.b16 %v313
  %v1316 = vunpack.c.l.b16 %v314
  %v1317 = vunpack.c.h.b16 %v314
  %v1318 = vunpack.c.l.b16 %v315
  %v1319 = vunpack.c.h.b16 %v315
  %v1320 = vunpack.c.l.b16 %v316
  %v1321 = vunpack.c.h.b16 %v316
  %v1322 = vunpack.c.l.b16 %v317
  %v1323 = vunpack.c.h.b16 %v317
  %v1324 = vunpack.c.l.b16 %v318
  %v1325 = vunpack.c.h.b16 %v318
  %v1326 = vunpack.c.l.b16 %v319
  %v1327 = vunpack.c.h.b16 %v319
  %v1328 = vunpack.c.l.b16 %v320
  %v1329 = vunpack.c.h.b16 %v320
  %v1330 = vunpack.c.l.b16 %v321
  %v1331 = vunpack.c.h.b16 %v321
  %v1332 = vunpack.c.l.b16 %v322
  %v1333 = vunpack.c.h.b16 %v322
  %v1334 = vunpack.c.l.b16 %v323
  %v1335 = vunpack.c.h.b16 %v323
  %v1336 = vunpack.c.l.b16 %v324
  %v1337 = vunpack.c.h.b16 %v324
  %v1338 = vunpack.c.l.b16 %v325
  %v1339 = vunpack.c.h.b16 %v325
  %v1340 = vunpack.c.l.b16 %v326
  %v1341 = vunpack.c.h.b16 %v326
  %v1342 = vunpack.c.l.b16 %v327
  %v1343 = vunpack.c.h.b16 %v327
  %v1344 = vunpack.c.l.b16 %v328
  %v1345 = vunpack.c.h.b16 %v328
  %v1346 = vunpack.c.l.b16 %v329
  %v1347 = vunpack.c.h.b16 %v329
  %v1348 = vunpack.c.l.b16 %v330
  %v1349 = vunpack.c.h.b16 %v330
  %v1350 = vunpack.c.l.b16 %v331
  %v1351 = vunpack.c.h.b16 %v331
  %v1352 = vunpack.c.l.b16 %v332
  %v1353 = vunpack.c.h.b16 %v332
  %v1354 = vunpack.c.l.b16 %v333
  %v1355 = vunpack.c.h.b16 %v333
  %v1356 = vunpack.c.l.b16 %v334
  %v1357 = vunpack.c.h.b16 %v334
  %v1358 = vunpack.c.l.b16 %v335
  %v1359 = vunpack.c.h.b16 %v335
  %v1360 = vunpack.c.l.b16 %v336
  %v1361 = vunpack.c.h.b16 %v336
  %v1362 = vunpack.c.l.b16 %v337
  %v1363 = vunpack.c.h.b16 %v337
  %v1364 = vunpack.c.l.b16 %v338
  %v1365 = vunpack.c.h.b16 %v338
  %v1366 = vunpack.c.l.b16 %v339
  %v1367 = vunpack.c.h.b16 %v339
  %v1368 = vunpack.c.l.b16 %v340
  %v1369 = vunpack.c.h.b16 %v340
  %v1370 = vunpack.c.l.b16 %v341
  %v1371 = vunpack.c.h.b16 %v341
  %v1372 = vunpack.c.l.b16 %v342
  %v1373 = vunpack.c.h.b16 %v342
  %v1374 = vunpack.c.l.b16 %v343
  %v1375 = vunpack.c.h.b16 %v343
  %v1376 = vunpack.c.l.b16 %v344
  %v1377 = vunpack.c.h.b16 %v344
  %v1378 = vunpack.c.l.b16 %v345
  %v1379 = vunpack.c.h.b16 %v345
  %v1380 = vunpack.c.l.b16 %v346
  %v1381 = vunpack.c.h.b16 %v346
  %v1382 = vunpack.c.l.b16 %v347
  %v1383 = vunpack.c.h.b16 %v347
  %v1384 = vunpack.c.l.b16 %v348
  %v1385 = vunpack.c.h.b16 %v348
  %v1386 = vunpack.c.l.b16 %v349
  %v1387 = vunpack.c.h.b16 %v349
  %v1388 = vunpack.c.l.b16 %v350
  %v1389 = vunpack.c.h.b16 %v350
  %v1390 = vunpack.c.l.b16 %v351
  %v1391 = vunpack.c.h.b16 %v351
  %v1392 = vunpack.c.l.b16 %v352
  %v1393 = vunpack.c.h.b16 %v352
  %v1394 = vunpack.c.l.b16 %v353
  %v1395 = vunpack.c.h.b16 %v353
  %v1396 = vunpack.c.l.b16 %v354
  %v1397 = vunpack.c.h.b16 %v354
  %v1398 = vunpack.c.l.b16 %v355
  %v1399 = vunpack.c.h.b16 %v355
  %v1400 = vunpack.c.l.b16 %v356
  %v1401 = vunpack.c.h.b16 %v356
  %v1402 = vunpack.c.l.b16 %v357
  %v1403 = vunpack.c.h.b16 %v357
  %v1404 = vunpack.c.l.b16 %v358
  %v1405 = vunpack.c.h.b16 %v358
  %v1406 = vunpack.c.l.b16 %v359
  %v1407 = vunpack.c.h.b16 %v359
  %v1408 = vunpack.c.l.b16 %v360
  %v1409 = vunpack.c.h.b16 %v360
  %v1410 = vunpack.c.l.b16 %v361
  %v1411 = vunpack.c.h.b16 %v361
  %v1412 = vunpack.c.l.b16 %v362
  %v1413 = vunpack.c.h.b16 %v362
  %v1414 = vunpack.c.l.b16 %v363
  %v1415 = vunpack.c.h.b16 %v363
  %v1416 = vunpack.c.l.b16 %v364
  %v1417 = vunpack.c.h.b16 %v364
  %v1418 = vunpack.c.l.b16 %v365
  %v1419 = vunpack.c.h.b16 %v365
  %v1420 = vunpack.c.l.b16 %v366
  %v1421 = vunpack.c.h.b16 %v366
  %v1422 = vunpack.c.l.b16 %v367
  %v1423 = vunpack.c.h.b16 %v367
  %v1424 = vunpack.c.l.b16 %v368
  %v1425 = vunpack.c.h.b16 %v368
  %v1426 = vunpack.c.l.b16 %v369
  %v1427 = vunpack.c.h.b16 %v369
  %v1428 = vunpack.c.l.b16 %v370
  %v1429 = vunpack.c.h.b16 %v370
  %v1430 = vunpack.c.l.b16 %v371
  %v1431 = vunpack.c.h.b16 %v371
  %v1432 = vunpack.c.l.b16 %v372
  %v1433 = vunpack.c.h.b16 %v372
  %v1434 = vunpack.c.l.b16 %v373
  %v1435 = vunpack.c.h.b16 %v373
  %v1436 = vunpack.c.l.b16 %v374
  %v1437 = vunpack.c.h.b16 %v374
  %v1438 = vunpack.c.l.b16 %v375
  %v1439 = vunpack.c.h.b16 %v375
  %v1440 = vunpack.c.l.b16 %v376
  %v1441 = vunpack.c.h.b16 %v376
  %v1442 = vunpack.c.l.b16 %v377
  %v1443 = vunpack.c.h.b16 %v377
  %v1444 = vunpack.c.l.b16 %v378
  %v1445 = vunpack.c.h.b16 %v378
  %v1446 = vunpack.c.l.b16 %v379
  %v1447 = vunpack.c.h.b16 %v379
  %v1448 = vunpack.c.l.b16 %v380
  %v1449 = vunpack.c.h.b16 %v380
  %v1450 = vunpack.c.l.b16 %v381
  %v1451 = vunpack.c.h.b16 %v381
  %v1452 = vunpack.c.l.b16 %v382
  %v1453 = vunpack.c.h.b16 %v382
  %v1454 = vunpack.c.l.b16 %v383
  %v1455 = vunpack.c.h.b16 %v383
  %v1456 = vunpack.c.l.b16 %v384
  %v1457 = vunpack.c.h.b16 %v384
  %v1458 = vunpack.c.l.b16 %v385
  %v1459 = vunpack.c.h.b16 %v385
  %v1460 = vunpack.c.l.b16 %v386
  %v1461 = vunpack.c.h.b16 %v386
  %v1462 = vunpack.c.l.b16 %v387
  %v1463 = vunpack.c.h.b16 %v387
  %v1464 = vunpack.c.l.b16 %v388
  %v1465 = vunpack.c.h.b16 %v388
  %v1466 = vunpack.c.l.b16 %v389
  %v1467 = vunpack.c.h.b16 %v389
  %v1468 = vunpack.c.l.b16 %v390
  %v1469 = vunpack.c.h.b16 %v390
  %v1470 = vunpack.c.l.b16 %v391
  %v1471 = vunpack.c.h.b16 %v391
  %v1472 = vunpack.c.l.b16 %v392
  %v1473 = vunpack.c.h.b16 %v392
  %v1474 = vunpack.c.l.b16 %v393
  %v1475 = vunpack.c.h.b16 %v393
  %v1476 = vunpack.c.l.b16 %v394
  %v1477 = vunpack.c.h.b16 %v394
  %v1478 = vunpack.c.l.b16 %v395
  %v1479 = vunpack.c.h.b16 %v395
  %v1480 = vunpack.c.l.b16 %v396
  %v1481 = vunpack.c.h.b16 %v396
  %v1482 = vunpack.c.l.b16 %v397
  %v1483 = vunpack.c.h.b16 %v397
  %v1484 = vunpack.c.l.b16 %v398
  %v1485 = vunpack.c.h.b16 %v398
  %v1486 = vunpack.c.l.b16 %v399
  %v1487 = vunpack.c.h.b16 %v399
  %v1488 = vunpack.c.l.b16 %v400
  %v1489 = vunpack.c.h.b16 %v400
  %v1490 = vunpack.c.l.b16 %v401
  %v1491 = vunpack.c.h.b16 %v401
  %v1492 = vunpack.c.l.b16 %v402
  %v1493 = vunpack.c.h.b16 %v402
  %v1494 = vunpack.c.l.b16 %v403
  %v1495 = vunpack.c.h.b16 %v403
  %v1496 = vunpack.c.l.b16 %v404
  %v1497 = vunpack.c.h.b16 %v404
  %v1498 = vunpack.c.l.b16 %v405
  %v1499 = vunpack.c.h.b16 %v405
  %v1500 = vunpack.c.l.b16 %v406
  %v1501 = vunpack.c.h.b16 %v406
  %v1502 = vunpack.c.l.b16 %v407
  %v1503 = vunpack.c.h.b16 %v407
  %v1504 = vunpack.c.l.b16 %v408
  %v1505 = vunpack.c.h.b16 %v408
  %v1506 = vunpack.c.l.b16 %v409
  %v1507 = vunpack.c.h.b16 %v409
  %v1508 = vunpack.c.l.b16 %v410
  %v1509 = vunpack.c.h.b16 %v410
  %v1510 = vunpack.c.l.b16 %v411
  %v1511 = vunpack.c.h.b16 %v411
  %v1512 = vunpack.c.l.b16 %v412
  %v1513 = vunpack.c.h.b16 %v412
  %v1514 = vunpack.c.l.b16 %v413
  %v1515 = vunpack.c.h.b16 %v413
  %v1516 = vunpack.c.l.b16 %v414
  %v1517 = vunpack.c.h.b16 %v414
  %v1518 = vunpack.c.l.b16 %v415
  %v1519 = vunpack.c.h.b16 %v415
  %v1520 = vunpack.c.l.b16 %v416
  %v1521 = vunpack.c.h.b16 %v416
  %v1522 = vunpack.c.l.b16 %v417
  %v1523 = vunpack.c.h.b16 %v417
  %v1524 = vunpack.c.l.b16 %v418
  %v1525 = vunpack.c.h.b16 %v418
  %v1526 = vunpack.c.l.b16 %v419
  %v1527 = vunpack.c.h.b16 %v419
  %v1528 = vunpack.c.l.b16 %v420
  %v1529 = vunpack.c.h.b16 %v420
  %v1530 = vunpack.c.l.b16 %v421
  %v1531 = vunpack.c.h.b16 %v421
  %v1532 = vunpack.c.l.b16 %v422
  %v1533 = vunpack.c.h.b16 %v422
  %v1534 = vunpack.c.l.b16 %v423
  %v1535 = vunpack.c.h.b16 %v423
  %v1536 = vunpack.c.l.b16 %v424
  %v1537 = vunpack.c.h.b16 %v424
  %v1538 = vunpack.c.l.b16 %v425
  %v1539 = vunpack.c.h.b16 %v425
  %v1540 = vunpack.c.l.b16 %v426
  %v1541 = vunpack.c.h.b16 %v426
  %v1542 = vunpack.c.l.b16 %v427
  %v1543 = vunpack.c.h.b16 %v427
  %v1544 = vunpack.c.l.b16 %v428
  %v1545 = vunpack.c.h.b16 %v428
  %v1546 = vunpack.c.l.b16 %v429
  %v1547 = vunpack.c.h.b16 %v429
  %v1548 = vunpack.c.l.b16 %v430
  %v1549 = vunpack.c.h.b16 %v430
  %v1550 = vunpack.c.l.b16 %v431
  %v1551 = vunpack.c.h.b16 %v431
  %v1552 = vunpack.c.l.b16 %v432
  %v1553 = vunpack.c.h.b16 %v432
  %v1554 = vunpack.c.l.b16 %v433
  %v1555 = vunpack.c.h.b16 %v433
  %v1556 = vunpack.c.l.b16 %v434
  %v1557 = vunpack.c.h.b16 %v434
  %v1558 = vunpack.c.l.b16 %v435
  %v1559 = vunpack.c.h.b16 %v435
  %v1560 = vunpack.c.l.b16 %v436
  %v1561 = vunpack.c.h.b16 %v436
  %v1562 = vunpack.c.l.b16 %v437
  %v1563 = vunpack.c.h.b16 %v437
  %v1564 = vunpack.c.l.b16 %v438
  %v1565 = vunpack.c.h.b16 %v438
  %v1566 = vunpack.c.l.b16 %v439
  %v1567 = vunpack.c.h.b16 %v439
  %v1568 = vunpack.c.l.b16 %v440
  %v1569 = vunpack.c.h.b16 %v440
  %v1570 = vunpack.c.l.b16 %v441
  %v1571 = vunpack.c.h.b16 %v441
  %v1572 = vunpack.c.l.b16 %v442
  %v1573 = vunpack.c.h.b16 %v442
  %v1574 = vunpack.c.l.b16 %v443
  %v1575 = vunpack.c.h.b16 %v443
  %v1576 = vunpack.c.l.b16 %v444
  %v1577 = vunpack.c.h.b16 %v444
  %v1578 = vunpack.c.l.b16 %v445
  %v1579 = vunpack.c.h.b16 %v445
  %v1580 = vunpack.c.l.b16 %v446
  %v1581 = vunpack.c.h.b16 %v446
  %v1582 = vunpack.c.l.b16 %v447
  %v1583 = vunpack.c.h.b16 %v447
  %v1584 = vunpack.c.l.b16 %v448
  %v1585 = vunpack.c.h.b16 %v448
  %v1586 = vunpack.c.l.b16 %v449
  %v1587 = vunpack.c.h.b16 %v449
  %v1588 = vunpack.c.l.b16 %v450
  %v1589 = vunpack.c.h.b16 %v450
  %v1590 = vunpack.c.l.b16 %v451
  %v1591 = vunpack.c.h.b16 %v451
  %v1592 = vunpack.c.l.b16 %v452
  %v1593 = vunpack.c.h.b16 %v452
  %v1594 = vunpack.c.l.b16 %v453
  %v1595 = vunpack.c.h.b16 %v453
  %v1596 = vunpack.c.l.b16 %v454
  %v1597 = vunpack.c.h.b16 %v454
  %v1598 = vunpack.c.l.b16 %v455
  %v1599 = vunpack.c.h.b16 %v455
  %v1600 = vunpack.c.l.b16 %v456
  %v1601 = vunpack.c.h.b16 %v456
  %v1602 = vunpack.c.l.b16 %v457
  %v1603 = vunpack.c.h.b16 %v457
  %v1604 = vunpack.c.l.b16 %v458
  %v1605 = vunpack.c.h.b16 %v458
  %v1606 = vunpack.c.l.b16 %v459
  %v1607 = vunpack.c.h.b16 %v459
  %v1608 = vunpack.c.l.b16 %v460
  %v1609 = vunpack.c.h.b16 %v460
  %v1610 = vunpack.c.l.b16 %v461
  %v1611 = vunpack.c.h.b16 %v461
  %v1612 = vunpack.c.l.b16 %v462
  %v1613 = vunpack.c.h.b16 %v462
  %v1614 = vunpack.c.l.b16 %v463
  %v1615 = vunpack.c.h.b16 %v463
  %v1616 = vunpack.c.l.b16 %v464
  %v1617 = vunpack.c.h.b16 %v464
  %v1618 = vunpack.c.l.b16 %v465
  %v1619 = vunpack.c.h.b16 %v465
  %v1620 = vunpack.c.l.b16 %v466
  %v1621 = vunpack.c.h.b16 %v466
  %v1622 = vunpack.c.l.b16 %v467
  %v1623 = vunpack.c.h.b16 %v467
  %v1624 = vunpack.c.l.b16 %v468
  %v1625 = vunpack.c.h.b16 %v468
  %v1626 = vunpack.c.l.b16 %v469
  %v1627 = vunpack.c.h.b16 %v469
  %v1628 = vunpack.c.l.b16 %v470
  %v1629 = vunpack.c.h.b16 %v470
  %v1630 = vunpack.c.l.b16 %v471
  %v1631 = vunpack.c.h.b16 %v471
  %v1632 = vunpack.c.l.b16 %v472
  %v1633 = vunpack.c.h.b16 %v472
  %v1634 = vunpack.c.l.b16 %v473
  %v1635 = vunpack.c.h.b16 %v473
  %v1636 = vunpack.c.l.b16 %v474
  %v1637 = vunpack.c.h.b16 %v474
  %v1638 = vunpack.c.l.b16 %v475
  %v1639 = vunpack.c.h.b16 %v475
  %v1640 = vunpack.c.l.b16 %v476
  %v1641 = vunpack.c.h.b16 %v476
  %v1642 = vunpack.c.l.b16 %v477
  %v1643 = vunpack.c.h.b16 %v477
  %v1644 = vunpack.c.l.b16 %v478
  %v1645 = vunpack.c.h.b16 %v478
  %v1646 = vunpack.c.l.b16 %v479
  %v1647 = vunpack.c.h.b16 %v479
  %v1648 = vunpack.c.l.b16 %v480
  %v1649 = vunpack.c.h.b16 %v480
  %v1650 = vunpack.c.l.b16 %v481
  %v1651 = vunpack.c.h.b16 %v481
  %v1652 = vunpack.c.l.b16 %v482
  %v1653 = vunpack.c.h.b16 %v482
  %v1654 = vunpack.c.l.b16 %v483
  %v1655 = vunpack.c.h.b16 %v483
  %v1656 = vunpack.c.l.b16 %v484
  %v1657 = vunpack.c.h.b16 %v484
  %v1658 = vunpack.c.l.b16 %v485
  %v1659 = vunpack.c.h.b16 %v485
  %v1660 = vunpack.c.l.b16 %v486
  %v1661 = vunpack.c.h.b16 %v486
  %v1662 = vunpack.c.l.b16 %v487
  %v1663 = vunpack.c.h.b16 %v487
  %v1664 = vpack.c.b16 %v888, %v880
  %v1665 = vpack.c.b16 %v889, %v881
  %v1666 = vpack.c.b16 %v890, %v882
  %v1667 = vpack.c.b16 %v891, %v883
  %v1668 = vpack.c.b16 %v892, %v884
  %v1669 = vpack.c.b16 %v893, %v885
  %v1670 = vpack.c.b16 %v894, %v886
  %v1671 = vpack.c.b16 %v895, %v887
  %v1672 = vpack.c.b16 %v904, %v896
  %v1673 = vpack.c.b16 %v905, %v897
  %v1674 = vpack.c.b16 %v906, %v898
  %v1675 = vpack.c.b16 %v907, %v899
  %v1676 = vpack.c.b16 %v908, %v900
  %v1677 = vpack.c.b16 %v909, %v901
  %v1678 = vpack.c.b16 %v910, %v902
  %v1679 = vpack.c.b16 %v911, %v903
  %v1680 = vpack.c.b16 %v920, %v912
  %v1681 = vpack.c.b16 %v921, %v913
  %v1682 = vpack.c.b16 %v922, %v914
  %v1683 = vpack.c.b16 %v923, %v915
  %v1684 = vpack.c.b16 %v924, %v916
  %v1685 = vpack.c.b16 %v925, %v917
  %v1686 = vpack.c.b16 %v926, %v918
  %v1687 = vpack.c.b16 %v927, %v919
  %v1688 = vpack.c.b16 %v936, %v928
  %v1689 = vpack.c.b16 %v937, %v929
  %v1690 = vpack.c.b16 %v938, %v930
  %v1691 = vpack.c.b16 %v939, %v931
  %v1692 = vpack.c.b16 %v940, %v932
  %v1693 = vpack.c.b16 %v941, %v933
  %v1694 = vpack.c.b16 %v942, %v934
  %v1695 = vpack.c.b16 %v943, %v935
  %v1696 = vpack.c.b16 %v952, %v944
  %v1697 = vpack.c.b16 %v953, %v945
  %v1698 = vpack.c.b16 %v954, %v946
  %v1699 = vpack.c.b16 %v955, %v947
  %v1700 = vpack.c.b16 %v956, %v948
  %v1701 = vpack.c.b16 %v957, %v949
  %v1702 = vpack.c.b16 %v958, %v950
  %v1703 = vpack.c.b16 %v959, %v951
  %v1704 = vpack.c.b16 %v968, %v960
  %v1705 = vpack.c.b16 %v969, %v961
  %v1706 = vpack.c.b16 %v970, %v962
  %v1707 = vpack.c.b16 %v971, %v963
  %v1708 = vpack.c.b16 %v972, %v964
  %v1709 = vpack.c.b16 %v973, %v965
  %v1710 = vpack.c.b16 %v974, %v966
  %v1711 = vpack.c.b16 %v975, %v967
  %v1712 = vpack.c.b16 %v984, %v976
  %v1713 = vpack.c.b16 %v985, %v977
  %v1714 = vpack.c.b16 %v986, %v978
  %v1715 = vpack.c.b16 %v987, %v979
  %v1716 = vpack.c.b16 %v988, %v980
  %v1717 = vpack.c.b16 %v989, %v981
  %v1718 = vpack.c.b16 %v990, %v982
  %v1719 = vpack.c.b16 %v991, %v983
  %v1720 = vpack.c.b16 %v1000, %v992
  %v1721 = vpack.c.b16 %v1001, %v993
  %v1722 = vpack.c.b16 %v1002, %v994
  %v1723 = vpack.c.b16 %v1003, %v995
  %v1724 = vpack.c.b16 %v1004, %v996
  %v1725 = vpack.c.b16 %v1005, %v997
  %v1726 = vpack.c.b16 %v1006, %v998
  %v1727 = vpack.c.b16 %v1007, %v999
  %v1728 = vpack.c.b16 %v1016, %v1008
  %v1729 = vpack.c.b16 %v1017, %v1009
  %v1730 = vpack.c.b16 %v1018, %v1010
  %v1731 = vpack.c.b16 %v1019, %v1011
  %v1732 = vpack.c.b16 %v1020, %v1012
  %v1733 = vpack.c.b16 %v1021, %v1013
  %v1734 = vpack.c.b16 %v1022, %v1014
  %v1735 = vpack.c.b16 %v1023, %v1015
  %v1736 = vpack.c.b16 %v1032, %v1024
  %v1737 = vpack.c.b16 %v1033, %v1025
  %v1738 = vpack.c.b16 %v1034, %v1026
  %v1739 = vpack.c.b16 %v1035, %v1027
  %v1740 = vpack.c.b16 %v1036, %v1028
  %v1741 = vpack.c.b16 %v1037, %v1029
  %v1742 = vpack.c.b16 %v1038, %v1030
  %v1743 = vpack.c.b16 %v1039, %v1031
  %v1744 = vpack.c.b16 %v1048, %v1040
  %v1745 = vpack.c.b16 %v1049, %v1041
  %v1746 = vpack.c.b16 %v1050, %v1042
  %v1747 = vpack.c.b16 %v1051, %v1043
  %v1748 = vpack.c.b16 %v1052, %v1044
  %v1749 = vpack.c.b16 %v1053, %v1045
  %v1750 = vpack.c.b16 %v1054, %v1046
  %v1751 = vpack.c.b16 %v1055, %v1047
  %v1752 = vpack.c.b16 %v1064, %v1056
  %v1753 = vpack.c.b16 %v1065, %v1057
  %v1754 = vpack.c.b16 %v1066, %v1058
  %v1755 = vpack.c.b16 %v1067, %v1059
  %v1756 = vpack.c.b16 %v1068, %v1060
  %v1757 = vpack.c.b16 %v1069, %v1061
  %v1758 = vpack.c.b16 %v1070, %v1062
  %v1759 = vpack.c.b16 %v1071, %v1063
  %v1760 = vpack.c.b16 %v1080, %v1072
  %v1761 = vpack.c.b16 %v1081, %v1073
  %v1762 = vpack.c.b16 %v1082, %v1074
  %v1763 = vpack.c.b16 %v1083, %v1075
  %v1764 = vpack.c.b16 %v1084, %v1076
  %v1765 = vpack.c.b16 %v1085, %v1077
  %v1766 = vpack.c.b16 %v1086, %v1078
  %v1767 = vpack.c.b16 %v1087, %v1079
  %v1768 = vpack.c.b16 %v1096, %v1088
  %v1769 = vpack.c.b16 %v1097, %v1089
  %v1770 = vpack.c.b16 %v1098, %v1090
  %v1771 = vpack.c.b16 %v1099, %v1091
  %v1772 = vpack.c.b16 %v1100, %v1092
  %v1773 = vpack.c.b16 %v1101, %v1093
  %v1774 = vpack.c.b16 %v1102, %v1094
  %v1775 = vpack.c.b16 %v1103, %v1095
  %v1776 = vpack.c.b16 %v1112, %v1104
  %v1777 = vpack.c.b16 %v1113, %v1105
  %v1778 = vpack.c.b16 %v1114, %v1106
  %v1779 = vpack.c.b16 %v1115, %v1107
  %v1780 = vpack.c.b16 %v1116, %v1108
  %v1781 = vpack.c.b16 %v1117, %v1109
  %v1782 = vpack.c.b16 %v1118, %v1110
  %v1783 = vpack.c.b16 %v1119, %v1111
  %v1784 = vpack.c.b16 %v1128, %v1120
  %v1785 = vpack.c.b16 %v1129, %v1121
  %v1786 = vpack.c.b16 %v1130, %v1122
  %v1787 = vpack.c.b16 %v1131, %v1123
  %v1788 = vpack.c.b16 %v1132, %v1124
  %v1789 = vpack.c.b16 %v1133, %v1125
  %v1790 = vpack.c.b16 %v1134, %v1126
  %v1791 = vpack.c.b16 %v1135, %v1127
  %v1792 = vpack.c.b16 %v1144, %v1136
  %v1793 = vpack.c.b16 %v1145, %v1137
  %v1794 = vpack.c.b16 %v1146, %v1138
  %v1795 = vpack.c.b16 %v1147, %v1139
  %v1796 = vpack.c.b16 %v1148, %v1140
  %v1797 = vpack.c.b16 %v1149, %v1141
  %v1798 = vpack.c.b16 %v1150, %v1142
  %v1799 = vpack.c.b16 %v1151, %v1143
  %v1800 = vpack.c.b16 %v1160, %v1152
  %v1801 = vpack.c.b16 %v1161, %v1153
  %v1802 = vpack.c.b16 %v1162, %v1154
  %v1803 = vpack.c.b16 %v1163, %v1155
  %v1804 = vpack.c.b16 %v1164, %v1156
  %v1805 = vpack.c.b16 %v1165, %v1157
  %v1806 = vpack.c.b16 %v1166, %v1158
  %v1807 = vpack.c.b16 %v1167, %v1159
  %v1808 = vpack.c.b16 %v1176, %v1168
  %v1809 = vpack.c.b16 %v1177, %v1169
  %v1810 = vpack.c.b16 %v1178, %v1170
  %v1811 = vpack.c.b16 %v1179, %v1171
  %v1812 = vpack.c.b16 %v1180, %v1172
  %v1813 = vpack.c.b16 %v1181, %v1173
  %v1814 = vpack.c.b16 %v1182, %v1174
  %v1815 = vpack.c.b16 %v1183, %v1175
  %v1816 = vpack.c.b16 %v1192, %v1184
  %v1817 = vpack.c.b16 %v1193, %v1185
  %v1818 = vpack.c.b16 %v1194, %v1186
  %v1819 = vpack.c.b16 %v1195, %v1187
  %v1820 = vpack.c.b16 %v1196, %v1188
  %v1821 = vpack.c.b16 %v1197, %v1189
  %v1822 = vpack.c.b16 %v1198, %v1190
  %v1823 = vpack.c.b16 %v1199, %v1191
  %v1824 = vpack.c.b16 %v1208, %v1200
  %v1825 = vpack.c.b16 %v1209, %v1201
  %v1826 = vpack.c.b16 %v1210, %v1202
  %v1827 = vpack.c.b16 %v1211, %v1203
  %v1828 = vpack.c.b16 %v1212, %v1204
  %v1829 = vpack.c.b16 %v1213, %v1205
  %v1830 = vpack.c.b16 %v1214, %v1206
  %v1831 = vpack.c.b16 %v1215, %v1207
  %v1832 = vpack.c.b16 %v1224, %v1216
  %v1833 = vpack.c.b16 %v1225, %v1217
  %v1834 = vpack.c.b16 %v1226, %v1218
  %v1835 = vpack.c.b16 %v1227, %v1219
  %v1836 = vpack.c.b16 %v1228, %v1220
  %v1837 = vpack.c.b16 %v1229, %v1221
  %v1838 = vpack.c.b16 %v1230, %v1222
  %v1839 = vpack.c.b16 %v1231, %v1223
  %v1840 = vpack.c.b16 %v1240, %v1232
  %v1841 = vpack.c.b16 %v1241, %v1233
  %v1842 = vpack.c.b16 %v1242, %v1234
  %v1843 = vpack.c.b16 %v1243, %v1235
  %v1844 = vpack.c.b16 %v1244, %v1236
  %v1845 = vpack.c.b16 %v1245, %v1237
  %v1846 = vpack.c.b16 %v1246, %v1238
  %v1847 = vpack.c.b16 %v1247, %v1239
  %v1848 = vpack.c.b16 %v1256, %v1248
  %v1849 = vpack.c.b16 %v1257, %v1249
  %v1850 = vpack.c.b16 %v1258, %v1250
  %v1851 = vpack.c.b16 %v1259, %v1251
  %v1852 = vpack.c.b16 %v1260, %v1252
  %v1853 = vpack.c.b16 %v1261, %v1253
  %v1854 = vpack.c.b16 %v1262, %v1254
  %v1855 = vpack.c.b16 %v1263, %v1255
  %v1856 = vpack.c.b16 %v1272, %v1264
  %v1857 = vpack.c.b16 %v1273, %v1265
  %v1858 = vpack.c.b16 %v1274, %v1266
  %v1859 = vpack.c.b16 %v1275, %v1267
  %v1860 = vpack.c.b16 %v1276, %v1268
  %v1861 = vpack.c.b16 %v1277, %v1269
  %v1862 = vpack.c.b16 %v1278, %v1270
  %v1863 = vpack.c.b16 %v1279, %v1271
  %v1864 = vpack.c.b16 %v1288, %v1280
  %v1865 = vpack.c.b16 %v1289, %v1281
  %v1866 = vpack.c.b16 %v1290, %v1282
  %v1867 = vpack.c.b16 %v1291, %v1283
  %v1868 = vpack.c.b16 %v1292, %v1284
  %v1869 = vpack.c.b16 %v1293, %v1285
  %v1870 = vpack.c.b16 %v1294, %v1286
  %v1871 = vpack.c.b16 %v1295, %v1287
  %v1872 = vpack.c.b16 %v1304, %v1296
  %v1873 = vpack.c.b16 %v1305, %v1297
  %v1874 = vpack.c.b16 %v1306, %v1298
  %v1875 = vpack.c.b16 %v1307, %v1299
  %v1876 = vpack.c.b16 %v1308, %v1300
  %v1877 = vpack.c.b16 %v1309, %v1301
  %v1878 = vpack.c.b16 %v1310, %v1302
  %v1879 = vpack.c.b16 %v1311, %v1303
  %v1880 = vpack.c.b16 %v1320, %v1312
  %v1881 = vpack.c.b16 %v1321, %v1313
  %v1882 = vpack.c.b16 %v1322, %v1314
  %v1883 = vpack.c.b16 %v1323, %v1315
  %v1884 = vpack.c.b16 %v1324, %v1316
  %v1885 = vpack.c.b16 %v1325, %v1317
  %v1886 = vpack.c.b16 %v1326, %v1318
  %v1887 = vpack.c.b16 %v1327, %v1319
  %v1888 = vpack.c.b16 %v1336, %v1328
  %v1889 = vpack.c.b16 %v1337, %v1329
  %v1890 = vpack.c.b16 %v1338, %v1330
  %v1891 = vpack.c.b16 %v1339, %v1331
  %v1892 = vpack.c.b16 %v1340, %v1332
  %v1893 = vpack.c.b16 %v1341, %v1333
  %v1894 = vpack.c.b16 %v1342, %v1334
  %v1895 = vpack.c.b16 %v1343, %v1335
  %v1896 = vpack.c.b16 %v1352, %v1344
  %v1897 = vpack.c.b16 %v1353, %v1345
  %v1898 = vpack.c.b16 %v1354, %v1346
  %v1899 = vpack.c.b16 %v1355, %v1347
  %v1900 = vpack.c.b16 %v1356, %v1348
  %v1901 = vpack.c.b16 %v1357, %v1349
  %v1902 = vpack.c.b16 %v1358, %v1350
  %v1903 = vpack.c.b16 %v1359, %v1351
  %v1904 = vpack.c.b16 %v1368, %v1360
  %v1905 = vpack.c.b16 %v1369, %v1361
  %v1906 = vpack.c.b16 %v1370, %v1362
  %v1907 = vpack.c.b16 %v1371, %v1363
  %v1908 = vpack.c.b16 %v1372, %v1364
  %v1909 = vpack.c.b16 %v1373, %v1365
  %v1910 = vpack.c.b16 %v1374, %v1366
  %v1911 = vpack.c.b16 %v1375, %v1367
  %v1912 = vpack.c.b16 %v1384, %v1376
  %v1913 = vpack.c.b16 %v1385, %v1377
  %v1914 = vpack.c.b16 %v1386, %v1378
  %v1915 = vpack.c.b16 %v1387, %v1379
  %v1916 = vpack.c.b16 %v1388, %v1380
  %v1917 = vpack.c.b16 %v1389, %v1381
  %v1918 = vpack.c.b16 %v1390, %v1382
  %v1919 = vpack.c.b16 %v1391, %v1383
  %v1920 = vpack.c.b16 %v1400, %v1392
  %v1921 = vpack.c.b16 %v1401, %v1393
  %v1922 = vpack.c.b16 %v1402, %v1394
  %v1923 = vpack.c.b16 %v1403, %v1395
  %v1924 = vpack.c.b16 %v1404, %v1396
  %v1925 = vpack.c.b16 %v1405, %v1397
  %v1926 = vpack.c.b16 %v1406, %v1398
  %v1927 = vpack.c.b16 %v1407, %v1399
  %v1928 = vpack.c.b16 %v1416, %v1408
  %v1929 = vpack.c.b16 %v1417, %v1409
  %v1930 = vpack.c.b16 %v1418, %v1410
  %v1931 = vpack.c.b16 %v1419, %v1411
  %v1932 = vpack.c.b16 %v1420, %v1412
  %v1933 = vpack.c.b16 %v1421, %v1413
  %v1934 = vpack.c.b16 %v1422, %v1414
  %v1935 = vpack.c.b16 %v1423, %v1415
  %v1936 = vpack.c.b16 %v1432, %v1424
  %v1937 = vpack.c.b16 %v1433, %v1425
  %v1938 = vpack.c.b16 %v1434, %v1426
  %v1939 = vpack.c.b16 %v1435, %v1427
  %v1940 = vpack.c.b16 %v1436, %v1428
  %v1941 = vpack.c.b16 %v1437, %v1429
  %v1942 = vpack.c.b16 %v1438, %v1430
  %v1943 = vpack.c.b16 %v1439, %v1431
  %v1944 = vpack.c.b16 %v1448, %v1440
  %v1945 = vpack.c.b16 %v1449, %v1441
  %v1946 = vpack.c.b16 %v1450, %v1442
  %v1947 = vpack.c.b16 %v1451, %v1443
  %v1948 = vpack.c.b16 %v1452, %v1444
  %v1949 = vpack.c.b16 %v1453, %v1445
  %v1950 = vpack.c.b16 %v1454, %v1446
  %v1951 = vpack.c.b16 %v1455, %v1447
  %v1952 = vpack.c.b16 %v1464, %v1456
  %v1953 = vpack.c.b16 %v1465, %v1457
  %v1954 = vpack.c.b16 %v1466, %v1458
  %v1955 = vpack.c.b16 %v1467, %v1459
  %v1956 = vpack.c.b16 %v1468, %v1460
  %v1957 = vpack.c.b16 %v1469, %v1461
  %v1958 = vpack.c.b16 %v1470, %v1462
  %v1959 = vpack.c.b16 %v1471, %v1463
  %v1960 = vpack.c.b16 %v1480, %v1472
  %v1961 = vpack.c.b16 %v1481, %v1473
  %v1962 = vpack.c.b16 %v1482, %v1474
  %v1963 = vpack.c.b16 %v1483, %v1475
  %v1964 = vpack.c.b16 %v1484, %v1476
  %v1965 = vpack.c.b16 %v1485, %v1477
  %v1966 = vpack.c.b16 %v1486, %v1478
  %v1967 = vpack.c.b16 %v1487, %v1479
  %v1968 = vpack.c.b16 %v1496, %v1488
  %v1969 = vpack.c.b16 %v1497, %v1489
  %v1970 = vpack.c.b16 %v1498, %v1490
  %v1971 = vpack.c.b16 %v1499, %v1491
  %v1972 = vpack.c.b16 %v1500, %v1492
  %v1973 = vpack.c.b16 %v1501, %v1493
  %v1974 = vpack.c.b16 %v1502, %v1494
  %v1975 = vpack.c.b16 %v1503, %v1495
  %v1976 = vpack.c.b16 %v1512, %v1504
  %v1977 = vpack.c.b16 %v1513, %v1505
  %v1978 = vpack.c.b16 %v1514, %v1506
  %v1979 = vpack.c.b16 %v1515, %v1507
  %v1980 = vpack.c.b16 %v1516, %v1508
  %v1981 = vpack.c.b16 %v1517, %v1509
  %v1982 = vpack.c.b16 %v1518, %v1510
  %v1983 = vpack.c.b16 %v1519, %v1511
  %v1984 = vpack.c.b16 %v1528, %v1520
  %v1985 = vpack.c.b16 %v1529, %v1521
  %v1986 = vpack.c.b16 %v1530, %v1522
  %v1987 = vpack.c.b16 %v1531, %v1523
  %v1988 = vpack.c.b16 %v1532, %v1524
  %v1989 = vpack.c.b16 %v1533, %v1525
  %v1990 = vpack.c.b16 %v1534, %v1526
  %v1991 = vpack.c.b16 %v1535, %v1527
  %v1992 = vpack.c.b16 %v1544, %v1536
  %v1993 = vpack.c.b16 %v1545, %v1537
  %v1994 = vpack.c.b16 %v1546, %v1538
  %v1995 = vpack.c.b16 %v1547, %v1539
  %v1996 = vpack.c.b16 %v1548, %v1540
  %v1997 = vpack.c.b16 %v1549, %v1541
  %v1998 = vpack.c.b16 %v1550, %v1542
  %v1999 = vpack.c.b16 %v1551, %v1543
  %v2000 = vpack.c.b16 %v1560, %v1552
  %v2001 = vpack.c.b16 %v1561, %v1553
  %v2002 = vpack.c.b16 %v1562, %v1554
  %v2003 = vpack.c.b16 %v1563, %v1555
  %v2004 = vpack.c.b16 %v1564, %v1556
  %v2005 = vpack.c.b16 %v1565, %v1557
  %v2006 = vpack.c.b16 %v1566, %v1558
  %v2007 = vpack.c.b16 %v1567, %v1559
  %v2008 = vpack.c.b16 %v1576, %v1568
  %v2009 = vpack.c.b16 %v1577, %v1569
  %v2010 = vpack.c.b16 %v1578, %v1570
  %v2011 = vpack.c.b16 %v1579, %v1571
  %v2012 = vpack.c.b16 %v1580, %v1572
  %v2013 = vpack.c.b16 %v1581, %v1573
  %v2014 = vpack.c.b16 %v1582, %v1574
  %v2015 = vpack.c.b16 %v1583, %v1575
  %v2016 = vpack.c.b16 %v1592, %v1584
  %v2017 = vpack.c.b16 %v1593, %v1585
  %v2018 = vpack.c.b16 %v1594, %v1586
  %v2019 = vpack.c.b16 %v1595, %v1587
  %v2020 = vpack.c.b16 %v1596, %v1588
  %v2021 = vpack.c.b16 %v1597, %v1589
  %v2022 = vpack.c.b16 %v1598, %v1590
  %v2023 = vpack.c.b16 %v1599, %v1591
  %v2024 = vpack.c.b16 %v1608, %v1600
  %v2025 = vpack.c.b16 %v1609, %v1601
  %v2026 = vpack.c.b16 %v1610, %v1602
  %v2027 = vpack.c.b16 %v1611, %v1603
  %v2028 = vpack.c.b16 %v1612, %v1604
  %v2029 = vpack.c.b16 %v1613, %v1605
  %v2030 = vpack.c.b16 %v1614, %v1606
  %v2031 = vpack.c.b16 %v1615, %v1607
  %v2032 = vpack.c.b16 %v1624, %v1616
  %v2033 = vpack.c.b16 %v1625, %v1617
  %v2034 = vpack.c.b16 %v1626, %v1618
  %v2035 = vpack.c.b16 %v1627, %v1619
  %v2036 = vpack.c.b16 %v1628, %v1620
  %v2037 = vpack.c.b16 %v1629, %v1621
  %v2038 = vpack.c.b16 %v1630, %v1622
  %v2039 = vpack.c.b16 %v1631, %v1623
  %v2040 = vpack.c.b16 %v1640, %v1632
  %v2041 = vpack.c.b16 %v1641, %v1633
  %v2042 = vpack.c.b16 %v1642, %v1634
  %v2043 = vpack.c.b16 %v1643, %v1635
  %v2044 = vpack.c.b16 %v1644, %v1636
  %v2045 = vpack.c.b16 %v1645, %v1637
  %v2046 = vpack.c.b16 %v1646, %v1638
  %v2047 = vpack.c.b16 %v1647, %v1639
  %v2048 = vpack.c.b16 %v1656, %v1648
  %v2049 = vpack.c.b16 %v1657, %v1649
  %v2050 = vpack.c.b16 %v1658, %v1650
  %v2051 = vpack.c.b16 %v1659, %v1651
  %v2052 = vpack.c.b16 %v1660, %v1652
  %v2053 = vpack.c.b16 %v1661, %v1653
  %v2054 = vpack.c.b16 %v1662, %v1654
  %v2055 = vpack.c.b16 %v1663, %v1655
  %vm2448 = vcmask 130048
  %v2450 = vsel %vm2448, %v81, 0
  %v2453 = vsel %vm2448, %v88, 0
  %v2456 = vsel %vm2448, %v95, 0
  %2458 = vmatpush.bf16.msra.mxu0 %v1720
  %2459 = vmatpush.bf16.msra.mxu0 %v1712
  %2460 = vmatpush.bf16.msra.mxu0 %v1704
  %2461 = vmatpush.bf16.msra.mxu0 %v1696
  %2462 = vmatpush.bf16.msra.mxu0 %v1688
  %2463 = vmatpush.bf16.msra.mxu0 %v1680
  %2464 = vmatpush.bf16.msra.mxu0 %v1672
  %2465 = vmatpush.bf16.msra.mxu0 %v1664
  %2466 = vmatmul.bf16.gmra.mxu0 %v75
  %v2467 = vpop.f32.mrf.mxu0
  %v2468 = vadd.f32 0.0, %v2467
  %v2469 = vpop.f32.mrf.mxu0
  %v2470 = vadd.f32 0.0, %v2469
  %2471 = vmatmul.bf16.gmra.mxu0 %v82
  %v2472 = vpop.f32.mrf.mxu0
  %v2473 = vadd.f32 0.0, %v2472
  %v2474 = vpop.f32.mrf.mxu0
  %v2475 = vadd.f32 0.0, %v2474
  %2476 = vmatmul.bf16.gmra.mxu0 %v89
  %v2477 = vpop.f32.mrf.mxu0
  %v2478 = vadd.f32 0.0, %v2477
  %v2479 = vpop.f32.mrf.mxu0
  %v2480 = vadd.f32 0.0, %v2479
  %2481 = vdwg.mxu0
  %2482 = vmatpush.bf16.msra.mxu0 %v1784
  %2483 = vmatpush.bf16.msra.mxu0 %v1776
  %2484 = vmatpush.bf16.msra.mxu0 %v1768
  %2485 = vmatpush.bf16.msra.mxu0 %v1760
  %2486 = vmatpush.bf16.msra.mxu0 %v1752
  %2487 = vmatpush.bf16.msra.mxu0 %v1744
  %2488 = vmatpush.bf16.msra.mxu0 %v1736
  %2489 = vmatpush.bf16.msra.mxu0 %v1728
  %2490 = vmatmul.bf16.gmra.mxu0 %v76
  %v2491 = vpop.f32.mrf.mxu0
  %v2492 = vadd.f32 %v2468, %v2491
  %v2493 = vpop.f32.mrf.mxu0
  %v2494 = vadd.f32 %v2470, %v2493
  %2495 = vmatmul.bf16.gmra.mxu0 %v83
  %v2496 = vpop.f32.mrf.mxu0
  %v2497 = vadd.f32 %v2473, %v2496
  %v2498 = vpop.f32.mrf.mxu0
  %v2499 = vadd.f32 %v2475, %v2498
  %2500 = vmatmul.bf16.gmra.mxu0 %v90
  %v2501 = vpop.f32.mrf.mxu0
  %v2502 = vadd.f32 %v2478, %v2501
  %v2503 = vpop.f32.mrf.mxu0
  %v2504 = vadd.f32 %v2480, %v2503
  %2505 = vdwg.mxu0
  %2506 = vmatpush.bf16.msra.mxu0 %v1848
  %2507 = vmatpush.bf16.msra.mxu0 %v1840
  %2508 = vmatpush.bf16.msra.mxu0 %v1832
  %2509 = vmatpush.bf16.msra.mxu0 %v1824
  %2510 = vmatpush.bf16.msra.mxu0 %v1816
  %2511 = vmatpush.bf16.msra.mxu0 %v1808
  %2512 = vmatpush.bf16.msra.mxu0 %v1800
  %2513 = vmatpush.bf16.msra.mxu0 %v1792
  %2514 = vmatmul.bf16.gmra.mxu0 %v77
  %v2515 = vpop.f32.mrf.mxu0
  %v2516 = vadd.f32 %v2492, %v2515
  %v2517 = vpop.f32.mrf.mxu0
  %v2518 = vadd.f32 %v2494, %v2517
  %2519 = vmatmul.bf16.gmra.mxu0 %v84
  %v2520 = vpop.f32.mrf.mxu0
  %v2521 = vadd.f32 %v2497, %v2520
  %v2522 = vpop.f32.mrf.mxu0
  %v2523 = vadd.f32 %v2499, %v2522
  %2524 = vmatmul.bf16.gmra.mxu0 %v91
  %v2525 = vpop.f32.mrf.mxu0
  %v2526 = vadd.f32 %v2502, %v2525
  %v2527 = vpop.f32.mrf.mxu0
  %v2528 = vadd.f32 %v2504, %v2527
  %2529 = vdwg.mxu0
  %2530 = vmatpush.bf16.msra.mxu0 %v1912
  %2531 = vmatpush.bf16.msra.mxu0 %v1904
  %2532 = vmatpush.bf16.msra.mxu0 %v1896
  %2533 = vmatpush.bf16.msra.mxu0 %v1888
  %2534 = vmatpush.bf16.msra.mxu0 %v1880
  %2535 = vmatpush.bf16.msra.mxu0 %v1872
  %2536 = vmatpush.bf16.msra.mxu0 %v1864
  %2537 = vmatpush.bf16.msra.mxu0 %v1856
  %2538 = vmatmul.bf16.gmra.mxu0 %v78
  %v2539 = vpop.f32.mrf.mxu0
  %v2540 = vadd.f32 %v2516, %v2539
  %v2541 = vpop.f32.mrf.mxu0
  %v2542 = vadd.f32 %v2518, %v2541
  %2543 = vmatmul.bf16.gmra.mxu0 %v85
  %v2544 = vpop.f32.mrf.mxu0
  %v2545 = vadd.f32 %v2521, %v2544
  %v2546 = vpop.f32.mrf.mxu0
  %v2547 = vadd.f32 %v2523, %v2546
  %2548 = vmatmul.bf16.gmra.mxu0 %v92
  %v2549 = vpop.f32.mrf.mxu0
  %v2550 = vadd.f32 %v2526, %v2549
  %v2551 = vpop.f32.mrf.mxu0
  %v2552 = vadd.f32 %v2528, %v2551
  %2553 = vdwg.mxu0
  %2554 = vmatpush.bf16.msra.mxu0 %v1976
  %2555 = vmatpush.bf16.msra.mxu0 %v1968
  %2556 = vmatpush.bf16.msra.mxu0 %v1960
  %2557 = vmatpush.bf16.msra.mxu0 %v1952
  %2558 = vmatpush.bf16.msra.mxu0 %v1944
  %2559 = vmatpush.bf16.msra.mxu0 %v1936
  %2560 = vmatpush.bf16.msra.mxu0 %v1928
  %2561 = vmatpush.bf16.msra.mxu0 %v1920
  %2562 = vmatmul.bf16.gmra.mxu0 %v79
  %v2563 = vpop.f32.mrf.mxu0
  %v2564 = vadd.f32 %v2540, %v2563
  %v2565 = vpop.f32.mrf.mxu0
  %v2566 = vadd.f32 %v2542, %v2565
  %2567 = vmatmul.bf16.gmra.mxu0 %v86
  %v2568 = vpop.f32.mrf.mxu0
  %v2569 = vadd.f32 %v2545, %v2568
  %v2570 = vpop.f32.mrf.mxu0
  %v2571 = vadd.f32 %v2547, %v2570
  %2572 = vmatmul.bf16.gmra.mxu0 %v93
  %v2573 = vpop.f32.mrf.mxu0
  %v2574 = vadd.f32 %v2550, %v2573
  %v2575 = vpop.f32.mrf.mxu0
  %v2576 = vadd.f32 %v2552, %v2575
  %2577 = vdwg.mxu0
  %2578 = vmatpush.bf16.msra.mxu0 %v2040
  %2579 = vmatpush.bf16.msra.mxu0 %v2032
  %2580 = vmatpush.bf16.msra.mxu0 %v2024
  %2581 = vmatpush.bf16.msra.mxu0 %v2016
  %2582 = vmatpush.bf16.msra.mxu0 %v2008
  %2583 = vmatpush.bf16.msra.mxu0 %v2000
  %2584 = vmatpush.bf16.msra.mxu0 %v1992
  %2585 = vmatpush.bf16.msra.mxu0 %v1984
  %2586 = vmatmul.bf16.gmra.mxu0 %v80
  %v2587 = vpop.f32.mrf.mxu0
  %v2588 = vadd.f32 %v2564, %v2587
  %v2589 = vpop.f32.mrf.mxu0
  %v2590 = vadd.f32 %v2566, %v2589
  %2591 = vmatmul.bf16.gmra.mxu0 %v87
  %v2592 = vpop.f32.mrf.mxu0
  %v2593 = vadd.f32 %v2569, %v2592
  %v2594 = vpop.f32.mrf.mxu0
  %v2595 = vadd.f32 %v2571, %v2594
  %2596 = vmatmul.bf16.gmra.mxu0 %v94
  %v2597 = vpop.f32.mrf.mxu0
  %v2598 = vadd.f32 %v2574, %v2597
  %v2599 = vpop.f32.mrf.mxu0
  %v2600 = vadd.f32 %v2576, %v2599
  %2601 = vdwg.mxu0
  %2602 = vmatpush.bf16.msra.mxu0 0
  %2603 = vmatpush.bf16.msra.mxu0 0
  %2604 = vmatpush.bf16.msra.mxu0 0
  %2605 = vmatpush.bf16.msra.mxu0 0
  %2606 = vmatpush.bf16.msra.mxu0 0
  %2607 = vmatpush.bf16.msra.mxu0 0
  %2608 = vmatpush.bf16.msra.mxu0 0
  %2609 = vmatpush.bf16.msra.mxu0 %v2048
  %2610 = vmatmul.bf16.gmra.mxu0 %v2450
  %v2611 = vpop.f32.mrf.mxu0
  %v2612 = vadd.f32 %v2588, %v2611
  %v2613 = vpop.f32.mrf.mxu0
  %v2614 = vadd.f32 %v2590, %v2613
  %2615 = vmatmul.bf16.gmra.mxu0 %v2453
  %v2616 = vpop.f32.mrf.mxu0
  %v2617 = vadd.f32 %v2593, %v2616
  %v2618 = vpop.f32.mrf.mxu0
  %v2619 = vadd.f32 %v2595, %v2618
  %2620 = vmatmul.bf16.gmra.mxu0 %v2456
  %v2621 = vpop.f32.mrf.mxu0
  %v2622 = vadd.f32 %v2598, %v2621
  %v2623 = vpop.f32.mrf.mxu0
  %v2624 = vadd.f32 %v2600, %v2623
  %2625 = vdwg.mxu0
  %2626 = vmatpush.bf16.msra.mxu0 %v1721
  %2627 = vmatpush.bf16.msra.mxu0 %v1713
  %2628 = vmatpush.bf16.msra.mxu0 %v1705
  %2629 = vmatpush.bf16.msra.mxu0 %v1697
  %2630 = vmatpush.bf16.msra.mxu0 %v1689
  %2631 = vmatpush.bf16.msra.mxu0 %v1681
  %2632 = vmatpush.bf16.msra.mxu0 %v1673
  %2633 = vmatpush.bf16.msra.mxu0 %v1665
  %2634 = vmatmul.bf16.gmra.mxu0 %v75
  %v2635 = vpop.f32.mrf.mxu0
  %v2636 = vadd.f32 0.0, %v2635
  %v2637 = vpop.f32.mrf.mxu0
  %v2638 = vadd.f32 0.0, %v2637
  %2639 = vmatmul.bf16.gmra.mxu0 %v82
  %v2640 = vpop.f32.mrf.mxu0
  %v2641 = vadd.f32 0.0, %v2640
  %v2642 = vpop.f32.mrf.mxu0
  %v2643 = vadd.f32 0.0, %v2642
  %2644 = vmatmul.bf16.gmra.mxu0 %v89
  %v2645 = vpop.f32.mrf.mxu0
  %v2646 = vadd.f32 0.0, %v2645
  %v2647 = vpop.f32.mrf.mxu0
  %v2648 = vadd.f32 0.0, %v2647
  %2649 = vdwg.mxu0
  %2650 = vmatpush.bf16.msra.mxu0 %v1785
  %2651 = vmatpush.bf16.msra.mxu0 %v1777
  %2652 = vmatpush.bf16.msra.mxu0 %v1769
  %2653 = vmatpush.bf16.msra.mxu0 %v1761
  %2654 = vmatpush.bf16.msra.mxu0 %v1753
  %2655 = vmatpush.bf16.msra.mxu0 %v1745
  %2656 = vmatpush.bf16.msra.mxu0 %v1737
  %2657 = vmatpush.bf16.msra.mxu0 %v1729
  %2658 = vmatmul.bf16.gmra.mxu0 %v76
  %v2659 = vpop.f32.mrf.mxu0
  %v2660 = vadd.f32 %v2636, %v2659
  %v2661 = vpop.f32.mrf.mxu0
  %v2662 = vadd.f32 %v2638, %v2661
  %2663 = vmatmul.bf16.gmra.mxu0 %v83
  %v2664 = vpop.f32.mrf.mxu0
  %v2665 = vadd.f32 %v2641, %v2664
  %v2666 = vpop.f32.mrf.mxu0
  %v2667 = vadd.f32 %v2643, %v2666
  %2668 = vmatmul.bf16.gmra.mxu0 %v90
  %v2669 = vpop.f32.mrf.mxu0
  %v2670 = vadd.f32 %v2646, %v2669
  %v2671 = vpop.f32.mrf.mxu0
  %v2672 = vadd.f32 %v2648, %v2671
  %2673 = vdwg.mxu0
  %2674 = vmatpush.bf16.msra.mxu0 %v1849
  %2675 = vmatpush.bf16.msra.mxu0 %v1841
  %2676 = vmatpush.bf16.msra.mxu0 %v1833
  %2677 = vmatpush.bf16.msra.mxu0 %v1825
  %2678 = vmatpush.bf16.msra.mxu0 %v1817
  %2679 = vmatpush.bf16.msra.mxu0 %v1809
  %2680 = vmatpush.bf16.msra.mxu0 %v1801
  %2681 = vmatpush.bf16.msra.mxu0 %v1793
  %2682 = vmatmul.bf16.gmra.mxu0 %v77
  %v2683 = vpop.f32.mrf.mxu0
  %v2684 = vadd.f32 %v2660, %v2683
  %v2685 = vpop.f32.mrf.mxu0
  %v2686 = vadd.f32 %v2662, %v2685
  %2687 = vmatmul.bf16.gmra.mxu0 %v84
  %v2688 = vpop.f32.mrf.mxu0
  %v2689 = vadd.f32 %v2665, %v2688
  %v2690 = vpop.f32.mrf.mxu0
  %v2691 = vadd.f32 %v2667, %v2690
  %2692 = vmatmul.bf16.gmra.mxu0 %v91
  %v2693 = vpop.f32.mrf.mxu0
  %v2694 = vadd.f32 %v2670, %v2693
  %v2695 = vpop.f32.mrf.mxu0
  %v2696 = vadd.f32 %v2672, %v2695
  %2697 = vdwg.mxu0
  %2698 = vmatpush.bf16.msra.mxu0 %v1913
  %2699 = vmatpush.bf16.msra.mxu0 %v1905
  %2700 = vmatpush.bf16.msra.mxu0 %v1897
  %2701 = vmatpush.bf16.msra.mxu0 %v1889
  %2702 = vmatpush.bf16.msra.mxu0 %v1881
  %2703 = vmatpush.bf16.msra.mxu0 %v1873
  %2704 = vmatpush.bf16.msra.mxu0 %v1865
  %2705 = vmatpush.bf16.msra.mxu0 %v1857
  %2706 = vmatmul.bf16.gmra.mxu0 %v78
  %v2707 = vpop.f32.mrf.mxu0
  %v2708 = vadd.f32 %v2684, %v2707
  %v2709 = vpop.f32.mrf.mxu0
  %v2710 = vadd.f32 %v2686, %v2709
  %2711 = vmatmul.bf16.gmra.mxu0 %v85
  %v2712 = vpop.f32.mrf.mxu0
  %v2713 = vadd.f32 %v2689, %v2712
  %v2714 = vpop.f32.mrf.mxu0
  %v2715 = vadd.f32 %v2691, %v2714
  %2716 = vmatmul.bf16.gmra.mxu0 %v92
  %v2717 = vpop.f32.mrf.mxu0
  %v2718 = vadd.f32 %v2694, %v2717
  %v2719 = vpop.f32.mrf.mxu0
  %v2720 = vadd.f32 %v2696, %v2719
  %2721 = vdwg.mxu0
  %2722 = vmatpush.bf16.msra.mxu0 %v1977
  %2723 = vmatpush.bf16.msra.mxu0 %v1969
  %2724 = vmatpush.bf16.msra.mxu0 %v1961
  %2725 = vmatpush.bf16.msra.mxu0 %v1953
  %2726 = vmatpush.bf16.msra.mxu0 %v1945
  %2727 = vmatpush.bf16.msra.mxu0 %v1937
  %2728 = vmatpush.bf16.msra.mxu0 %v1929
  %2729 = vmatpush.bf16.msra.mxu0 %v1921
  %2730 = vmatmul.bf16.gmra.mxu0 %v79
  %v2731 = vpop.f32.mrf.mxu0
  %v2732 = vadd.f32 %v2708, %v2731
  %v2733 = vpop.f32.mrf.mxu0
  %v2734 = vadd.f32 %v2710, %v2733
  %2735 = vmatmul.bf16.gmra.mxu0 %v86
  %v2736 = vpop.f32.mrf.mxu0
  %v2737 = vadd.f32 %v2713, %v2736
  %v2738 = vpop.f32.mrf.mxu0
  %v2739 = vadd.f32 %v2715, %v2738
  %2740 = vmatmul.bf16.gmra.mxu0 %v93
  %v2741 = vpop.f32.mrf.mxu0
  %v2742 = vadd.f32 %v2718, %v2741
  %v2743 = vpop.f32.mrf.mxu0
  %v2744 = vadd.f32 %v2720, %v2743
  %2745 = vdwg.mxu0
  %2746 = vmatpush.bf16.msra.mxu0 %v2041
  %2747 = vmatpush.bf16.msra.mxu0 %v2033
  %2748 = vmatpush.bf16.msra.mxu0 %v2025
  %2749 = vmatpush.bf16.msra.mxu0 %v2017
  %2750 = vmatpush.bf16.msra.mxu0 %v2009
  %2751 = vmatpush.bf16.msra.mxu0 %v2001
  %2752 = vmatpush.bf16.msra.mxu0 %v1993
  %2753 = vmatpush.bf16.msra.mxu0 %v1985
  %2754 = vmatmul.bf16.gmra.mxu0 %v80
  %v2755 = vpop.f32.mrf.mxu0
  %v2756 = vadd.f32 %v2732, %v2755
  %v2757 = vpop.f32.mrf.mxu0
  %v2758 = vadd.f32 %v2734, %v2757
  %2759 = vmatmul.bf16.gmra.mxu0 %v87
  %v2760 = vpop.f32.mrf.mxu0
  %v2761 = vadd.f32 %v2737, %v2760
  %v2762 = vpop.f32.mrf.mxu0
  %v2763 = vadd.f32 %v2739, %v2762
  %2764 = vmatmul.bf16.gmra.mxu0 %v94
  %v2765 = vpop.f32.mrf.mxu0
  %v2766 = vadd.f32 %v2742, %v2765
  %v2767 = vpop.f32.mrf.mxu0
  %v2768 = vadd.f32 %v2744, %v2767
  %2769 = vdwg.mxu0
  %2770 = vmatpush.bf16.msra.mxu0 0
  %2771 = vmatpush.bf16.msra.mxu0 0
  %2772 = vmatpush.bf16.msra.mxu0 0
  %2773 = vmatpush.bf16.msra.mxu0 0
  %2774 = vmatpush.bf16.msra.mxu0 0
  %2775 = vmatpush.bf16.msra.mxu0 0
  %2776 = vmatpush.bf16.msra.mxu0 0
  %2777 = vmatpush.bf16.msra.mxu0 %v2049
  %2778 = vmatmul.bf16.gmra.mxu0 %v2450
  %v2779 = vpop.f32.mrf.mxu0
  %v2780 = vadd.f32 %v2756, %v2779
  %v2781 = vpop.f32.mrf.mxu0
  %v2782 = vadd.f32 %v2758, %v2781
  %2783 = vmatmul.bf16.gmra.mxu0 %v2453
  %v2784 = vpop.f32.mrf.mxu0
  %v2785 = vadd.f32 %v2761, %v2784
  %v2786 = vpop.f32.mrf.mxu0
  %v2787 = vadd.f32 %v2763, %v2786
  %2788 = vmatmul.bf16.gmra.mxu0 %v2456
  %v2789 = vpop.f32.mrf.mxu0
  %v2790 = vadd.f32 %v2766, %v2789
  %v2791 = vpop.f32.mrf.mxu0
  %v2792 = vadd.f32 %v2768, %v2791
  %2793 = vdwg.mxu0
  %2794 = vmatpush.bf16.msra.mxu0 %v1722
  %2795 = vmatpush.bf16.msra.mxu0 %v1714
  %2796 = vmatpush.bf16.msra.mxu0 %v1706
  %2797 = vmatpush.bf16.msra.mxu0 %v1698
  %2798 = vmatpush.bf16.msra.mxu0 %v1690
  %2799 = vmatpush.bf16.msra.mxu0 %v1682
  %2800 = vmatpush.bf16.msra.mxu0 %v1674
  %2801 = vmatpush.bf16.msra.mxu0 %v1666
  %2802 = vmatmul.bf16.gmra.mxu0 %v75
  %v2803 = vpop.f32.mrf.mxu0
  %v2804 = vadd.f32 0.0, %v2803
  %v2805 = vpop.f32.mrf.mxu0
  %v2806 = vadd.f32 0.0, %v2805
  %2807 = vmatmul.bf16.gmra.mxu0 %v82
  %v2808 = vpop.f32.mrf.mxu0
  %v2809 = vadd.f32 0.0, %v2808
  %v2810 = vpop.f32.mrf.mxu0
  %v2811 = vadd.f32 0.0, %v2810
  %2812 = vmatmul.bf16.gmra.mxu0 %v89
  %v2813 = vpop.f32.mrf.mxu0
  %v2814 = vadd.f32 0.0, %v2813
  %v2815 = vpop.f32.mrf.mxu0
  %v2816 = vadd.f32 0.0, %v2815
  %2817 = vdwg.mxu0
  %2818 = vmatpush.bf16.msra.mxu0 %v1786
  %2819 = vmatpush.bf16.msra.mxu0 %v1778
  %2820 = vmatpush.bf16.msra.mxu0 %v1770
  %2821 = vmatpush.bf16.msra.mxu0 %v1762
  %2822 = vmatpush.bf16.msra.mxu0 %v1754
  %2823 = vmatpush.bf16.msra.mxu0 %v1746
  %2824 = vmatpush.bf16.msra.mxu0 %v1738
  %2825 = vmatpush.bf16.msra.mxu0 %v1730
  %2826 = vmatmul.bf16.gmra.mxu0 %v76
  %v2827 = vpop.f32.mrf.mxu0
  %v2828 = vadd.f32 %v2804, %v2827
  %v2829 = vpop.f32.mrf.mxu0
  %v2830 = vadd.f32 %v2806, %v2829
  %2831 = vmatmul.bf16.gmra.mxu0 %v83
  %v2832 = vpop.f32.mrf.mxu0
  %v2833 = vadd.f32 %v2809, %v2832
  %v2834 = vpop.f32.mrf.mxu0
  %v2835 = vadd.f32 %v2811, %v2834
  %2836 = vmatmul.bf16.gmra.mxu0 %v90
  %v2837 = vpop.f32.mrf.mxu0
  %v2838 = vadd.f32 %v2814, %v2837
  %v2839 = vpop.f32.mrf.mxu0
  %v2840 = vadd.f32 %v2816, %v2839
  %2841 = vdwg.mxu0
  %2842 = vmatpush.bf16.msra.mxu0 %v1850
  %2843 = vmatpush.bf16.msra.mxu0 %v1842
  %2844 = vmatpush.bf16.msra.mxu0 %v1834
  %2845 = vmatpush.bf16.msra.mxu0 %v1826
  %2846 = vmatpush.bf16.msra.mxu0 %v1818
  %2847 = vmatpush.bf16.msra.mxu0 %v1810
  %2848 = vmatpush.bf16.msra.mxu0 %v1802
  %2849 = vmatpush.bf16.msra.mxu0 %v1794
  %2850 = vmatmul.bf16.gmra.mxu0 %v77
  %v2851 = vpop.f32.mrf.mxu0
  %v2852 = vadd.f32 %v2828, %v2851
  %v2853 = vpop.f32.mrf.mxu0
  %v2854 = vadd.f32 %v2830, %v2853
  %2855 = vmatmul.bf16.gmra.mxu0 %v84
  %v2856 = vpop.f32.mrf.mxu0
  %v2857 = vadd.f32 %v2833, %v2856
  %v2858 = vpop.f32.mrf.mxu0
  %v2859 = vadd.f32 %v2835, %v2858
  %2860 = vmatmul.bf16.gmra.mxu0 %v91
  %v2861 = vpop.f32.mrf.mxu0
  %v2862 = vadd.f32 %v2838, %v2861
  %v2863 = vpop.f32.mrf.mxu0
  %v2864 = vadd.f32 %v2840, %v2863
  %2865 = vdwg.mxu0
  %2866 = vmatpush.bf16.msra.mxu0 %v1914
  %2867 = vmatpush.bf16.msra.mxu0 %v1906
  %2868 = vmatpush.bf16.msra.mxu0 %v1898
  %2869 = vmatpush.bf16.msra.mxu0 %v1890
  %2870 = vmatpush.bf16.msra.mxu0 %v1882
  %2871 = vmatpush.bf16.msra.mxu0 %v1874
  %2872 = vmatpush.bf16.msra.mxu0 %v1866
  %2873 = vmatpush.bf16.msra.mxu0 %v1858
  %2874 = vmatmul.bf16.gmra.mxu0 %v78
  %v2875 = vpop.f32.mrf.mxu0
  %v2876 = vadd.f32 %v2852, %v2875
  %v2877 = vpop.f32.mrf.mxu0
  %v2878 = vadd.f32 %v2854, %v2877
  %2879 = vmatmul.bf16.gmra.mxu0 %v85
  %v2880 = vpop.f32.mrf.mxu0
  %v2881 = vadd.f32 %v2857, %v2880
  %v2882 = vpop.f32.mrf.mxu0
  %v2883 = vadd.f32 %v2859, %v2882
  %2884 = vmatmul.bf16.gmra.mxu0 %v92
  %v2885 = vpop.f32.mrf.mxu0
  %v2886 = vadd.f32 %v2862, %v2885
  %v2887 = vpop.f32.mrf.mxu0
  %v2888 = vadd.f32 %v2864, %v2887
  %2889 = vdwg.mxu0
  %2890 = vmatpush.bf16.msra.mxu0 %v1978
  %2891 = vmatpush.bf16.msra.mxu0 %v1970
  %2892 = vmatpush.bf16.msra.mxu0 %v1962
  %2893 = vmatpush.bf16.msra.mxu0 %v1954
  %2894 = vmatpush.bf16.msra.mxu0 %v1946
  %2895 = vmatpush.bf16.msra.mxu0 %v1938
  %2896 = vmatpush.bf16.msra.mxu0 %v1930
  %2897 = vmatpush.bf16.msra.mxu0 %v1922
  %2898 = vmatmul.bf16.gmra.mxu0 %v79
  %v2899 = vpop.f32.mrf.mxu0
  %v2900 = vadd.f32 %v2876, %v2899
  %v2901 = vpop.f32.mrf.mxu0
  %v2902 = vadd.f32 %v2878, %v2901
  %2903 = vmatmul.bf16.gmra.mxu0 %v86
  %v2904 = vpop.f32.mrf.mxu0
  %v2905 = vadd.f32 %v2881, %v2904
  %v2906 = vpop.f32.mrf.mxu0
  %v2907 = vadd.f32 %v2883, %v2906
  %2908 = vmatmul.bf16.gmra.mxu0 %v93
  %v2909 = vpop.f32.mrf.mxu0
  %v2910 = vadd.f32 %v2886, %v2909
  %v2911 = vpop.f32.mrf.mxu0
  %v2912 = vadd.f32 %v2888, %v2911
  %2913 = vdwg.mxu0
  %2914 = vmatpush.bf16.msra.mxu0 %v2042
  %2915 = vmatpush.bf16.msra.mxu0 %v2034
  %2916 = vmatpush.bf16.msra.mxu0 %v2026
  %2917 = vmatpush.bf16.msra.mxu0 %v2018
  %2918 = vmatpush.bf16.msra.mxu0 %v2010
  %2919 = vmatpush.bf16.msra.mxu0 %v2002
  %2920 = vmatpush.bf16.msra.mxu0 %v1994
  %2921 = vmatpush.bf16.msra.mxu0 %v1986
  %2922 = vmatmul.bf16.gmra.mxu0 %v80
  %v2923 = vpop.f32.mrf.mxu0
  %v2924 = vadd.f32 %v2900, %v2923
  %v2925 = vpop.f32.mrf.mxu0
  %v2926 = vadd.f32 %v2902, %v2925
  %2927 = vmatmul.bf16.gmra.mxu0 %v87
  %v2928 = vpop.f32.mrf.mxu0
  %v2929 = vadd.f32 %v2905, %v2928
  %v2930 = vpop.f32.mrf.mxu0
  %v2931 = vadd.f32 %v2907, %v2930
  %2932 = vmatmul.bf16.gmra.mxu0 %v94
  %v2933 = vpop.f32.mrf.mxu0
  %v2934 = vadd.f32 %v2910, %v2933
  %v2935 = vpop.f32.mrf.mxu0
  %v2936 = vadd.f32 %v2912, %v2935
  %2937 = vdwg.mxu0
  %2938 = vmatpush.bf16.msra.mxu0 0
  %2939 = vmatpush.bf16.msra.mxu0 0
  %2940 = vmatpush.bf16.msra.mxu0 0
  %2941 = vmatpush.bf16.msra.mxu0 0
  %2942 = vmatpush.bf16.msra.mxu0 0
  %2943 = vmatpush.bf16.msra.mxu0 0
  %2944 = vmatpush.bf16.msra.mxu0 0
  %2945 = vmatpush.bf16.msra.mxu0 %v2050
  %2946 = vmatmul.bf16.gmra.mxu0 %v2450
  %v2947 = vpop.f32.mrf.mxu0
  %v2948 = vadd.f32 %v2924, %v2947
  %v2949 = vpop.f32.mrf.mxu0
  %v2950 = vadd.f32 %v2926, %v2949
  %2951 = vmatmul.bf16.gmra.mxu0 %v2453
  %v2952 = vpop.f32.mrf.mxu0
  %v2953 = vadd.f32 %v2929, %v2952
  %v2954 = vpop.f32.mrf.mxu0
  %v2955 = vadd.f32 %v2931, %v2954
  %2956 = vmatmul.bf16.gmra.mxu0 %v2456
  %v2957 = vpop.f32.mrf.mxu0
  %v2958 = vadd.f32 %v2934, %v2957
  %v2959 = vpop.f32.mrf.mxu0
  %v2960 = vadd.f32 %v2936, %v2959
  %2961 = vdwg.mxu0
  %2962 = vmatpush.bf16.msra.mxu0 %v1723
  %2963 = vmatpush.bf16.msra.mxu0 %v1715
  %2964 = vmatpush.bf16.msra.mxu0 %v1707
  %2965 = vmatpush.bf16.msra.mxu0 %v1699
  %2966 = vmatpush.bf16.msra.mxu0 %v1691
  %2967 = vmatpush.bf16.msra.mxu0 %v1683
  %2968 = vmatpush.bf16.msra.mxu0 %v1675
  %2969 = vmatpush.bf16.msra.mxu0 %v1667
  %2970 = vmatmul.bf16.gmra.mxu0 %v75
  %v2971 = vpop.f32.mrf.mxu0
  %v2972 = vadd.f32 0.0, %v2971
  %v2973 = vpop.f32.mrf.mxu0
  %v2974 = vadd.f32 0.0, %v2973
  %2975 = vmatmul.bf16.gmra.mxu0 %v82
  %v2976 = vpop.f32.mrf.mxu0
  %v2977 = vadd.f32 0.0, %v2976
  %v2978 = vpop.f32.mrf.mxu0
  %v2979 = vadd.f32 0.0, %v2978
  %2980 = vmatmul.bf16.gmra.mxu0 %v89
  %v2981 = vpop.f32.mrf.mxu0
  %v2982 = vadd.f32 0.0, %v2981
  %v2983 = vpop.f32.mrf.mxu0
  %v2984 = vadd.f32 0.0, %v2983
  %2985 = vdwg.mxu0
  %2986 = vmatpush.bf16.msra.mxu0 %v1787
  %2987 = vmatpush.bf16.msra.mxu0 %v1779
  %2988 = vmatpush.bf16.msra.mxu0 %v1771
  %2989 = vmatpush.bf16.msra.mxu0 %v1763
  %2990 = vmatpush.bf16.msra.mxu0 %v1755
  %2991 = vmatpush.bf16.msra.mxu0 %v1747
  %2992 = vmatpush.bf16.msra.mxu0 %v1739
  %2993 = vmatpush.bf16.msra.mxu0 %v1731
  %2994 = vmatmul.bf16.gmra.mxu0 %v76
  %v2995 = vpop.f32.mrf.mxu0
  %v2996 = vadd.f32 %v2972, %v2995
  %v2997 = vpop.f32.mrf.mxu0
  %v2998 = vadd.f32 %v2974, %v2997
  %2999 = vmatmul.bf16.gmra.mxu0 %v83
  %v3000 = vpop.f32.mrf.mxu0
  %v3001 = vadd.f32 %v2977, %v3000
  %v3002 = vpop.f32.mrf.mxu0
  %v3003 = vadd.f32 %v2979, %v3002
  %3004 = vmatmul.bf16.gmra.mxu0 %v90
  %v3005 = vpop.f32.mrf.mxu0
  %v3006 = vadd.f32 %v2982, %v3005
  %v3007 = vpop.f32.mrf.mxu0
  %v3008 = vadd.f32 %v2984, %v3007
  %3009 = vdwg.mxu0
  %3010 = vmatpush.bf16.msra.mxu0 %v1851
  %3011 = vmatpush.bf16.msra.mxu0 %v1843
  %3012 = vmatpush.bf16.msra.mxu0 %v1835
  %3013 = vmatpush.bf16.msra.mxu0 %v1827
  %3014 = vmatpush.bf16.msra.mxu0 %v1819
  %3015 = vmatpush.bf16.msra.mxu0 %v1811
  %3016 = vmatpush.bf16.msra.mxu0 %v1803
  %3017 = vmatpush.bf16.msra.mxu0 %v1795
  %3018 = vmatmul.bf16.gmra.mxu0 %v77
  %v3019 = vpop.f32.mrf.mxu0
  %v3020 = vadd.f32 %v2996, %v3019
  %v3021 = vpop.f32.mrf.mxu0
  %v3022 = vadd.f32 %v2998, %v3021
  %3023 = vmatmul.bf16.gmra.mxu0 %v84
  %v3024 = vpop.f32.mrf.mxu0
  %v3025 = vadd.f32 %v3001, %v3024
  %v3026 = vpop.f32.mrf.mxu0
  %v3027 = vadd.f32 %v3003, %v3026
  %3028 = vmatmul.bf16.gmra.mxu0 %v91
  %v3029 = vpop.f32.mrf.mxu0
  %v3030 = vadd.f32 %v3006, %v3029
  %v3031 = vpop.f32.mrf.mxu0
  %v3032 = vadd.f32 %v3008, %v3031
  %3033 = vdwg.mxu0
  %3034 = vmatpush.bf16.msra.mxu0 %v1915
  %3035 = vmatpush.bf16.msra.mxu0 %v1907
  %3036 = vmatpush.bf16.msra.mxu0 %v1899
  %3037 = vmatpush.bf16.msra.mxu0 %v1891
  %3038 = vmatpush.bf16.msra.mxu0 %v1883
  %3039 = vmatpush.bf16.msra.mxu0 %v1875
  %3040 = vmatpush.bf16.msra.mxu0 %v1867
  %3041 = vmatpush.bf16.msra.mxu0 %v1859
  %3042 = vmatmul.bf16.gmra.mxu0 %v78
  %v3043 = vpop.f32.mrf.mxu0
  %v3044 = vadd.f32 %v3020, %v3043
  %v3045 = vpop.f32.mrf.mxu0
  %v3046 = vadd.f32 %v3022, %v3045
  %3047 = vmatmul.bf16.gmra.mxu0 %v85
  %v3048 = vpop.f32.mrf.mxu0
  %v3049 = vadd.f32 %v3025, %v3048
  %v3050 = vpop.f32.mrf.mxu0
  %v3051 = vadd.f32 %v3027, %v3050
  %3052 = vmatmul.bf16.gmra.mxu0 %v92
  %v3053 = vpop.f32.mrf.mxu0
  %v3054 = vadd.f32 %v3030, %v3053
  %v3055 = vpop.f32.mrf.mxu0
  %v3056 = vadd.f32 %v3032, %v3055
  %3057 = vdwg.mxu0
  %3058 = vmatpush.bf16.msra.mxu0 %v1979
  %3059 = vmatpush.bf16.msra.mxu0 %v1971
  %3060 = vmatpush.bf16.msra.mxu0 %v1963
  %3061 = vmatpush.bf16.msra.mxu0 %v1955
  %3062 = vmatpush.bf16.msra.mxu0 %v1947
  %3063 = vmatpush.bf16.msra.mxu0 %v1939
  %3064 = vmatpush.bf16.msra.mxu0 %v1931
  %3065 = vmatpush.bf16.msra.mxu0 %v1923
  %3066 = vmatmul.bf16.gmra.mxu0 %v79
  %v3067 = vpop.f32.mrf.mxu0
  %v3068 = vadd.f32 %v3044, %v3067
  %v3069 = vpop.f32.mrf.mxu0
  %v3070 = vadd.f32 %v3046, %v3069
  %3071 = vmatmul.bf16.gmra.mxu0 %v86
  %v3072 = vpop.f32.mrf.mxu0
  %v3073 = vadd.f32 %v3049, %v3072
  %v3074 = vpop.f32.mrf.mxu0
  %v3075 = vadd.f32 %v3051, %v3074
  %3076 = vmatmul.bf16.gmra.mxu0 %v93
  %v3077 = vpop.f32.mrf.mxu0
  %v3078 = vadd.f32 %v3054, %v3077
  %v3079 = vpop.f32.mrf.mxu0
  %v3080 = vadd.f32 %v3056, %v3079
  %3081 = vdwg.mxu0
  %3082 = vmatpush.bf16.msra.mxu0 %v2043
  %3083 = vmatpush.bf16.msra.mxu0 %v2035
  %3084 = vmatpush.bf16.msra.mxu0 %v2027
  %3085 = vmatpush.bf16.msra.mxu0 %v2019
  %3086 = vmatpush.bf16.msra.mxu0 %v2011
  %3087 = vmatpush.bf16.msra.mxu0 %v2003
  %3088 = vmatpush.bf16.msra.mxu0 %v1995
  %3089 = vmatpush.bf16.msra.mxu0 %v1987
  %3090 = vmatmul.bf16.gmra.mxu0 %v80
  %v3091 = vpop.f32.mrf.mxu0
  %v3092 = vadd.f32 %v3068, %v3091
  %v3093 = vpop.f32.mrf.mxu0
  %v3094 = vadd.f32 %v3070, %v3093
  %3095 = vmatmul.bf16.gmra.mxu0 %v87
  %v3096 = vpop.f32.mrf.mxu0
  %v3097 = vadd.f32 %v3073, %v3096
  %v3098 = vpop.f32.mrf.mxu0
  %v3099 = vadd.f32 %v3075, %v3098
  %3100 = vmatmul.bf16.gmra.mxu0 %v94
  %v3101 = vpop.f32.mrf.mxu0
  %v3102 = vadd.f32 %v3078, %v3101
  %v3103 = vpop.f32.mrf.mxu0
  %v3104 = vadd.f32 %v3080, %v3103
  %3105 = vdwg.mxu0
  %3106 = vmatpush.bf16.msra.mxu0 0
  %3107 = vmatpush.bf16.msra.mxu0 0
  %3108 = vmatpush.bf16.msra.mxu0 0
  %3109 = vmatpush.bf16.msra.mxu0 0
  %3110 = vmatpush.bf16.msra.mxu0 0
  %3111 = vmatpush.bf16.msra.mxu0 0
  %3112 = vmatpush.bf16.msra.mxu0 0
  %3113 = vmatpush.bf16.msra.mxu0 %v2051
  %3114 = vmatmul.bf16.gmra.mxu0 %v2450
  %v3115 = vpop.f32.mrf.mxu0
  %v3116 = vadd.f32 %v3092, %v3115
  %v3117 = vpop.f32.mrf.mxu0
  %v3118 = vadd.f32 %v3094, %v3117
  %3119 = vmatmul.bf16.gmra.mxu0 %v2453
  %v3120 = vpop.f32.mrf.mxu0
  %v3121 = vadd.f32 %v3097, %v3120
  %v3122 = vpop.f32.mrf.mxu0
  %v3123 = vadd.f32 %v3099, %v3122
  %3124 = vmatmul.bf16.gmra.mxu0 %v2456
  %v3125 = vpop.f32.mrf.mxu0
  %v3126 = vadd.f32 %v3102, %v3125
  %v3127 = vpop.f32.mrf.mxu0
  %v3128 = vadd.f32 %v3104, %v3127
  %3129 = vdwg.mxu0
  %3130 = vmatpush.bf16.msra.mxu0 %v1724
  %3131 = vmatpush.bf16.msra.mxu0 %v1716
  %3132 = vmatpush.bf16.msra.mxu0 %v1708
  %3133 = vmatpush.bf16.msra.mxu0 %v1700
  %3134 = vmatpush.bf16.msra.mxu0 %v1692
  %3135 = vmatpush.bf16.msra.mxu0 %v1684
  %3136 = vmatpush.bf16.msra.mxu0 %v1676
  %3137 = vmatpush.bf16.msra.mxu0 %v1668
  %3138 = vmatmul.bf16.gmra.mxu0 %v75
  %v3139 = vpop.f32.mrf.mxu0
  %v3140 = vadd.f32 0.0, %v3139
  %v3141 = vpop.f32.mrf.mxu0
  %v3142 = vadd.f32 0.0, %v3141
  %3143 = vmatmul.bf16.gmra.mxu0 %v82
  %v3144 = vpop.f32.mrf.mxu0
  %v3145 = vadd.f32 0.0, %v3144
  %v3146 = vpop.f32.mrf.mxu0
  %v3147 = vadd.f32 0.0, %v3146
  %3148 = vmatmul.bf16.gmra.mxu0 %v89
  %v3149 = vpop.f32.mrf.mxu0
  %v3150 = vadd.f32 0.0, %v3149
  %v3151 = vpop.f32.mrf.mxu0
  %v3152 = vadd.f32 0.0, %v3151
  %3153 = vdwg.mxu0
  %3154 = vmatpush.bf16.msra.mxu0 %v1788
  %3155 = vmatpush.bf16.msra.mxu0 %v1780
  %3156 = vmatpush.bf16.msra.mxu0 %v1772
  %3157 = vmatpush.bf16.msra.mxu0 %v1764
  %3158 = vmatpush.bf16.msra.mxu0 %v1756
  %3159 = vmatpush.bf16.msra.mxu0 %v1748
  %3160 = vmatpush.bf16.msra.mxu0 %v1740
  %3161 = vmatpush.bf16.msra.mxu0 %v1732
  %3162 = vmatmul.bf16.gmra.mxu0 %v76
  %v3163 = vpop.f32.mrf.mxu0
  %v3164 = vadd.f32 %v3140, %v3163
  %v3165 = vpop.f32.mrf.mxu0
  %v3166 = vadd.f32 %v3142, %v3165
  %3167 = vmatmul.bf16.gmra.mxu0 %v83
  %v3168 = vpop.f32.mrf.mxu0
  %v3169 = vadd.f32 %v3145, %v3168
  %v3170 = vpop.f32.mrf.mxu0
  %v3171 = vadd.f32 %v3147, %v3170
  %3172 = vmatmul.bf16.gmra.mxu0 %v90
  %v3173 = vpop.f32.mrf.mxu0
  %v3174 = vadd.f32 %v3150, %v3173
  %v3175 = vpop.f32.mrf.mxu0
  %v3176 = vadd.f32 %v3152, %v3175
  %3177 = vdwg.mxu0
  %3178 = vmatpush.bf16.msra.mxu0 %v1852
  %3179 = vmatpush.bf16.msra.mxu0 %v1844
  %3180 = vmatpush.bf16.msra.mxu0 %v1836
  %3181 = vmatpush.bf16.msra.mxu0 %v1828
  %3182 = vmatpush.bf16.msra.mxu0 %v1820
  %3183 = vmatpush.bf16.msra.mxu0 %v1812
  %3184 = vmatpush.bf16.msra.mxu0 %v1804
  %3185 = vmatpush.bf16.msra.mxu0 %v1796
  %3186 = vmatmul.bf16.gmra.mxu0 %v77
  %v3187 = vpop.f32.mrf.mxu0
  %v3188 = vadd.f32 %v3164, %v3187
  %v3189 = vpop.f32.mrf.mxu0
  %v3190 = vadd.f32 %v3166, %v3189
  %3191 = vmatmul.bf16.gmra.mxu0 %v84
  %v3192 = vpop.f32.mrf.mxu0
  %v3193 = vadd.f32 %v3169, %v3192
  %v3194 = vpop.f32.mrf.mxu0
  %v3195 = vadd.f32 %v3171, %v3194
  %3196 = vmatmul.bf16.gmra.mxu0 %v91
  %v3197 = vpop.f32.mrf.mxu0
  %v3198 = vadd.f32 %v3174, %v3197
  %v3199 = vpop.f32.mrf.mxu0
  %v3200 = vadd.f32 %v3176, %v3199
  %3201 = vdwg.mxu0
  %3202 = vmatpush.bf16.msra.mxu0 %v1916
  %3203 = vmatpush.bf16.msra.mxu0 %v1908
  %3204 = vmatpush.bf16.msra.mxu0 %v1900
  %3205 = vmatpush.bf16.msra.mxu0 %v1892
  %3206 = vmatpush.bf16.msra.mxu0 %v1884
  %3207 = vmatpush.bf16.msra.mxu0 %v1876
  %3208 = vmatpush.bf16.msra.mxu0 %v1868
  %3209 = vmatpush.bf16.msra.mxu0 %v1860
  %3210 = vmatmul.bf16.gmra.mxu0 %v78
  %v3211 = vpop.f32.mrf.mxu0
  %v3212 = vadd.f32 %v3188, %v3211
  %v3213 = vpop.f32.mrf.mxu0
  %v3214 = vadd.f32 %v3190, %v3213
  %3215 = vmatmul.bf16.gmra.mxu0 %v85
  %v3216 = vpop.f32.mrf.mxu0
  %v3217 = vadd.f32 %v3193, %v3216
  %v3218 = vpop.f32.mrf.mxu0
  %v3219 = vadd.f32 %v3195, %v3218
  %3220 = vmatmul.bf16.gmra.mxu0 %v92
  %v3221 = vpop.f32.mrf.mxu0
  %v3222 = vadd.f32 %v3198, %v3221
  %v3223 = vpop.f32.mrf.mxu0
  %v3224 = vadd.f32 %v3200, %v3223
  %3225 = vdwg.mxu0
  %3226 = vmatpush.bf16.msra.mxu0 %v1980
  %3227 = vmatpush.bf16.msra.mxu0 %v1972
  %3228 = vmatpush.bf16.msra.mxu0 %v1964
  %3229 = vmatpush.bf16.msra.mxu0 %v1956
  %3230 = vmatpush.bf16.msra.mxu0 %v1948
  %3231 = vmatpush.bf16.msra.mxu0 %v1940
  %3232 = vmatpush.bf16.msra.mxu0 %v1932
  %3233 = vmatpush.bf16.msra.mxu0 %v1924
  %3234 = vmatmul.bf16.gmra.mxu0 %v79
  %v3235 = vpop.f32.mrf.mxu0
  %v3236 = vadd.f32 %v3212, %v3235
  %v3237 = vpop.f32.mrf.mxu0
  %v3238 = vadd.f32 %v3214, %v3237
  %3239 = vmatmul.bf16.gmra.mxu0 %v86
  %v3240 = vpop.f32.mrf.mxu0
  %v3241 = vadd.f32 %v3217, %v3240
  %v3242 = vpop.f32.mrf.mxu0
  %v3243 = vadd.f32 %v3219, %v3242
  %3244 = vmatmul.bf16.gmra.mxu0 %v93
  %v3245 = vpop.f32.mrf.mxu0
  %v3246 = vadd.f32 %v3222, %v3245
  %v3247 = vpop.f32.mrf.mxu0
  %v3248 = vadd.f32 %v3224, %v3247
  %3249 = vdwg.mxu0
  %3250 = vmatpush.bf16.msra.mxu0 %v2044
  %3251 = vmatpush.bf16.msra.mxu0 %v2036
  %3252 = vmatpush.bf16.msra.mxu0 %v2028
  %3253 = vmatpush.bf16.msra.mxu0 %v2020
  %3254 = vmatpush.bf16.msra.mxu0 %v2012
  %3255 = vmatpush.bf16.msra.mxu0 %v2004
  %3256 = vmatpush.bf16.msra.mxu0 %v1996
  %3257 = vmatpush.bf16.msra.mxu0 %v1988
  %3258 = vmatmul.bf16.gmra.mxu0 %v80
  %v3259 = vpop.f32.mrf.mxu0
  %v3260 = vadd.f32 %v3236, %v3259
  %v3261 = vpop.f32.mrf.mxu0
  %v3262 = vadd.f32 %v3238, %v3261
  %3263 = vmatmul.bf16.gmra.mxu0 %v87
  %v3264 = vpop.f32.mrf.mxu0
  %v3265 = vadd.f32 %v3241, %v3264
  %v3266 = vpop.f32.mrf.mxu0
  %v3267 = vadd.f32 %v3243, %v3266
  %3268 = vmatmul.bf16.gmra.mxu0 %v94
  %v3269 = vpop.f32.mrf.mxu0
  %v3270 = vadd.f32 %v3246, %v3269
  %v3271 = vpop.f32.mrf.mxu0
  %v3272 = vadd.f32 %v3248, %v3271
  %3273 = vdwg.mxu0
  %3274 = vmatpush.bf16.msra.mxu0 0
  %3275 = vmatpush.bf16.msra.mxu0 0
  %3276 = vmatpush.bf16.msra.mxu0 0
  %3277 = vmatpush.bf16.msra.mxu0 0
  %3278 = vmatpush.bf16.msra.mxu0 0
  %3279 = vmatpush.bf16.msra.mxu0 0
  %3280 = vmatpush.bf16.msra.mxu0 0
  %3281 = vmatpush.bf16.msra.mxu0 %v2052
  %3282 = vmatmul.bf16.gmra.mxu0 %v2450
  %v3283 = vpop.f32.mrf.mxu0
  %v3284 = vadd.f32 %v3260, %v3283
  %v3285 = vpop.f32.mrf.mxu0
  %v3286 = vadd.f32 %v3262, %v3285
  %3287 = vmatmul.bf16.gmra.mxu0 %v2453
  %v3288 = vpop.f32.mrf.mxu0
  %v3289 = vadd.f32 %v3265, %v3288
  %v3290 = vpop.f32.mrf.mxu0
  %v3291 = vadd.f32 %v3267, %v3290
  %3292 = vmatmul.bf16.gmra.mxu0 %v2456
  %v3293 = vpop.f32.mrf.mxu0
  %v3294 = vadd.f32 %v3270, %v3293
  %v3295 = vpop.f32.mrf.mxu0
  %v3296 = vadd.f32 %v3272, %v3295
  %3297 = vdwg.mxu0
  %3298 = vmatpush.bf16.msra.mxu0 %v1725
  %3299 = vmatpush.bf16.msra.mxu0 %v1717
  %3300 = vmatpush.bf16.msra.mxu0 %v1709
  %3301 = vmatpush.bf16.msra.mxu0 %v1701
  %3302 = vmatpush.bf16.msra.mxu0 %v1693
  %3303 = vmatpush.bf16.msra.mxu0 %v1685
  %3304 = vmatpush.bf16.msra.mxu0 %v1677
  %3305 = vmatpush.bf16.msra.mxu0 %v1669
  %3306 = vmatmul.bf16.gmra.mxu0 %v75
  %v3307 = vpop.f32.mrf.mxu0
  %v3308 = vadd.f32 0.0, %v3307
  %v3309 = vpop.f32.mrf.mxu0
  %v3310 = vadd.f32 0.0, %v3309
  %3311 = vmatmul.bf16.gmra.mxu0 %v82
  %v3312 = vpop.f32.mrf.mxu0
  %v3313 = vadd.f32 0.0, %v3312
  %v3314 = vpop.f32.mrf.mxu0
  %v3315 = vadd.f32 0.0, %v3314
  %3316 = vmatmul.bf16.gmra.mxu0 %v89
  %v3317 = vpop.f32.mrf.mxu0
  %v3318 = vadd.f32 0.0, %v3317
  %v3319 = vpop.f32.mrf.mxu0
  %v3320 = vadd.f32 0.0, %v3319
  %3321 = vdwg.mxu0
  %3322 = vmatpush.bf16.msra.mxu0 %v1789
  %3323 = vmatpush.bf16.msra.mxu0 %v1781
  %3324 = vmatpush.bf16.msra.mxu0 %v1773
  %3325 = vmatpush.bf16.msra.mxu0 %v1765
  %3326 = vmatpush.bf16.msra.mxu0 %v1757
  %3327 = vmatpush.bf16.msra.mxu0 %v1749
  %3328 = vmatpush.bf16.msra.mxu0 %v1741
  %3329 = vmatpush.bf16.msra.mxu0 %v1733
  %3330 = vmatmul.bf16.gmra.mxu0 %v76
  %v3331 = vpop.f32.mrf.mxu0
  %v3332 = vadd.f32 %v3308, %v3331
  %v3333 = vpop.f32.mrf.mxu0
  %v3334 = vadd.f32 %v3310, %v3333
  %3335 = vmatmul.bf16.gmra.mxu0 %v83
  %v3336 = vpop.f32.mrf.mxu0
  %v3337 = vadd.f32 %v3313, %v3336
  %v3338 = vpop.f32.mrf.mxu0
  %v3339 = vadd.f32 %v3315, %v3338
  %3340 = vmatmul.bf16.gmra.mxu0 %v90
  %v3341 = vpop.f32.mrf.mxu0
  %v3342 = vadd.f32 %v3318, %v3341
  %v3343 = vpop.f32.mrf.mxu0
  %v3344 = vadd.f32 %v3320, %v3343
  %3345 = vdwg.mxu0
  %3346 = vmatpush.bf16.msra.mxu0 %v1853
  %3347 = vmatpush.bf16.msra.mxu0 %v1845
  %3348 = vmatpush.bf16.msra.mxu0 %v1837
  %3349 = vmatpush.bf16.msra.mxu0 %v1829
  %3350 = vmatpush.bf16.msra.mxu0 %v1821
  %3351 = vmatpush.bf16.msra.mxu0 %v1813
  %3352 = vmatpush.bf16.msra.mxu0 %v1805
  %3353 = vmatpush.bf16.msra.mxu0 %v1797
  %3354 = vmatmul.bf16.gmra.mxu0 %v77
  %v3355 = vpop.f32.mrf.mxu0
  %v3356 = vadd.f32 %v3332, %v3355
  %v3357 = vpop.f32.mrf.mxu0
  %v3358 = vadd.f32 %v3334, %v3357
  %3359 = vmatmul.bf16.gmra.mxu0 %v84
  %v3360 = vpop.f32.mrf.mxu0
  %v3361 = vadd.f32 %v3337, %v3360
  %v3362 = vpop.f32.mrf.mxu0
  %v3363 = vadd.f32 %v3339, %v3362
  %3364 = vmatmul.bf16.gmra.mxu0 %v91
  %v3365 = vpop.f32.mrf.mxu0
  %v3366 = vadd.f32 %v3342, %v3365
  %v3367 = vpop.f32.mrf.mxu0
  %v3368 = vadd.f32 %v3344, %v3367
  %3369 = vdwg.mxu0
  %3370 = vmatpush.bf16.msra.mxu0 %v1917
  %3371 = vmatpush.bf16.msra.mxu0 %v1909
  %3372 = vmatpush.bf16.msra.mxu0 %v1901
  %3373 = vmatpush.bf16.msra.mxu0 %v1893
  %3374 = vmatpush.bf16.msra.mxu0 %v1885
  %3375 = vmatpush.bf16.msra.mxu0 %v1877
  %3376 = vmatpush.bf16.msra.mxu0 %v1869
  %3377 = vmatpush.bf16.msra.mxu0 %v1861
  %3378 = vmatmul.bf16.gmra.mxu0 %v78
  %v3379 = vpop.f32.mrf.mxu0
  %v3380 = vadd.f32 %v3356, %v3379
  %v3381 = vpop.f32.mrf.mxu0
  %v3382 = vadd.f32 %v3358, %v3381
  %3383 = vmatmul.bf16.gmra.mxu0 %v85
  %v3384 = vpop.f32.mrf.mxu0
  %v3385 = vadd.f32 %v3361, %v3384
  %v3386 = vpop.f32.mrf.mxu0
  %v3387 = vadd.f32 %v3363, %v3386
  %3388 = vmatmul.bf16.gmra.mxu0 %v92
  %v3389 = vpop.f32.mrf.mxu0
  %v3390 = vadd.f32 %v3366, %v3389
  %v3391 = vpop.f32.mrf.mxu0
  %v3392 = vadd.f32 %v3368, %v3391
  %3393 = vdwg.mxu0
  %3394 = vmatpush.bf16.msra.mxu0 %v1981
  %3395 = vmatpush.bf16.msra.mxu0 %v1973
  %3396 = vmatpush.bf16.msra.mxu0 %v1965
  %3397 = vmatpush.bf16.msra.mxu0 %v1957
  %3398 = vmatpush.bf16.msra.mxu0 %v1949
  %3399 = vmatpush.bf16.msra.mxu0 %v1941
  %3400 = vmatpush.bf16.msra.mxu0 %v1933
  %3401 = vmatpush.bf16.msra.mxu0 %v1925
  %3402 = vmatmul.bf16.gmra.mxu0 %v79
  %v3403 = vpop.f32.mrf.mxu0
  %v3404 = vadd.f32 %v3380, %v3403
  %v3405 = vpop.f32.mrf.mxu0
  %v3406 = vadd.f32 %v3382, %v3405
  %3407 = vmatmul.bf16.gmra.mxu0 %v86
  %v3408 = vpop.f32.mrf.mxu0
  %v3409 = vadd.f32 %v3385, %v3408
  %v3410 = vpop.f32.mrf.mxu0
  %v3411 = vadd.f32 %v3387, %v3410
  %3412 = vmatmul.bf16.gmra.mxu0 %v93
  %v3413 = vpop.f32.mrf.mxu0
  %v3414 = vadd.f32 %v3390, %v3413
  %v3415 = vpop.f32.mrf.mxu0
  %v3416 = vadd.f32 %v3392, %v3415
  %3417 = vdwg.mxu0
  %3418 = vmatpush.bf16.msra.mxu0 %v2045
  %3419 = vmatpush.bf16.msra.mxu0 %v2037
  %3420 = vmatpush.bf16.msra.mxu0 %v2029
  %3421 = vmatpush.bf16.msra.mxu0 %v2021
  %3422 = vmatpush.bf16.msra.mxu0 %v2013
  %3423 = vmatpush.bf16.msra.mxu0 %v2005
  %3424 = vmatpush.bf16.msra.mxu0 %v1997
  %3425 = vmatpush.bf16.msra.mxu0 %v1989
  %3426 = vmatmul.bf16.gmra.mxu0 %v80
  %v3427 = vpop.f32.mrf.mxu0
  %v3428 = vadd.f32 %v3404, %v3427
  %v3429 = vpop.f32.mrf.mxu0
  %v3430 = vadd.f32 %v3406, %v3429
  %3431 = vmatmul.bf16.gmra.mxu0 %v87
  %v3432 = vpop.f32.mrf.mxu0
  %v3433 = vadd.f32 %v3409, %v3432
  %v3434 = vpop.f32.mrf.mxu0
  %v3435 = vadd.f32 %v3411, %v3434
  %3436 = vmatmul.bf16.gmra.mxu0 %v94
  %v3437 = vpop.f32.mrf.mxu0
  %v3438 = vadd.f32 %v3414, %v3437
  %v3439 = vpop.f32.mrf.mxu0
  %v3440 = vadd.f32 %v3416, %v3439
  %3441 = vdwg.mxu0
  %3442 = vmatpush.bf16.msra.mxu0 0
  %3443 = vmatpush.bf16.msra.mxu0 0
  %3444 = vmatpush.bf16.msra.mxu0 0
  %3445 = vmatpush.bf16.msra.mxu0 0
  %3446 = vmatpush.bf16.msra.mxu0 0
  %3447 = vmatpush.bf16.msra.mxu0 0
  %3448 = vmatpush.bf16.msra.mxu0 0
  %3449 = vmatpush.bf16.msra.mxu0 %v2053
  %3450 = vmatmul.bf16.gmra.mxu0 %v2450
  %v3451 = vpop.f32.mrf.mxu0
  %v3452 = vadd.f32 %v3428, %v3451
  %v3453 = vpop.f32.mrf.mxu0
  %v3454 = vadd.f32 %v3430, %v3453
  %3455 = vmatmul.bf16.gmra.mxu0 %v2453
  %v3456 = vpop.f32.mrf.mxu0
  %v3457 = vadd.f32 %v3433, %v3456
  %v3458 = vpop.f32.mrf.mxu0
  %v3459 = vadd.f32 %v3435, %v3458
  %3460 = vmatmul.bf16.gmra.mxu0 %v2456
  %v3461 = vpop.f32.mrf.mxu0
  %v3462 = vadd.f32 %v3438, %v3461
  %v3463 = vpop.f32.mrf.mxu0
  %v3464 = vadd.f32 %v3440, %v3463
  %3465 = vdwg.mxu0
  %3466 = vmatpush.bf16.msra.mxu0 %v1726
  %3467 = vmatpush.bf16.msra.mxu0 %v1718
  %3468 = vmatpush.bf16.msra.mxu0 %v1710
  %3469 = vmatpush.bf16.msra.mxu0 %v1702
  %3470 = vmatpush.bf16.msra.mxu0 %v1694
  %3471 = vmatpush.bf16.msra.mxu0 %v1686
  %3472 = vmatpush.bf16.msra.mxu0 %v1678
  %3473 = vmatpush.bf16.msra.mxu0 %v1670
  %3474 = vmatmul.bf16.gmra.mxu0 %v75
  %v3475 = vpop.f32.mrf.mxu0
  %v3476 = vadd.f32 0.0, %v3475
  %v3477 = vpop.f32.mrf.mxu0
  %v3478 = vadd.f32 0.0, %v3477
  %3479 = vmatmul.bf16.gmra.mxu0 %v82
  %v3480 = vpop.f32.mrf.mxu0
  %v3481 = vadd.f32 0.0, %v3480
  %v3482 = vpop.f32.mrf.mxu0
  %v3483 = vadd.f32 0.0, %v3482
  %3484 = vmatmul.bf16.gmra.mxu0 %v89
  %v3485 = vpop.f32.mrf.mxu0
  %v3486 = vadd.f32 0.0, %v3485
  %v3487 = vpop.f32.mrf.mxu0
  %v3488 = vadd.f32 0.0, %v3487
  %3489 = vdwg.mxu0
  %3490 = vmatpush.bf16.msra.mxu0 %v1790
  %3491 = vmatpush.bf16.msra.mxu0 %v1782
  %3492 = vmatpush.bf16.msra.mxu0 %v1774
  %3493 = vmatpush.bf16.msra.mxu0 %v1766
  %3494 = vmatpush.bf16.msra.mxu0 %v1758
  %3495 = vmatpush.bf16.msra.mxu0 %v1750
  %3496 = vmatpush.bf16.msra.mxu0 %v1742
  %3497 = vmatpush.bf16.msra.mxu0 %v1734
  %3498 = vmatmul.bf16.gmra.mxu0 %v76
  %v3499 = vpop.f32.mrf.mxu0
  %v3500 = vadd.f32 %v3476, %v3499
  %v3501 = vpop.f32.mrf.mxu0
  %v3502 = vadd.f32 %v3478, %v3501
  %3503 = vmatmul.bf16.gmra.mxu0 %v83
  %v3504 = vpop.f32.mrf.mxu0
  %v3505 = vadd.f32 %v3481, %v3504
  %v3506 = vpop.f32.mrf.mxu0
  %v3507 = vadd.f32 %v3483, %v3506
  %3508 = vmatmul.bf16.gmra.mxu0 %v90
  %v3509 = vpop.f32.mrf.mxu0
  %v3510 = vadd.f32 %v3486, %v3509
  %v3511 = vpop.f32.mrf.mxu0
  %v3512 = vadd.f32 %v3488, %v3511
  %3513 = vdwg.mxu0
  %3514 = vmatpush.bf16.msra.mxu0 %v1854
  %3515 = vmatpush.bf16.msra.mxu0 %v1846
  %3516 = vmatpush.bf16.msra.mxu0 %v1838
  %3517 = vmatpush.bf16.msra.mxu0 %v1830
  %3518 = vmatpush.bf16.msra.mxu0 %v1822
  %3519 = vmatpush.bf16.msra.mxu0 %v1814
  %3520 = vmatpush.bf16.msra.mxu0 %v1806
  %3521 = vmatpush.bf16.msra.mxu0 %v1798
  %3522 = vmatmul.bf16.gmra.mxu0 %v77
  %v3523 = vpop.f32.mrf.mxu0
  %v3524 = vadd.f32 %v3500, %v3523
  %v3525 = vpop.f32.mrf.mxu0
  %v3526 = vadd.f32 %v3502, %v3525
  %3527 = vmatmul.bf16.gmra.mxu0 %v84
  %v3528 = vpop.f32.mrf.mxu0
  %v3529 = vadd.f32 %v3505, %v3528
  %v3530 = vpop.f32.mrf.mxu0
  %v3531 = vadd.f32 %v3507, %v3530
  %3532 = vmatmul.bf16.gmra.mxu0 %v91
  %v3533 = vpop.f32.mrf.mxu0
  %v3534 = vadd.f32 %v3510, %v3533
  %v3535 = vpop.f32.mrf.mxu0
  %v3536 = vadd.f32 %v3512, %v3535
  %3537 = vdwg.mxu0
  %3538 = vmatpush.bf16.msra.mxu0 %v1918
  %3539 = vmatpush.bf16.msra.mxu0 %v1910
  %3540 = vmatpush.bf16.msra.mxu0 %v1902
  %3541 = vmatpush.bf16.msra.mxu0 %v1894
  %3542 = vmatpush.bf16.msra.mxu0 %v1886
  %3543 = vmatpush.bf16.msra.mxu0 %v1878
  %3544 = vmatpush.bf16.msra.mxu0 %v1870
  %3545 = vmatpush.bf16.msra.mxu0 %v1862
  %3546 = vmatmul.bf16.gmra.mxu0 %v78
  %v3547 = vpop.f32.mrf.mxu0
  %v3548 = vadd.f32 %v3524, %v3547
  %v3549 = vpop.f32.mrf.mxu0
  %v3550 = vadd.f32 %v3526, %v3549
  %3551 = vmatmul.bf16.gmra.mxu0 %v85
  %v3552 = vpop.f32.mrf.mxu0
  %v3553 = vadd.f32 %v3529, %v3552
  %v3554 = vpop.f32.mrf.mxu0
  %v3555 = vadd.f32 %v3531, %v3554
  %3556 = vmatmul.bf16.gmra.mxu0 %v92
  %v3557 = vpop.f32.mrf.mxu0
  %v3558 = vadd.f32 %v3534, %v3557
  %v3559 = vpop.f32.mrf.mxu0
  %v3560 = vadd.f32 %v3536, %v3559
  %3561 = vdwg.mxu0
  %3562 = vmatpush.bf16.msra.mxu0 %v1982
  %3563 = vmatpush.bf16.msra.mxu0 %v1974
  %3564 = vmatpush.bf16.msra.mxu0 %v1966
  %3565 = vmatpush.bf16.msra.mxu0 %v1958
  %3566 = vmatpush.bf16.msra.mxu0 %v1950
  %3567 = vmatpush.bf16.msra.mxu0 %v1942
  %3568 = vmatpush.bf16.msra.mxu0 %v1934
  %3569 = vmatpush.bf16.msra.mxu0 %v1926
  %3570 = vmatmul.bf16.gmra.mxu0 %v79
  %v3571 = vpop.f32.mrf.mxu0
  %v3572 = vadd.f32 %v3548, %v3571
  %v3573 = vpop.f32.mrf.mxu0
  %v3574 = vadd.f32 %v3550, %v3573
  %3575 = vmatmul.bf16.gmra.mxu0 %v86
  %v3576 = vpop.f32.mrf.mxu0
  %v3577 = vadd.f32 %v3553, %v3576
  %v3578 = vpop.f32.mrf.mxu0
  %v3579 = vadd.f32 %v3555, %v3578
  %3580 = vmatmul.bf16.gmra.mxu0 %v93
  %v3581 = vpop.f32.mrf.mxu0
  %v3582 = vadd.f32 %v3558, %v3581
  %v3583 = vpop.f32.mrf.mxu0
  %v3584 = vadd.f32 %v3560, %v3583
  %3585 = vdwg.mxu0
  %3586 = vmatpush.bf16.msra.mxu0 %v2046
  %3587 = vmatpush.bf16.msra.mxu0 %v2038
  %3588 = vmatpush.bf16.msra.mxu0 %v2030
  %3589 = vmatpush.bf16.msra.mxu0 %v2022
  %3590 = vmatpush.bf16.msra.mxu0 %v2014
  %3591 = vmatpush.bf16.msra.mxu0 %v2006
  %3592 = vmatpush.bf16.msra.mxu0 %v1998
  %3593 = vmatpush.bf16.msra.mxu0 %v1990
  %3594 = vmatmul.bf16.gmra.mxu0 %v80
  %v3595 = vpop.f32.mrf.mxu0
  %v3596 = vadd.f32 %v3572, %v3595
  %v3597 = vpop.f32.mrf.mxu0
  %v3598 = vadd.f32 %v3574, %v3597
  %3599 = vmatmul.bf16.gmra.mxu0 %v87
  %v3600 = vpop.f32.mrf.mxu0
  %v3601 = vadd.f32 %v3577, %v3600
  %v3602 = vpop.f32.mrf.mxu0
  %v3603 = vadd.f32 %v3579, %v3602
  %3604 = vmatmul.bf16.gmra.mxu0 %v94
  %v3605 = vpop.f32.mrf.mxu0
  %v3606 = vadd.f32 %v3582, %v3605
  %v3607 = vpop.f32.mrf.mxu0
  %v3608 = vadd.f32 %v3584, %v3607
  %3609 = vdwg.mxu0
  %3610 = vmatpush.bf16.msra.mxu0 0
  %3611 = vmatpush.bf16.msra.mxu0 0
  %3612 = vmatpush.bf16.msra.mxu0 0
  %3613 = vmatpush.bf16.msra.mxu0 0
  %3614 = vmatpush.bf16.msra.mxu0 0
  %3615 = vmatpush.bf16.msra.mxu0 0
  %3616 = vmatpush.bf16.msra.mxu0 0
  %3617 = vmatpush.bf16.msra.mxu0 %v2054
  %3618 = vmatmul.bf16.gmra.mxu0 %v2450
  %v3619 = vpop.f32.mrf.mxu0
  %v3620 = vadd.f32 %v3596, %v3619
  %v3621 = vpop.f32.mrf.mxu0
  %v3622 = vadd.f32 %v3598, %v3621
  %3623 = vmatmul.bf16.gmra.mxu0 %v2453
  %v3624 = vpop.f32.mrf.mxu0
  %v3625 = vadd.f32 %v3601, %v3624
  %v3626 = vpop.f32.mrf.mxu0
  %v3627 = vadd.f32 %v3603, %v3626
  %3628 = vmatmul.bf16.gmra.mxu0 %v2456
  %v3629 = vpop.f32.mrf.mxu0
  %v3630 = vadd.f32 %v3606, %v3629
  %v3631 = vpop.f32.mrf.mxu0
  %v3632 = vadd.f32 %v3608, %v3631
  %3633 = vdwg.mxu0
  %3634 = vmatpush.bf16.msra.mxu0 %v1727
  %3635 = vmatpush.bf16.msra.mxu0 %v1719
  %3636 = vmatpush.bf16.msra.mxu0 %v1711
  %3637 = vmatpush.bf16.msra.mxu0 %v1703
  %3638 = vmatpush.bf16.msra.mxu0 %v1695
  %3639 = vmatpush.bf16.msra.mxu0 %v1687
  %3640 = vmatpush.bf16.msra.mxu0 %v1679
  %3641 = vmatpush.bf16.msra.mxu0 %v1671
  %3642 = vmatmul.bf16.gmra.mxu0 %v75
  %v3643 = vpop.f32.mrf.mxu0
  %v3644 = vadd.f32 0.0, %v3643
  %v3645 = vpop.f32.mrf.mxu0
  %v3646 = vadd.f32 0.0, %v3645
  %3647 = vmatmul.bf16.gmra.mxu0 %v82
  %v3648 = vpop.f32.mrf.mxu0
  %v3649 = vadd.f32 0.0, %v3648
  %v3650 = vpop.f32.mrf.mxu0
  %v3651 = vadd.f32 0.0, %v3650
  %3652 = vmatmul.bf16.gmra.mxu0 %v89
  %v3653 = vpop.f32.mrf.mxu0
  %v3654 = vadd.f32 0.0, %v3653
  %v3655 = vpop.f32.mrf.mxu0
  %v3656 = vadd.f32 0.0, %v3655
  %3657 = vdwg.mxu0
  %3658 = vmatpush.bf16.msra.mxu0 %v1791
  %3659 = vmatpush.bf16.msra.mxu0 %v1783
  %3660 = vmatpush.bf16.msra.mxu0 %v1775
  %3661 = vmatpush.bf16.msra.mxu0 %v1767
  %3662 = vmatpush.bf16.msra.mxu0 %v1759
  %3663 = vmatpush.bf16.msra.mxu0 %v1751
  %3664 = vmatpush.bf16.msra.mxu0 %v1743
  %3665 = vmatpush.bf16.msra.mxu0 %v1735
  %3666 = vmatmul.bf16.gmra.mxu0 %v76
  %v3667 = vpop.f32.mrf.mxu0
  %v3668 = vadd.f32 %v3644, %v3667
  %v3669 = vpop.f32.mrf.mxu0
  %v3670 = vadd.f32 %v3646, %v3669
  %3671 = vmatmul.bf16.gmra.mxu0 %v83
  %v3672 = vpop.f32.mrf.mxu0
  %v3673 = vadd.f32 %v3649, %v3672
  %v3674 = vpop.f32.mrf.mxu0
  %v3675 = vadd.f32 %v3651, %v3674
  %3676 = vmatmul.bf16.gmra.mxu0 %v90
  %v3677 = vpop.f32.mrf.mxu0
  %v3678 = vadd.f32 %v3654, %v3677
  %v3679 = vpop.f32.mrf.mxu0
  %v3680 = vadd.f32 %v3656, %v3679
  %3681 = vdwg.mxu0
  %3682 = vmatpush.bf16.msra.mxu0 %v1855
  %3683 = vmatpush.bf16.msra.mxu0 %v1847
  %3684 = vmatpush.bf16.msra.mxu0 %v1839
  %3685 = vmatpush.bf16.msra.mxu0 %v1831
  %3686 = vmatpush.bf16.msra.mxu0 %v1823
  %3687 = vmatpush.bf16.msra.mxu0 %v1815
  %3688 = vmatpush.bf16.msra.mxu0 %v1807
  %3689 = vmatpush.bf16.msra.mxu0 %v1799
  %3690 = vmatmul.bf16.gmra.mxu0 %v77
  %v3691 = vpop.f32.mrf.mxu0
  %v3692 = vadd.f32 %v3668, %v3691
  %v3693 = vpop.f32.mrf.mxu0
  %v3694 = vadd.f32 %v3670, %v3693
  %3695 = vmatmul.bf16.gmra.mxu0 %v84
  %v3696 = vpop.f32.mrf.mxu0
  %v3697 = vadd.f32 %v3673, %v3696
  %v3698 = vpop.f32.mrf.mxu0
  %v3699 = vadd.f32 %v3675, %v3698
  %3700 = vmatmul.bf16.gmra.mxu0 %v91
  %v3701 = vpop.f32.mrf.mxu0
  %v3702 = vadd.f32 %v3678, %v3701
  %v3703 = vpop.f32.mrf.mxu0
  %v3704 = vadd.f32 %v3680, %v3703
  %3705 = vdwg.mxu0
  %3706 = vmatpush.bf16.msra.mxu0 %v1919
  %3707 = vmatpush.bf16.msra.mxu0 %v1911
  %3708 = vmatpush.bf16.msra.mxu0 %v1903
  %3709 = vmatpush.bf16.msra.mxu0 %v1895
  %3710 = vmatpush.bf16.msra.mxu0 %v1887
  %3711 = vmatpush.bf16.msra.mxu0 %v1879
  %3712 = vmatpush.bf16.msra.mxu0 %v1871
  %3713 = vmatpush.bf16.msra.mxu0 %v1863
  %3714 = vmatmul.bf16.gmra.mxu0 %v78
  %v3715 = vpop.f32.mrf.mxu0
  %v3716 = vadd.f32 %v3692, %v3715
  %v3717 = vpop.f32.mrf.mxu0
  %v3718 = vadd.f32 %v3694, %v3717
  %3719 = vmatmul.bf16.gmra.mxu0 %v85
  %v3720 = vpop.f32.mrf.mxu0
  %v3721 = vadd.f32 %v3697, %v3720
  %v3722 = vpop.f32.mrf.mxu0
  %v3723 = vadd.f32 %v3699, %v3722
  %3724 = vmatmul.bf16.gmra.mxu0 %v92
  %v3725 = vpop.f32.mrf.mxu0
  %v3726 = vadd.f32 %v3702, %v3725
  %v3727 = vpop.f32.mrf.mxu0
  %v3728 = vadd.f32 %v3704, %v3727
  %3729 = vdwg.mxu0
  %3730 = vmatpush.bf16.msra.mxu0 %v1983
  %3731 = vmatpush.bf16.msra.mxu0 %v1975
  %3732 = vmatpush.bf16.msra.mxu0 %v1967
  %3733 = vmatpush.bf16.msra.mxu0 %v1959
  %3734 = vmatpush.bf16.msra.mxu0 %v1951
  %3735 = vmatpush.bf16.msra.mxu0 %v1943
  %3736 = vmatpush.bf16.msra.mxu0 %v1935
  %3737 = vmatpush.bf16.msra.mxu0 %v1927
  %3738 = vmatmul.bf16.gmra.mxu0 %v79
  %v3739 = vpop.f32.mrf.mxu0
  %v3740 = vadd.f32 %v3716, %v3739
  %v3741 = vpop.f32.mrf.mxu0
  %v3742 = vadd.f32 %v3718, %v3741
  %3743 = vmatmul.bf16.gmra.mxu0 %v86
  %v3744 = vpop.f32.mrf.mxu0
  %v3745 = vadd.f32 %v3721, %v3744
  %v3746 = vpop.f32.mrf.mxu0
  %v3747 = vadd.f32 %v3723, %v3746
  %3748 = vmatmul.bf16.gmra.mxu0 %v93
  %v3749 = vpop.f32.mrf.mxu0
  %v3750 = vadd.f32 %v3726, %v3749
  %v3751 = vpop.f32.mrf.mxu0
  %v3752 = vadd.f32 %v3728, %v3751
  %3753 = vdwg.mxu0
  %3754 = vmatpush.bf16.msra.mxu0 %v2047
  %3755 = vmatpush.bf16.msra.mxu0 %v2039
  %3756 = vmatpush.bf16.msra.mxu0 %v2031
  %3757 = vmatpush.bf16.msra.mxu0 %v2023
  %3758 = vmatpush.bf16.msra.mxu0 %v2015
  %3759 = vmatpush.bf16.msra.mxu0 %v2007
  %3760 = vmatpush.bf16.msra.mxu0 %v1999
  %3761 = vmatpush.bf16.msra.mxu0 %v1991
  %3762 = vmatmul.bf16.gmra.mxu0 %v80
  %v3763 = vpop.f32.mrf.mxu0
  %v3764 = vadd.f32 %v3740, %v3763
  %v3765 = vpop.f32.mrf.mxu0
  %v3766 = vadd.f32 %v3742, %v3765
  %3767 = vmatmul.bf16.gmra.mxu0 %v87
  %v3768 = vpop.f32.mrf.mxu0
  %v3769 = vadd.f32 %v3745, %v3768
  %v3770 = vpop.f32.mrf.mxu0
  %v3771 = vadd.f32 %v3747, %v3770
  %3772 = vmatmul.bf16.gmra.mxu0 %v94
  %v3773 = vpop.f32.mrf.mxu0
  %v3774 = vadd.f32 %v3750, %v3773
  %v3775 = vpop.f32.mrf.mxu0
  %v3776 = vadd.f32 %v3752, %v3775
  %3777 = vdwg.mxu0
  %3778 = vmatpush.bf16.msra.mxu0 0
  %3779 = vmatpush.bf16.msra.mxu0 0
  %3780 = vmatpush.bf16.msra.mxu0 0
  %3781 = vmatpush.bf16.msra.mxu0 0
  %3782 = vmatpush.bf16.msra.mxu0 0
  %3783 = vmatpush.bf16.msra.mxu0 0
  %3784 = vmatpush.bf16.msra.mxu0 0
  %3785 = vmatpush.bf16.msra.mxu0 %v2055
  %3786 = vmatmul.bf16.gmra.mxu0 %v2450
  %v3787 = vpop.f32.mrf.mxu0
  %v3788 = vadd.f32 %v3764, %v3787
  %v3789 = vpop.f32.mrf.mxu0
  %v3790 = vadd.f32 %v3766, %v3789
  %3791 = vmatmul.bf16.gmra.mxu0 %v2453
  %v3792 = vpop.f32.mrf.mxu0
  %v3793 = vadd.f32 %v3769, %v3792
  %v3794 = vpop.f32.mrf.mxu0
  %v3795 = vadd.f32 %v3771, %v3794
  %3796 = vmatmul.bf16.gmra.mxu0 %v2456
  %v3797 = vpop.f32.mrf.mxu0
  %v3798 = vadd.f32 %v3774, %v3797
  %v3799 = vpop.f32.mrf.mxu0
  %v3800 = vadd.f32 %v3776, %v3799
  %3801 = vdwg.mxu0
  %v3802 = vpack.c.bf16 %v2780, %v2612
  %v3803 = vpack.c.bf16 %v3116, %v2948
  %v3804 = vpack.c.bf16 %v3452, %v3284
  %v3805 = vpack.c.bf16 %v3788, %v3620
  %v3806 = vpack.c.bf16 %v2782, %v2614
  %v3807 = vpack.c.bf16 %v3118, %v2950
  %v3808 = vpack.c.bf16 %v3454, %v3286
  %v3809 = vpack.c.bf16 %v3790, %v3622
  %v3810 = vpack.c.bf16 %v2785, %v2617
  %v3811 = vpack.c.bf16 %v3121, %v2953
  %v3812 = vpack.c.bf16 %v3457, %v3289
  %v3813 = vpack.c.bf16 %v3793, %v3625
  %v3814 = vpack.c.bf16 %v2787, %v2619
  %v3815 = vpack.c.bf16 %v3123, %v2955
  %v3816 = vpack.c.bf16 %v3459, %v3291
  %v3817 = vpack.c.bf16 %v3795, %v3627
  %v3818 = vpack.c.bf16 %v2790, %v2622
  %v3819 = vpack.c.bf16 %v3126, %v2958
  %v3820 = vpack.c.bf16 %v3462, %v3294
  %v3821 = vpack.c.bf16 %v3798, %v3630
  %v3822 = vpack.c.bf16 %v2792, %v2624
  %v3823 = vpack.c.bf16 %v3128, %v2960
  %v3824 = vpack.c.bf16 %v3464, %v3296
  %v3825 = vpack.c.bf16 %v3800, %v3632
  %v3826 = vld [vmem:[%s2] sm:$0xff]
  %3828 = vst [vmem:[#allocation1] ss:$9 sm:$0xff] %v3826
  %v3829 = vld [vmem:[#allocation1] sm:$0xff]
  %v3830 = vld [vmem:[#allocation1 + $0x9] sm:$0xff]
  %v3831 = vld [vmem:[#allocation1 + $0x12] sm:$0xff]
  %v3832 = vld [vmem:[#allocation1 + $0x1b] sm:$0xff]
  %v3833 = vld [vmem:[#allocation1 + $0x24] sm:$0xff]
  %v3834 = vld [vmem:[#allocation1 + $0x2d] sm:$0xff]
  %v3835 = vld [vmem:[#allocation1 + $0x36] sm:$0xff]
  %v3836 = vld [vmem:[#allocation1 + $0x3f] sm:$0xff]
  %v3837 = vpack.i.b16 %v3829, %v3829
  %v3839 = vperm.slane %v3837, 0
  %v3840 = vpack.i.b16 %v3830, %v3830
  %v3842 = vperm.slane %v3840, 0
  %v3843 = vpack.i.b16 %v3831, %v3831
  %v3845 = vperm.slane %v3843, 0
  %v3846 = vpack.i.b16 %v3832, %v3832
  %v3848 = vperm.slane %v3846, 0
  %v3849 = vpack.i.b16 %v3833, %v3833
  %v3851 = vperm.slane %v3849, 0
  %v3852 = vpack.i.b16 %v3834, %v3834
  %v3854 = vperm.slane %v3852, 0
  %v3855 = vpack.i.b16 %v3835, %v3835
  %v3857 = vperm.slane %v3855, 0
  %v3858 = vpack.i.b16 %v3836, %v3836
  %v3860 = vperm.slane %v3858, 0
  %v3861 = vunpack.c.l.bf16 %v3802
  %v3862 = vunpack.c.h.bf16 %v3802
  %v3863 = vunpack.c.l.bf16 %v3803
  %v3864 = vunpack.c.h.bf16 %v3803
  %v3865 = vunpack.c.l.bf16 %v3804
  %v3866 = vunpack.c.h.bf16 %v3804
  %v3867 = vunpack.c.l.bf16 %v3805
  %v3868 = vunpack.c.h.bf16 %v3805
  %v3869 = vunpack.c.l.bf16 %v3806
  %v3870 = vunpack.c.h.bf16 %v3806
  %v3871 = vunpack.c.l.bf16 %v3807
  %v3872 = vunpack.c.h.bf16 %v3807
  %v3873 = vunpack.c.l.bf16 %v3808
  %v3874 = vunpack.c.h.bf16 %v3808
  %v3875 = vunpack.c.l.bf16 %v3809
  %v3876 = vunpack.c.h.bf16 %v3809
  %v3877 = vunpack.c.l.bf16 %v3810
  %v3878 = vunpack.c.h.bf16 %v3810
  %v3879 = vunpack.c.l.bf16 %v3811
  %v3880 = vunpack.c.h.bf16 %v3811
  %v3881 = vunpack.c.l.bf16 %v3812
  %v3882 = vunpack.c.h.bf16 %v3812
  %v3883 = vunpack.c.l.bf16 %v3813
  %v3884 = vunpack.c.h.bf16 %v3813
  %v3885 = vunpack.c.l.bf16 %v3814
  %v3886 = vunpack.c.h.bf16 %v3814
  %v3887 = vunpack.c.l.bf16 %v3815
  %v3888 = vunpack.c.h.bf16 %v3815
  %v3889 = vunpack.c.l.bf16 %v3816
  %v3890 = vunpack.c.h.bf16 %v3816
  %v3891 = vunpack.c.l.bf16 %v3817
  %v3892 = vunpack.c.h.bf16 %v3817
  %v3893 = vunpack.c.l.bf16 %v3818
  %v3894 = vunpack.c.h.bf16 %v3818
  %v3895 = vunpack.c.l.bf16 %v3819
  %v3896 = vunpack.c.h.bf16 %v3819
  %v3897 = vunpack.c.l.bf16 %v3820
  %v3898 = vunpack.c.h.bf16 %v3820
  %v3899 = vunpack.c.l.bf16 %v3821
  %v3900 = vunpack.c.h.bf16 %v3821
  %v3901 = vunpack.c.l.bf16 %v3822
  %v3902 = vunpack.c.h.bf16 %v3822
  %v3903 = vunpack.c.l.bf16 %v3823
  %v3904 = vunpack.c.h.bf16 %v3823
  %v3905 = vunpack.c.l.bf16 %v3824
  %v3906 = vunpack.c.h.bf16 %v3824
  %v3907 = vunpack.c.l.bf16 %v3825
  %v3908 = vunpack.c.h.bf16 %v3825
  %v3909 = vunpack.c.l.bf16 %v3839
  %v3910 = vunpack.c.l.bf16 %v3842
  %v3911 = vunpack.c.l.bf16 %v3845
  %v3912 = vunpack.c.l.bf16 %v3848
  %v3913 = vunpack.c.l.bf16 %v3851
  %v3914 = vunpack.c.l.bf16 %v3854
  %v3915 = vunpack.c.l.bf16 %v3857
  %v3916 = vunpack.c.l.bf16 %v3860
  %v3917 = vadd.f32 %v3861, %v3909
  %v3918 = vadd.f32 %v3862, %v3910
  %v3919 = vadd.f32 %v3863, %v3911
  %v3920 = vadd.f32 %v3864, %v3912
  %v3921 = vadd.f32 %v3865, %v3913
  %v3922 = vadd.f32 %v3866, %v3914
  %v3923 = vadd.f32 %v3867, %v3915
  %v3924 = vadd.f32 %v3868, %v3916
  %v3925 = vadd.f32 %v3869, %v3909
  %v3926 = vadd.f32 %v3870, %v3910
  %v3927 = vadd.f32 %v3871, %v3911
  %v3928 = vadd.f32 %v3872, %v3912
  %v3929 = vadd.f32 %v3873, %v3913
  %v3930 = vadd.f32 %v3874, %v3914
  %v3931 = vadd.f32 %v3875, %v3915
  %v3932 = vadd.f32 %v3876, %v3916
  %v3933 = vadd.f32 %v3877, %v3909
  %v3934 = vadd.f32 %v3878, %v3910
  %v3935 = vadd.f32 %v3879, %v3911
  %v3936 = vadd.f32 %v3880, %v3912
  %v3937 = vadd.f32 %v3881, %v3913
  %v3938 = vadd.f32 %v3882, %v3914
  %v3939 = vadd.f32 %v3883, %v3915
  %v3940 = vadd.f32 %v3884, %v3916
  %v3941 = vadd.f32 %v3885, %v3909
  %v3942 = vadd.f32 %v3886, %v3910
  %v3943 = vadd.f32 %v3887, %v3911
  %v3944 = vadd.f32 %v3888, %v3912
  %v3945 = vadd.f32 %v3889, %v3913
  %v3946 = vadd.f32 %v3890, %v3914
  %v3947 = vadd.f32 %v3891, %v3915
  %v3948 = vadd.f32 %v3892, %v3916
  %v3949 = vadd.f32 %v3893, %v3909
  %v3950 = vadd.f32 %v3894, %v3910
  %v3951 = vadd.f32 %v3895, %v3911
  %v3952 = vadd.f32 %v3896, %v3912
  %v3953 = vadd.f32 %v3897, %v3913
  %v3954 = vadd.f32 %v3898, %v3914
  %v3955 = vadd.f32 %v3899, %v3915
  %v3956 = vadd.f32 %v3900, %v3916
  %v3957 = vadd.f32 %v3901, %v3909
  %v3958 = vadd.f32 %v3902, %v3910
  %v3959 = vadd.f32 %v3903, %v3911
  %v3960 = vadd.f32 %v3904, %v3912
  %v3961 = vadd.f32 %v3905, %v3913
  %v3962 = vadd.f32 %v3906, %v3914
  %v3963 = vadd.f32 %v3907, %v3915
  %v3964 = vadd.f32 %v3908, %v3916
  %v3965 = vpack.c.bf16 %v3918, %v3917
  %v3966 = vpack.c.bf16 %v3920, %v3919
  %v3967 = vpack.c.bf16 %v3922, %v3921
  %v3968 = vpack.c.bf16 %v3924, %v3923
  %v3969 = vpack.c.bf16 %v3926, %v3925
  %v3970 = vpack.c.bf16 %v3928, %v3927
  %v3971 = vpack.c.bf16 %v3930, %v3929
  %v3972 = vpack.c.bf16 %v3932, %v3931
  %v3973 = vpack.c.bf16 %v3934, %v3933
  %v3974 = vpack.c.bf16 %v3936, %v3935
  %v3975 = vpack.c.bf16 %v3938, %v3937
  %v3976 = vpack.c.bf16 %v3940, %v3939
  %v3977 = vpack.c.bf16 %v3942, %v3941
  %v3978 = vpack.c.bf16 %v3944, %v3943
  %v3979 = vpack.c.bf16 %v3946, %v3945
  %v3980 = vpack.c.bf16 %v3948, %v3947
  %v3981 = vpack.c.bf16 %v3950, %v3949
  %v3982 = vpack.c.bf16 %v3952, %v3951
  %v3983 = vpack.c.bf16 %v3954, %v3953
  %v3984 = vpack.c.bf16 %v3956, %v3955
  %v3985 = vpack.c.bf16 %v3958, %v3957
  %v3986 = vpack.c.bf16 %v3960, %v3959
  %v3987 = vpack.c.bf16 %v3962, %v3961
  %v3988 = vpack.c.bf16 %v3964, %v3963
  %v3989 = vunpack.c.l.bf16 %v3965
  %v3990 = vunpack.c.h.bf16 %v3965
  %v3991 = vunpack.c.l.bf16 %v3966
  %v3992 = vunpack.c.h.bf16 %v3966
  %v3993 = vunpack.c.l.bf16 %v3967
  %v3994 = vunpack.c.h.bf16 %v3967
  %v3995 = vunpack.c.l.bf16 %v3968
  %v3996 = vunpack.c.h.bf16 %v3968
  %v3997 = vunpack.c.l.bf16 %v3969
  %v3998 = vunpack.c.h.bf16 %v3969
  %v3999 = vunpack.c.l.bf16 %v3970
  %v4000 = vunpack.c.h.bf16 %v3970
  %v4001 = vunpack.c.l.bf16 %v3971
  %v4002 = vunpack.c.h.bf16 %v3971
  %v4003 = vunpack.c.l.bf16 %v3972
  %v4004 = vunpack.c.h.bf16 %v3972
  %v4005 = vunpack.c.l.bf16 %v3973
  %v4006 = vunpack.c.h.bf16 %v3973
  %v4007 = vunpack.c.l.bf16 %v3974
  %v4008 = vunpack.c.h.bf16 %v3974
  %v4009 = vunpack.c.l.bf16 %v3975
  %v4010 = vunpack.c.h.bf16 %v3975
  %v4011 = vunpack.c.l.bf16 %v3976
  %v4012 = vunpack.c.h.bf16 %v3976
  %v4013 = vunpack.c.l.bf16 %v3977
  %v4014 = vunpack.c.h.bf16 %v3977
  %v4015 = vunpack.c.l.bf16 %v3978
  %v4016 = vunpack.c.h.bf16 %v3978
  %v4017 = vunpack.c.l.bf16 %v3979
  %v4018 = vunpack.c.h.bf16 %v3979
  %v4019 = vunpack.c.l.bf16 %v3980
  %v4020 = vunpack.c.h.bf16 %v3980
  %v4021 = vunpack.c.l.bf16 %v3981
  %v4022 = vunpack.c.h.bf16 %v3981
  %v4023 = vunpack.c.l.bf16 %v3982
  %v4024 = vunpack.c.h.bf16 %v3982
  %v4025 = vunpack.c.l.bf16 %v3983
  %v4026 = vunpack.c.h.bf16 %v3983
  %v4027 = vunpack.c.l.bf16 %v3984
  %v4028 = vunpack.c.h.bf16 %v3984
  %v4029 = vunpack.c.l.bf16 %v3985
  %v4030 = vunpack.c.h.bf16 %v3985
  %v4031 = vunpack.c.l.bf16 %v3986
  %v4032 = vunpack.c.h.bf16 %v3986
  %v4033 = vunpack.c.l.bf16 %v3987
  %v4034 = vunpack.c.h.bf16 %v3987
  %v4035 = vunpack.c.l.bf16 %v3988
  %v4036 = vunpack.c.h.bf16 %v3988
  %v4037 = vmul.f32 %v3989, 0.20019531
  %v4038 = vmul.f32 %v3990, 0.20019531
  %v4039 = vmul.f32 %v3991, 0.20019531
  %v4040 = vmul.f32 %v3992, 0.20019531
  %v4041 = vmul.f32 %v3993, 0.20019531
  %v4042 = vmul.f32 %v3994, 0.20019531
  %v4043 = vmul.f32 %v3995, 0.20019531
  %v4044 = vmul.f32 %v3996, 0.20019531
  %v4045 = vmul.f32 %v3997, 0.20019531
  %v4046 = vmul.f32 %v3998, 0.20019531
  %v4047 = vmul.f32 %v3999, 0.20019531
  %v4048 = vmul.f32 %v4000, 0.20019531
  %v4049 = vmul.f32 %v4001, 0.20019531
  %v4050 = vmul.f32 %v4002, 0.20019531
  %v4051 = vmul.f32 %v4003, 0.20019531
  %v4052 = vmul.f32 %v4004, 0.20019531
  %v4053 = vmul.f32 %v4005, 0.20019531
  %v4054 = vmul.f32 %v4006, 0.20019531
  %v4055 = vmul.f32 %v4007, 0.20019531
  %v4056 = vmul.f32 %v4008, 0.20019531
  %v4057 = vmul.f32 %v4009, 0.20019531
  %v4058 = vmul.f32 %v4010, 0.20019531
  %v4059 = vmul.f32 %v4011, 0.20019531
  %v4060 = vmul.f32 %v4012, 0.20019531
  %v4061 = vmul.f32 %v4013, 0.20019531
  %v4062 = vmul.f32 %v4014, 0.20019531
  %v4063 = vmul.f32 %v4015, 0.20019531
  %v4064 = vmul.f32 %v4016, 0.20019531
  %v4065 = vmul.f32 %v4017, 0.20019531
  %v4066 = vmul.f32 %v4018, 0.20019531
  %v4067 = vmul.f32 %v4019, 0.20019531
  %v4068 = vmul.f32 %v4020, 0.20019531
  %v4069 = vmul.f32 %v4021, 0.20019531
  %v4070 = vmul.f32 %v4022, 0.20019531
  %v4071 = vmul.f32 %v4023, 0.20019531
  %v4072 = vmul.f32 %v4024, 0.20019531
  %v4073 = vmul.f32 %v4025, 0.20019531
  %v4074 = vmul.f32 %v4026, 0.20019531
  %v4075 = vmul.f32 %v4027, 0.20019531
  %v4076 = vmul.f32 %v4028, 0.20019531
  %v4077 = vmul.f32 %v4029, 0.20019531
  %v4078 = vmul.f32 %v4030, 0.20019531
  %v4079 = vmul.f32 %v4031, 0.20019531
  %v4080 = vmul.f32 %v4032, 0.20019531
  %v4081 = vmul.f32 %v4033, 0.20019531
  %v4082 = vmul.f32 %v4034, 0.20019531
  %v4083 = vmul.f32 %v4035, 0.20019531
  %v4084 = vmul.f32 %v4036, 0.20019531
  %v4085 = vpack.c.bf16 %v4038, %v4037
  %v4086 = vpack.c.bf16 %v4040, %v4039
  %v4087 = vpack.c.bf16 %v4042, %v4041
  %v4088 = vpack.c.bf16 %v4044, %v4043
  %v4089 = vpack.c.bf16 %v4046, %v4045
  %v4090 = vpack.c.bf16 %v4048, %v4047
  %v4091 = vpack.c.bf16 %v4050, %v4049
  %v4092 = vpack.c.bf16 %v4052, %v4051
  %v4093 = vpack.c.bf16 %v4054, %v4053
  %v4094 = vpack.c.bf16 %v4056, %v4055
  %v4095 = vpack.c.bf16 %v4058, %v4057
  %v4096 = vpack.c.bf16 %v4060, %v4059
  %v4097 = vpack.c.bf16 %v4062, %v4061
  %v4098 = vpack.c.bf16 %v4064, %v4063
  %v4099 = vpack.c.bf16 %v4066, %v4065
  %v4100 = vpack.c.bf16 %v4068, %v4067
  %v4101 = vpack.c.bf16 %v4070, %v4069
  %v4102 = vpack.c.bf16 %v4072, %v4071
  %v4103 = vpack.c.bf16 %v4074, %v4073
  %v4104 = vpack.c.bf16 %v4076, %v4075
  %v4105 = vpack.c.bf16 %v4078, %v4077
  %v4106 = vpack.c.bf16 %v4080, %v4079
  %v4107 = vpack.c.bf16 %v4082, %v4081
  %v4108 = vpack.c.bf16 %v4084, %v4083
  %v4109 = vunpack.c.l.bf16 %v4085
  %v4110 = vunpack.c.h.bf16 %v4085
  %v4111 = vunpack.c.l.bf16 %v4086
  %v4112 = vunpack.c.h.bf16 %v4086
  %v4113 = vunpack.c.l.bf16 %v4087
  %v4114 = vunpack.c.h.bf16 %v4087
  %v4115 = vunpack.c.l.bf16 %v4088
  %v4116 = vunpack.c.h.bf16 %v4088
  %v4117 = vunpack.c.l.bf16 %v4089
  %v4118 = vunpack.c.h.bf16 %v4089
  %v4119 = vunpack.c.l.bf16 %v4090
  %v4120 = vunpack.c.h.bf16 %v4090
  %v4121 = vunpack.c.l.bf16 %v4091
  %v4122 = vunpack.c.h.bf16 %v4091
  %v4123 = vunpack.c.l.bf16 %v4092
  %v4124 = vunpack.c.h.bf16 %v4092
  %v4125 = vunpack.c.l.bf16 %v4093
  %v4126 = vunpack.c.h.bf16 %v4093
  %v4127 = vunpack.c.l.bf16 %v4094
  %v4128 = vunpack.c.h.bf16 %v4094
  %v4129 = vunpack.c.l.bf16 %v4095
  %v4130 = vunpack.c.h.bf16 %v4095
  %v4131 = vunpack.c.l.bf16 %v4096
  %v4132 = vunpack.c.h.bf16 %v4096
  %v4133 = vunpack.c.l.bf16 %v4097
  %v4134 = vunpack.c.h.bf16 %v4097
  %v4135 = vunpack.c.l.bf16 %v4098
  %v4136 = vunpack.c.h.bf16 %v4098
  %v4137 = vunpack.c.l.bf16 %v4099
  %v4138 = vunpack.c.h.bf16 %v4099
  %v4139 = vunpack.c.l.bf16 %v4100
  %v4140 = vunpack.c.h.bf16 %v4100
  %v4141 = vunpack.c.l.bf16 %v4101
  %v4142 = vunpack.c.h.bf16 %v4101
  %v4143 = vunpack.c.l.bf16 %v4102
  %v4144 = vunpack.c.h.bf16 %v4102
  %v4145 = vunpack.c.l.bf16 %v4103
  %v4146 = vunpack.c.h.bf16 %v4103
  %v4147 = vunpack.c.l.bf16 %v4104
  %v4148 = vunpack.c.h.bf16 %v4104
  %v4149 = vunpack.c.l.bf16 %v4105
  %v4150 = vunpack.c.h.bf16 %v4105
  %v4151 = vunpack.c.l.bf16 %v4106
  %v4152 = vunpack.c.h.bf16 %v4106
  %v4153 = vunpack.c.l.bf16 %v4107
  %v4154 = vunpack.c.h.bf16 %v4107
  %v4155 = vunpack.c.l.bf16 %v4108
  %v4156 = vunpack.c.h.bf16 %v4108
  %v4157 = vmax.f32 %v3989, %v4109
  %v4158 = vmax.f32 %v3990, %v4110
  %v4159 = vmax.f32 %v3991, %v4111
  %v4160 = vmax.f32 %v3992, %v4112
  %v4161 = vmax.f32 %v3993, %v4113
  %v4162 = vmax.f32 %v3994, %v4114
  %v4163 = vmax.f32 %v3995, %v4115
  %v4164 = vmax.f32 %v3996, %v4116
  %v4165 = vmax.f32 %v3997, %v4117
  %v4166 = vmax.f32 %v3998, %v4118
  %v4167 = vmax.f32 %v3999, %v4119
  %v4168 = vmax.f32 %v4000, %v4120
  %v4169 = vmax.f32 %v4001, %v4121
  %v4170 = vmax.f32 %v4002, %v4122
  %v4171 = vmax.f32 %v4003, %v4123
  %v4172 = vmax.f32 %v4004, %v4124
  %v4173 = vmax.f32 %v4005, %v4125
  %v4174 = vmax.f32 %v4006, %v4126
  %v4175 = vmax.f32 %v4007, %v4127
  %v4176 = vmax.f32 %v4008, %v4128
  %v4177 = vmax.f32 %v4009, %v4129
  %v4178 = vmax.f32 %v4010, %v4130
  %v4179 = vmax.f32 %v4011, %v4131
  %v4180 = vmax.f32 %v4012, %v4132
  %v4181 = vmax.f32 %v4013, %v4133
  %v4182 = vmax.f32 %v4014, %v4134
  %v4183 = vmax.f32 %v4015, %v4135
  %v4184 = vmax.f32 %v4016, %v4136
  %v4185 = vmax.f32 %v4017, %v4137
  %v4186 = vmax.f32 %v4018, %v4138
  %v4187 = vmax.f32 %v4019, %v4139
  %v4188 = vmax.f32 %v4020, %v4140
  %v4189 = vmax.f32 %v4021, %v4141
  %v4190 = vmax.f32 %v4022, %v4142
  %v4191 = vmax.f32 %v4023, %v4143
  %v4192 = vmax.f32 %v4024, %v4144
  %v4193 = vmax.f32 %v4025, %v4145
  %v4194 = vmax.f32 %v4026, %v4146
  %v4195 = vmax.f32 %v4027, %v4147
  %v4196 = vmax.f32 %v4028, %v4148
  %v4197 = vmax.f32 %v4029, %v4149
  %v4198 = vmax.f32 %v4030, %v4150
  %v4199 = vmax.f32 %v4031, %v4151
  %v4200 = vmax.f32 %v4032, %v4152
  %v4201 = vmax.f32 %v4033, %v4153
  %v4202 = vmax.f32 %v4034, %v4154
  %v4203 = vmax.f32 %v4035, %v4155
  %v4204 = vmax.f32 %v4036, %v4156
  %v4205 = vpack.c.bf16 %v4165, %v4157
  %v4206 = vpack.c.bf16 %v4166, %v4158
  %v4207 = vpack.c.bf16 %v4167, %v4159
  %v4208 = vpack.c.bf16 %v4168, %v4160
  %v4209 = vpack.c.bf16 %v4169, %v4161
  %v4210 = vpack.c.bf16 %v4170, %v4162
  %v4211 = vpack.c.bf16 %v4171, %v4163
  %v4212 = vpack.c.bf16 %v4172, %v4164
  %v4213 = vpack.c.bf16 %v4181, %v4173
  %v4214 = vpack.c.bf16 %v4182, %v4174
  %v4215 = vpack.c.bf16 %v4183, %v4175
  %v4216 = vpack.c.bf16 %v4184, %v4176
  %v4217 = vpack.c.bf16 %v4185, %v4177
  %v4218 = vpack.c.bf16 %v4186, %v4178
  %v4219 = vpack.c.bf16 %v4187, %v4179
  %v4220 = vpack.c.bf16 %v4188, %v4180
  %v4221 = vpack.c.bf16 %v4197, %v4189
  %v4222 = vpack.c.bf16 %v4198, %v4190
  %v4223 = vpack.c.bf16 %v4199, %v4191
  %v4224 = vpack.c.bf16 %v4200, %v4192
  %v4225 = vpack.c.bf16 %v4201, %v4193
  %v4226 = vpack.c.bf16 %v4202, %v4194
  %v4227 = vpack.c.bf16 %v4203, %v4195
  %v4228 = vpack.c.bf16 %v4204, %v4196
  %v4229 = vld [vmem:[%s3] sm:$0xff]
  %v4230 = vld [vmem:[%s3 + $0x8] sm:$0xff]
  %v4231 = vld [vmem:[%s3 + $0x10] sm:$0xff]
  %v4232 = vld [vmem:[%s3 + $0x18] sm:$0xff]
  %v4233 = vld [vmem:[%s3 + $0x20] sm:$0xff]
  %v4234 = vld [vmem:[%s3 + $0x28] sm:$0xff]
  %v4235 = vld [vmem:[%s3 + $0x30] sm:$0xff]
  %v4236 = vld [vmem:[%s3 + $0x38] sm:$0xff]
  %v4237 = vld [vmem:[%s3 + $0x40] sm:$0xff]
  %v4238 = vld [vmem:[%s3 + $0x48] sm:$0xff]
  %v4239 = vld [vmem:[%s3 + $0x50] sm:$0xff]
  %v4240 = vld [vmem:[%s3 + $0x58] sm:$0xff]
  %v4241 = vld [vmem:[%s3 + $0x60] sm:$0xff]
  %v4242 = vld [vmem:[%s3 + $0x68] sm:$0xff]
  %v4243 = vld [vmem:[%s3 + $0x70] sm:$0xff]
  %v4244 = vld [vmem:[%s3 + $0x78] sm:$0xff]
  %v4245 = vld [vmem:[%s3 + $0x80] sm:$0xff]
  %v4246 = vld [vmem:[%s3 + $0x88] sm:$0xff]
  %v4247 = vld [vmem:[%s3 + $0x90] sm:$0xff]
  %v4248 = vld [vmem:[%s3 + $0x98] sm:$0xff]
  %v4249 = vld [vmem:[%s3 + $0xa0] sm:$0xff]
  %v4250 = vld [vmem:[%s3 + $0xa8] sm:$0xff]
  %v4251 = vld [vmem:[%s3 + $0xb0] sm:$0xff]
  %v4252 = vld [vmem:[%s3 + $0xb8] sm:$0xff]
  %v4253 = vld [vmem:[%s3 + $0xc0] sm:$0xff]
  %v4254 = vld [vmem:[%s3 + $0xc8] sm:$0xff]
  %v4255 = vld [vmem:[%s3 + $0xd0] sm:$0xff]
  %v4256 = vld [vmem:[%s3 + $0xd8] sm:$0xff]
  %v4257 = vld [vmem:[%s3 + $0xe0] sm:$0xff]
  %v4258 = vld [vmem:[%s3 + $0xe8] sm:$0xff]
  %v4259 = vld [vmem:[%s3 + $0xf0] sm:$0xff]
  %v4260 = vld [vmem:[%s3 + $0xf8] sm:$0xff]
  %v4261 = vld [vmem:[%s3 + $0x100] sm:$0xff]
  %v4262 = vld [vmem:[%s3 + $0x108] sm:$0xff]
  %v4263 = vld [vmem:[%s3 + $0x110] sm:$0xff]
  %v4264 = vld [vmem:[%s3 + $0x118] sm:$0xff]
  %v4265 = vld [vmem:[%s3 + $0x120] sm:$0xff]
  %v4266 = vld [vmem:[%s3 + $0x128] sm:$0xff]
  %v4267 = vld [vmem:[%s3 + $0x130] sm:$0xff]
  %v4268 = vld [vmem:[%s3 + $0x138] sm:$0xff]
  %v4269 = vld [vmem:[%s3 + $0x140] sm:$0xff]
  %v4270 = vld [vmem:[%s3 + $0x148] sm:$0xff]
  %v4271 = vld [vmem:[%s3 + $0x150] sm:$0xff]
  %v4272 = vld [vmem:[%s3 + $0x158] sm:$0xff]
  %v4273 = vld [vmem:[%s3 + $0x160] sm:$0xff]
  %v4274 = vld [vmem:[%s3 + $0x168] sm:$0xff]
  %v4275 = vld [vmem:[%s3 + $0x170] sm:$0xff]
  %v4276 = vld [vmem:[%s3 + $0x178] sm:$0xff]
  %v4277 = vld [vmem:[%s3 + $0x180] sm:$0xff]
  %v4278 = vld [vmem:[%s3 + $0x188] sm:$0xff]
  %v4279 = vld [vmem:[%s3 + $0x190] sm:$0xff]
  %v4280 = vld [vmem:[%s3 + $0x198] sm:$0xff]
  %v4281 = vld [vmem:[%s3 + $0x1a0] sm:$0xff]
  %v4282 = vld [vmem:[%s3 + $0x1a8] sm:$0xff]
  %v4283 = vld [vmem:[%s3 + $0x1b0] sm:$0xff]
  %v4284 = vld [vmem:[%s3 + $0x1b8] sm:$0xff]
  %v4285 = vld [vmem:[%s3 + $0x1c0] sm:$0xff]
  %v4286 = vld [vmem:[%s3 + $0x1c8] sm:$0xff]
  %v4287 = vld [vmem:[%s3 + $0x1d0] sm:$0xff]
  %v4288 = vld [vmem:[%s3 + $0x1d8] sm:$0xff]
  %v4289 = vld [vmem:[%s3 + $0x1e0] sm:$0xff]
  %v4290 = vld [vmem:[%s3 + $0x1e8] sm:$0xff]
  %v4291 = vld [vmem:[%s3 + $0x1f0] sm:$0xff]
  %v4292 = vld [vmem:[%s3 + $0x1f8] sm:$0xff]
  %v4293 = vld [vmem:[%s3 + $0x200] sm:$0xff]
  %v4294 = vld [vmem:[%s3 + $0x208] sm:$0xff]
  %v4295 = vld [vmem:[%s3 + $0x210] sm:$0xff]
  %v4296 = vld [vmem:[%s3 + $0x218] sm:$0xff]
  %v4297 = vld [vmem:[%s3 + $0x220] sm:$0xff]
  %v4298 = vld [vmem:[%s3 + $0x228] sm:$0xff]
  %v4299 = vld [vmem:[%s3 + $0x230] sm:$0xff]
  %v4300 = vld [vmem:[%s3 + $0x238] sm:$0xff]
  %v4301 = vld [vmem:[%s3 + $0x240] sm:$0xff]
  %v4302 = vld [vmem:[%s3 + $0x248] sm:$0xff]
  %v4303 = vld [vmem:[%s3 + $0x250] sm:$0xff]
  %v4304 = vld [vmem:[%s3 + $0x258] sm:$0xff]
  %v4305 = vld [vmem:[%s3 + $0x260] sm:$0xff]
  %v4306 = vld [vmem:[%s3 + $0x268] sm:$0xff]
  %v4307 = vld [vmem:[%s3 + $0x270] sm:$0xff]
  %v4308 = vld [vmem:[%s3 + $0x278] sm:$0xff]
  %v4309 = vld [vmem:[%s3 + $0x280] sm:$0xff]
  %v4310 = vld [vmem:[%s3 + $0x288] sm:$0xff]
  %v4311 = vld [vmem:[%s3 + $0x290] sm:$0xff]
  %v4312 = vld [vmem:[%s3 + $0x298] sm:$0xff]
  %v4313 = vld [vmem:[%s3 + $0x2a0] sm:$0xff]
  %v4314 = vld [vmem:[%s3 + $0x2a8] sm:$0xff]
  %v4315 = vld [vmem:[%s3 + $0x2b0] sm:$0xff]
  %v4316 = vld [vmem:[%s3 + $0x2b8] sm:$0xff]
  %v4317 = vld [vmem:[%s3 + $0x2c0] sm:$0xff]
  %v4318 = vld [vmem:[%s3 + $0x2c8] sm:$0xff]
  %v4319 = vld [vmem:[%s3 + $0x2d0] sm:$0xff]
  %v4320 = vld [vmem:[%s3 + $0x2d8] sm:$0xff]
  %v4321 = vld [vmem:[%s3 + $0x2e0] sm:$0xff]
  %v4322 = vld [vmem:[%s3 + $0x2e8] sm:$0xff]
  %v4323 = vld [vmem:[%s3 + $0x2f0] sm:$0xff]
  %v4324 = vld [vmem:[%s3 + $0x2f8] sm:$0xff]
  %v4325 = vld [vmem:[%s3 + $0x300] sm:$0xff]
  %v4326 = vld [vmem:[%s3 + $0x308] sm:$0xff]
  %v4327 = vld [vmem:[%s3 + $0x310] sm:$0xff]
  %v4328 = vld [vmem:[%s3 + $0x318] sm:$0xff]
  %v4329 = vld [vmem:[%s3 + $0x320] sm:$0xff]
  %v4330 = vld [vmem:[%s3 + $0x328] sm:$0xff]
  %v4331 = vld [vmem:[%s3 + $0x330] sm:$0xff]
  %v4332 = vld [vmem:[%s3 + $0x338] sm:$0xff]
  %v4333 = vld [vmem:[%s3 + $0x340] sm:$0xff]
  %v4334 = vld [vmem:[%s3 + $0x348] sm:$0xff]
  %v4335 = vld [vmem:[%s3 + $0x350] sm:$0xff]
  %v4336 = vld [vmem:[%s3 + $0x358] sm:$0xff]
  %v4337 = vld [vmem:[%s3 + $0x360] sm:$0xff]
  %v4338 = vld [vmem:[%s3 + $0x368] sm:$0xff]
  %v4339 = vld [vmem:[%s3 + $0x370] sm:$0xff]
  %v4340 = vld [vmem:[%s3 + $0x378] sm:$0xff]
  %v4341 = vld [vmem:[%s3 + $0x380] sm:$0xff]
  %v4342 = vld [vmem:[%s3 + $0x388] sm:$0xff]
  %v4343 = vld [vmem:[%s3 + $0x390] sm:$0xff]
  %v4344 = vld [vmem:[%s3 + $0x398] sm:$0xff]
  %v4345 = vld [vmem:[%s3 + $0x3a0] sm:$0xff]
  %v4346 = vld [vmem:[%s3 + $0x3a8] sm:$0xff]
  %v4347 = vld [vmem:[%s3 + $0x3b0] sm:$0xff]
  %v4348 = vld [vmem:[%s3 + $0x3b8] sm:$0xff]
  %v4349 = vld [vmem:[%s3 + $0x3c0] sm:$0xff]
  %v4350 = vld [vmem:[%s3 + $0x3c8] sm:$0xff]
  %v4351 = vld [vmem:[%s3 + $0x3d0] sm:$0xff]
  %v4352 = vld [vmem:[%s3 + $0x3d8] sm:$0xff]
  %v4353 = vld [vmem:[%s3 + $0x3e0] sm:$0xff]
  %v4354 = vld [vmem:[%s3 + $0x3e8] sm:$0xff]
  %v4355 = vld [vmem:[%s3 + $0x3f0] sm:$0xff]
  %v4356 = vld [vmem:[%s3 + $0x3f8] sm:$0xff]
  %v4357 = vld [vmem:[%s3 + $0x400] sm:$0xff]
  %v4358 = vld [vmem:[%s3 + $0x408] sm:$0xff]
  %v4359 = vld [vmem:[%s3 + $0x410] sm:$0xff]
  %v4360 = vld [vmem:[%s3 + $0x418] sm:$0xff]
  %v4361 = vld [vmem:[%s3 + $0x420] sm:$0xff]
  %v4362 = vld [vmem:[%s3 + $0x428] sm:$0xff]
  %v4363 = vld [vmem:[%s3 + $0x430] sm:$0xff]
  %v4364 = vld [vmem:[%s3 + $0x438] sm:$0xff]
  %v4365 = vld [vmem:[%s3 + $0x440] sm:$0xff]
  %v4366 = vld [vmem:[%s3 + $0x448] sm:$0xff]
  %v4367 = vld [vmem:[%s3 + $0x450] sm:$0xff]
  %v4368 = vld [vmem:[%s3 + $0x458] sm:$0xff]
  %v4369 = vld [vmem:[%s3 + $0x460] sm:$0xff]
  %v4370 = vld [vmem:[%s3 + $0x468] sm:$0xff]
  %v4371 = vld [vmem:[%s3 + $0x470] sm:$0xff]
  %v4372 = vld [vmem:[%s3 + $0x478] sm:$0xff]
  %v4373 = vld [vmem:[%s3 + $0x480] sm:$0xff]
  %v4374 = vld [vmem:[%s3 + $0x488] sm:$0xff]
  %v4375 = vld [vmem:[%s3 + $0x490] sm:$0xff]
  %v4376 = vld [vmem:[%s3 + $0x498] sm:$0xff]
  %v4377 = vld [vmem:[%s3 + $0x4a0] sm:$0xff]
  %v4378 = vld [vmem:[%s3 + $0x4a8] sm:$0xff]
  %v4379 = vld [vmem:[%s3 + $0x4b0] sm:$0xff]
  %v4380 = vld [vmem:[%s3 + $0x4b8] sm:$0xff]
  %v4381 = vld [vmem:[%s3 + $0x4c0] sm:$0xff]
  %v4382 = vld [vmem:[%s3 + $0x4c8] sm:$0xff]
  %v4383 = vld [vmem:[%s3 + $0x4d0] sm:$0xff]
  %v4384 = vld [vmem:[%s3 + $0x4d8] sm:$0xff]
  %v4385 = vld [vmem:[%s3 + $0x4e0] sm:$0xff]
  %v4386 = vld [vmem:[%s3 + $0x4e8] sm:$0xff]
  %v4387 = vld [vmem:[%s3 + $0x4f0] sm:$0xff]
  %v4388 = vld [vmem:[%s3 + $0x4f8] sm:$0xff]
  %v4389 = vld [vmem:[%s3 + $0x500] sm:$0xff]
  %v4390 = vld [vmem:[%s3 + $0x508] sm:$0xff]
  %v4391 = vld [vmem:[%s3 + $0x510] sm:$0xff]
  %v4392 = vld [vmem:[%s3 + $0x518] sm:$0xff]
  %v4393 = vld [vmem:[%s3 + $0x520] sm:$0xff]
  %v4394 = vld [vmem:[%s3 + $0x528] sm:$0xff]
  %v4395 = vld [vmem:[%s3 + $0x530] sm:$0xff]
  %v4396 = vld [vmem:[%s3 + $0x538] sm:$0xff]
  %v4397 = vld [vmem:[%s3 + $0x540] sm:$0xff]
  %v4398 = vld [vmem:[%s3 + $0x548] sm:$0xff]
  %v4399 = vld [vmem:[%s3 + $0x550] sm:$0xff]
  %v4400 = vld [vmem:[%s3 + $0x558] sm:$0xff]
  %v4401 = vld [vmem:[%s3 + $0x560] sm:$0xff]
  %v4402 = vld [vmem:[%s3 + $0x568] sm:$0xff]
  %v4403 = vld [vmem:[%s3 + $0x570] sm:$0xff]
  %v4404 = vld [vmem:[%s3 + $0x578] sm:$0xff]
  %v4405 = vld [vmem:[%s3 + $0x580] sm:$0xff]
  %v4406 = vld [vmem:[%s3 + $0x588] sm:$0xff]
  %v4407 = vld [vmem:[%s3 + $0x590] sm:$0xff]
  %v4408 = vld [vmem:[%s3 + $0x598] sm:$0xff]
  %v4409 = vld [vmem:[%s3 + $0x5a0] sm:$0xff]
  %v4410 = vld [vmem:[%s3 + $0x5a8] sm:$0xff]
  %v4411 = vld [vmem:[%s3 + $0x5b0] sm:$0xff]
  %v4412 = vld [vmem:[%s3 + $0x5b8] sm:$0xff]
  %v4413 = vld [vmem:[%s3 + $0x5c0] sm:$0xff]
  %v4414 = vld [vmem:[%s3 + $0x5c8] sm:$0xff]
  %v4415 = vld [vmem:[%s3 + $0x5d0] sm:$0xff]
  %v4416 = vld [vmem:[%s3 + $0x5d8] sm:$0xff]
  %v4417 = vld [vmem:[%s3 + $0x5e0] sm:$0xff]
  %v4418 = vld [vmem:[%s3 + $0x5e8] sm:$0xff]
  %v4419 = vld [vmem:[%s3 + $0x5f0] sm:$0xff]
  %v4420 = vld [vmem:[%s3 + $0x5f8] sm:$0xff]
  %v4421 = vld [vmem:[%s3 + $0x600] sm:$0xff]
  %v4422 = vld [vmem:[%s3 + $0x608] sm:$0xff]
  %v4423 = vld [vmem:[%s3 + $0x610] sm:$0xff]
  %v4424 = vld [vmem:[%s3 + $0x618] sm:$0xff]
  %v4425 = vld [vmem:[%s3 + $0x620] sm:$0xff]
  %v4426 = vld [vmem:[%s3 + $0x628] sm:$0xff]
  %v4427 = vld [vmem:[%s3 + $0x630] sm:$0xff]
  %v4428 = vld [vmem:[%s3 + $0x638] sm:$0xff]
  %v4429 = vld [vmem:[%s3 + $0x640] sm:$0xff]
  %v4430 = vld [vmem:[%s3 + $0x648] sm:$0xff]
  %v4431 = vld [vmem:[%s3 + $0x650] sm:$0xff]
  %v4432 = vld [vmem:[%s3 + $0x658] sm:$0xff]
  %v4433 = vld [vmem:[%s3 + $0x660] sm:$0xff]
  %v4434 = vld [vmem:[%s3 + $0x668] sm:$0xff]
  %v4435 = vld [vmem:[%s3 + $0x670] sm:$0xff]
  %v4436 = vld [vmem:[%s3 + $0x678] sm:$0xff]
  %v4437 = vld [vmem:[%s3 + $0x680] sm:$0xff]
  %v4438 = vld [vmem:[%s3 + $0x688] sm:$0xff]
  %v4439 = vld [vmem:[%s3 + $0x690] sm:$0xff]
  %v4440 = vld [vmem:[%s3 + $0x698] sm:$0xff]
  %v4441 = vld [vmem:[%s3 + $0x6a0] sm:$0xff]
  %v4442 = vld [vmem:[%s3 + $0x6a8] sm:$0xff]
  %v4443 = vld [vmem:[%s3 + $0x6b0] sm:$0xff]
  %v4444 = vld [vmem:[%s3 + $0x6b8] sm:$0xff]
  %v4445 = vld [vmem:[%s3 + $0x6c0] sm:$0xff]
  %v4446 = vld [vmem:[%s3 + $0x6c8] sm:$0xff]
  %v4447 = vld [vmem:[%s3 + $0x6d0] sm:$0xff]
  %v4448 = vld [vmem:[%s3 + $0x6d8] sm:$0xff]
  %v4449 = vld [vmem:[%s3 + $0x6e0] sm:$0xff]
  %v4450 = vld [vmem:[%s3 + $0x6e8] sm:$0xff]
  %v4451 = vld [vmem:[%s3 + $0x6f0] sm:$0xff]
  %v4452 = vld [vmem:[%s3 + $0x6f8] sm:$0xff]
  %v4453 = vld [vmem:[%s3 + $0x700] sm:$0xff]
  %v4454 = vld [vmem:[%s3 + $0x708] sm:$0xff]
  %v4455 = vld [vmem:[%s3 + $0x710] sm:$0xff]
  %v4456 = vld [vmem:[%s3 + $0x718] sm:$0xff]
  %v4457 = vld [vmem:[%s3 + $0x720] sm:$0xff]
  %v4458 = vld [vmem:[%s3 + $0x728] sm:$0xff]
  %v4459 = vld [vmem:[%s3 + $0x730] sm:$0xff]
  %v4460 = vld [vmem:[%s3 + $0x738] sm:$0xff]
  %v4461 = vld [vmem:[%s3 + $0x740] sm:$0xff]
  %v4462 = vld [vmem:[%s3 + $0x748] sm:$0xff]
  %v4463 = vld [vmem:[%s3 + $0x750] sm:$0xff]
  %v4464 = vld [vmem:[%s3 + $0x758] sm:$0xff]
  %v4465 = vld [vmem:[%s3 + $0x760] sm:$0xff]
  %v4466 = vld [vmem:[%s3 + $0x768] sm:$0xff]
  %v4467 = vld [vmem:[%s3 + $0x770] sm:$0xff]
  %v4468 = vld [vmem:[%s3 + $0x778] sm:$0xff]
  %v4469 = vld [vmem:[%s3 + $0x780] sm:$0xff]
  %v4470 = vld [vmem:[%s3 + $0x788] sm:$0xff]
  %v4471 = vld [vmem:[%s3 + $0x790] sm:$0xff]
  %v4472 = vld [vmem:[%s3 + $0x798] sm:$0xff]
  %v4473 = vld [vmem:[%s3 + $0x7a0] sm:$0xff]
  %v4474 = vld [vmem:[%s3 + $0x7a8] sm:$0xff]
  %v4475 = vld [vmem:[%s3 + $0x7b0] sm:$0xff]
  %v4476 = vld [vmem:[%s3 + $0x7b8] sm:$0xff]
  %v4477 = vld [vmem:[%s3 + $0x7c0] sm:$0xff]
  %v4478 = vld [vmem:[%s3 + $0x7c8] sm:$0xff]
  %v4479 = vld [vmem:[%s3 + $0x7d0] sm:$0xff]
  %v4480 = vld [vmem:[%s3 + $0x7d8] sm:$0xff]
  %v4481 = vld [vmem:[%s3 + $0x7e0] sm:$0xff]
  %v4482 = vld [vmem:[%s3 + $0x7e8] sm:$0xff]
  %v4483 = vld [vmem:[%s3 + $0x7f0] sm:$0xff]
  %v4484 = vld [vmem:[%s3 + $0x7f8] sm:$0xff]
  %v4741 = vunpack.c.l.b16 %v4229
  %v4742 = vunpack.c.h.b16 %v4229
  %v4743 = vunpack.c.l.b16 %v4230
  %v4744 = vunpack.c.h.b16 %v4230
  %v4745 = vunpack.c.l.b16 %v4231
  %v4746 = vunpack.c.h.b16 %v4231
  %v4747 = vunpack.c.l.b16 %v4232
  %v4748 = vunpack.c.h.b16 %v4232
  %v4749 = vunpack.c.l.b16 %v4233
  %v4750 = vunpack.c.h.b16 %v4233
  %v4751 = vunpack.c.l.b16 %v4234
  %v4752 = vunpack.c.h.b16 %v4234
  %v4753 = vunpack.c.l.b16 %v4235
  %v4754 = vunpack.c.h.b16 %v4235
  %v4755 = vunpack.c.l.b16 %v4236
  %v4756 = vunpack.c.h.b16 %v4236
  %v4757 = vunpack.c.l.b16 %v4237
  %v4758 = vunpack.c.h.b16 %v4237
  %v4759 = vunpack.c.l.b16 %v4238
  %v4760 = vunpack.c.h.b16 %v4238
  %v4761 = vunpack.c.l.b16 %v4239
  %v4762 = vunpack.c.h.b16 %v4239
  %v4763 = vunpack.c.l.b16 %v4240
  %v4764 = vunpack.c.h.b16 %v4240
  %v4765 = vunpack.c.l.b16 %v4241
  %v4766 = vunpack.c.h.b16 %v4241
  %v4767 = vunpack.c.l.b16 %v4242
  %v4768 = vunpack.c.h.b16 %v4242
  %v4769 = vunpack.c.l.b16 %v4243
  %v4770 = vunpack.c.h.b16 %v4243
  %v4771 = vunpack.c.l.b16 %v4244
  %v4772 = vunpack.c.h.b16 %v4244
  %v4773 = vunpack.c.l.b16 %v4245
  %v4774 = vunpack.c.h.b16 %v4245
  %v4775 = vunpack.c.l.b16 %v4246
  %v4776 = vunpack.c.h.b16 %v4246
  %v4777 = vunpack.c.l.b16 %v4247
  %v4778 = vunpack.c.h.b16 %v4247
  %v4779 = vunpack.c.l.b16 %v4248
  %v4780 = vunpack.c.h.b16 %v4248
  %v4781 = vunpack.c.l.b16 %v4249
  %v4782 = vunpack.c.h.b16 %v4249
  %v4783 = vunpack.c.l.b16 %v4250
  %v4784 = vunpack.c.h.b16 %v4250
  %v4785 = vunpack.c.l.b16 %v4251
  %v4786 = vunpack.c.h.b16 %v4251
  %v4787 = vunpack.c.l.b16 %v4252
  %v4788 = vunpack.c.h.b16 %v4252
  %v4789 = vunpack.c.l.b16 %v4253
  %v4790 = vunpack.c.h.b16 %v4253
  %v4791 = vunpack.c.l.b16 %v4254
  %v4792 = vunpack.c.h.b16 %v4254
  %v4793 = vunpack.c.l.b16 %v4255
  %v4794 = vunpack.c.h.b16 %v4255
  %v4795 = vunpack.c.l.b16 %v4256
  %v4796 = vunpack.c.h.b16 %v4256
  %v4797 = vunpack.c.l.b16 %v4257
  %v4798 = vunpack.c.h.b16 %v4257
  %v4799 = vunpack.c.l.b16 %v4258
  %v4800 = vunpack.c.h.b16 %v4258
  %v4801 = vunpack.c.l.b16 %v4259
  %v4802 = vunpack.c.h.b16 %v4259
  %v4803 = vunpack.c.l.b16 %v4260
  %v4804 = vunpack.c.h.b16 %v4260
  %v4805 = vunpack.c.l.b16 %v4261
  %v4806 = vunpack.c.h.b16 %v4261
  %v4807 = vunpack.c.l.b16 %v4262
  %v4808 = vunpack.c.h.b16 %v4262
  %v4809 = vunpack.c.l.b16 %v4263
  %v4810 = vunpack.c.h.b16 %v4263
  %v4811 = vunpack.c.l.b16 %v4264
  %v4812 = vunpack.c.h.b16 %v4264
  %v4813 = vunpack.c.l.b16 %v4265
  %v4814 = vunpack.c.h.b16 %v4265
  %v4815 = vunpack.c.l.b16 %v4266
  %v4816 = vunpack.c.h.b16 %v4266
  %v4817 = vunpack.c.l.b16 %v4267
  %v4818 = vunpack.c.h.b16 %v4267
  %v4819 = vunpack.c.l.b16 %v4268
  %v4820 = vunpack.c.h.b16 %v4268
  %v4821 = vunpack.c.l.b16 %v4269
  %v4822 = vunpack.c.h.b16 %v4269
  %v4823 = vunpack.c.l.b16 %v4270
  %v4824 = vunpack.c.h.b16 %v4270
  %v4825 = vunpack.c.l.b16 %v4271
  %v4826 = vunpack.c.h.b16 %v4271
  %v4827 = vunpack.c.l.b16 %v4272
  %v4828 = vunpack.c.h.b16 %v4272
  %v4829 = vunpack.c.l.b16 %v4273
  %v4830 = vunpack.c.h.b16 %v4273
  %v4831 = vunpack.c.l.b16 %v4274
  %v4832 = vunpack.c.h.b16 %v4274
  %v4833 = vunpack.c.l.b16 %v4275
  %v4834 = vunpack.c.h.b16 %v4275
  %v4835 = vunpack.c.l.b16 %v4276
  %v4836 = vunpack.c.h.b16 %v4276
  %v4837 = vunpack.c.l.b16 %v4277
  %v4838 = vunpack.c.h.b16 %v4277
  %v4839 = vunpack.c.l.b16 %v4278
  %v4840 = vunpack.c.h.b16 %v4278
  %v4841 = vunpack.c.l.b16 %v4279
  %v4842 = vunpack.c.h.b16 %v4279
  %v4843 = vunpack.c.l.b16 %v4280
  %v4844 = vunpack.c.h.b16 %v4280
  %v4845 = vunpack.c.l.b16 %v4281
  %v4846 = vunpack.c.h.b16 %v4281
  %v4847 = vunpack.c.l.b16 %v4282
  %v4848 = vunpack.c.h.b16 %v4282
  %v4849 = vunpack.c.l.b16 %v4283
  %v4850 = vunpack.c.h.b16 %v4283
  %v4851 = vunpack.c.l.b16 %v4284
  %v4852 = vunpack.c.h.b16 %v4284
  %v4853 = vunpack.c.l.b16 %v4285
  %v4854 = vunpack.c.h.b16 %v4285
  %v4855 = vunpack.c.l.b16 %v4286
  %v4856 = vunpack.c.h.b16 %v4286
  %v4857 = vunpack.c.l.b16 %v4287
  %v4858 = vunpack.c.h.b16 %v4287
  %v4859 = vunpack.c.l.b16 %v4288
  %v4860 = vunpack.c.h.b16 %v4288
  %v4861 = vunpack.c.l.b16 %v4289
  %v4862 = vunpack.c.h.b16 %v4289
  %v4863 = vunpack.c.l.b16 %v4290
  %v4864 = vunpack.c.h.b16 %v4290
  %v4865 = vunpack.c.l.b16 %v4291
  %v4866 = vunpack.c.h.b16 %v4291
  %v4867 = vunpack.c.l.b16 %v4292
  %v4868 = vunpack.c.h.b16 %v4292
  %v4869 = vunpack.c.l.b16 %v4293
  %v4870 = vunpack.c.h.b16 %v4293
  %v4871 = vunpack.c.l.b16 %v4294
  %v4872 = vunpack.c.h.b16 %v4294
  %v4873 = vunpack.c.l.b16 %v4295
  %v4874 = vunpack.c.h.b16 %v4295
  %v4875 = vunpack.c.l.b16 %v4296
  %v4876 = vunpack.c.h.b16 %v4296
  %v4877 = vunpack.c.l.b16 %v4297
  %v4878 = vunpack.c.h.b16 %v4297
  %v4879 = vunpack.c.l.b16 %v4298
  %v4880 = vunpack.c.h.b16 %v4298
  %v4881 = vunpack.c.l.b16 %v4299
  %v4882 = vunpack.c.h.b16 %v4299
  %v4883 = vunpack.c.l.b16 %v4300
  %v4884 = vunpack.c.h.b16 %v4300
  %v4885 = vunpack.c.l.b16 %v4301
  %v4886 = vunpack.c.h.b16 %v4301
  %v4887 = vunpack.c.l.b16 %v4302
  %v4888 = vunpack.c.h.b16 %v4302
  %v4889 = vunpack.c.l.b16 %v4303
  %v4890 = vunpack.c.h.b16 %v4303
  %v4891 = vunpack.c.l.b16 %v4304
  %v4892 = vunpack.c.h.b16 %v4304
  %v4893 = vunpack.c.l.b16 %v4305
  %v4894 = vunpack.c.h.b16 %v4305
  %v4895 = vunpack.c.l.b16 %v4306
  %v4896 = vunpack.c.h.b16 %v4306
  %v4897 = vunpack.c.l.b16 %v4307
  %v4898 = vunpack.c.h.b16 %v4307
  %v4899 = vunpack.c.l.b16 %v4308
  %v4900 = vunpack.c.h.b16 %v4308
  %v4901 = vunpack.c.l.b16 %v4309
  %v4902 = vunpack.c.h.b16 %v4309
  %v4903 = vunpack.c.l.b16 %v4310
  %v4904 = vunpack.c.h.b16 %v4310
  %v4905 = vunpack.c.l.b16 %v4311
  %v4906 = vunpack.c.h.b16 %v4311
  %v4907 = vunpack.c.l.b16 %v4312
  %v4908 = vunpack.c.h.b16 %v4312
  %v4909 = vunpack.c.l.b16 %v4313
  %v4910 = vunpack.c.h.b16 %v4313
  %v4911 = vunpack.c.l.b16 %v4314
  %v4912 = vunpack.c.h.b16 %v4314
  %v4913 = vunpack.c.l.b16 %v4315
  %v4914 = vunpack.c.h.b16 %v4315
  %v4915 = vunpack.c.l.b16 %v4316
  %v4916 = vunpack.c.h.b16 %v4316
  %v4917 = vunpack.c.l.b16 %v4317
  %v4918 = vunpack.c.h.b16 %v4317
  %v4919 = vunpack.c.l.b16 %v4318
  %v4920 = vunpack.c.h.b16 %v4318
  %v4921 = vunpack.c.l.b16 %v4319
  %v4922 = vunpack.c.h.b16 %v4319
  %v4923 = vunpack.c.l.b16 %v4320
  %v4924 = vunpack.c.h.b16 %v4320
  %v4925 = vunpack.c.l.b16 %v4321
  %v4926 = vunpack.c.h.b16 %v4321
  %v4927 = vunpack.c.l.b16 %v4322
  %v4928 = vunpack.c.h.b16 %v4322
  %v4929 = vunpack.c.l.b16 %v4323
  %v4930 = vunpack.c.h.b16 %v4323
  %v4931 = vunpack.c.l.b16 %v4324
  %v4932 = vunpack.c.h.b16 %v4324
  %v4933 = vunpack.c.l.b16 %v4325
  %v4934 = vunpack.c.h.b16 %v4325
  %v4935 = vunpack.c.l.b16 %v4326
  %v4936 = vunpack.c.h.b16 %v4326
  %v4937 = vunpack.c.l.b16 %v4327
  %v4938 = vunpack.c.h.b16 %v4327
  %v4939 = vunpack.c.l.b16 %v4328
  %v4940 = vunpack.c.h.b16 %v4328
  %v4941 = vunpack.c.l.b16 %v4329
  %v4942 = vunpack.c.h.b16 %v4329
  %v4943 = vunpack.c.l.b16 %v4330
  %v4944 = vunpack.c.h.b16 %v4330
  %v4945 = vunpack.c.l.b16 %v4331
  %v4946 = vunpack.c.h.b16 %v4331
  %v4947 = vunpack.c.l.b16 %v4332
  %v4948 = vunpack.c.h.b16 %v4332
  %v4949 = vunpack.c.l.b16 %v4333
  %v4950 = vunpack.c.h.b16 %v4333
  %v4951 = vunpack.c.l.b16 %v4334
  %v4952 = vunpack.c.h.b16 %v4334
  %v4953 = vunpack.c.l.b16 %v4335
  %v4954 = vunpack.c.h.b16 %v4335
  %v4955 = vunpack.c.l.b16 %v4336
  %v4956 = vunpack.c.h.b16 %v4336
  %v4957 = vunpack.c.l.b16 %v4337
  %v4958 = vunpack.c.h.b16 %v4337
  %v4959 = vunpack.c.l.b16 %v4338
  %v4960 = vunpack.c.h.b16 %v4338
  %v4961 = vunpack.c.l.b16 %v4339
  %v4962 = vunpack.c.h.b16 %v4339
  %v4963 = vunpack.c.l.b16 %v4340
  %v4964 = vunpack.c.h.b16 %v4340
  %v4965 = vunpack.c.l.b16 %v4341
  %v4966 = vunpack.c.h.b16 %v4341
  %v4967 = vunpack.c.l.b16 %v4342
  %v4968 = vunpack.c.h.b16 %v4342
  %v4969 = vunpack.c.l.b16 %v4343
  %v4970 = vunpack.c.h.b16 %v4343
  %v4971 = vunpack.c.l.b16 %v4344
  %v4972 = vunpack.c.h.b16 %v4344
  %v4973 = vunpack.c.l.b16 %v4345
  %v4974 = vunpack.c.h.b16 %v4345
  %v4975 = vunpack.c.l.b16 %v4346
  %v4976 = vunpack.c.h.b16 %v4346
  %v4977 = vunpack.c.l.b16 %v4347
  %v4978 = vunpack.c.h.b16 %v4347
  %v4979 = vunpack.c.l.b16 %v4348
  %v4980 = vunpack.c.h.b16 %v4348
  %v4981 = vunpack.c.l.b16 %v4349
  %v4982 = vunpack.c.h.b16 %v4349
  %v4983 = vunpack.c.l.b16 %v4350
  %v4984 = vunpack.c.h.b16 %v4350
  %v4985 = vunpack.c.l.b16 %v4351
  %v4986 = vunpack.c.h.b16 %v4351
  %v4987 = vunpack.c.l.b16 %v4352
  %v4988 = vunpack.c.h.b16 %v4352
  %v4989 = vunpack.c.l.b16 %v4353
  %v4990 = vunpack.c.h.b16 %v4353
  %v4991 = vunpack.c.l.b16 %v4354
  %v4992 = vunpack.c.h.b16 %v4354
  %v4993 = vunpack.c.l.b16 %v4355
  %v4994 = vunpack.c.h.b16 %v4355
  %v4995 = vunpack.c.l.b16 %v4356
  %v4996 = vunpack.c.h.b16 %v4356
  %v4997 = vunpack.c.l.b16 %v4357
  %v4998 = vunpack.c.h.b16 %v4357
  %v4999 = vunpack.c.l.b16 %v4358
  %v5000 = vunpack.c.h.b16 %v4358
  %v5001 = vunpack.c.l.b16 %v4359
  %v5002 = vunpack.c.h.b16 %v4359
  %v5003 = vunpack.c.l.b16 %v4360
  %v5004 = vunpack.c.h.b16 %v4360
  %v5005 = vunpack.c.l.b16 %v4361
  %v5006 = vunpack.c.h.b16 %v4361
  %v5007 = vunpack.c.l.b16 %v4362
  %v5008 = vunpack.c.h.b16 %v4362
  %v5009 = vunpack.c.l.b16 %v4363
  %v5010 = vunpack.c.h.b16 %v4363
  %v5011 = vunpack.c.l.b16 %v4364
  %v5012 = vunpack.c.h.b16 %v4364
  %v5013 = vunpack.c.l.b16 %v4365
  %v5014 = vunpack.c.h.b16 %v4365
  %v5015 = vunpack.c.l.b16 %v4366
  %v5016 = vunpack.c.h.b16 %v4366
  %v5017 = vunpack.c.l.b16 %v4367
  %v5018 = vunpack.c.h.b16 %v4367
  %v5019 = vunpack.c.l.b16 %v4368
  %v5020 = vunpack.c.h.b16 %v4368
  %v5021 = vunpack.c.l.b16 %v4369
  %v5022 = vunpack.c.h.b16 %v4369
  %v5023 = vunpack.c.l.b16 %v4370
  %v5024 = vunpack.c.h.b16 %v4370
  %v5025 = vunpack.c.l.b16 %v4371
  %v5026 = vunpack.c.h.b16 %v4371
  %v5027 = vunpack.c.l.b16 %v4372
  %v5028 = vunpack.c.h.b16 %v4372
  %v5029 = vunpack.c.l.b16 %v4373
  %v5030 = vunpack.c.h.b16 %v4373
  %v5031 = vunpack.c.l.b16 %v4374
  %v5032 = vunpack.c.h.b16 %v4374
  %v5033 = vunpack.c.l.b16 %v4375
  %v5034 = vunpack.c.h.b16 %v4375
  %v5035 = vunpack.c.l.b16 %v4376
  %v5036 = vunpack.c.h.b16 %v4376
  %v5037 = vunpack.c.l.b16 %v4377
  %v5038 = vunpack.c.h.b16 %v4377
  %v5039 = vunpack.c.l.b16 %v4378
  %v5040 = vunpack.c.h.b16 %v4378
  %v5041 = vunpack.c.l.b16 %v4379
  %v5042 = vunpack.c.h.b16 %v4379
  %v5043 = vunpack.c.l.b16 %v4380
  %v5044 = vunpack.c.h.b16 %v4380
  %v5045 = vunpack.c.l.b16 %v4381
  %v5046 = vunpack.c.h.b16 %v4381
  %v5047 = vunpack.c.l.b16 %v4382
  %v5048 = vunpack.c.h.b16 %v4382
  %v5049 = vunpack.c.l.b16 %v4383
  %v5050 = vunpack.c.h.b16 %v4383
  %v5051 = vunpack.c.l.b16 %v4384
  %v5052 = vunpack.c.h.b16 %v4384
  %v5053 = vunpack.c.l.b16 %v4385
  %v5054 = vunpack.c.h.b16 %v4385
  %v5055 = vunpack.c.l.b16 %v4386
  %v5056 = vunpack.c.h.b16 %v4386
  %v5057 = vunpack.c.l.b16 %v4387
  %v5058 = vunpack.c.h.b16 %v4387
  %v5059 = vunpack.c.l.b16 %v4388
  %v5060 = vunpack.c.h.b16 %v4388
  %v5061 = vunpack.c.l.b16 %v4389
  %v5062 = vunpack.c.h.b16 %v4389
  %v5063 = vunpack.c.l.b16 %v4390
  %v5064 = vunpack.c.h.b16 %v4390
  %v5065 = vunpack.c.l.b16 %v4391
  %v5066 = vunpack.c.h.b16 %v4391
  %v5067 = vunpack.c.l.b16 %v4392
  %v5068 = vunpack.c.h.b16 %v4392
  %v5069 = vunpack.c.l.b16 %v4393
  %v5070 = vunpack.c.h.b16 %v4393
  %v5071 = vunpack.c.l.b16 %v4394
  %v5072 = vunpack.c.h.b16 %v4394
  %v5073 = vunpack.c.l.b16 %v4395
  %v5074 = vunpack.c.h.b16 %v4395
  %v5075 = vunpack.c.l.b16 %v4396
  %v5076 = vunpack.c.h.b16 %v4396
  %v5077 = vunpack.c.l.b16 %v4397
  %v5078 = vunpack.c.h.b16 %v4397
  %v5079 = vunpack.c.l.b16 %v4398
  %v5080 = vunpack.c.h.b16 %v4398
  %v5081 = vunpack.c.l.b16 %v4399
  %v5082 = vunpack.c.h.b16 %v4399
  %v5083 = vunpack.c.l.b16 %v4400
  %v5084 = vunpack.c.h.b16 %v4400
  %v5085 = vunpack.c.l.b16 %v4401
  %v5086 = vunpack.c.h.b16 %v4401
  %v5087 = vunpack.c.l.b16 %v4402
  %v5088 = vunpack.c.h.b16 %v4402
  %v5089 = vunpack.c.l.b16 %v4403
  %v5090 = vunpack.c.h.b16 %v4403
  %v5091 = vunpack.c.l.b16 %v4404
  %v5092 = vunpack.c.h.b16 %v4404
  %v5093 = vunpack.c.l.b16 %v4405
  %v5094 = vunpack.c.h.b16 %v4405
  %v5095 = vunpack.c.l.b16 %v4406
  %v5096 = vunpack.c.h.b16 %v4406
  %v5097 = vunpack.c.l.b16 %v4407
  %v5098 = vunpack.c.h.b16 %v4407
  %v5099 = vunpack.c.l.b16 %v4408
  %v5100 = vunpack.c.h.b16 %v4408
  %v5101 = vunpack.c.l.b16 %v4409
  %v5102 = vunpack.c.h.b16 %v4409
  %v5103 = vunpack.c.l.b16 %v4410
  %v5104 = vunpack.c.h.b16 %v4410
  %v5105 = vunpack.c.l.b16 %v4411
  %v5106 = vunpack.c.h.b16 %v4411
  %v5107 = vunpack.c.l.b16 %v4412
  %v5108 = vunpack.c.h.b16 %v4412
  %v5109 = vunpack.c.l.b16 %v4413
  %v5110 = vunpack.c.h.b16 %v4413
  %v5111 = vunpack.c.l.b16 %v4414
  %v5112 = vunpack.c.h.b16 %v4414
  %v5113 = vunpack.c.l.b16 %v4415
  %v5114 = vunpack.c.h.b16 %v4415
  %v5115 = vunpack.c.l.b16 %v4416
  %v5116 = vunpack.c.h.b16 %v4416
  %v5117 = vunpack.c.l.b16 %v4417
  %v5118 = vunpack.c.h.b16 %v4417
  %v5119 = vunpack.c.l.b16 %v4418
  %v5120 = vunpack.c.h.b16 %v4418
  %v5121 = vunpack.c.l.b16 %v4419
  %v5122 = vunpack.c.h.b16 %v4419
  %v5123 = vunpack.c.l.b16 %v4420
  %v5124 = vunpack.c.h.b16 %v4420
  %v5125 = vunpack.c.l.b16 %v4421
  %v5126 = vunpack.c.h.b16 %v4421
  %v5127 = vunpack.c.l.b16 %v4422
  %v5128 = vunpack.c.h.b16 %v4422
  %v5129 = vunpack.c.l.b16 %v4423
  %v5130 = vunpack.c.h.b16 %v4423
  %v5131 = vunpack.c.l.b16 %v4424
  %v5132 = vunpack.c.h.b16 %v4424
  %v5133 = vunpack.c.l.b16 %v4425
  %v5134 = vunpack.c.h.b16 %v4425
  %v5135 = vunpack.c.l.b16 %v4426
  %v5136 = vunpack.c.h.b16 %v4426
  %v5137 = vunpack.c.l.b16 %v4427
  %v5138 = vunpack.c.h.b16 %v4427
  %v5139 = vunpack.c.l.b16 %v4428
  %v5140 = vunpack.c.h.b16 %v4428
  %v5141 = vunpack.c.l.b16 %v4429
  %v5142 = vunpack.c.h.b16 %v4429
  %v5143 = vunpack.c.l.b16 %v4430
  %v5144 = vunpack.c.h.b16 %v4430
  %v5145 = vunpack.c.l.b16 %v4431
  %v5146 = vunpack.c.h.b16 %v4431
  %v5147 = vunpack.c.l.b16 %v4432
  %v5148 = vunpack.c.h.b16 %v4432
  %v5149 = vunpack.c.l.b16 %v4433
  %v5150 = vunpack.c.h.b16 %v4433
  %v5151 = vunpack.c.l.b16 %v4434
  %v5152 = vunpack.c.h.b16 %v4434
  %v5153 = vunpack.c.l.b16 %v4435
  %v5154 = vunpack.c.h.b16 %v4435
  %v5155 = vunpack.c.l.b16 %v4436
  %v5156 = vunpack.c.h.b16 %v4436
  %v5157 = vunpack.c.l.b16 %v4437
  %v5158 = vunpack.c.h.b16 %v4437
  %v5159 = vunpack.c.l.b16 %v4438
  %v5160 = vunpack.c.h.b16 %v4438
  %v5161 = vunpack.c.l.b16 %v4439
  %v5162 = vunpack.c.h.b16 %v4439
  %v5163 = vunpack.c.l.b16 %v4440
  %v5164 = vunpack.c.h.b16 %v4440
  %v5165 = vunpack.c.l.b16 %v4441
  %v5166 = vunpack.c.h.b16 %v4441
  %v5167 = vunpack.c.l.b16 %v4442
  %v5168 = vunpack.c.h.b16 %v4442
  %v5169 = vunpack.c.l.b16 %v4443
  %v5170 = vunpack.c.h.b16 %v4443
  %v5171 = vunpack.c.l.b16 %v4444
  %v5172 = vunpack.c.h.b16 %v4444
  %v5173 = vunpack.c.l.b16 %v4445
  %v5174 = vunpack.c.h.b16 %v4445
  %v5175 = vunpack.c.l.b16 %v4446
  %v5176 = vunpack.c.h.b16 %v4446
  %v5177 = vunpack.c.l.b16 %v4447
  %v5178 = vunpack.c.h.b16 %v4447
  %v5179 = vunpack.c.l.b16 %v4448
  %v5180 = vunpack.c.h.b16 %v4448
  %v5181 = vunpack.c.l.b16 %v4449
  %v5182 = vunpack.c.h.b16 %v4449
  %v5183 = vunpack.c.l.b16 %v4450
  %v5184 = vunpack.c.h.b16 %v4450
  %v5185 = vunpack.c.l.b16 %v4451
  %v5186 = vunpack.c.h.b16 %v4451
  %v5187 = vunpack.c.l.b16 %v4452
  %v5188 = vunpack.c.h.b16 %v4452
  %v5189 = vunpack.c.l.b16 %v4453
  %v5190 = vunpack.c.h.b16 %v4453
  %v5191 = vunpack.c.l.b16 %v4454
  %v5192 = vunpack.c.h.b16 %v4454
  %v5193 = vunpack.c.l.b16 %v4455
  %v5194 = vunpack.c.h.b16 %v4455
  %v5195 = vunpack.c.l.b16 %v4456
  %v5196 = vunpack.c.h.b16 %v4456
  %v5197 = vunpack.c.l.b16 %v4457
  %v5198 = vunpack.c.h.b16 %v4457
  %v5199 = vunpack.c.l.b16 %v4458
  %v5200 = vunpack.c.h.b16 %v4458
  %v5201 = vunpack.c.l.b16 %v4459
  %v5202 = vunpack.c.h.b16 %v4459
  %v5203 = vunpack.c.l.b16 %v4460
  %v5204 = vunpack.c.h.b16 %v4460
  %v5205 = vunpack.c.l.b16 %v4461
  %v5206 = vunpack.c.h.b16 %v4461
  %v5207 = vunpack.c.l.b16 %v4462
  %v5208 = vunpack.c.h.b16 %v4462
  %v5209 = vunpack.c.l.b16 %v4463
  %v5210 = vunpack.c.h.b16 %v4463
  %v5211 = vunpack.c.l.b16 %v4464
  %v5212 = vunpack.c.h.b16 %v4464
  %v5213 = vunpack.c.l.b16 %v4465
  %v5214 = vunpack.c.h.b16 %v4465
  %v5215 = vunpack.c.l.b16 %v4466
  %v5216 = vunpack.c.h.b16 %v4466
  %v5217 = vunpack.c.l.b16 %v4467
  %v5218 = vunpack.c.h.b16 %v4467
  %v5219 = vunpack.c.l.b16 %v4468
  %v5220 = vunpack.c.h.b16 %v4468
  %v5221 = vunpack.c.l.b16 %v4469
  %v5222 = vunpack.c.h.b16 %v4469
  %v5223 = vunpack.c.l.b16 %v4470
  %v5224 = vunpack.c.h.b16 %v4470
  %v5225 = vunpack.c.l.b16 %v4471
  %v5226 = vunpack.c.h.b16 %v4471
  %v5227 = vunpack.c.l.b16 %v4472
  %v5228 = vunpack.c.h.b16 %v4472
  %v5229 = vunpack.c.l.b16 %v4473
  %v5230 = vunpack.c.h.b16 %v4473
  %v5231 = vunpack.c.l.b16 %v4474
  %v5232 = vunpack.c.h.b16 %v4474
  %v5233 = vunpack.c.l.b16 %v4475
  %v5234 = vunpack.c.h.b16 %v4475
  %v5235 = vunpack.c.l.b16 %v4476
  %v5236 = vunpack.c.h.b16 %v4476
  %v5237 = vunpack.c.l.b16 %v4477
  %v5238 = vunpack.c.h.b16 %v4477
  %v5239 = vunpack.c.l.b16 %v4478
  %v5240 = vunpack.c.h.b16 %v4478
  %v5241 = vunpack.c.l.b16 %v4479
  %v5242 = vunpack.c.h.b16 %v4479
  %v5243 = vunpack.c.l.b16 %v4480
  %v5244 = vunpack.c.h.b16 %v4480
  %v5245 = vunpack.c.l.b16 %v4481
  %v5246 = vunpack.c.h.b16 %v4481
  %v5247 = vunpack.c.l.b16 %v4482
  %v5248 = vunpack.c.h.b16 %v4482
  %v5249 = vunpack.c.l.b16 %v4483
  %v5250 = vunpack.c.h.b16 %v4483
  %v5251 = vunpack.c.l.b16 %v4484
  %v5252 = vunpack.c.h.b16 %v4484
  %v5253 = vpack.c.b16 %v4745, %v4741
  %v5254 = vpack.c.b16 %v4746, %v4742
  %v5255 = vpack.c.b16 %v4747, %v4743
  %v5256 = vpack.c.b16 %v4748, %v4744
  %v5257 = vpack.c.b16 %v4753, %v4749
  %v5258 = vpack.c.b16 %v4754, %v4750
  %v5259 = vpack.c.b16 %v4755, %v4751
  %v5260 = vpack.c.b16 %v4756, %v4752
  %v5261 = vpack.c.b16 %v4761, %v4757
  %v5262 = vpack.c.b16 %v4762, %v4758
  %v5263 = vpack.c.b16 %v4763, %v4759
  %v5264 = vpack.c.b16 %v4764, %v4760
  %v5265 = vpack.c.b16 %v4769, %v4765
  %v5266 = vpack.c.b16 %v4770, %v4766
  %v5267 = vpack.c.b16 %v4771, %v4767
  %v5268 = vpack.c.b16 %v4772, %v4768
  %v5269 = vpack.c.b16 %v4777, %v4773
  %v5270 = vpack.c.b16 %v4778, %v4774
  %v5271 = vpack.c.b16 %v4779, %v4775
  %v5272 = vpack.c.b16 %v4780, %v4776
  %v5273 = vpack.c.b16 %v4785, %v4781
  %v5274 = vpack.c.b16 %v4786, %v4782
  %v5275 = vpack.c.b16 %v4787, %v4783
  %v5276 = vpack.c.b16 %v4788, %v4784
  %v5277 = vpack.c.b16 %v4793, %v4789
  %v5278 = vpack.c.b16 %v4794, %v4790
  %v5279 = vpack.c.b16 %v4795, %v4791
  %v5280 = vpack.c.b16 %v4796, %v4792
  %v5281 = vpack.c.b16 %v4801, %v4797
  %v5282 = vpack.c.b16 %v4802, %v4798
  %v5283 = vpack.c.b16 %v4803, %v4799
  %v5284 = vpack.c.b16 %v4804, %v4800
  %v5285 = vpack.c.b16 %v4809, %v4805
  %v5286 = vpack.c.b16 %v4810, %v4806
  %v5287 = vpack.c.b16 %v4811, %v4807
  %v5288 = vpack.c.b16 %v4812, %v4808
  %v5289 = vpack.c.b16 %v4817, %v4813
  %v5290 = vpack.c.b16 %v4818, %v4814
  %v5291 = vpack.c.b16 %v4819, %v4815
  %v5292 = vpack.c.b16 %v4820, %v4816
  %v5293 = vpack.c.b16 %v4825, %v4821
  %v5294 = vpack.c.b16 %v4826, %v4822
  %v5295 = vpack.c.b16 %v4827, %v4823
  %v5296 = vpack.c.b16 %v4828, %v4824
  %v5297 = vpack.c.b16 %v4833, %v4829
  %v5298 = vpack.c.b16 %v4834, %v4830
  %v5299 = vpack.c.b16 %v4835, %v4831
  %v5300 = vpack.c.b16 %v4836, %v4832
  %v5301 = vpack.c.b16 %v4841, %v4837
  %v5302 = vpack.c.b16 %v4842, %v4838
  %v5303 = vpack.c.b16 %v4843, %v4839
  %v5304 = vpack.c.b16 %v4844, %v4840
  %v5305 = vpack.c.b16 %v4849, %v4845
  %v5306 = vpack.c.b16 %v4850, %v4846
  %v5307 = vpack.c.b16 %v4851, %v4847
  %v5308 = vpack.c.b16 %v4852, %v4848
  %v5309 = vpack.c.b16 %v4857, %v4853
  %v5310 = vpack.c.b16 %v4858, %v4854
  %v5311 = vpack.c.b16 %v4859, %v4855
  %v5312 = vpack.c.b16 %v4860, %v4856
  %v5313 = vpack.c.b16 %v4865, %v4861
  %v5314 = vpack.c.b16 %v4866, %v4862
  %v5315 = vpack.c.b16 %v4867, %v4863
  %v5316 = vpack.c.b16 %v4868, %v4864
  %v5317 = vpack.c.b16 %v4873, %v4869
  %v5318 = vpack.c.b16 %v4874, %v4870
  %v5319 = vpack.c.b16 %v4875, %v4871
  %v5320 = vpack.c.b16 %v4876, %v4872
  %v5321 = vpack.c.b16 %v4881, %v4877
  %v5322 = vpack.c.b16 %v4882, %v4878
  %v5323 = vpack.c.b16 %v4883, %v4879
  %v5324 = vpack.c.b16 %v4884, %v4880
  %v5325 = vpack.c.b16 %v4889, %v4885
  %v5326 = vpack.c.b16 %v4890, %v4886
  %v5327 = vpack.c.b16 %v4891, %v4887
  %v5328 = vpack.c.b16 %v4892, %v4888
  %v5329 = vpack.c.b16 %v4897, %v4893
  %v5330 = vpack.c.b16 %v4898, %v4894
  %v5331 = vpack.c.b16 %v4899, %v4895
  %v5332 = vpack.c.b16 %v4900, %v4896
  %v5333 = vpack.c.b16 %v4905, %v4901
  %v5334 = vpack.c.b16 %v4906, %v4902
  %v5335 = vpack.c.b16 %v4907, %v4903
  %v5336 = vpack.c.b16 %v4908, %v4904
  %v5337 = vpack.c.b16 %v4913, %v4909
  %v5338 = vpack.c.b16 %v4914, %v4910
  %v5339 = vpack.c.b16 %v4915, %v4911
  %v5340 = vpack.c.b16 %v4916, %v4912
  %v5341 = vpack.c.b16 %v4921, %v4917
  %v5342 = vpack.c.b16 %v4922, %v4918
  %v5343 = vpack.c.b16 %v4923, %v4919
  %v5344 = vpack.c.b16 %v4924, %v4920
  %v5345 = vpack.c.b16 %v4929, %v4925
  %v5346 = vpack.c.b16 %v4930, %v4926
  %v5347 = vpack.c.b16 %v4931, %v4927
  %v5348 = vpack.c.b16 %v4932, %v4928
  %v5349 = vpack.c.b16 %v4937, %v4933
  %v5350 = vpack.c.b16 %v4938, %v4934
  %v5351 = vpack.c.b16 %v4939, %v4935
  %v5352 = vpack.c.b16 %v4940, %v4936
  %v5353 = vpack.c.b16 %v4945, %v4941
  %v5354 = vpack.c.b16 %v4946, %v4942
  %v5355 = vpack.c.b16 %v4947, %v4943
  %v5356 = vpack.c.b16 %v4948, %v4944
  %v5357 = vpack.c.b16 %v4953, %v4949
  %v5358 = vpack.c.b16 %v4954, %v4950
  %v5359 = vpack.c.b16 %v4955, %v4951
  %v5360 = vpack.c.b16 %v4956, %v4952
  %v5361 = vpack.c.b16 %v4961, %v4957
  %v5362 = vpack.c.b16 %v4962, %v4958
  %v5363 = vpack.c.b16 %v4963, %v4959
  %v5364 = vpack.c.b16 %v4964, %v4960
  %v5365 = vpack.c.b16 %v4969, %v4965
  %v5366 = vpack.c.b16 %v4970, %v4966
  %v5367 = vpack.c.b16 %v4971, %v4967
  %v5368 = vpack.c.b16 %v4972, %v4968
  %v5369 = vpack.c.b16 %v4977, %v4973
  %v5370 = vpack.c.b16 %v4978, %v4974
  %v5371 = vpack.c.b16 %v4979, %v4975
  %v5372 = vpack.c.b16 %v4980, %v4976
  %v5373 = vpack.c.b16 %v4985, %v4981
  %v5374 = vpack.c.b16 %v4986, %v4982
  %v5375 = vpack.c.b16 %v4987, %v4983
  %v5376 = vpack.c.b16 %v4988, %v4984
  %v5377 = vpack.c.b16 %v4993, %v4989
  %v5378 = vpack.c.b16 %v4994, %v4990
  %v5379 = vpack.c.b16 %v4995, %v4991
  %v5380 = vpack.c.b16 %v4996, %v4992
  %v5381 = vpack.c.b16 %v5001, %v4997
  %v5382 = vpack.c.b16 %v5002, %v4998
  %v5383 = vpack.c.b16 %v5003, %v4999
  %v5384 = vpack.c.b16 %v5004, %v5000
  %v5385 = vpack.c.b16 %v5009, %v5005
  %v5386 = vpack.c.b16 %v5010, %v5006
  %v5387 = vpack.c.b16 %v5011, %v5007
  %v5388 = vpack.c.b16 %v5012, %v5008
  %v5389 = vpack.c.b16 %v5017, %v5013
  %v5390 = vpack.c.b16 %v5018, %v5014
  %v5391 = vpack.c.b16 %v5019, %v5015
  %v5392 = vpack.c.b16 %v5020, %v5016
  %v5393 = vpack.c.b16 %v5025, %v5021
  %v5394 = vpack.c.b16 %v5026, %v5022
  %v5395 = vpack.c.b16 %v5027, %v5023
  %v5396 = vpack.c.b16 %v5028, %v5024
  %v5397 = vpack.c.b16 %v5033, %v5029
  %v5398 = vpack.c.b16 %v5034, %v5030
  %v5399 = vpack.c.b16 %v5035, %v5031
  %v5400 = vpack.c.b16 %v5036, %v5032
  %v5401 = vpack.c.b16 %v5041, %v5037
  %v5402 = vpack.c.b16 %v5042, %v5038
  %v5403 = vpack.c.b16 %v5043, %v5039
  %v5404 = vpack.c.b16 %v5044, %v5040
  %v5405 = vpack.c.b16 %v5049, %v5045
  %v5406 = vpack.c.b16 %v5050, %v5046
  %v5407 = vpack.c.b16 %v5051, %v5047
  %v5408 = vpack.c.b16 %v5052, %v5048
  %v5409 = vpack.c.b16 %v5057, %v5053
  %v5410 = vpack.c.b16 %v5058, %v5054
  %v5411 = vpack.c.b16 %v5059, %v5055
  %v5412 = vpack.c.b16 %v5060, %v5056
  %v5413 = vpack.c.b16 %v5065, %v5061
  %v5414 = vpack.c.b16 %v5066, %v5062
  %v5415 = vpack.c.b16 %v5067, %v5063
  %v5416 = vpack.c.b16 %v5068, %v5064
  %v5417 = vpack.c.b16 %v5073, %v5069
  %v5418 = vpack.c.b16 %v5074, %v5070
  %v5419 = vpack.c.b16 %v5075, %v5071
  %v5420 = vpack.c.b16 %v5076, %v5072
  %v5421 = vpack.c.b16 %v5081, %v5077
  %v5422 = vpack.c.b16 %v5082, %v5078
  %v5423 = vpack.c.b16 %v5083, %v5079
  %v5424 = vpack.c.b16 %v5084, %v5080
  %v5425 = vpack.c.b16 %v5089, %v5085
  %v5426 = vpack.c.b16 %v5090, %v5086
  %v5427 = vpack.c.b16 %v5091, %v5087
  %v5428 = vpack.c.b16 %v5092, %v5088
  %v5429 = vpack.c.b16 %v5097, %v5093
  %v5430 = vpack.c.b16 %v5098, %v5094
  %v5431 = vpack.c.b16 %v5099, %v5095
  %v5432 = vpack.c.b16 %v5100, %v5096
  %v5433 = vpack.c.b16 %v5105, %v5101
  %v5434 = vpack.c.b16 %v5106, %v5102
  %v5435 = vpack.c.b16 %v5107, %v5103
  %v5436 = vpack.c.b16 %v5108, %v5104
  %v5437 = vpack.c.b16 %v5113, %v5109
  %v5438 = vpack.c.b16 %v5114, %v5110
  %v5439 = vpack.c.b16 %v5115, %v5111
  %v5440 = vpack.c.b16 %v5116, %v5112
  %v5441 = vpack.c.b16 %v5121, %v5117
  %v5442 = vpack.c.b16 %v5122, %v5118
  %v5443 = vpack.c.b16 %v5123, %v5119
  %v5444 = vpack.c.b16 %v5124, %v5120
  %v5445 = vpack.c.b16 %v5129, %v5125
  %v5446 = vpack.c.b16 %v5130, %v5126
  %v5447 = vpack.c.b16 %v5131, %v5127
  %v5448 = vpack.c.b16 %v5132, %v5128
  %v5449 = vpack.c.b16 %v5137, %v5133
  %v5450 = vpack.c.b16 %v5138, %v5134
  %v5451 = vpack.c.b16 %v5139, %v5135
  %v5452 = vpack.c.b16 %v5140, %v5136
  %v5453 = vpack.c.b16 %v5145, %v5141
  %v5454 = vpack.c.b16 %v5146, %v5142
  %v5455 = vpack.c.b16 %v5147, %v5143
  %v5456 = vpack.c.b16 %v5148, %v5144
  %v5457 = vpack.c.b16 %v5153, %v5149
  %v5458 = vpack.c.b16 %v5154, %v5150
  %v5459 = vpack.c.b16 %v5155, %v5151
  %v5460 = vpack.c.b16 %v5156, %v5152
  %v5461 = vpack.c.b16 %v5161, %v5157
  %v5462 = vpack.c.b16 %v5162, %v5158
  %v5463 = vpack.c.b16 %v5163, %v5159
  %v5464 = vpack.c.b16 %v5164, %v5160
  %v5465 = vpack.c.b16 %v5169, %v5165
  %v5466 = vpack.c.b16 %v5170, %v5166
  %v5467 = vpack.c.b16 %v5171, %v5167
  %v5468 = vpack.c.b16 %v5172, %v5168
  %v5469 = vpack.c.b16 %v5177, %v5173
  %v5470 = vpack.c.b16 %v5178, %v5174
  %v5471 = vpack.c.b16 %v5179, %v5175
  %v5472 = vpack.c.b16 %v5180, %v5176
  %v5473 = vpack.c.b16 %v5185, %v5181
  %v5474 = vpack.c.b16 %v5186, %v5182
  %v5475 = vpack.c.b16 %v5187, %v5183
  %v5476 = vpack.c.b16 %v5188, %v5184
  %v5477 = vpack.c.b16 %v5193, %v5189
  %v5478 = vpack.c.b16 %v5194, %v5190
  %v5479 = vpack.c.b16 %v5195, %v5191
  %v5480 = vpack.c.b16 %v5196, %v5192
  %v5481 = vpack.c.b16 %v5201, %v5197
  %v5482 = vpack.c.b16 %v5202, %v5198
  %v5483 = vpack.c.b16 %v5203, %v5199
  %v5484 = vpack.c.b16 %v5204, %v5200
  %v5485 = vpack.c.b16 %v5209, %v5205
  %v5486 = vpack.c.b16 %v5210, %v5206
  %v5487 = vpack.c.b16 %v5211, %v5207
  %v5488 = vpack.c.b16 %v5212, %v5208
  %v5489 = vpack.c.b16 %v5217, %v5213
  %v5490 = vpack.c.b16 %v5218, %v5214
  %v5491 = vpack.c.b16 %v5219, %v5215
  %v5492 = vpack.c.b16 %v5220, %v5216
  %v5493 = vpack.c.b16 %v5225, %v5221
  %v5494 = vpack.c.b16 %v5226, %v5222
  %v5495 = vpack.c.b16 %v5227, %v5223
  %v5496 = vpack.c.b16 %v5228, %v5224
  %v5497 = vpack.c.b16 %v5233, %v5229
  %v5498 = vpack.c.b16 %v5234, %v5230
  %v5499 = vpack.c.b16 %v5235, %v5231
  %v5500 = vpack.c.b16 %v5236, %v5232
  %v5501 = vpack.c.b16 %v5241, %v5237
  %v5502 = vpack.c.b16 %v5242, %v5238
  %v5503 = vpack.c.b16 %v5243, %v5239
  %v5504 = vpack.c.b16 %v5244, %v5240
  %v5505 = vpack.c.b16 %v5249, %v5245
  %v5506 = vpack.c.b16 %v5250, %v5246
  %v5507 = vpack.c.b16 %v5251, %v5247
  %v5508 = vpack.c.b16 %v5252, %v5248
  %5765 = vmatpush.bf16.msra.mxu0 %v5281
  %5766 = vmatpush.bf16.msra.mxu0 %v5277
  %5767 = vmatpush.bf16.msra.mxu0 %v5273
  %5768 = vmatpush.bf16.msra.mxu0 %v5269
  %5769 = vmatpush.bf16.msra.mxu0 %v5265
  %5770 = vmatpush.bf16.msra.mxu0 %v5261
  %5771 = vmatpush.bf16.msra.mxu0 %v5257
  %5772 = vmatpush.bf16.msra.mxu0 %v5253
  %5773 = vmatmul.bf16.gmra.mxu0 %v4205
  %v5774 = vpop.f32.mrf.mxu0
  %v5775 = vadd.f32 0.0, %v5774
  %v5776 = vpop.f32.mrf.mxu0
  %v5777 = vadd.f32 0.0, %v5776
  %5778 = vmatmul.bf16.gmra.mxu0 %v4213
  %v5779 = vpop.f32.mrf.mxu0
  %v5780 = vadd.f32 0.0, %v5779
  %v5781 = vpop.f32.mrf.mxu0
  %v5782 = vadd.f32 0.0, %v5781
  %5783 = vmatmul.bf16.gmra.mxu0 %v4221
  %v5784 = vpop.f32.mrf.mxu0
  %v5785 = vadd.f32 0.0, %v5784
  %v5786 = vpop.f32.mrf.mxu0
  %v5787 = vadd.f32 0.0, %v5786
  %5788 = vdwg.mxu0
  %5789 = vmatpush.bf16.msra.mxu0 %v5313
  %5790 = vmatpush.bf16.msra.mxu0 %v5309
  %5791 = vmatpush.bf16.msra.mxu0 %v5305
  %5792 = vmatpush.bf16.msra.mxu0 %v5301
  %5793 = vmatpush.bf16.msra.mxu0 %v5297
  %5794 = vmatpush.bf16.msra.mxu0 %v5293
  %5795 = vmatpush.bf16.msra.mxu0 %v5289
  %5796 = vmatpush.bf16.msra.mxu0 %v5285
  %5797 = vmatmul.bf16.gmra.mxu0 %v4206
  %v5798 = vpop.f32.mrf.mxu0
  %v5799 = vadd.f32 %v5775, %v5798
  %v5800 = vpop.f32.mrf.mxu0
  %v5801 = vadd.f32 %v5777, %v5800
  %5802 = vmatmul.bf16.gmra.mxu0 %v4214
  %v5803 = vpop.f32.mrf.mxu0
  %v5804 = vadd.f32 %v5780, %v5803
  %v5805 = vpop.f32.mrf.mxu0
  %v5806 = vadd.f32 %v5782, %v5805
  %5807 = vmatmul.bf16.gmra.mxu0 %v4222
  %v5808 = vpop.f32.mrf.mxu0
  %v5809 = vadd.f32 %v5785, %v5808
  %v5810 = vpop.f32.mrf.mxu0
  %v5811 = vadd.f32 %v5787, %v5810
  %5812 = vdwg.mxu0
  %5813 = vmatpush.bf16.msra.mxu0 %v5345
  %5814 = vmatpush.bf16.msra.mxu0 %v5341
  %5815 = vmatpush.bf16.msra.mxu0 %v5337
  %5816 = vmatpush.bf16.msra.mxu0 %v5333
  %5817 = vmatpush.bf16.msra.mxu0 %v5329
  %5818 = vmatpush.bf16.msra.mxu0 %v5325
  %5819 = vmatpush.bf16.msra.mxu0 %v5321
  %5820 = vmatpush.bf16.msra.mxu0 %v5317
  %5821 = vmatmul.bf16.gmra.mxu0 %v4207
  %v5822 = vpop.f32.mrf.mxu0
  %v5823 = vadd.f32 %v5799, %v5822
  %v5824 = vpop.f32.mrf.mxu0
  %v5825 = vadd.f32 %v5801, %v5824
  %5826 = vmatmul.bf16.gmra.mxu0 %v4215
  %v5827 = vpop.f32.mrf.mxu0
  %v5828 = vadd.f32 %v5804, %v5827
  %v5829 = vpop.f32.mrf.mxu0
  %v5830 = vadd.f32 %v5806, %v5829
  %5831 = vmatmul.bf16.gmra.mxu0 %v4223
  %v5832 = vpop.f32.mrf.mxu0
  %v5833 = vadd.f32 %v5809, %v5832
  %v5834 = vpop.f32.mrf.mxu0
  %v5835 = vadd.f32 %v5811, %v5834
  %5836 = vdwg.mxu0
  %5837 = vmatpush.bf16.msra.mxu0 %v5377
  %5838 = vmatpush.bf16.msra.mxu0 %v5373
  %5839 = vmatpush.bf16.msra.mxu0 %v5369
  %5840 = vmatpush.bf16.msra.mxu0 %v5365
  %5841 = vmatpush.bf16.msra.mxu0 %v5361
  %5842 = vmatpush.bf16.msra.mxu0 %v5357
  %5843 = vmatpush.bf16.msra.mxu0 %v5353
  %5844 = vmatpush.bf16.msra.mxu0 %v5349
  %5845 = vmatmul.bf16.gmra.mxu0 %v4208
  %v5846 = vpop.f32.mrf.mxu0
  %v5847 = vadd.f32 %v5823, %v5846
  %v5848 = vpop.f32.mrf.mxu0
  %v5849 = vadd.f32 %v5825, %v5848
  %5850 = vmatmul.bf16.gmra.mxu0 %v4216
  %v5851 = vpop.f32.mrf.mxu0
  %v5852 = vadd.f32 %v5828, %v5851
  %v5853 = vpop.f32.mrf.mxu0
  %v5854 = vadd.f32 %v5830, %v5853
  %5855 = vmatmul.bf16.gmra.mxu0 %v4224
  %v5856 = vpop.f32.mrf.mxu0
  %v5857 = vadd.f32 %v5833, %v5856
  %v5858 = vpop.f32.mrf.mxu0
  %v5859 = vadd.f32 %v5835, %v5858
  %5860 = vdwg.mxu0
  %5861 = vmatpush.bf16.msra.mxu0 %v5409
  %5862 = vmatpush.bf16.msra.mxu0 %v5405
  %5863 = vmatpush.bf16.msra.mxu0 %v5401
  %5864 = vmatpush.bf16.msra.mxu0 %v5397
  %5865 = vmatpush.bf16.msra.mxu0 %v5393
  %5866 = vmatpush.bf16.msra.mxu0 %v5389
  %5867 = vmatpush.bf16.msra.mxu0 %v5385
  %5868 = vmatpush.bf16.msra.mxu0 %v5381
  %5869 = vmatmul.bf16.gmra.mxu0 %v4209
  %v5870 = vpop.f32.mrf.mxu0
  %v5871 = vadd.f32 %v5847, %v5870
  %v5872 = vpop.f32.mrf.mxu0
  %v5873 = vadd.f32 %v5849, %v5872
  %5874 = vmatmul.bf16.gmra.mxu0 %v4217
  %v5875 = vpop.f32.mrf.mxu0
  %v5876 = vadd.f32 %v5852, %v5875
  %v5877 = vpop.f32.mrf.mxu0
  %v5878 = vadd.f32 %v5854, %v5877
  %5879 = vmatmul.bf16.gmra.mxu0 %v4225
  %v5880 = vpop.f32.mrf.mxu0
  %v5881 = vadd.f32 %v5857, %v5880
  %v5882 = vpop.f32.mrf.mxu0
  %v5883 = vadd.f32 %v5859, %v5882
  %5884 = vdwg.mxu0
  %5885 = vmatpush.bf16.msra.mxu0 %v5441
  %5886 = vmatpush.bf16.msra.mxu0 %v5437
  %5887 = vmatpush.bf16.msra.mxu0 %v5433
  %5888 = vmatpush.bf16.msra.mxu0 %v5429
  %5889 = vmatpush.bf16.msra.mxu0 %v5425
  %5890 = vmatpush.bf16.msra.mxu0 %v5421
  %5891 = vmatpush.bf16.msra.mxu0 %v5417
  %5892 = vmatpush.bf16.msra.mxu0 %v5413
  %5893 = vmatmul.bf16.gmra.mxu0 %v4210
  %v5894 = vpop.f32.mrf.mxu0
  %v5895 = vadd.f32 %v5871, %v5894
  %v5896 = vpop.f32.mrf.mxu0
  %v5897 = vadd.f32 %v5873, %v5896
  %5898 = vmatmul.bf16.gmra.mxu0 %v4218
  %v5899 = vpop.f32.mrf.mxu0
  %v5900 = vadd.f32 %v5876, %v5899
  %v5901 = vpop.f32.mrf.mxu0
  %v5902 = vadd.f32 %v5878, %v5901
  %5903 = vmatmul.bf16.gmra.mxu0 %v4226
  %v5904 = vpop.f32.mrf.mxu0
  %v5905 = vadd.f32 %v5881, %v5904
  %v5906 = vpop.f32.mrf.mxu0
  %v5907 = vadd.f32 %v5883, %v5906
  %5908 = vdwg.mxu0
  %5909 = vmatpush.bf16.msra.mxu0 %v5473
  %5910 = vmatpush.bf16.msra.mxu0 %v5469
  %5911 = vmatpush.bf16.msra.mxu0 %v5465
  %5912 = vmatpush.bf16.msra.mxu0 %v5461
  %5913 = vmatpush.bf16.msra.mxu0 %v5457
  %5914 = vmatpush.bf16.msra.mxu0 %v5453
  %5915 = vmatpush.bf16.msra.mxu0 %v5449
  %5916 = vmatpush.bf16.msra.mxu0 %v5445
  %5917 = vmatmul.bf16.gmra.mxu0 %v4211
  %v5918 = vpop.f32.mrf.mxu0
  %v5919 = vadd.f32 %v5895, %v5918
  %v5920 = vpop.f32.mrf.mxu0
  %v5921 = vadd.f32 %v5897, %v5920
  %5922 = vmatmul.bf16.gmra.mxu0 %v4219
  %v5923 = vpop.f32.mrf.mxu0
  %v5924 = vadd.f32 %v5900, %v5923
  %v5925 = vpop.f32.mrf.mxu0
  %v5926 = vadd.f32 %v5902, %v5925
  %5927 = vmatmul.bf16.gmra.mxu0 %v4227
  %v5928 = vpop.f32.mrf.mxu0
  %v5929 = vadd.f32 %v5905, %v5928
  %v5930 = vpop.f32.mrf.mxu0
  %v5931 = vadd.f32 %v5907, %v5930
  %5932 = vdwg.mxu0
  %5933 = vmatpush.bf16.msra.mxu0 %v5505
  %5934 = vmatpush.bf16.msra.mxu0 %v5501
  %5935 = vmatpush.bf16.msra.mxu0 %v5497
  %5936 = vmatpush.bf16.msra.mxu0 %v5493
  %5937 = vmatpush.bf16.msra.mxu0 %v5489
  %5938 = vmatpush.bf16.msra.mxu0 %v5485
  %5939 = vmatpush.bf16.msra.mxu0 %v5481
  %5940 = vmatpush.bf16.msra.mxu0 %v5477
  %5941 = vmatmul.bf16.gmra.mxu0 %v4212
  %v5942 = vpop.f32.mrf.mxu0
  %v5943 = vadd.f32 %v5919, %v5942
  %v5944 = vpop.f32.mrf.mxu0
  %v5945 = vadd.f32 %v5921, %v5944
  %5946 = vmatmul.bf16.gmra.mxu0 %v4220
  %v5947 = vpop.f32.mrf.mxu0
  %v5948 = vadd.f32 %v5924, %v5947
  %v5949 = vpop.f32.mrf.mxu0
  %v5950 = vadd.f32 %v5926, %v5949
  %5951 = vmatmul.bf16.gmra.mxu0 %v4228
  %v5952 = vpop.f32.mrf.mxu0
  %v5953 = vadd.f32 %v5929, %v5952
  %v5954 = vpop.f32.mrf.mxu0
  %v5955 = vadd.f32 %v5931, %v5954
  %5956 = vdwg.mxu0
  %5957 = vmatpush.bf16.msra.mxu0 %v5282
  %5958 = vmatpush.bf16.msra.mxu0 %v5278
  %5959 = vmatpush.bf16.msra.mxu0 %v5274
  %5960 = vmatpush.bf16.msra.mxu0 %v5270
  %5961 = vmatpush.bf16.msra.mxu0 %v5266
  %5962 = vmatpush.bf16.msra.mxu0 %v5262
  %5963 = vmatpush.bf16.msra.mxu0 %v5258
  %5964 = vmatpush.bf16.msra.mxu0 %v5254
  %5965 = vmatmul.bf16.gmra.mxu0 %v4205
  %v5966 = vpop.f32.mrf.mxu0
  %v5967 = vadd.f32 0.0, %v5966
  %v5968 = vpop.f32.mrf.mxu0
  %v5969 = vadd.f32 0.0, %v5968
  %5970 = vmatmul.bf16.gmra.mxu0 %v4213
  %v5971 = vpop.f32.mrf.mxu0
  %v5972 = vadd.f32 0.0, %v5971
  %v5973 = vpop.f32.mrf.mxu0
  %v5974 = vadd.f32 0.0, %v5973
  %5975 = vmatmul.bf16.gmra.mxu0 %v4221
  %v5976 = vpop.f32.mrf.mxu0
  %v5977 = vadd.f32 0.0, %v5976
  %v5978 = vpop.f32.mrf.mxu0
  %v5979 = vadd.f32 0.0, %v5978
  %5980 = vdwg.mxu0
  %5981 = vmatpush.bf16.msra.mxu0 %v5314
  %5982 = vmatpush.bf16.msra.mxu0 %v5310
  %5983 = vmatpush.bf16.msra.mxu0 %v5306
  %5984 = vmatpush.bf16.msra.mxu0 %v5302
  %5985 = vmatpush.bf16.msra.mxu0 %v5298
  %5986 = vmatpush.bf16.msra.mxu0 %v5294
  %5987 = vmatpush.bf16.msra.mxu0 %v5290
  %5988 = vmatpush.bf16.msra.mxu0 %v5286
  %5989 = vmatmul.bf16.gmra.mxu0 %v4206
  %v5990 = vpop.f32.mrf.mxu0
  %v5991 = vadd.f32 %v5967, %v5990
  %v5992 = vpop.f32.mrf.mxu0
  %v5993 = vadd.f32 %v5969, %v5992
  %5994 = vmatmul.bf16.gmra.mxu0 %v4214
  %v5995 = vpop.f32.mrf.mxu0
  %v5996 = vadd.f32 %v5972, %v5995
  %v5997 = vpop.f32.mrf.mxu0
  %v5998 = vadd.f32 %v5974, %v5997
  %5999 = vmatmul.bf16.gmra.mxu0 %v4222
  %v6000 = vpop.f32.mrf.mxu0
  %v6001 = vadd.f32 %v5977, %v6000
  %v6002 = vpop.f32.mrf.mxu0
  %v6003 = vadd.f32 %v5979, %v6002
  %6004 = vdwg.mxu0
  %6005 = vmatpush.bf16.msra.mxu0 %v5346
  %6006 = vmatpush.bf16.msra.mxu0 %v5342
  %6007 = vmatpush.bf16.msra.mxu0 %v5338
  %6008 = vmatpush.bf16.msra.mxu0 %v5334
  %6009 = vmatpush.bf16.msra.mxu0 %v5330
  %6010 = vmatpush.bf16.msra.mxu0 %v5326
  %6011 = vmatpush.bf16.msra.mxu0 %v5322
  %6012 = vmatpush.bf16.msra.mxu0 %v5318
  %6013 = vmatmul.bf16.gmra.mxu0 %v4207
  %v6014 = vpop.f32.mrf.mxu0
  %v6015 = vadd.f32 %v5991, %v6014
  %v6016 = vpop.f32.mrf.mxu0
  %v6017 = vadd.f32 %v5993, %v6016
  %6018 = vmatmul.bf16.gmra.mxu0 %v4215
  %v6019 = vpop.f32.mrf.mxu0
  %v6020 = vadd.f32 %v5996, %v6019
  %v6021 = vpop.f32.mrf.mxu0
  %v6022 = vadd.f32 %v5998, %v6021
  %6023 = vmatmul.bf16.gmra.mxu0 %v4223
  %v6024 = vpop.f32.mrf.mxu0
  %v6025 = vadd.f32 %v6001, %v6024
  %v6026 = vpop.f32.mrf.mxu0
  %v6027 = vadd.f32 %v6003, %v6026
  %6028 = vdwg.mxu0
  %6029 = vmatpush.bf16.msra.mxu0 %v5378
  %6030 = vmatpush.bf16.msra.mxu0 %v5374
  %6031 = vmatpush.bf16.msra.mxu0 %v5370
  %6032 = vmatpush.bf16.msra.mxu0 %v5366
  %6033 = vmatpush.bf16.msra.mxu0 %v5362
  %6034 = vmatpush.bf16.msra.mxu0 %v5358
  %6035 = vmatpush.bf16.msra.mxu0 %v5354
  %6036 = vmatpush.bf16.msra.mxu0 %v5350
  %6037 = vmatmul.bf16.gmra.mxu0 %v4208
  %v6038 = vpop.f32.mrf.mxu0
  %v6039 = vadd.f32 %v6015, %v6038
  %v6040 = vpop.f32.mrf.mxu0
  %v6041 = vadd.f32 %v6017, %v6040
  %6042 = vmatmul.bf16.gmra.mxu0 %v4216
  %v6043 = vpop.f32.mrf.mxu0
  %v6044 = vadd.f32 %v6020, %v6043
  %v6045 = vpop.f32.mrf.mxu0
  %v6046 = vadd.f32 %v6022, %v6045
  %6047 = vmatmul.bf16.gmra.mxu0 %v4224
  %v6048 = vpop.f32.mrf.mxu0
  %v6049 = vadd.f32 %v6025, %v6048
  %v6050 = vpop.f32.mrf.mxu0
  %v6051 = vadd.f32 %v6027, %v6050
  %6052 = vdwg.mxu0
  %6053 = vmatpush.bf16.msra.mxu0 %v5410
  %6054 = vmatpush.bf16.msra.mxu0 %v5406
  %6055 = vmatpush.bf16.msra.mxu0 %v5402
  %6056 = vmatpush.bf16.msra.mxu0 %v5398
  %6057 = vmatpush.bf16.msra.mxu0 %v5394
  %6058 = vmatpush.bf16.msra.mxu0 %v5390
  %6059 = vmatpush.bf16.msra.mxu0 %v5386
  %6060 = vmatpush.bf16.msra.mxu0 %v5382
  %6061 = vmatmul.bf16.gmra.mxu0 %v4209
  %v6062 = vpop.f32.mrf.mxu0
  %v6063 = vadd.f32 %v6039, %v6062
  %v6064 = vpop.f32.mrf.mxu0
  %v6065 = vadd.f32 %v6041, %v6064
  %6066 = vmatmul.bf16.gmra.mxu0 %v4217
  %v6067 = vpop.f32.mrf.mxu0
  %v6068 = vadd.f32 %v6044, %v6067
  %v6069 = vpop.f32.mrf.mxu0
  %v6070 = vadd.f32 %v6046, %v6069
  %6071 = vmatmul.bf16.gmra.mxu0 %v4225
  %v6072 = vpop.f32.mrf.mxu0
  %v6073 = vadd.f32 %v6049, %v6072
  %v6074 = vpop.f32.mrf.mxu0
  %v6075 = vadd.f32 %v6051, %v6074
  %6076 = vdwg.mxu0
  %6077 = vmatpush.bf16.msra.mxu0 %v5442
  %6078 = vmatpush.bf16.msra.mxu0 %v5438
  %6079 = vmatpush.bf16.msra.mxu0 %v5434
  %6080 = vmatpush.bf16.msra.mxu0 %v5430
  %6081 = vmatpush.bf16.msra.mxu0 %v5426
  %6082 = vmatpush.bf16.msra.mxu0 %v5422
  %6083 = vmatpush.bf16.msra.mxu0 %v5418
  %6084 = vmatpush.bf16.msra.mxu0 %v5414
  %6085 = vmatmul.bf16.gmra.mxu0 %v4210
  %v6086 = vpop.f32.mrf.mxu0
  %v6087 = vadd.f32 %v6063, %v6086
  %v6088 = vpop.f32.mrf.mxu0
  %v6089 = vadd.f32 %v6065, %v6088
  %6090 = vmatmul.bf16.gmra.mxu0 %v4218
  %v6091 = vpop.f32.mrf.mxu0
  %v6092 = vadd.f32 %v6068, %v6091
  %v6093 = vpop.f32.mrf.mxu0
  %v6094 = vadd.f32 %v6070, %v6093
  %6095 = vmatmul.bf16.gmra.mxu0 %v4226
  %v6096 = vpop.f32.mrf.mxu0
  %v6097 = vadd.f32 %v6073, %v6096
  %v6098 = vpop.f32.mrf.mxu0
  %v6099 = vadd.f32 %v6075, %v6098
  %6100 = vdwg.mxu0
  %6101 = vmatpush.bf16.msra.mxu0 %v5474
  %6102 = vmatpush.bf16.msra.mxu0 %v5470
  %6103 = vmatpush.bf16.msra.mxu0 %v5466
  %6104 = vmatpush.bf16.msra.mxu0 %v5462
  %6105 = vmatpush.bf16.msra.mxu0 %v5458
  %6106 = vmatpush.bf16.msra.mxu0 %v5454
  %6107 = vmatpush.bf16.msra.mxu0 %v5450
  %6108 = vmatpush.bf16.msra.mxu0 %v5446
  %6109 = vmatmul.bf16.gmra.mxu0 %v4211
  %v6110 = vpop.f32.mrf.mxu0
  %v6111 = vadd.f32 %v6087, %v6110
  %v6112 = vpop.f32.mrf.mxu0
  %v6113 = vadd.f32 %v6089, %v6112
  %6114 = vmatmul.bf16.gmra.mxu0 %v4219
  %v6115 = vpop.f32.mrf.mxu0
  %v6116 = vadd.f32 %v6092, %v6115
  %v6117 = vpop.f32.mrf.mxu0
  %v6118 = vadd.f32 %v6094, %v6117
  %6119 = vmatmul.bf16.gmra.mxu0 %v4227
  %v6120 = vpop.f32.mrf.mxu0
  %v6121 = vadd.f32 %v6097, %v6120
  %v6122 = vpop.f32.mrf.mxu0
  %v6123 = vadd.f32 %v6099, %v6122
  %6124 = vdwg.mxu0
  %6125 = vmatpush.bf16.msra.mxu0 %v5506
  %6126 = vmatpush.bf16.msra.mxu0 %v5502
  %6127 = vmatpush.bf16.msra.mxu0 %v5498
  %6128 = vmatpush.bf16.msra.mxu0 %v5494
  %6129 = vmatpush.bf16.msra.mxu0 %v5490
  %6130 = vmatpush.bf16.msra.mxu0 %v5486
  %6131 = vmatpush.bf16.msra.mxu0 %v5482
  %6132 = vmatpush.bf16.msra.mxu0 %v5478
  %6133 = vmatmul.bf16.gmra.mxu0 %v4212
  %v6134 = vpop.f32.mrf.mxu0
  %v6135 = vadd.f32 %v6111, %v6134
  %v6136 = vpop.f32.mrf.mxu0
  %v6137 = vadd.f32 %v6113, %v6136
  %6138 = vmatmul.bf16.gmra.mxu0 %v4220
  %v6139 = vpop.f32.mrf.mxu0
  %v6140 = vadd.f32 %v6116, %v6139
  %v6141 = vpop.f32.mrf.mxu0
  %v6142 = vadd.f32 %v6118, %v6141
  %6143 = vmatmul.bf16.gmra.mxu0 %v4228
  %v6144 = vpop.f32.mrf.mxu0
  %v6145 = vadd.f32 %v6121, %v6144
  %v6146 = vpop.f32.mrf.mxu0
  %v6147 = vadd.f32 %v6123, %v6146
  %6148 = vdwg.mxu0
  %6149 = vmatpush.bf16.msra.mxu0 %v5283
  %6150 = vmatpush.bf16.msra.mxu0 %v5279
  %6151 = vmatpush.bf16.msra.mxu0 %v5275
  %6152 = vmatpush.bf16.msra.mxu0 %v5271
  %6153 = vmatpush.bf16.msra.mxu0 %v5267
  %6154 = vmatpush.bf16.msra.mxu0 %v5263
  %6155 = vmatpush.bf16.msra.mxu0 %v5259
  %6156 = vmatpush.bf16.msra.mxu0 %v5255
  %6157 = vmatmul.bf16.gmra.mxu0 %v4205
  %v6158 = vpop.f32.mrf.mxu0
  %v6159 = vadd.f32 0.0, %v6158
  %v6160 = vpop.f32.mrf.mxu0
  %v6161 = vadd.f32 0.0, %v6160
  %6162 = vmatmul.bf16.gmra.mxu0 %v4213
  %v6163 = vpop.f32.mrf.mxu0
  %v6164 = vadd.f32 0.0, %v6163
  %v6165 = vpop.f32.mrf.mxu0
  %v6166 = vadd.f32 0.0, %v6165
  %6167 = vmatmul.bf16.gmra.mxu0 %v4221
  %v6168 = vpop.f32.mrf.mxu0
  %v6169 = vadd.f32 0.0, %v6168
  %v6170 = vpop.f32.mrf.mxu0
  %v6171 = vadd.f32 0.0, %v6170
  %6172 = vdwg.mxu0
  %6173 = vmatpush.bf16.msra.mxu0 %v5315
  %6174 = vmatpush.bf16.msra.mxu0 %v5311
  %6175 = vmatpush.bf16.msra.mxu0 %v5307
  %6176 = vmatpush.bf16.msra.mxu0 %v5303
  %6177 = vmatpush.bf16.msra.mxu0 %v5299
  %6178 = vmatpush.bf16.msra.mxu0 %v5295
  %6179 = vmatpush.bf16.msra.mxu0 %v5291
  %6180 = vmatpush.bf16.msra.mxu0 %v5287
  %6181 = vmatmul.bf16.gmra.mxu0 %v4206
  %v6182 = vpop.f32.mrf.mxu0
  %v6183 = vadd.f32 %v6159, %v6182
  %v6184 = vpop.f32.mrf.mxu0
  %v6185 = vadd.f32 %v6161, %v6184
  %6186 = vmatmul.bf16.gmra.mxu0 %v4214
  %v6187 = vpop.f32.mrf.mxu0
  %v6188 = vadd.f32 %v6164, %v6187
  %v6189 = vpop.f32.mrf.mxu0
  %v6190 = vadd.f32 %v6166, %v6189
  %6191 = vmatmul.bf16.gmra.mxu0 %v4222
  %v6192 = vpop.f32.mrf.mxu0
  %v6193 = vadd.f32 %v6169, %v6192
  %v6194 = vpop.f32.mrf.mxu0
  %v6195 = vadd.f32 %v6171, %v6194
  %6196 = vdwg.mxu0
  %6197 = vmatpush.bf16.msra.mxu0 %v5347
  %6198 = vmatpush.bf16.msra.mxu0 %v5343
  %6199 = vmatpush.bf16.msra.mxu0 %v5339
  %6200 = vmatpush.bf16.msra.mxu0 %v5335
  %6201 = vmatpush.bf16.msra.mxu0 %v5331
  %6202 = vmatpush.bf16.msra.mxu0 %v5327
  %6203 = vmatpush.bf16.msra.mxu0 %v5323
  %6204 = vmatpush.bf16.msra.mxu0 %v5319
  %6205 = vmatmul.bf16.gmra.mxu0 %v4207
  %v6206 = vpop.f32.mrf.mxu0
  %v6207 = vadd.f32 %v6183, %v6206
  %v6208 = vpop.f32.mrf.mxu0
  %v6209 = vadd.f32 %v6185, %v6208
  %6210 = vmatmul.bf16.gmra.mxu0 %v4215
  %v6211 = vpop.f32.mrf.mxu0
  %v6212 = vadd.f32 %v6188, %v6211
  %v6213 = vpop.f32.mrf.mxu0
  %v6214 = vadd.f32 %v6190, %v6213
  %6215 = vmatmul.bf16.gmra.mxu0 %v4223
  %v6216 = vpop.f32.mrf.mxu0
  %v6217 = vadd.f32 %v6193, %v6216
  %v6218 = vpop.f32.mrf.mxu0
  %v6219 = vadd.f32 %v6195, %v6218
  %6220 = vdwg.mxu0
  %6221 = vmatpush.bf16.msra.mxu0 %v5379
  %6222 = vmatpush.bf16.msra.mxu0 %v5375
  %6223 = vmatpush.bf16.msra.mxu0 %v5371
  %6224 = vmatpush.bf16.msra.mxu0 %v5367
  %6225 = vmatpush.bf16.msra.mxu0 %v5363
  %6226 = vmatpush.bf16.msra.mxu0 %v5359
  %6227 = vmatpush.bf16.msra.mxu0 %v5355
  %6228 = vmatpush.bf16.msra.mxu0 %v5351
  %6229 = vmatmul.bf16.gmra.mxu0 %v4208
  %v6230 = vpop.f32.mrf.mxu0
  %v6231 = vadd.f32 %v6207, %v6230
  %v6232 = vpop.f32.mrf.mxu0
  %v6233 = vadd.f32 %v6209, %v6232
  %6234 = vmatmul.bf16.gmra.mxu0 %v4216
  %v6235 = vpop.f32.mrf.mxu0
  %v6236 = vadd.f32 %v6212, %v6235
  %v6237 = vpop.f32.mrf.mxu0
  %v6238 = vadd.f32 %v6214, %v6237
  %6239 = vmatmul.bf16.gmra.mxu0 %v4224
  %v6240 = vpop.f32.mrf.mxu0
  %v6241 = vadd.f32 %v6217, %v6240
  %v6242 = vpop.f32.mrf.mxu0
  %v6243 = vadd.f32 %v6219, %v6242
  %6244 = vdwg.mxu0
  %6245 = vmatpush.bf16.msra.mxu0 %v5411
  %6246 = vmatpush.bf16.msra.mxu0 %v5407
  %6247 = vmatpush.bf16.msra.mxu0 %v5403
  %6248 = vmatpush.bf16.msra.mxu0 %v5399
  %6249 = vmatpush.bf16.msra.mxu0 %v5395
  %6250 = vmatpush.bf16.msra.mxu0 %v5391
  %6251 = vmatpush.bf16.msra.mxu0 %v5387
  %6252 = vmatpush.bf16.msra.mxu0 %v5383
  %6253 = vmatmul.bf16.gmra.mxu0 %v4209
  %v6254 = vpop.f32.mrf.mxu0
  %v6255 = vadd.f32 %v6231, %v6254
  %v6256 = vpop.f32.mrf.mxu0
  %v6257 = vadd.f32 %v6233, %v6256
  %6258 = vmatmul.bf16.gmra.mxu0 %v4217
  %v6259 = vpop.f32.mrf.mxu0
  %v6260 = vadd.f32 %v6236, %v6259
  %v6261 = vpop.f32.mrf.mxu0
  %v6262 = vadd.f32 %v6238, %v6261
  %6263 = vmatmul.bf16.gmra.mxu0 %v4225
  %v6264 = vpop.f32.mrf.mxu0
  %v6265 = vadd.f32 %v6241, %v6264
  %v6266 = vpop.f32.mrf.mxu0
  %v6267 = vadd.f32 %v6243, %v6266
  %6268 = vdwg.mxu0
  %6269 = vmatpush.bf16.msra.mxu0 %v5443
  %6270 = vmatpush.bf16.msra.mxu0 %v5439
  %6271 = vmatpush.bf16.msra.mxu0 %v5435
  %6272 = vmatpush.bf16.msra.mxu0 %v5431
  %6273 = vmatpush.bf16.msra.mxu0 %v5427
  %6274 = vmatpush.bf16.msra.mxu0 %v5423
  %6275 = vmatpush.bf16.msra.mxu0 %v5419
  %6276 = vmatpush.bf16.msra.mxu0 %v5415
  %6277 = vmatmul.bf16.gmra.mxu0 %v4210
  %v6278 = vpop.f32.mrf.mxu0
  %v6279 = vadd.f32 %v6255, %v6278
  %v6280 = vpop.f32.mrf.mxu0
  %v6281 = vadd.f32 %v6257, %v6280
  %6282 = vmatmul.bf16.gmra.mxu0 %v4218
  %v6283 = vpop.f32.mrf.mxu0
  %v6284 = vadd.f32 %v6260, %v6283
  %v6285 = vpop.f32.mrf.mxu0
  %v6286 = vadd.f32 %v6262, %v6285
  %6287 = vmatmul.bf16.gmra.mxu0 %v4226
  %v6288 = vpop.f32.mrf.mxu0
  %v6289 = vadd.f32 %v6265, %v6288
  %v6290 = vpop.f32.mrf.mxu0
  %v6291 = vadd.f32 %v6267, %v6290
  %6292 = vdwg.mxu0
  %6293 = vmatpush.bf16.msra.mxu0 %v5475
  %6294 = vmatpush.bf16.msra.mxu0 %v5471
  %6295 = vmatpush.bf16.msra.mxu0 %v5467
  %6296 = vmatpush.bf16.msra.mxu0 %v5463
  %6297 = vmatpush.bf16.msra.mxu0 %v5459
  %6298 = vmatpush.bf16.msra.mxu0 %v5455
  %6299 = vmatpush.bf16.msra.mxu0 %v5451
  %6300 = vmatpush.bf16.msra.mxu0 %v5447
  %6301 = vmatmul.bf16.gmra.mxu0 %v4211
  %v6302 = vpop.f32.mrf.mxu0
  %v6303 = vadd.f32 %v6279, %v6302
  %v6304 = vpop.f32.mrf.mxu0
  %v6305 = vadd.f32 %v6281, %v6304
  %6306 = vmatmul.bf16.gmra.mxu0 %v4219
  %v6307 = vpop.f32.mrf.mxu0
  %v6308 = vadd.f32 %v6284, %v6307
  %v6309 = vpop.f32.mrf.mxu0
  %v6310 = vadd.f32 %v6286, %v6309
  %6311 = vmatmul.bf16.gmra.mxu0 %v4227
  %v6312 = vpop.f32.mrf.mxu0
  %v6313 = vadd.f32 %v6289, %v6312
  %v6314 = vpop.f32.mrf.mxu0
  %v6315 = vadd.f32 %v6291, %v6314
  %6316 = vdwg.mxu0
  %6317 = vmatpush.bf16.msra.mxu0 %v5507
  %6318 = vmatpush.bf16.msra.mxu0 %v5503
  %6319 = vmatpush.bf16.msra.mxu0 %v5499
  %6320 = vmatpush.bf16.msra.mxu0 %v5495
  %6321 = vmatpush.bf16.msra.mxu0 %v5491
  %6322 = vmatpush.bf16.msra.mxu0 %v5487
  %6323 = vmatpush.bf16.msra.mxu0 %v5483
  %6324 = vmatpush.bf16.msra.mxu0 %v5479
  %6325 = vmatmul.bf16.gmra.mxu0 %v4212
  %v6326 = vpop.f32.mrf.mxu0
  %v6327 = vadd.f32 %v6303, %v6326
  %v6328 = vpop.f32.mrf.mxu0
  %v6329 = vadd.f32 %v6305, %v6328
  %6330 = vmatmul.bf16.gmra.mxu0 %v4220
  %v6331 = vpop.f32.mrf.mxu0
  %v6332 = vadd.f32 %v6308, %v6331
  %v6333 = vpop.f32.mrf.mxu0
  %v6334 = vadd.f32 %v6310, %v6333
  %6335 = vmatmul.bf16.gmra.mxu0 %v4228
  %v6336 = vpop.f32.mrf.mxu0
  %v6337 = vadd.f32 %v6313, %v6336
  %v6338 = vpop.f32.mrf.mxu0
  %v6339 = vadd.f32 %v6315, %v6338
  %6340 = vdwg.mxu0
  %6341 = vmatpush.bf16.msra.mxu0 %v5284
  %6342 = vmatpush.bf16.msra.mxu0 %v5280
  %6343 = vmatpush.bf16.msra.mxu0 %v5276
  %6344 = vmatpush.bf16.msra.mxu0 %v5272
  %6345 = vmatpush.bf16.msra.mxu0 %v5268
  %6346 = vmatpush.bf16.msra.mxu0 %v5264
  %6347 = vmatpush.bf16.msra.mxu0 %v5260
  %6348 = vmatpush.bf16.msra.mxu0 %v5256
  %6349 = vmatmul.bf16.gmra.mxu0 %v4205
  %v6350 = vpop.f32.mrf.mxu0
  %v6351 = vadd.f32 0.0, %v6350
  %v6352 = vpop.f32.mrf.mxu0
  %v6353 = vadd.f32 0.0, %v6352
  %6354 = vmatmul.bf16.gmra.mxu0 %v4213
  %v6355 = vpop.f32.mrf.mxu0
  %v6356 = vadd.f32 0.0, %v6355
  %v6357 = vpop.f32.mrf.mxu0
  %v6358 = vadd.f32 0.0, %v6357
  %6359 = vmatmul.bf16.gmra.mxu0 %v4221
  %v6360 = vpop.f32.mrf.mxu0
  %v6361 = vadd.f32 0.0, %v6360
  %v6362 = vpop.f32.mrf.mxu0
  %v6363 = vadd.f32 0.0, %v6362
  %6364 = vdwg.mxu0
  %6365 = vmatpush.bf16.msra.mxu0 %v5316
  %6366 = vmatpush.bf16.msra.mxu0 %v5312
  %6367 = vmatpush.bf16.msra.mxu0 %v5308
  %6368 = vmatpush.bf16.msra.mxu0 %v5304
  %6369 = vmatpush.bf16.msra.mxu0 %v5300
  %6370 = vmatpush.bf16.msra.mxu0 %v5296
  %6371 = vmatpush.bf16.msra.mxu0 %v5292
  %6372 = vmatpush.bf16.msra.mxu0 %v5288
  %6373 = vmatmul.bf16.gmra.mxu0 %v4206
  %v6374 = vpop.f32.mrf.mxu0
  %v6375 = vadd.f32 %v6351, %v6374
  %v6376 = vpop.f32.mrf.mxu0
  %v6377 = vadd.f32 %v6353, %v6376
  %6378 = vmatmul.bf16.gmra.mxu0 %v4214
  %v6379 = vpop.f32.mrf.mxu0
  %v6380 = vadd.f32 %v6356, %v6379
  %v6381 = vpop.f32.mrf.mxu0
  %v6382 = vadd.f32 %v6358, %v6381
  %6383 = vmatmul.bf16.gmra.mxu0 %v4222
  %v6384 = vpop.f32.mrf.mxu0
  %v6385 = vadd.f32 %v6361, %v6384
  %v6386 = vpop.f32.mrf.mxu0
  %v6387 = vadd.f32 %v6363, %v6386
  %6388 = vdwg.mxu0
  %6389 = vmatpush.bf16.msra.mxu0 %v5348
  %6390 = vmatpush.bf16.msra.mxu0 %v5344
  %6391 = vmatpush.bf16.msra.mxu0 %v5340
  %6392 = vmatpush.bf16.msra.mxu0 %v5336
  %6393 = vmatpush.bf16.msra.mxu0 %v5332
  %6394 = vmatpush.bf16.msra.mxu0 %v5328
  %6395 = vmatpush.bf16.msra.mxu0 %v5324
  %6396 = vmatpush.bf16.msra.mxu0 %v5320
  %6397 = vmatmul.bf16.gmra.mxu0 %v4207
  %v6398 = vpop.f32.mrf.mxu0
  %v6399 = vadd.f32 %v6375, %v6398
  %v6400 = vpop.f32.mrf.mxu0
  %v6401 = vadd.f32 %v6377, %v6400
  %6402 = vmatmul.bf16.gmra.mxu0 %v4215
  %v6403 = vpop.f32.mrf.mxu0
  %v6404 = vadd.f32 %v6380, %v6403
  %v6405 = vpop.f32.mrf.mxu0
  %v6406 = vadd.f32 %v6382, %v6405
  %6407 = vmatmul.bf16.gmra.mxu0 %v4223
  %v6408 = vpop.f32.mrf.mxu0
  %v6409 = vadd.f32 %v6385, %v6408
  %v6410 = vpop.f32.mrf.mxu0
  %v6411 = vadd.f32 %v6387, %v6410
  %6412 = vdwg.mxu0
  %6413 = vmatpush.bf16.msra.mxu0 %v5380
  %6414 = vmatpush.bf16.msra.mxu0 %v5376
  %6415 = vmatpush.bf16.msra.mxu0 %v5372
  %6416 = vmatpush.bf16.msra.mxu0 %v5368
  %6417 = vmatpush.bf16.msra.mxu0 %v5364
  %6418 = vmatpush.bf16.msra.mxu0 %v5360
  %6419 = vmatpush.bf16.msra.mxu0 %v5356
  %6420 = vmatpush.bf16.msra.mxu0 %v5352
  %6421 = vmatmul.bf16.gmra.mxu0 %v4208
  %v6422 = vpop.f32.mrf.mxu0
  %v6423 = vadd.f32 %v6399, %v6422
  %v6424 = vpop.f32.mrf.mxu0
  %v6425 = vadd.f32 %v6401, %v6424
  %6426 = vmatmul.bf16.gmra.mxu0 %v4216
  %v6427 = vpop.f32.mrf.mxu0
  %v6428 = vadd.f32 %v6404, %v6427
  %v6429 = vpop.f32.mrf.mxu0
  %v6430 = vadd.f32 %v6406, %v6429
  %6431 = vmatmul.bf16.gmra.mxu0 %v4224
  %v6432 = vpop.f32.mrf.mxu0
  %v6433 = vadd.f32 %v6409, %v6432
  %v6434 = vpop.f32.mrf.mxu0
  %v6435 = vadd.f32 %v6411, %v6434
  %6436 = vdwg.mxu0
  %6437 = vmatpush.bf16.msra.mxu0 %v5412
  %6438 = vmatpush.bf16.msra.mxu0 %v5408
  %6439 = vmatpush.bf16.msra.mxu0 %v5404
  %6440 = vmatpush.bf16.msra.mxu0 %v5400
  %6441 = vmatpush.bf16.msra.mxu0 %v5396
  %6442 = vmatpush.bf16.msra.mxu0 %v5392
  %6443 = vmatpush.bf16.msra.mxu0 %v5388
  %6444 = vmatpush.bf16.msra.mxu0 %v5384
  %6445 = vmatmul.bf16.gmra.mxu0 %v4209
  %v6446 = vpop.f32.mrf.mxu0
  %v6447 = vadd.f32 %v6423, %v6446
  %v6448 = vpop.f32.mrf.mxu0
  %v6449 = vadd.f32 %v6425, %v6448
  %6450 = vmatmul.bf16.gmra.mxu0 %v4217
  %v6451 = vpop.f32.mrf.mxu0
  %v6452 = vadd.f32 %v6428, %v6451
  %v6453 = vpop.f32.mrf.mxu0
  %v6454 = vadd.f32 %v6430, %v6453
  %6455 = vmatmul.bf16.gmra.mxu0 %v4225
  %v6456 = vpop.f32.mrf.mxu0
  %v6457 = vadd.f32 %v6433, %v6456
  %v6458 = vpop.f32.mrf.mxu0
  %v6459 = vadd.f32 %v6435, %v6458
  %6460 = vdwg.mxu0
  %6461 = vmatpush.bf16.msra.mxu0 %v5444
  %6462 = vmatpush.bf16.msra.mxu0 %v5440
  %6463 = vmatpush.bf16.msra.mxu0 %v5436
  %6464 = vmatpush.bf16.msra.mxu0 %v5432
  %6465 = vmatpush.bf16.msra.mxu0 %v5428
  %6466 = vmatpush.bf16.msra.mxu0 %v5424
  %6467 = vmatpush.bf16.msra.mxu0 %v5420
  %6468 = vmatpush.bf16.msra.mxu0 %v5416
  %6469 = vmatmul.bf16.gmra.mxu0 %v4210
  %v6470 = vpop.f32.mrf.mxu0
  %v6471 = vadd.f32 %v6447, %v6470
  %v6472 = vpop.f32.mrf.mxu0
  %v6473 = vadd.f32 %v6449, %v6472
  %6474 = vmatmul.bf16.gmra.mxu0 %v4218
  %v6475 = vpop.f32.mrf.mxu0
  %v6476 = vadd.f32 %v6452, %v6475
  %v6477 = vpop.f32.mrf.mxu0
  %v6478 = vadd.f32 %v6454, %v6477
  %6479 = vmatmul.bf16.gmra.mxu0 %v4226
  %v6480 = vpop.f32.mrf.mxu0
  %v6481 = vadd.f32 %v6457, %v6480
  %v6482 = vpop.f32.mrf.mxu0
  %v6483 = vadd.f32 %v6459, %v6482
  %6484 = vdwg.mxu0
  %6485 = vmatpush.bf16.msra.mxu0 %v5476
  %6486 = vmatpush.bf16.msra.mxu0 %v5472
  %6487 = vmatpush.bf16.msra.mxu0 %v5468
  %6488 = vmatpush.bf16.msra.mxu0 %v5464
  %6489 = vmatpush.bf16.msra.mxu0 %v5460
  %6490 = vmatpush.bf16.msra.mxu0 %v5456
  %6491 = vmatpush.bf16.msra.mxu0 %v5452
  %6492 = vmatpush.bf16.msra.mxu0 %v5448
  %6493 = vmatmul.bf16.gmra.mxu0 %v4211
  %v6494 = vpop.f32.mrf.mxu0
  %v6495 = vadd.f32 %v6471, %v6494
  %v6496 = vpop.f32.mrf.mxu0
  %v6497 = vadd.f32 %v6473, %v6496
  %6498 = vmatmul.bf16.gmra.mxu0 %v4219
  %v6499 = vpop.f32.mrf.mxu0
  %v6500 = vadd.f32 %v6476, %v6499
  %v6501 = vpop.f32.mrf.mxu0
  %v6502 = vadd.f32 %v6478, %v6501
  %6503 = vmatmul.bf16.gmra.mxu0 %v4227
  %v6504 = vpop.f32.mrf.mxu0
  %v6505 = vadd.f32 %v6481, %v6504
  %v6506 = vpop.f32.mrf.mxu0
  %v6507 = vadd.f32 %v6483, %v6506
  %6508 = vdwg.mxu0
  %6509 = vmatpush.bf16.msra.mxu0 %v5508
  %6510 = vmatpush.bf16.msra.mxu0 %v5504
  %6511 = vmatpush.bf16.msra.mxu0 %v5500
  %6512 = vmatpush.bf16.msra.mxu0 %v5496
  %6513 = vmatpush.bf16.msra.mxu0 %v5492
  %6514 = vmatpush.bf16.msra.mxu0 %v5488
  %6515 = vmatpush.bf16.msra.mxu0 %v5484
  %6516 = vmatpush.bf16.msra.mxu0 %v5480
  %6517 = vmatmul.bf16.gmra.mxu0 %v4212
  %v6518 = vpop.f32.mrf.mxu0
  %v6519 = vadd.f32 %v6495, %v6518
  %v6520 = vpop.f32.mrf.mxu0
  %v6521 = vadd.f32 %v6497, %v6520
  %6522 = vmatmul.bf16.gmra.mxu0 %v4220
  %v6523 = vpop.f32.mrf.mxu0
  %v6524 = vadd.f32 %v6500, %v6523
  %v6525 = vpop.f32.mrf.mxu0
  %v6526 = vadd.f32 %v6502, %v6525
  %6527 = vmatmul.bf16.gmra.mxu0 %v4228
  %v6528 = vpop.f32.mrf.mxu0
  %v6529 = vadd.f32 %v6505, %v6528
  %v6530 = vpop.f32.mrf.mxu0
  %v6531 = vadd.f32 %v6507, %v6530
  %6532 = vdwg.mxu0
  %v6533 = vpack.c.bf16 %v6135, %v5943
  %v6534 = vpack.c.bf16 %v6519, %v6327
  %v6535 = vpack.c.bf16 %v6137, %v5945
  %v6536 = vpack.c.bf16 %v6521, %v6329
  %v6537 = vpack.c.bf16 %v6140, %v5948
  %v6538 = vpack.c.bf16 %v6524, %v6332
  %v6539 = vpack.c.bf16 %v6142, %v5950
  %v6540 = vpack.c.bf16 %v6526, %v6334
  %v6541 = vpack.c.bf16 %v6145, %v5953
  %v6542 = vpack.c.bf16 %v6529, %v6337
  %v6543 = vpack.c.bf16 %v6147, %v5955
  %v6544 = vpack.c.bf16 %v6531, %v6339
  %v6545 = vld [vmem:[%s4] sm:$0xf]
  %6547 = vst [vmem:[#allocation1] ss:$9 sm:$0xff] %v6545
  %v6548 = vld [vmem:[#allocation1] sm:$0xff]
  %v6549 = vld [vmem:[#allocation1 + $0x9] sm:$0xff]
  %v6550 = vld [vmem:[#allocation1 + $0x12] sm:$0xff]
  %v6551 = vld [vmem:[#allocation1 + $0x1b] sm:$0xff]
  %v6552 = vpack.i.b16 %v6548, %v6548
  %v6554 = vperm.slane %v6552, 0
  %v6555 = vpack.i.b16 %v6549, %v6549
  %v6557 = vperm.slane %v6555, 0
  %v6558 = vpack.i.b16 %v6550, %v6550
  %v6560 = vperm.slane %v6558, 0
  %v6561 = vpack.i.b16 %v6551, %v6551
  %v6563 = vperm.slane %v6561, 0
  %v6564 = vunpack.c.l.bf16 %v6533
  %v6565 = vunpack.c.h.bf16 %v6533
  %v6566 = vunpack.c.l.bf16 %v6534
  %v6567 = vunpack.c.h.bf16 %v6534
  %v6568 = vunpack.c.l.bf16 %v6535
  %v6569 = vunpack.c.h.bf16 %v6535
  %v6570 = vunpack.c.l.bf16 %v6536
  %v6571 = vunpack.c.h.bf16 %v6536
  %v6572 = vunpack.c.l.bf16 %v6537
  %v6573 = vunpack.c.h.bf16 %v6537
  %v6574 = vunpack.c.l.bf16 %v6538
  %v6575 = vunpack.c.h.bf16 %v6538
  %v6576 = vunpack.c.l.bf16 %v6539
  %v6577 = vunpack.c.h.bf16 %v6539
  %v6578 = vunpack.c.l.bf16 %v6540
  %v6579 = vunpack.c.h.bf16 %v6540
  %v6580 = vunpack.c.l.bf16 %v6541
  %v6581 = vunpack.c.h.bf16 %v6541
  %v6582 = vunpack.c.l.bf16 %v6542
  %v6583 = vunpack.c.h.bf16 %v6542
  %v6584 = vunpack.c.l.bf16 %v6543
  %v6585 = vunpack.c.h.bf16 %v6543
  %v6586 = vunpack.c.l.bf16 %v6544
  %v6587 = vunpack.c.h.bf16 %v6544
  %v6588 = vunpack.c.l.bf16 %v6554
  %v6589 = vunpack.c.l.bf16 %v6557
  %v6590 = vunpack.c.l.bf16 %v6560
  %v6591 = vunpack.c.l.bf16 %v6563
  %v6592 = vadd.f32 %v6564, %v6588
  %v6593 = vadd.f32 %v6565, %v6589
  %v6594 = vadd.f32 %v6566, %v6590
  %v6595 = vadd.f32 %v6567, %v6591
  %v6596 = vadd.f32 %v6568, %v6588
  %v6597 = vadd.f32 %v6569, %v6589
  %v6598 = vadd.f32 %v6570, %v6590
  %v6599 = vadd.f32 %v6571, %v6591
  %v6600 = vadd.f32 %v6572, %v6588
  %v6601 = vadd.f32 %v6573, %v6589
  %v6602 = vadd.f32 %v6574, %v6590
  %v6603 = vadd.f32 %v6575, %v6591
  %v6604 = vadd.f32 %v6576, %v6588
  %v6605 = vadd.f32 %v6577, %v6589
  %v6606 = vadd.f32 %v6578, %v6590
  %v6607 = vadd.f32 %v6579, %v6591
  %v6608 = vadd.f32 %v6580, %v6588
  %v6609 = vadd.f32 %v6581, %v6589
  %v6610 = vadd.f32 %v6582, %v6590
  %v6611 = vadd.f32 %v6583, %v6591
  %v6612 = vadd.f32 %v6584, %v6588
  %v6613 = vadd.f32 %v6585, %v6589
  %v6614 = vadd.f32 %v6586, %v6590
  %v6615 = vadd.f32 %v6587, %v6591
  %v6616 = vpack.c.bf16 %v6593, %v6592
  %v6617 = vpack.c.bf16 %v6595, %v6594
  %v6618 = vpack.c.bf16 %v6597, %v6596
  %v6619 = vpack.c.bf16 %v6599, %v6598
  %v6620 = vpack.c.bf16 %v6601, %v6600
  %v6621 = vpack.c.bf16 %v6603, %v6602
  %v6622 = vpack.c.bf16 %v6605, %v6604
  %v6623 = vpack.c.bf16 %v6607, %v6606
  %v6624 = vpack.c.bf16 %v6609, %v6608
  %v6625 = vpack.c.bf16 %v6611, %v6610
  %v6626 = vpack.c.bf16 %v6613, %v6612
  %v6627 = vpack.c.bf16 %v6615, %v6614
  %v6628 = vunpack.c.l.bf16 %v6616
  %v6629 = vunpack.c.h.bf16 %v6616
  %v6630 = vunpack.c.l.bf16 %v6617
  %v6631 = vunpack.c.h.bf16 %v6617
  %v6632 = vunpack.c.l.bf16 %v6618
  %v6633 = vunpack.c.h.bf16 %v6618
  %v6634 = vunpack.c.l.bf16 %v6619
  %v6635 = vunpack.c.h.bf16 %v6619
  %v6636 = vunpack.c.l.bf16 %v6620
  %v6637 = vunpack.c.h.bf16 %v6620
  %v6638 = vunpack.c.l.bf16 %v6621
  %v6639 = vunpack.c.h.bf16 %v6621
  %v6640 = vunpack.c.l.bf16 %v6622
  %v6641 = vunpack.c.h.bf16 %v6622
  %v6642 = vunpack.c.l.bf16 %v6623
  %v6643 = vunpack.c.h.bf16 %v6623
  %v6644 = vunpack.c.l.bf16 %v6624
  %v6645 = vunpack.c.h.bf16 %v6624
  %v6646 = vunpack.c.l.bf16 %v6625
  %v6647 = vunpack.c.h.bf16 %v6625
  %v6648 = vunpack.c.l.bf16 %v6626
  %v6649 = vunpack.c.h.bf16 %v6626
  %v6650 = vunpack.c.l.bf16 %v6627
  %v6651 = vunpack.c.h.bf16 %v6627
  %v6652 = vmul.f32 %v6628, 0.20019531
  %v6653 = vmul.f32 %v6629, 0.20019531
  %v6654 = vmul.f32 %v6630, 0.20019531
  %v6655 = vmul.f32 %v6631, 0.20019531
  %v6656 = vmul.f32 %v6632, 0.20019531
  %v6657 = vmul.f32 %v6633, 0.20019531
  %v6658 = vmul.f32 %v6634, 0.20019531
  %v6659 = vmul.f32 %v6635, 0.20019531
  %v6660 = vmul.f32 %v6636, 0.20019531
  %v6661 = vmul.f32 %v6637, 0.20019531
  %v6662 = vmul.f32 %v6638, 0.20019531
  %v6663 = vmul.f32 %v6639, 0.20019531
  %v6664 = vmul.f32 %v6640, 0.20019531
  %v6665 = vmul.f32 %v6641, 0.20019531
  %v6666 = vmul.f32 %v6642, 0.20019531
  %v6667 = vmul.f32 %v6643, 0.20019531
  %v6668 = vmul.f32 %v6644, 0.20019531
  %v6669 = vmul.f32 %v6645, 0.20019531
  %v6670 = vmul.f32 %v6646, 0.20019531
  %v6671 = vmul.f32 %v6647, 0.20019531
  %v6672 = vmul.f32 %v6648, 0.20019531
  %v6673 = vmul.f32 %v6649, 0.20019531
  %v6674 = vmul.f32 %v6650, 0.20019531
  %v6675 = vmul.f32 %v6651, 0.20019531
  %v6676 = vpack.c.bf16 %v6653, %v6652
  %v6677 = vpack.c.bf16 %v6655, %v6654
  %v6678 = vpack.c.bf16 %v6657, %v6656
  %v6679 = vpack.c.bf16 %v6659, %v6658
  %v6680 = vpack.c.bf16 %v6661, %v6660
  %v6681 = vpack.c.bf16 %v6663, %v6662
  %v6682 = vpack.c.bf16 %v6665, %v6664
  %v6683 = vpack.c.bf16 %v6667, %v6666
  %v6684 = vpack.c.bf16 %v6669, %v6668
  %v6685 = vpack.c.bf16 %v6671, %v6670
  %v6686 = vpack.c.bf16 %v6673, %v6672
  %v6687 = vpack.c.bf16 %v6675, %v6674
  %v6688 = vunpack.c.l.bf16 %v6676
  %v6689 = vunpack.c.h.bf16 %v6676
  %v6690 = vunpack.c.l.bf16 %v6677
  %v6691 = vunpack.c.h.bf16 %v6677
  %v6692 = vunpack.c.l.bf16 %v6678
  %v6693 = vunpack.c.h.bf16 %v6678
  %v6694 = vunpack.c.l.bf16 %v6679
  %v6695 = vunpack.c.h.bf16 %v6679
  %v6696 = vunpack.c.l.bf16 %v6680
  %v6697 = vunpack.c.h.bf16 %v6680
  %v6698 = vunpack.c.l.bf16 %v6681
  %v6699 = vunpack.c.h.bf16 %v6681
  %v6700 = vunpack.c.l.bf16 %v6682
  %v6701 = vunpack.c.h.bf16 %v6682
  %v6702 = vunpack.c.l.bf16 %v6683
  %v6703 = vunpack.c.h.bf16 %v6683
  %v6704 = vunpack.c.l.bf16 %v6684
  %v6705 = vunpack.c.h.bf16 %v6684
  %v6706 = vunpack.c.l.bf16 %v6685
  %v6707 = vunpack.c.h.bf16 %v6685
  %v6708 = vunpack.c.l.bf16 %v6686
  %v6709 = vunpack.c.h.bf16 %v6686
  %v6710 = vunpack.c.l.bf16 %v6687
  %v6711 = vunpack.c.h.bf16 %v6687
  %v6712 = vmax.f32 %v6628, %v6688
  %v6713 = vmax.f32 %v6629, %v6689
  %v6714 = vmax.f32 %v6630, %v6690
  %v6715 = vmax.f32 %v6631, %v6691
  %v6716 = vmax.f32 %v6632, %v6692
  %v6717 = vmax.f32 %v6633, %v6693
  %v6718 = vmax.f32 %v6634, %v6694
  %v6719 = vmax.f32 %v6635, %v6695
  %v6720 = vmax.f32 %v6636, %v6696
  %v6721 = vmax.f32 %v6637, %v6697
  %v6722 = vmax.f32 %v6638, %v6698
  %v6723 = vmax.f32 %v6639, %v6699
  %v6724 = vmax.f32 %v6640, %v6700
  %v6725 = vmax.f32 %v6641, %v6701
  %v6726 = vmax.f32 %v6642, %v6702
  %v6727 = vmax.f32 %v6643, %v6703
  %v6728 = vmax.f32 %v6644, %v6704
  %v6729 = vmax.f32 %v6645, %v6705
  %v6730 = vmax.f32 %v6646, %v6706
  %v6731 = vmax.f32 %v6647, %v6707
  %v6732 = vmax.f32 %v6648, %v6708
  %v6733 = vmax.f32 %v6649, %v6709
  %v6734 = vmax.f32 %v6650, %v6710
  %v6735 = vmax.f32 %v6651, %v6711
  %v6736 = vpack.c.bf16 %v6716, %v6712
  %v6737 = vpack.c.bf16 %v6717, %v6713
  %v6738 = vpack.c.bf16 %v6718, %v6714
  %v6739 = vpack.c.bf16 %v6719, %v6715
  %v6740 = vpack.c.bf16 %v6724, %v6720
  %v6741 = vpack.c.bf16 %v6725, %v6721
  %v6742 = vpack.c.bf16 %v6726, %v6722
  %v6743 = vpack.c.bf16 %v6727, %v6723
  %v6744 = vpack.c.bf16 %v6732, %v6728
  %v6745 = vpack.c.bf16 %v6733, %v6729
  %v6746 = vpack.c.bf16 %v6734, %v6730
  %v6747 = vpack.c.bf16 %v6735, %v6731
  %v6748 = vld [vmem:[%s5] sm:$0xff]
  %v6749 = vld [vmem:[%s5 + $0x8] sm:$0xff]
  %v6750 = vld [vmem:[%s5 + $0x10] sm:$0xff]
  %v6751 = vld [vmem:[%s5 + $0x18] sm:$0xff]
  %v6752 = vld [vmem:[%s5 + $0x20] sm:$0xff]
  %v6753 = vld [vmem:[%s5 + $0x28] sm:$0xff]
  %v6754 = vld [vmem:[%s5 + $0x30] sm:$0xff]
  %v6755 = vld [vmem:[%s5 + $0x38] sm:$0xff]
  %v6756 = vld [vmem:[%s5 + $0x40] sm:$0xff]
  %v6757 = vld [vmem:[%s5 + $0x48] sm:$0xff]
  %v6758 = vld [vmem:[%s5 + $0x50] sm:$0xff]
  %v6759 = vld [vmem:[%s5 + $0x58] sm:$0xff]
  %v6760 = vld [vmem:[%s5 + $0x60] sm:$0xff]
  %v6761 = vld [vmem:[%s5 + $0x68] sm:$0xff]
  %v6762 = vld [vmem:[%s5 + $0x70] sm:$0xff]
  %v6763 = vld [vmem:[%s5 + $0x78] sm:$0xff]
  %v6764 = vld [vmem:[%s5 + $0x80] sm:$0xff]
  %v6765 = vld [vmem:[%s5 + $0x88] sm:$0xff]
  %v6766 = vld [vmem:[%s5 + $0x90] sm:$0xff]
  %v6767 = vld [vmem:[%s5 + $0x98] sm:$0xff]
  %v6768 = vld [vmem:[%s5 + $0xa0] sm:$0xff]
  %v6769 = vld [vmem:[%s5 + $0xa8] sm:$0xff]
  %v6770 = vld [vmem:[%s5 + $0xb0] sm:$0xff]
  %v6771 = vld [vmem:[%s5 + $0xb8] sm:$0xff]
  %v6772 = vld [vmem:[%s5 + $0xc0] sm:$0xff]
  %v6773 = vld [vmem:[%s5 + $0xc8] sm:$0xff]
  %v6774 = vld [vmem:[%s5 + $0xd0] sm:$0xff]
  %v6775 = vld [vmem:[%s5 + $0xd8] sm:$0xff]
  %v6776 = vld [vmem:[%s5 + $0xe0] sm:$0xff]
  %v6777 = vld [vmem:[%s5 + $0xe8] sm:$0xff]
  %v6778 = vld [vmem:[%s5 + $0xf0] sm:$0xff]
  %v6779 = vld [vmem:[%s5 + $0xf8] sm:$0xff]
  %v6780 = vld [vmem:[%s5 + $0x100] sm:$0xff]
  %v6781 = vld [vmem:[%s5 + $0x108] sm:$0xff]
  %v6782 = vld [vmem:[%s5 + $0x110] sm:$0xff]
  %v6783 = vld [vmem:[%s5 + $0x118] sm:$0xff]
  %v6784 = vld [vmem:[%s5 + $0x120] sm:$0xff]
  %v6785 = vld [vmem:[%s5 + $0x128] sm:$0xff]
  %v6786 = vld [vmem:[%s5 + $0x130] sm:$0xff]
  %v6787 = vld [vmem:[%s5 + $0x138] sm:$0xff]
  %v6788 = vld [vmem:[%s5 + $0x140] sm:$0xff]
  %v6789 = vld [vmem:[%s5 + $0x148] sm:$0xff]
  %v6790 = vld [vmem:[%s5 + $0x150] sm:$0xff]
  %v6791 = vld [vmem:[%s5 + $0x158] sm:$0xff]
  %v6792 = vld [vmem:[%s5 + $0x160] sm:$0xff]
  %v6793 = vld [vmem:[%s5 + $0x168] sm:$0xff]
  %v6794 = vld [vmem:[%s5 + $0x170] sm:$0xff]
  %v6795 = vld [vmem:[%s5 + $0x178] sm:$0xff]
  %v6796 = vld [vmem:[%s5 + $0x180] sm:$0xff]
  %v6797 = vld [vmem:[%s5 + $0x188] sm:$0xff]
  %v6798 = vld [vmem:[%s5 + $0x190] sm:$0xff]
  %v6799 = vld [vmem:[%s5 + $0x198] sm:$0xff]
  %v6800 = vld [vmem:[%s5 + $0x1a0] sm:$0xff]
  %v6801 = vld [vmem:[%s5 + $0x1a8] sm:$0xff]
  %v6802 = vld [vmem:[%s5 + $0x1b0] sm:$0xff]
  %v6803 = vld [vmem:[%s5 + $0x1b8] sm:$0xff]
  %v6804 = vld [vmem:[%s5 + $0x1c0] sm:$0xff]
  %v6805 = vld [vmem:[%s5 + $0x1c8] sm:$0xff]
  %v6806 = vld [vmem:[%s5 + $0x1d0] sm:$0xff]
  %v6807 = vld [vmem:[%s5 + $0x1d8] sm:$0xff]
  %v6808 = vld [vmem:[%s5 + $0x1e0] sm:$0xff]
  %v6809 = vld [vmem:[%s5 + $0x1e8] sm:$0xff]
  %v6810 = vld [vmem:[%s5 + $0x1f0] sm:$0xff]
  %v6811 = vld [vmem:[%s5 + $0x1f8] sm:$0xff]
  %v6876 = vunpack.c.l.b16 %v6748
  %v6877 = vunpack.c.h.b16 %v6748
  %v6878 = vunpack.c.l.b16 %v6749
  %v6879 = vunpack.c.h.b16 %v6749
  %v6880 = vunpack.c.l.b16 %v6750
  %v6881 = vunpack.c.h.b16 %v6750
  %v6882 = vunpack.c.l.b16 %v6751
  %v6883 = vunpack.c.h.b16 %v6751
  %v6884 = vunpack.c.l.b16 %v6752
  %v6885 = vunpack.c.h.b16 %v6752
  %v6886 = vunpack.c.l.b16 %v6753
  %v6887 = vunpack.c.h.b16 %v6753
  %v6888 = vunpack.c.l.b16 %v6754
  %v6889 = vunpack.c.h.b16 %v6754
  %v6890 = vunpack.c.l.b16 %v6755
  %v6891 = vunpack.c.h.b16 %v6755
  %v6892 = vunpack.c.l.b16 %v6756
  %v6893 = vunpack.c.h.b16 %v6756
  %v6894 = vunpack.c.l.b16 %v6757
  %v6895 = vunpack.c.h.b16 %v6757
  %v6896 = vunpack.c.l.b16 %v6758
  %v6897 = vunpack.c.h.b16 %v6758
  %v6898 = vunpack.c.l.b16 %v6759
  %v6899 = vunpack.c.h.b16 %v6759
  %v6900 = vunpack.c.l.b16 %v6760
  %v6901 = vunpack.c.h.b16 %v6760
  %v6902 = vunpack.c.l.b16 %v6761
  %v6903 = vunpack.c.h.b16 %v6761
  %v6904 = vunpack.c.l.b16 %v6762
  %v6905 = vunpack.c.h.b16 %v6762
  %v6906 = vunpack.c.l.b16 %v6763
  %v6907 = vunpack.c.h.b16 %v6763
  %v6908 = vunpack.c.l.b16 %v6764
  %v6909 = vunpack.c.h.b16 %v6764
  %v6910 = vunpack.c.l.b16 %v6765
  %v6911 = vunpack.c.h.b16 %v6765
  %v6912 = vunpack.c.l.b16 %v6766
  %v6913 = vunpack.c.h.b16 %v6766
  %v6914 = vunpack.c.l.b16 %v6767
  %v6915 = vunpack.c.h.b16 %v6767
  %v6916 = vunpack.c.l.b16 %v6768
  %v6917 = vunpack.c.h.b16 %v6768
  %v6918 = vunpack.c.l.b16 %v6769
  %v6919 = vunpack.c.h.b16 %v6769
  %v6920 = vunpack.c.l.b16 %v6770
  %v6921 = vunpack.c.h.b16 %v6770
  %v6922 = vunpack.c.l.b16 %v6771
  %v6923 = vunpack.c.h.b16 %v6771
  %v6924 = vunpack.c.l.b16 %v6772
  %v6925 = vunpack.c.h.b16 %v6772
  %v6926 = vunpack.c.l.b16 %v6773
  %v6927 = vunpack.c.h.b16 %v6773
  %v6928 = vunpack.c.l.b16 %v6774
  %v6929 = vunpack.c.h.b16 %v6774
  %v6930 = vunpack.c.l.b16 %v6775
  %v6931 = vunpack.c.h.b16 %v6775
  %v6932 = vunpack.c.l.b16 %v6776
  %v6933 = vunpack.c.h.b16 %v6776
  %v6934 = vunpack.c.l.b16 %v6777
  %v6935 = vunpack.c.h.b16 %v6777
  %v6936 = vunpack.c.l.b16 %v6778
  %v6937 = vunpack.c.h.b16 %v6778
  %v6938 = vunpack.c.l.b16 %v6779
  %v6939 = vunpack.c.h.b16 %v6779
  %v6940 = vunpack.c.l.b16 %v6780
  %v6941 = vunpack.c.h.b16 %v6780
  %v6942 = vunpack.c.l.b16 %v6781
  %v6943 = vunpack.c.h.b16 %v6781
  %v6944 = vunpack.c.l.b16 %v6782
  %v6945 = vunpack.c.h.b16 %v6782
  %v6946 = vunpack.c.l.b16 %v6783
  %v6947 = vunpack.c.h.b16 %v6783
  %v6948 = vunpack.c.l.b16 %v6784
  %v6949 = vunpack.c.h.b16 %v6784
  %v6950 = vunpack.c.l.b16 %v6785
  %v6951 = vunpack.c.h.b16 %v6785
  %v6952 = vunpack.c.l.b16 %v6786
  %v6953 = vunpack.c.h.b16 %v6786
  %v6954 = vunpack.c.l.b16 %v6787
  %v6955 = vunpack.c.h.b16 %v6787
  %v6956 = vunpack.c.l.b16 %v6788
  %v6957 = vunpack.c.h.b16 %v6788
  %v6958 = vunpack.c.l.b16 %v6789
  %v6959 = vunpack.c.h.b16 %v6789
  %v6960 = vunpack.c.l.b16 %v6790
  %v6961 = vunpack.c.h.b16 %v6790
  %v6962 = vunpack.c.l.b16 %v6791
  %v6963 = vunpack.c.h.b16 %v6791
  %v6964 = vunpack.c.l.b16 %v6792
  %v6965 = vunpack.c.h.b16 %v6792
  %v6966 = vunpack.c.l.b16 %v6793
  %v6967 = vunpack.c.h.b16 %v6793
  %v6968 = vunpack.c.l.b16 %v6794
  %v6969 = vunpack.c.h.b16 %v6794
  %v6970 = vunpack.c.l.b16 %v6795
  %v6971 = vunpack.c.h.b16 %v6795
  %v6972 = vunpack.c.l.b16 %v6796
  %v6973 = vunpack.c.h.b16 %v6796
  %v6974 = vunpack.c.l.b16 %v6797
  %v6975 = vunpack.c.h.b16 %v6797
  %v6976 = vunpack.c.l.b16 %v6798
  %v6977 = vunpack.c.h.b16 %v6798
  %v6978 = vunpack.c.l.b16 %v6799
  %v6979 = vunpack.c.h.b16 %v6799
  %v6980 = vunpack.c.l.b16 %v6800
  %v6981 = vunpack.c.h.b16 %v6800
  %v6982 = vunpack.c.l.b16 %v6801
  %v6983 = vunpack.c.h.b16 %v6801
  %v6984 = vunpack.c.l.b16 %v6802
  %v6985 = vunpack.c.h.b16 %v6802
  %v6986 = vunpack.c.l.b16 %v6803
  %v6987 = vunpack.c.h.b16 %v6803
  %v6988 = vunpack.c.l.b16 %v6804
  %v6989 = vunpack.c.h.b16 %v6804
  %v6990 = vunpack.c.l.b16 %v6805
  %v6991 = vunpack.c.h.b16 %v6805
  %v6992 = vunpack.c.l.b16 %v6806
  %v6993 = vunpack.c.h.b16 %v6806
  %v6994 = vunpack.c.l.b16 %v6807
  %v6995 = vunpack.c.h.b16 %v6807
  %v6996 = vunpack.c.l.b16 %v6808
  %v6997 = vunpack.c.h.b16 %v6808
  %v6998 = vunpack.c.l.b16 %v6809
  %v6999 = vunpack.c.h.b16 %v6809
  %v7000 = vunpack.c.l.b16 %v6810
  %v7001 = vunpack.c.h.b16 %v6810
  %v7002 = vunpack.c.l.b16 %v6811
  %v7003 = vunpack.c.h.b16 %v6811
  %v7004 = vpack.c.b16 %v6878, %v6876
  %v7005 = vpack.c.b16 %v6879, %v6877
  %v7006 = vpack.c.b16 %v6882, %v6880
  %v7007 = vpack.c.b16 %v6883, %v6881
  %v7008 = vpack.c.b16 %v6886, %v6884
  %v7009 = vpack.c.b16 %v6887, %v6885
  %v7010 = vpack.c.b16 %v6890, %v6888
  %v7011 = vpack.c.b16 %v6891, %v6889
  %v7012 = vpack.c.b16 %v6894, %v6892
  %v7013 = vpack.c.b16 %v6895, %v6893
  %v7014 = vpack.c.b16 %v6898, %v6896
  %v7015 = vpack.c.b16 %v6899, %v6897
  %v7016 = vpack.c.b16 %v6902, %v6900
  %v7017 = vpack.c.b16 %v6903, %v6901
  %v7018 = vpack.c.b16 %v6906, %v6904
  %v7019 = vpack.c.b16 %v6907, %v6905
  %v7020 = vpack.c.b16 %v6910, %v6908
  %v7021 = vpack.c.b16 %v6911, %v6909
  %v7022 = vpack.c.b16 %v6914, %v6912
  %v7023 = vpack.c.b16 %v6915, %v6913
  %v7024 = vpack.c.b16 %v6918, %v6916
  %v7025 = vpack.c.b16 %v6919, %v6917
  %v7026 = vpack.c.b16 %v6922, %v6920
  %v7027 = vpack.c.b16 %v6923, %v6921
  %v7028 = vpack.c.b16 %v6926, %v6924
  %v7029 = vpack.c.b16 %v6927, %v6925
  %v7030 = vpack.c.b16 %v6930, %v6928
  %v7031 = vpack.c.b16 %v6931, %v6929
  %v7032 = vpack.c.b16 %v6934, %v6932
  %v7033 = vpack.c.b16 %v6935, %v6933
  %v7034 = vpack.c.b16 %v6938, %v6936
  %v7035 = vpack.c.b16 %v6939, %v6937
  %v7036 = vpack.c.b16 %v6942, %v6940
  %v7037 = vpack.c.b16 %v6943, %v6941
  %v7038 = vpack.c.b16 %v6946, %v6944
  %v7039 = vpack.c.b16 %v6947, %v6945
  %v7040 = vpack.c.b16 %v6950, %v6948
  %v7041 = vpack.c.b16 %v6951, %v6949
  %v7042 = vpack.c.b16 %v6954, %v6952
  %v7043 = vpack.c.b16 %v6955, %v6953
  %v7044 = vpack.c.b16 %v6958, %v6956
  %v7045 = vpack.c.b16 %v6959, %v6957
  %v7046 = vpack.c.b16 %v6962, %v6960
  %v7047 = vpack.c.b16 %v6963, %v6961
  %v7048 = vpack.c.b16 %v6966, %v6964
  %v7049 = vpack.c.b16 %v6967, %v6965
  %v7050 = vpack.c.b16 %v6970, %v6968
  %v7051 = vpack.c.b16 %v6971, %v6969
  %v7052 = vpack.c.b16 %v6974, %v6972
  %v7053 = vpack.c.b16 %v6975, %v6973
  %v7054 = vpack.c.b16 %v6978, %v6976
  %v7055 = vpack.c.b16 %v6979, %v6977
  %v7056 = vpack.c.b16 %v6982, %v6980
  %v7057 = vpack.c.b16 %v6983, %v6981
  %v7058 = vpack.c.b16 %v6986, %v6984
  %v7059 = vpack.c.b16 %v6987, %v6985
  %v7060 = vpack.c.b16 %v6990, %v6988
  %v7061 = vpack.c.b16 %v6991, %v6989
  %v7062 = vpack.c.b16 %v6994, %v6992
  %v7063 = vpack.c.b16 %v6995, %v6993
  %v7064 = vpack.c.b16 %v6998, %v6996
  %v7065 = vpack.c.b16 %v6999, %v6997
  %v7066 = vpack.c.b16 %v7002, %v7000
  %v7067 = vpack.c.b16 %v7003, %v7001
  %7132 = vmatpush.bf16.msra.mxu0 %v7018
  %7133 = vmatpush.bf16.msra.mxu0 %v7016
  %7134 = vmatpush.bf16.msra.mxu0 %v7014
  %7135 = vmatpush.bf16.msra.mxu0 %v7012
  %7136 = vmatpush.bf16.msra.mxu0 %v7010
  %7137 = vmatpush.bf16.msra.mxu0 %v7008
  %7138 = vmatpush.bf16.msra.mxu0 %v7006
  %7139 = vmatpush.bf16.msra.mxu0 %v7004
  %7140 = vmatmul.bf16.gmra.mxu0 %v6736
  %v7141 = vpop.f32.mrf.mxu0
  %v7142 = vadd.f32 0.0, %v7141
  %v7143 = vpop.f32.mrf.mxu0
  %v7144 = vadd.f32 0.0, %v7143
  %7145 = vmatmul.bf16.gmra.mxu0 %v6740
  %v7146 = vpop.f32.mrf.mxu0
  %v7147 = vadd.f32 0.0, %v7146
  %v7148 = vpop.f32.mrf.mxu0
  %v7149 = vadd.f32 0.0, %v7148
  %7150 = vmatmul.bf16.gmra.mxu0 %v6744
  %v7151 = vpop.f32.mrf.mxu0
  %v7152 = vadd.f32 0.0, %v7151
  %v7153 = vpop.f32.mrf.mxu0
  %v7154 = vadd.f32 0.0, %v7153
  %7155 = vdwg.mxu0
  %7156 = vmatpush.bf16.msra.mxu0 %v7034
  %7157 = vmatpush.bf16.msra.mxu0 %v7032
  %7158 = vmatpush.bf16.msra.mxu0 %v7030
  %7159 = vmatpush.bf16.msra.mxu0 %v7028
  %7160 = vmatpush.bf16.msra.mxu0 %v7026
  %7161 = vmatpush.bf16.msra.mxu0 %v7024
  %7162 = vmatpush.bf16.msra.mxu0 %v7022
  %7163 = vmatpush.bf16.msra.mxu0 %v7020
  %7164 = vmatmul.bf16.gmra.mxu0 %v6737
  %v7165 = vpop.f32.mrf.mxu0
  %v7166 = vadd.f32 %v7142, %v7165
  %v7167 = vpop.f32.mrf.mxu0
  %v7168 = vadd.f32 %v7144, %v7167
  %7169 = vmatmul.bf16.gmra.mxu0 %v6741
  %v7170 = vpop.f32.mrf.mxu0
  %v7171 = vadd.f32 %v7147, %v7170
  %v7172 = vpop.f32.mrf.mxu0
  %v7173 = vadd.f32 %v7149, %v7172
  %7174 = vmatmul.bf16.gmra.mxu0 %v6745
  %v7175 = vpop.f32.mrf.mxu0
  %v7176 = vadd.f32 %v7152, %v7175
  %v7177 = vpop.f32.mrf.mxu0
  %v7178 = vadd.f32 %v7154, %v7177
  %7179 = vdwg.mxu0
  %7180 = vmatpush.bf16.msra.mxu0 %v7050
  %7181 = vmatpush.bf16.msra.mxu0 %v7048
  %7182 = vmatpush.bf16.msra.mxu0 %v7046
  %7183 = vmatpush.bf16.msra.mxu0 %v7044
  %7184 = vmatpush.bf16.msra.mxu0 %v7042
  %7185 = vmatpush.bf16.msra.mxu0 %v7040
  %7186 = vmatpush.bf16.msra.mxu0 %v7038
  %7187 = vmatpush.bf16.msra.mxu0 %v7036
  %7188 = vmatmul.bf16.gmra.mxu0 %v6738
  %v7189 = vpop.f32.mrf.mxu0
  %v7190 = vadd.f32 %v7166, %v7189
  %v7191 = vpop.f32.mrf.mxu0
  %v7192 = vadd.f32 %v7168, %v7191
  %7193 = vmatmul.bf16.gmra.mxu0 %v6742
  %v7194 = vpop.f32.mrf.mxu0
  %v7195 = vadd.f32 %v7171, %v7194
  %v7196 = vpop.f32.mrf.mxu0
  %v7197 = vadd.f32 %v7173, %v7196
  %7198 = vmatmul.bf16.gmra.mxu0 %v6746
  %v7199 = vpop.f32.mrf.mxu0
  %v7200 = vadd.f32 %v7176, %v7199
  %v7201 = vpop.f32.mrf.mxu0
  %v7202 = vadd.f32 %v7178, %v7201
  %7203 = vdwg.mxu0
  %7204 = vmatpush.bf16.msra.mxu0 %v7066
  %7205 = vmatpush.bf16.msra.mxu0 %v7064
  %7206 = vmatpush.bf16.msra.mxu0 %v7062
  %7207 = vmatpush.bf16.msra.mxu0 %v7060
  %7208 = vmatpush.bf16.msra.mxu0 %v7058
  %7209 = vmatpush.bf16.msra.mxu0 %v7056
  %7210 = vmatpush.bf16.msra.mxu0 %v7054
  %7211 = vmatpush.bf16.msra.mxu0 %v7052
  %7212 = vmatmul.bf16.gmra.mxu0 %v6739
  %v7213 = vpop.f32.mrf.mxu0
  %v7214 = vadd.f32 %v7190, %v7213
  %v7215 = vpop.f32.mrf.mxu0
  %v7216 = vadd.f32 %v7192, %v7215
  %7217 = vmatmul.bf16.gmra.mxu0 %v6743
  %v7218 = vpop.f32.mrf.mxu0
  %v7219 = vadd.f32 %v7195, %v7218
  %v7220 = vpop.f32.mrf.mxu0
  %v7221 = vadd.f32 %v7197, %v7220
  %7222 = vmatmul.bf16.gmra.mxu0 %v6747
  %v7223 = vpop.f32.mrf.mxu0
  %v7224 = vadd.f32 %v7200, %v7223
  %v7225 = vpop.f32.mrf.mxu0
  %v7226 = vadd.f32 %v7202, %v7225
  %7227 = vdwg.mxu0
  %7228 = vmatpush.bf16.msra.mxu0 %v7019
  %7229 = vmatpush.bf16.msra.mxu0 %v7017
  %7230 = vmatpush.bf16.msra.mxu0 %v7015
  %7231 = vmatpush.bf16.msra.mxu0 %v7013
  %7232 = vmatpush.bf16.msra.mxu0 %v7011
  %7233 = vmatpush.bf16.msra.mxu0 %v7009
  %7234 = vmatpush.bf16.msra.mxu0 %v7007
  %7235 = vmatpush.bf16.msra.mxu0 %v7005
  %7236 = vmatmul.bf16.gmra.mxu0 %v6736
  %v7237 = vpop.f32.mrf.mxu0
  %v7238 = vadd.f32 0.0, %v7237
  %v7239 = vpop.f32.mrf.mxu0
  %v7240 = vadd.f32 0.0, %v7239
  %7241 = vmatmul.bf16.gmra.mxu0 %v6740
  %v7242 = vpop.f32.mrf.mxu0
  %v7243 = vadd.f32 0.0, %v7242
  %v7244 = vpop.f32.mrf.mxu0
  %v7245 = vadd.f32 0.0, %v7244
  %7246 = vmatmul.bf16.gmra.mxu0 %v6744
  %v7247 = vpop.f32.mrf.mxu0
  %v7248 = vadd.f32 0.0, %v7247
  %v7249 = vpop.f32.mrf.mxu0
  %v7250 = vadd.f32 0.0, %v7249
  %7251 = vdwg.mxu0
  %7252 = vmatpush.bf16.msra.mxu0 %v7035
  %7253 = vmatpush.bf16.msra.mxu0 %v7033
  %7254 = vmatpush.bf16.msra.mxu0 %v7031
  %7255 = vmatpush.bf16.msra.mxu0 %v7029
  %7256 = vmatpush.bf16.msra.mxu0 %v7027
  %7257 = vmatpush.bf16.msra.mxu0 %v7025
  %7258 = vmatpush.bf16.msra.mxu0 %v7023
  %7259 = vmatpush.bf16.msra.mxu0 %v7021
  %7260 = vmatmul.bf16.gmra.mxu0 %v6737
  %v7261 = vpop.f32.mrf.mxu0
  %v7262 = vadd.f32 %v7238, %v7261
  %v7263 = vpop.f32.mrf.mxu0
  %v7264 = vadd.f32 %v7240, %v7263
  %7265 = vmatmul.bf16.gmra.mxu0 %v6741
  %v7266 = vpop.f32.mrf.mxu0
  %v7267 = vadd.f32 %v7243, %v7266
  %v7268 = vpop.f32.mrf.mxu0
  %v7269 = vadd.f32 %v7245, %v7268
  %7270 = vmatmul.bf16.gmra.mxu0 %v6745
  %v7271 = vpop.f32.mrf.mxu0
  %v7272 = vadd.f32 %v7248, %v7271
  %v7273 = vpop.f32.mrf.mxu0
  %v7274 = vadd.f32 %v7250, %v7273
  %7275 = vdwg.mxu0
  %7276 = vmatpush.bf16.msra.mxu0 %v7051
  %7277 = vmatpush.bf16.msra.mxu0 %v7049
  %7278 = vmatpush.bf16.msra.mxu0 %v7047
  %7279 = vmatpush.bf16.msra.mxu0 %v7045
  %7280 = vmatpush.bf16.msra.mxu0 %v7043
  %7281 = vmatpush.bf16.msra.mxu0 %v7041
  %7282 = vmatpush.bf16.msra.mxu0 %v7039
  %7283 = vmatpush.bf16.msra.mxu0 %v7037
  %7284 = vmatmul.bf16.gmra.mxu0 %v6738
  %v7285 = vpop.f32.mrf.mxu0
  %v7286 = vadd.f32 %v7262, %v7285
  %v7287 = vpop.f32.mrf.mxu0
  %v7288 = vadd.f32 %v7264, %v7287
  %7289 = vmatmul.bf16.gmra.mxu0 %v6742
  %v7290 = vpop.f32.mrf.mxu0
  %v7291 = vadd.f32 %v7267, %v7290
  %v7292 = vpop.f32.mrf.mxu0
  %v7293 = vadd.f32 %v7269, %v7292
  %7294 = vmatmul.bf16.gmra.mxu0 %v6746
  %v7295 = vpop.f32.mrf.mxu0
  %v7296 = vadd.f32 %v7272, %v7295
  %v7297 = vpop.f32.mrf.mxu0
  %v7298 = vadd.f32 %v7274, %v7297
  %7299 = vdwg.mxu0
  %7300 = vmatpush.bf16.msra.mxu0 %v7067
  %7301 = vmatpush.bf16.msra.mxu0 %v7065
  %7302 = vmatpush.bf16.msra.mxu0 %v7063
  %7303 = vmatpush.bf16.msra.mxu0 %v7061
  %7304 = vmatpush.bf16.msra.mxu0 %v7059
  %7305 = vmatpush.bf16.msra.mxu0 %v7057
  %7306 = vmatpush.bf16.msra.mxu0 %v7055
  %7307 = vmatpush.bf16.msra.mxu0 %v7053
  %7308 = vmatmul.bf16.gmra.mxu0 %v6739
  %v7309 = vpop.f32.mrf.mxu0
  %v7310 = vadd.f32 %v7286, %v7309
  %v7311 = vpop.f32.mrf.mxu0
  %v7312 = vadd.f32 %v7288, %v7311
  %7313 = vmatmul.bf16.gmra.mxu0 %v6743
  %v7314 = vpop.f32.mrf.mxu0
  %v7315 = vadd.f32 %v7291, %v7314
  %v7316 = vpop.f32.mrf.mxu0
  %v7317 = vadd.f32 %v7293, %v7316
  %7318 = vmatmul.bf16.gmra.mxu0 %v6747
  %v7319 = vpop.f32.mrf.mxu0
  %v7320 = vadd.f32 %v7296, %v7319
  %v7321 = vpop.f32.mrf.mxu0
  %v7322 = vadd.f32 %v7298, %v7321
  %7323 = vdwg.mxu0
  %v7324 = vpack.c.bf16 %v7310, %v7214
  %v7325 = vpack.c.bf16 %v7312, %v7216
  %v7326 = vpack.c.bf16 %v7315, %v7219
  %v7327 = vpack.c.bf16 %v7317, %v7221
  %v7328 = vpack.c.bf16 %v7320, %v7224
  %v7329 = vpack.c.bf16 %v7322, %v7226
  %v7330 = vld [vmem:[%s6] sm:$0x3]
  %7332 = vst [vmem:[#allocation1] ss:$9 sm:$0xff] %v7330
  %v7333 = vld [vmem:[#allocation1] sm:$0xff]
  %v7334 = vld [vmem:[#allocation1 + $0x9] sm:$0xff]
  %v7335 = vpack.i.b16 %v7333, %v7333
  %v7337 = vperm.slane %v7335, 0
  %v7338 = vpack.i.b16 %v7334, %v7334
  %v7340 = vperm.slane %v7338, 0
  %v7341 = vunpack.c.l.bf16 %v7324
  %v7342 = vunpack.c.h.bf16 %v7324
  %v7343 = vunpack.c.l.bf16 %v7325
  %v7344 = vunpack.c.h.bf16 %v7325
  %v7345 = vunpack.c.l.bf16 %v7326
  %v7346 = vunpack.c.h.bf16 %v7326
  %v7347 = vunpack.c.l.bf16 %v7327
  %v7348 = vunpack.c.h.bf16 %v7327
  %v7349 = vunpack.c.l.bf16 %v7328
  %v7350 = vunpack.c.h.bf16 %v7328
  %v7351 = vunpack.c.l.bf16 %v7329
  %v7352 = vunpack.c.h.bf16 %v7329
  %v7353 = vunpack.c.l.bf16 %v7337
  %v7354 = vunpack.c.l.bf16 %v7340
  %v7355 = vadd.f32 %v7341, %v7353
  %v7356 = vadd.f32 %v7342, %v7354
  %v7357 = vadd.f32 %v7343, %v7353
  %v7358 = vadd.f32 %v7344, %v7354
  %v7359 = vadd.f32 %v7345, %v7353
  %v7360 = vadd.f32 %v7346, %v7354
  %v7361 = vadd.f32 %v7347, %v7353
  %v7362 = vadd.f32 %v7348, %v7354
  %v7363 = vadd.f32 %v7349, %v7353
  %v7364 = vadd.f32 %v7350, %v7354
  %v7365 = vadd.f32 %v7351, %v7353
  %v7366 = vadd.f32 %v7352, %v7354
  %v7367 = vpack.c.bf16 %v7356, %v7355
  %v7368 = vpack.c.bf16 %v7358, %v7357
  %v7369 = vpack.c.bf16 %v7360, %v7359
  %v7370 = vpack.c.bf16 %v7362, %v7361
  %v7371 = vpack.c.bf16 %v7364, %v7363
  %v7372 = vpack.c.bf16 %v7366, %v7365
  %v7373 = vunpack.c.l.bf16 %v7367
  %v7374 = vunpack.c.h.bf16 %v7367
  %v7375 = vunpack.c.l.bf16 %v7368
  %v7376 = vunpack.c.h.bf16 %v7368
  %v7377 = vunpack.c.l.bf16 %v7369
  %v7378 = vunpack.c.h.bf16 %v7369
  %v7379 = vunpack.c.l.bf16 %v7370
  %v7380 = vunpack.c.h.bf16 %v7370
  %v7381 = vunpack.c.l.bf16 %v7371
  %v7382 = vunpack.c.h.bf16 %v7371
  %v7383 = vunpack.c.l.bf16 %v7372
  %v7384 = vunpack.c.h.bf16 %v7372
  %v7385 = vmul.f32 %v7373, 0.20019531
  %v7386 = vmul.f32 %v7374, 0.20019531
  %v7387 = vmul.f32 %v7375, 0.20019531
  %v7388 = vmul.f32 %v7376, 0.20019531
  %v7389 = vmul.f32 %v7377, 0.20019531
  %v7390 = vmul.f32 %v7378, 0.20019531
  %v7391 = vmul.f32 %v7379, 0.20019531
  %v7392 = vmul.f32 %v7380, 0.20019531
  %v7393 = vmul.f32 %v7381, 0.20019531
  %v7394 = vmul.f32 %v7382, 0.20019531
  %v7395 = vmul.f32 %v7383, 0.20019531
  %v7396 = vmul.f32 %v7384, 0.20019531
  %v7397 = vpack.c.bf16 %v7386, %v7385
  %v7398 = vpack.c.bf16 %v7388, %v7387
  %v7399 = vpack.c.bf16 %v7390, %v7389
  %v7400 = vpack.c.bf16 %v7392, %v7391
  %v7401 = vpack.c.bf16 %v7394, %v7393
  %v7402 = vpack.c.bf16 %v7396, %v7395
  %v7403 = vunpack.c.l.bf16 %v7397
  %v7404 = vunpack.c.h.bf16 %v7397
  %v7405 = vunpack.c.l.bf16 %v7398
  %v7406 = vunpack.c.h.bf16 %v7398
  %v7407 = vunpack.c.l.bf16 %v7399
  %v7408 = vunpack.c.h.bf16 %v7399
  %v7409 = vunpack.c.l.bf16 %v7400
  %v7410 = vunpack.c.h.bf16 %v7400
  %v7411 = vunpack.c.l.bf16 %v7401
  %v7412 = vunpack.c.h.bf16 %v7401
  %v7413 = vunpack.c.l.bf16 %v7402
  %v7414 = vunpack.c.h.bf16 %v7402
  %v7415 = vmax.f32 %v7373, %v7403
  %v7416 = vmax.f32 %v7374, %v7404
  %v7417 = vmax.f32 %v7375, %v7405
  %v7418 = vmax.f32 %v7376, %v7406
  %v7419 = vmax.f32 %v7377, %v7407
  %v7420 = vmax.f32 %v7378, %v7408
  %v7421 = vmax.f32 %v7379, %v7409
  %v7422 = vmax.f32 %v7380, %v7410
  %v7423 = vmax.f32 %v7381, %v7411
  %v7424 = vmax.f32 %v7382, %v7412
  %v7425 = vmax.f32 %v7383, %v7413
  %v7426 = vmax.f32 %v7384, %v7414
  %v7427 = vpack.c.bf16 %v7417, %v7415
  %v7428 = vpack.c.bf16 %v7418, %v7416
  %v7429 = vpack.c.bf16 %v7421, %v7419
  %v7430 = vpack.c.bf16 %v7422, %v7420
  %v7431 = vpack.c.bf16 %v7425, %v7423
  %v7432 = vpack.c.bf16 %v7426, %v7424
  %v7433 = vld [vmem:[%s7] sm:$0xf]
  %v7434 = vld [vmem:[%s7 + $0x4] sm:$0xf]
  %v7435 = vld [vmem:[%s7 + $0x8] sm:$0xf]
  %v7436 = vld [vmem:[%s7 + $0xc] sm:$0xf]
  %v7437 = vld [vmem:[%s7 + $0x10] sm:$0xf]
  %v7438 = vld [vmem:[%s7 + $0x14] sm:$0xf]
  %v7439 = vld [vmem:[%s7 + $0x18] sm:$0xf]
  %v7440 = vld [vmem:[%s7 + $0x1c] sm:$0xf]
  %v7441 = vld [vmem:[%s7 + $0x20] sm:$0xf]
  %v7442 = vld [vmem:[%s7 + $0x24] sm:$0xf]
  %v7443 = vld [vmem:[%s7 + $0x28] sm:$0xf]
  %v7444 = vld [vmem:[%s7 + $0x2c] sm:$0xf]
  %v7445 = vld [vmem:[%s7 + $0x30] sm:$0xf]
  %v7446 = vld [vmem:[%s7 + $0x34] sm:$0xf]
  %v7447 = vld [vmem:[%s7 + $0x38] sm:$0xf]
  %v7448 = vld [vmem:[%s7 + $0x3c] sm:$0xf]
  %v7449 = vld [vmem:[%s7 + $0x40] sm:$0xf]
  %v7450 = vld [vmem:[%s7 + $0x44] sm:$0xf]
  %v7451 = vld [vmem:[%s7 + $0x48] sm:$0xf]
  %v7452 = vld [vmem:[%s7 + $0x4c] sm:$0xf]
  %v7453 = vld [vmem:[%s7 + $0x50] sm:$0xf]
  %v7454 = vld [vmem:[%s7 + $0x54] sm:$0xf]
  %v7455 = vld [vmem:[%s7 + $0x58] sm:$0xf]
  %v7456 = vld [vmem:[%s7 + $0x5c] sm:$0xf]
  %v7457 = vld [vmem:[%s7 + $0x60] sm:$0xf]
  %v7458 = vld [vmem:[%s7 + $0x64] sm:$0xf]
  %v7459 = vld [vmem:[%s7 + $0x68] sm:$0xf]
  %v7460 = vld [vmem:[%s7 + $0x6c] sm:$0xf]
  %v7461 = vld [vmem:[%s7 + $0x70] sm:$0xf]
  %v7462 = vld [vmem:[%s7 + $0x74] sm:$0xf]
  %v7463 = vld [vmem:[%s7 + $0x78] sm:$0xf]
  %v7464 = vld [vmem:[%s7 + $0x7c] sm:$0xf]
  %v7465 = vld [vmem:[%s8] sm:$0x1]
  %v7467 = vperm.slane %v7465, 0
  %v7501 = vunpack.c.l.b16 %v7433
  %v7502 = vunpack.c.l.b16 %v7434
  %v7503 = vunpack.c.l.b16 %v7435
  %v7504 = vunpack.c.l.b16 %v7436
  %v7505 = vunpack.c.l.b16 %v7437
  %v7506 = vunpack.c.l.b16 %v7438
  %v7507 = vunpack.c.l.b16 %v7439
  %v7508 = vunpack.c.l.b16 %v7440
  %v7509 = vunpack.c.l.b16 %v7441
  %v7510 = vunpack.c.l.b16 %v7442
  %v7511 = vunpack.c.l.b16 %v7443
  %v7512 = vunpack.c.l.b16 %v7444
  %v7513 = vunpack.c.l.b16 %v7445
  %v7514 = vunpack.c.l.b16 %v7446
  %v7515 = vunpack.c.l.b16 %v7447
  %v7516 = vunpack.c.l.b16 %v7448
  %v7517 = vunpack.c.l.b16 %v7449
  %v7518 = vunpack.c.l.b16 %v7450
  %v7519 = vunpack.c.l.b16 %v7451
  %v7520 = vunpack.c.l.b16 %v7452
  %v7521 = vunpack.c.l.b16 %v7453
  %v7522 = vunpack.c.l.b16 %v7454
  %v7523 = vunpack.c.l.b16 %v7455
  %v7524 = vunpack.c.l.b16 %v7456
  %v7525 = vunpack.c.l.b16 %v7457
  %v7526 = vunpack.c.l.b16 %v7458
  %v7527 = vunpack.c.l.b16 %v7459
  %v7528 = vunpack.c.l.b16 %v7460
  %v7529 = vunpack.c.l.b16 %v7461
  %v7530 = vunpack.c.l.b16 %v7462
  %v7531 = vunpack.c.l.b16 %v7463
  %v7532 = vunpack.c.l.b16 %v7464
  %v7533 = vpack.c.b16 %v7502, %v7501
  %v7534 = vpack.c.b16 %v7504, %v7503
  %v7535 = vpack.c.b16 %v7506, %v7505
  %v7536 = vpack.c.b16 %v7508, %v7507
  %v7537 = vpack.c.b16 %v7510, %v7509
  %v7538 = vpack.c.b16 %v7512, %v7511
  %v7539 = vpack.c.b16 %v7514, %v7513
  %v7540 = vpack.c.b16 %v7516, %v7515
  %v7541 = vpack.c.b16 %v7518, %v7517
  %v7542 = vpack.c.b16 %v7520, %v7519
  %v7543 = vpack.c.b16 %v7522, %v7521
  %v7544 = vpack.c.b16 %v7524, %v7523
  %v7545 = vpack.c.b16 %v7526, %v7525
  %v7546 = vpack.c.b16 %v7528, %v7527
  %v7547 = vpack.c.b16 %v7530, %v7529
  %v7548 = vpack.c.b16 %v7532, %v7531
  %7565 = vmatpush.bf16.msra.mxu0 %v7540
  %7566 = vmatpush.bf16.msra.mxu0 %v7539
  %7567 = vmatpush.bf16.msra.mxu0 %v7538
  %7568 = vmatpush.bf16.msra.mxu0 %v7537
  %7569 = vmatpush.bf16.msra.mxu0 %v7536
  %7570 = vmatpush.bf16.msra.mxu0 %v7535
  %7571 = vmatpush.bf16.msra.mxu0 %v7534
  %7572 = vmatpush.bf16.msra.mxu0 %v7533
  %7573 = vmatmul.bf16.gmra.mxu0 %v7427
  %v7574 = vpop.f32.mrf.mxu0
  %v7575 = vadd.f32 %v7467, %v7574
  %v7576 = vpop.f32.mrf.mxu0
  %v7577 = vadd.f32 %v7467, %v7576
  %7578 = vmatmul.bf16.gmra.mxu0 %v7429
  %v7579 = vpop.f32.mrf.mxu0
  %v7580 = vadd.f32 %v7467, %v7579
  %v7581 = vpop.f32.mrf.mxu0
  %v7582 = vadd.f32 %v7467, %v7581
  %7583 = vmatmul.bf16.gmra.mxu0 %v7431
  %v7584 = vpop.f32.mrf.mxu0
  %v7585 = vadd.f32 %v7467, %v7584
  %v7586 = vpop.f32.mrf.mxu0
  %v7587 = vadd.f32 %v7467, %v7586
  %7588 = vdwg.mxu0
  %7589 = vmatpush.bf16.msra.mxu0 %v7548
  %7590 = vmatpush.bf16.msra.mxu0 %v7547
  %7591 = vmatpush.bf16.msra.mxu0 %v7546
  %7592 = vmatpush.bf16.msra.mxu0 %v7545
  %7593 = vmatpush.bf16.msra.mxu0 %v7544
  %7594 = vmatpush.bf16.msra.mxu0 %v7543
  %7595 = vmatpush.bf16.msra.mxu0 %v7542
  %7596 = vmatpush.bf16.msra.mxu0 %v7541
  %7597 = vmatmul.bf16.gmra.mxu0 %v7428
  %v7598 = vpop.f32.mrf.mxu0
  %v7599 = vadd.f32 %v7575, %v7598
  %v7600 = vpop.f32.mrf.mxu0
  %v7601 = vadd.f32 %v7577, %v7600
  %7602 = vmatmul.bf16.gmra.mxu0 %v7430
  %v7603 = vpop.f32.mrf.mxu0
  %v7604 = vadd.f32 %v7580, %v7603
  %v7605 = vpop.f32.mrf.mxu0
  %v7606 = vadd.f32 %v7582, %v7605
  %7607 = vmatmul.bf16.gmra.mxu0 %v7432
  %v7608 = vpop.f32.mrf.mxu0
  %v7609 = vadd.f32 %v7585, %v7608
  %v7610 = vpop.f32.mrf.mxu0
  %v7611 = vadd.f32 %v7587, %v7610
  %7612 = vdwg.mxu0
  %v7613 = vxor.u32 %v7599, 2147483648
  %v7614 = vxor.u32 %v7601, 2147483648
  %v7615 = vxor.u32 %v7604, 2147483648
  %v7616 = vxor.u32 %v7606, 2147483648
  %v7617 = vxor.u32 %v7609, 2147483648
  %v7618 = vxor.u32 %v7611, 2147483648
  %v7619 = vmul.f32 %v7613, 1.442695
  %v7620 = vpow.pop %v7619
  %v7621 = vmul.f32 %v7614, 1.442695
  %v7622 = vpow.pop %v7621
  %v7623 = vmul.f32 %v7615, 1.442695
  %v7624 = vpow.pop %v7623
  %v7625 = vmul.f32 %v7616, 1.442695
  %v7626 = vpow.pop %v7625
  %v7627 = vmul.f32 %v7617, 1.442695
  %v7628 = vpow.pop %v7627
  %v7629 = vmul.f32 %v7618, 1.442695
  %v7630 = vpow.pop %v7629
  %v7631 = vadd.f32 %v7620, 1.0
  %v7632 = vadd.f32 %v7622, 1.0
  %v7633 = vadd.f32 %v7624, 1.0
  %v7634 = vadd.f32 %v7626, 1.0
  %v7635 = vadd.f32 %v7628, 1.0
  %v7636 = vadd.f32 %v7630, 1.0
  %v7637 = vrcp.pop %v7631
  %v7638 = vmul.f32 %v7631, %v7637
  %v7639 = vsub.f32 1.0, %v7638
  %v7640 = vmul.f32 %v7637, %v7639
  %v7641 = vadd.f32 %v7637, %v7640
  %vm7642 = vweird.f32 %v7631
  %vm7643 = vweird.f32 %v7637
  %vm7644 = vmor %vm7642, %vm7643
  %v7645 = vsel %vm7644, %v7637, %v7641
  %v7646 = vand.u32 2147483647, %v7631
  %vm7647 = vcmp.eq.f32.partialorder %v7646, 8.507059e+37
  %v7648 = vand.u32 %v7631, 2147483648
  %v7649 = vor.u32 1.1754944e-38, %v7648
  %v7650 = vsel %vm7647, %v7649, %v7645
  %v7651 = vmul.f32 1.0, %v7650
  %v7652 = vrcp.pop %v7632
  %v7653 = vmul.f32 %v7632, %v7652
  %v7654 = vsub.f32 1.0, %v7653
  %v7655 = vmul.f32 %v7652, %v7654
  %v7656 = vadd.f32 %v7652, %v7655
  %vm7657 = vweird.f32 %v7632
  %vm7658 = vweird.f32 %v7652
  %vm7659 = vmor %vm7657, %vm7658
  %v7660 = vsel %vm7659, %v7652, %v7656
  %v7661 = vand.u32 2147483647, %v7632
  %vm7662 = vcmp.eq.f32.partialorder %v7661, 8.507059e+37
  %v7663 = vand.u32 %v7632, 2147483648
  %v7664 = vor.u32 1.1754944e-38, %v7663
  %v7665 = vsel %vm7662, %v7664, %v7660
  %v7666 = vmul.f32 1.0, %v7665
  %v7667 = vrcp.pop %v7633
  %v7668 = vmul.f32 %v7633, %v7667
  %v7669 = vsub.f32 1.0, %v7668
  %v7670 = vmul.f32 %v7667, %v7669
  %v7671 = vadd.f32 %v7667, %v7670
  %vm7672 = vweird.f32 %v7633
  %vm7673 = vweird.f32 %v7667
  %vm7674 = vmor %vm7672, %vm7673
  %v7675 = vsel %vm7674, %v7667, %v7671
  %v7676 = vand.u32 2147483647, %v7633
  %vm7677 = vcmp.eq.f32.partialorder %v7676, 8.507059e+37
  %v7678 = vand.u32 %v7633, 2147483648
  %v7679 = vor.u32 1.1754944e-38, %v7678
  %v7680 = vsel %vm7677, %v7679, %v7675
  %v7681 = vmul.f32 1.0, %v7680
  %v7682 = vrcp.pop %v7634
  %v7683 = vmul.f32 %v7634, %v7682
  %v7684 = vsub.f32 1.0, %v7683
  %v7685 = vmul.f32 %v7682, %v7684
  %v7686 = vadd.f32 %v7682, %v7685
  %vm7687 = vweird.f32 %v7634
  %vm7688 = vweird.f32 %v7682
  %vm7689 = vmor %vm7687, %vm7688
  %v7690 = vsel %vm7689, %v7682, %v7686
  %v7691 = vand.u32 2147483647, %v7634
  %vm7692 = vcmp.eq.f32.partialorder %v7691, 8.507059e+37
  %v7693 = vand.u32 %v7634, 2147483648
  %v7694 = vor.u32 1.1754944e-38, %v7693
  %v7695 = vsel %vm7692, %v7694, %v7690
  %v7696 = vmul.f32 1.0, %v7695
  %v7697 = vrcp.pop %v7635
  %v7698 = vmul.f32 %v7635, %v7697
  %v7699 = vsub.f32 1.0, %v7698
  %v7700 = vmul.f32 %v7697, %v7699
  %v7701 = vadd.f32 %v7697, %v7700
  %vm7702 = vweird.f32 %v7635
  %vm7703 = vweird.f32 %v7697
  %vm7704 = vmor %vm7702, %vm7703
  %v7705 = vsel %vm7704, %v7697, %v7701
  %v7706 = vand.u32 2147483647, %v7635
  %vm7707 = vcmp.eq.f32.partialorder %v7706, 8.507059e+37
  %v7708 = vand.u32 %v7635, 2147483648
  %v7709 = vor.u32 1.1754944e-38, %v7708
  %v7710 = vsel %vm7707, %v7709, %v7705
  %v7711 = vmul.f32 1.0, %v7710
  %v7712 = vrcp.pop %v7636
  %v7713 = vmul.f32 %v7636, %v7712
  %v7714 = vsub.f32 1.0, %v7713
  %v7715 = vmul.f32 %v7712, %v7714
  %v7716 = vadd.f32 %v7712, %v7715
  %vm7717 = vweird.f32 %v7636
  %vm7718 = vweird.f32 %v7712
  %vm7719 = vmor %vm7717, %vm7718
  %v7720 = vsel %vm7719, %v7712, %v7716
  %v7721 = vand.u32 2147483647, %v7636
  %vm7722 = vcmp.eq.f32.partialorder %v7721, 8.507059e+37
  %v7723 = vand.u32 %v7636, 2147483648
  %v7724 = vor.u32 1.1754944e-38, %v7723
  %v7725 = vsel %vm7722, %v7724, %v7720
  %v7726 = vmul.f32 1.0, %v7725
  %7727 = vst [vmem:[%s9] sm:$0xff] %v7651
  %7728 = vst [vmem:[%s9 + $0x8] sm:$0xff] %v7666
  %7729 = vst [vmem:[%s9 + $0x10] sm:$0xff] %v7681
  %7730 = vst [vmem:[%s9 + $0x18] sm:$0xff] %v7696
  %7731 = vst [vmem:[%s9 + $0x20] sm:$0xff] %v7711
  %7732 = vst [vmem:[%s9 + $0x28] sm:$0xff] %v7726
  // Predicated region
  $region38: #{_discriminator_forward.1} parent=0 // pred_check
    _
  $region39: #{_discriminator_forward.1} parent=0 // pred_check_branch
    %7734 = sbr.rel (0) target = $region41
  $region40: #{_discriminator_forward.1} parent=0 // pred_region
    _
  $region41: #{_discriminator_forward.1} parent=0 // pred_fallthru
    _
  // Predicated region
  $region42: #{_discriminator_forward.1} parent=0 // pred_check
    _
  $region43: #{_discriminator_forward.1} parent=0 // pred_check_branch
    %7736 = sbr.rel (0) target = $region45
  $region44: #{_discriminator_forward.1} parent=0 // pred_region
    _
  $region45: #{_discriminator_forward.1} parent=0 // pred_fallthru
    _

</llo_original>
